<compile_context>
chip_gen: v5e
topology: v5e:2x2
jax: 0.10.0
libtpu: 0.0.40
codegen_flags: <defaults>
</compile_context>

<pallas_src>
import functools

import jax
import jax.numpy as jnp
from jax.experimental import pallas as pl
from jax.experimental.pallas import tpu as pltpu


def _round_up(x, m):
    return ((x + m - 1) // m) * m


_VMEM_LIMIT = 32 * 1024 * 1024  # every per-step buffer budget below is << this


# ----------------------------------------------------------------------------
# Pallas kernels
# ----------------------------------------------------------------------------
def matmul_bias_kernel(x_ref, w_ref, b_ref, o_ref, *, relu):
    """One (tm, N) output tile; K fully resident (single step)."""
    y = jnp.dot(x_ref[...], w_ref[...], preferred_element_type=jnp.float32)
    y = y + b_ref[...]                       # (tm, N) + (1, N) broadcast
    if relu:
        y = jnp.maximum(y, 0.0)
    o_ref[...] = y.astype(o_ref.dtype)


def conv2_s2d_kernel(x_ref, w_ref, b_ref, o_ref):
    """Implicit-im2col conv2 (5x5, stride 2) + ReLU.

    The input is the conv1 output in space-to-depth layout, so the stride-2
    conv is a 3x3 stride-1 conv over 256 channels; all 9 taps are accumulated
    from a VMEM-resident slab with aligned slices feeding the MXU.
      x_ref: (tile_b, 224, 256) bf16   224 = 14 hb-rows x 16 wb-cols (2 pad cols)
      w_ref: (9, 256, 64) bf16         tap index = 3*qh + qw
      b_ref: (1, 64) f32
      o_ref: (tile_b, 12, 12, 64) bf16
    """
    tile_b = x_ref.shape[0]
    bias = b_ref[...]
    for b in range(tile_b):
        acc = jnp.zeros((12, 12, 64), jnp.float32)
        for qh in range(3):
            for qw in range(3):
                lhs = x_ref[b, qh * 16:qh * 16 + 192, :]        # (192, 256)
                full = jnp.dot(lhs, w_ref[3 * qh + qw],
                               preferred_element_type=jnp.float32)
                full = full.reshape(12, 16, 64)                 # (i, wb, co)
                acc = acc + full[:, qw:qw + 12, :]              # out col j = wb - qw
        y = jnp.maximum(acc + bias, 0.0)
        o_ref[b] = y.astype(o_ref.dtype)


def head_kernel(x_ref, w1_ref, b1_ref, w2_ref, b2_ref, o_ref, acc_ref, *,
                n_classes):
    """fc1 (K split over grid axis 1) + ReLU + fc2 + log_softmax epilogue."""
    k = pl.program_id(1)

    @pl.when(k == 0)
    def _():
        acc_ref[...] = jnp.zeros_like(acc_ref)

    acc_ref[...] += jnp.dot(x_ref[...], w1_ref[...],
                            preferred_element_type=jnp.float32)

    @pl.when(k == pl.num_programs(1) - 1)
    def _():
        h = jnp.maximum(acc_ref[...] + b1_ref[...], 0.0)          # fc1 + ReLU
        logits = jnp.dot(h.astype(w2_ref.dtype), w2_ref[...],
                         preferred_element_type=jnp.float32) + b2_ref[...]
        col = jax.lax.broadcasted_iota(jnp.int32, logits.shape, 1)
        logits = jnp.where(col < n_classes, logits, -1e30)        # mask padding
        m = jnp.max(logits, axis=-1, keepdims=True)
        s = logits - m
        lse = jnp.log(jnp.sum(jnp.exp(s), axis=-1, keepdims=True))
        o_ref[...] = (s - lse).astype(o_ref.dtype)


# ----------------------------------------------------------------------------
# Wrappers
# ----------------------------------------------------------------------------
def matmul_bias(x, w, b, *, relu, out_dtype=jnp.float32, tm=2048):
    """y = (relu?)(x @ w + b); bf16 operands, f32 accumulation, resident K."""
    M, K = x.shape
    Kw, N = w.shape
    assert K == Kw and b.shape == (N,)
    assert N <= 128, "helper keeps the full N resident (enough for this model)"

    tm = max(8, min(_round_up(tm, 8), _round_up(M, 8)))
    Mp = _round_up(M, tm)
    Kp = _round_up(K, 8) if K <= 128 else _round_up(K, 128)

    xp = jnp.pad(x, ((0, Mp - M), (0, Kp - K))).astype(jnp.bfloat16)
    wp = jnp.pad(w, ((0, Kp - K), (0, 0))).astype(jnp.bfloat16)
    bp = b.astype(jnp.float32).reshape(1, N)

    out = pl.pallas_call(
        functools.partial(matmul_bias_kernel, relu=relu),
        out_shape=jax.ShapeDtypeStruct((Mp, N), out_dtype),
        grid_spec=pltpu.PrefetchScalarGridSpec(
            num_scalar_prefetch=0,
            grid=(Mp // tm,),
            in_specs=[
                pl.BlockSpec((tm, Kp), lambda i: (i, 0)),
                pl.BlockSpec((Kp, N), lambda i: (0, 0)),
                pl.BlockSpec((1, N), lambda i: (0, 0)),
            ],
            out_specs=pl.BlockSpec((tm, N), lambda i: (i, 0)),
        ),
        compiler_params=pltpu.CompilerParams(
            dimension_semantics=("parallel",),
            vmem_limit_bytes=_VMEM_LIMIT,
        ),
    )(xp, wp, bp)
    return out[:M, :]


def conv2_s2d(x2, w3, b):
    """relu(conv2(.)) from the space-to-depth conv1 output.

    x2: (N, 224, 256) bf16 (224 = 14 rows x 16 cols, last 2 cols are padding)
    w3: (9, 256, 64) bf16 equivalent 3x3 weights; b: (64,) bias.
    Returns (N, 12, 12, 64) bf16.
    """
    n = x2.shape[0]
    tile_b = next(t for t in (8, 4, 2, 1) if n % t == 0)
    bp = b.astype(jnp.float32).reshape(1, 64)
    return pl.pallas_call(
        conv2_s2d_kernel,
        out_shape=jax.ShapeDtypeStruct((n, 12, 12, 64), jnp.bfloat16),
        grid_spec=pltpu.PrefetchScalarGridSpec(
            num_scalar_prefetch=0,
            grid=(n // tile_b,),
            in_specs=[
                pl.BlockSpec((tile_b, 224, 256), lambda i: (i, 0, 0)),
                pl.BlockSpec((9, 256, 64), lambda i: (0, 0, 0)),
                pl.BlockSpec((1, 64), lambda i: (0, 0)),
            ],
            out_specs=pl.BlockSpec((tile_b, 12, 12, 64), lambda i: (i, 0, 0, 0)),
        ),
        compiler_params=pltpu.CompilerParams(
            dimension_semantics=("parallel",),
            vmem_limit_bytes=_VMEM_LIMIT,
        ),
    )(x2, w3, bp)


def fc_head(x, w1, b1, w2, b2, *, tm=256, tk=3072):
    """log_softmax(relu(x @ w1 + b1) @ w2 + b2) fused in one kernel.

    Grid = (M tiles ["parallel"], K reduction steps ["arbitrary"]).
    Small batch (Mp <= 128): whole K resident, single reduction step.
    """
    M, K = x.shape
    H = w1.shape[1]
    N = w2.shape[1]
    assert w1.shape[0] == K and w2.shape[0] == H and H <= 128

    Hp = _round_up(H, 128)
    Np = _round_up(N, 128)
    Kp = _round_up(K, 128)
    Mp = _round_up(M, 8)
    if Mp <= 128:
        tm = Mp
        tk = Kp                              # K fully resident, one k step
    else:
        tm = min(tm, Mp)
        Mp = _round_up(Mp, tm)
        if Kp % tk:
            tk = Kp                          # fallback: whole K resident
    kt = Kp // tk

    xp = jnp.pad(x, ((0, Mp - M), (0, Kp - K))).astype(jnp.bfloat16)
    w1p = jnp.pad(w1, ((0, Kp - K), (0, Hp - H))).astype(jnp.bfloat16)
    b1p = jnp.pad(b1, (0, Hp - H)).astype(jnp.float32).reshape(1, Hp)
    w2p = jnp.pad(w2, ((0, Hp - H), (0, Np - N))).astype(jnp.bfloat16)
    b2p = jnp.pad(b2, (0, Np - N)).astype(jnp.float32).reshape(1, Np)

    out = pl.pallas_call(
        functools.partial(head_kernel, n_classes=N),
        out_shape=jax.ShapeDtypeStruct((Mp, Np), jnp.float32),
        grid_spec=pltpu.PrefetchScalarGridSpec(
            num_scalar_prefetch=0,
            grid=(Mp // tm, kt),
            in_specs=[
                pl.BlockSpec((tm, tk), lambda m, k: (m, k)),
                pl.BlockSpec((tk, Hp), lambda m, k: (k, 0)),
                pl.BlockSpec((1, Hp), lambda m, k: (0, 0)),
                pl.BlockSpec((Hp, Np), lambda m, k: (0, 0)),
                pl.BlockSpec((1, Np), lambda m, k: (0, 0)),
            ],
            out_specs=pl.BlockSpec((tm, Np), lambda m, k: (m, 0)),
            scratch_shapes=[pltpu.VMEM((tm, Hp), jnp.float32)],
        ),
        compiler_params=pltpu.CompilerParams(
            dimension_semantics=("parallel", "arbitrary"),
            vmem_limit_bytes=_VMEM_LIMIT,
        ),
    )(xp, w1p, b1p, w2p, b2p)
    return out[:M, :N]


# ----------------------------------------------------------------------------
# XLA glue (cheap, no Pallas equivalent needed)
# ----------------------------------------------------------------------------
def im2col_nhwc(x, k, stride, pad):
    """(N, Ho, Wo, k*k*C) patches in (kh, kw, cin) channel order."""
    n, h, w, c = x.shape
    xp = jnp.pad(x, ((0, 0), (pad, pad), (pad, pad), (0, 0)))
    ho = (h + 2 * pad - k) // stride + 1
    wo = (w + 2 * pad - k) // stride + 1
    cols = []
    for i in range(k):
        for j in range(k):
            cols.append(xp[:, i:i + stride * ho:stride,
                           j:j + stride * wo:stride, :])
    return jnp.concatenate(cols, axis=-1)


# ----------------------------------------------------------------------------
# Model
# ----------------------------------------------------------------------------
def init_params(key):
    ks = jax.random.split(key, 8)
    return {
        # PyTorch conv weight layout: (Cout, Cin, Kh, Kw)
        "conv1_w": 0.05 * jax.random.normal(ks[0], (64, 1, 5, 5), jnp.float32),
        "conv1_b": 0.05 * jax.random.normal(ks[1], (64,), jnp.float32),
        "conv2_w": 0.05 * jax.random.normal(ks[2], (64, 64, 5, 5), jnp.float32),
        "conv2_b": 0.05 * jax.random.normal(ks[3], (64,), jnp.float32),
        # PyTorch linear weight layout: (out_features, in_features)
        "fc1_w": 0.02 * jax.random.normal(ks[4], (128, 9216), jnp.float32),
        "fc1_b": 0.02 * jax.random.normal(ks[5], (128,), jnp.float32),
        "fc2_w": 0.05 * jax.random.normal(ks[6], (10, 128), jnp.float32),
        "fc2_b": 0.05 * jax.random.normal(ks[7], (10,), jnp.float32),
    }


def prepare_params(params):
    """One-time weight re-layouts (hoisted out of the forward pass)."""
    # conv1: (kh,kw,ci,co) -> (25, 64), then block-diagonal doubled so one GEMM
    # row computes two horizontally adjacent output pixels (128 lane-dense cols).
    w25 = jnp.transpose(params["conv1_w"], (2, 3, 1, 0)).reshape(25, 64)
    z = jnp.zeros((25, 64), w25.dtype)
    w1d = jnp.concatenate([jnp.concatenate([w25, z], axis=1),
                           jnp.concatenate([z, w25], axis=1)], axis=0)  # (50,128)
    b1d = jnp.concatenate([params["conv1_b"], params["conv1_b"]])       # (128,)

    # conv2: 5x5/stride-2 kernel -> equivalent 3x3/stride-1 kernel over the
    # space-to-depth input; channel order (hp, wp, ci), tap index 3*qh + qw.
    w2 = jnp.pad(params["conv2_w"], ((0, 0), (0, 0), (0, 1), (0, 1)))   # (64,64,6,6)
    w2 = w2.reshape(64, 64, 3, 2, 3, 2)                                 # co,ci,qh,ph,qw,pw
    w2 = jnp.transpose(w2, (2, 4, 3, 5, 1, 0))                          # qh,qw,ph,pw,ci,co
    w3 = w2.reshape(9, 256, 64).astype(jnp.bfloat16)

    # fc1 rows reordered from PyTorch (c, h, w) flatten to our (h, w, c) flatten,
    # so the forward pass can flatten the conv2 output directly (no transpose).
    fc1 = params["fc1_w"].reshape(128, 64, 12, 12)
    fc1 = jnp.transpose(fc1, (0, 2, 3, 1)).reshape(128, 9216)

    return {
        "conv1_w": w1d.astype(jnp.bfloat16),
        "conv1_b": b1d.astype(jnp.float32),
        "conv2_w3": w3,
        "conv2_b": params["conv2_b"].astype(jnp.float32),
        "fc1_w": fc1.T.astype(jnp.bfloat16),            # (9216, 128)
        "fc1_b": params["fc1_b"].astype(jnp.float32),
        "fc2_w": params["fc2_w"].T.astype(jnp.bfloat16),  # (128, 10)
        "fc2_b": params["fc2_b"].astype(jnp.float32),
    }


def model_a_forward(x_nchw, p):
    n = x_nchw.shape[0]
    x = jnp.transpose(x_nchw, (0, 2, 3, 1))                      # NCHW -> NHWC

    # conv1: Conv2d(1, 64, 5, 1, 2) + ReLU as one GEMM whose rows/columns are
    # arranged so the output lands directly in space-to-depth layout, 128-wide.
    pt = im2col_nhwc(x, 5, 1, 2)                                 # (N,28,28,25)
    pt = pt.reshape(n, 14, 2, 14, 2, 25)                         # n,hb,hp,wb,wp,tap
    pt = jnp.transpose(pt, (0, 1, 3, 2, 4, 5))                   # n,hb,wb,hp,wp,tap
    pt = pt.reshape(n, 14, 14, 2, 50)                            # cols = (wp, tap)
    pt = jnp.pad(pt, ((0, 0), (0, 0), (0, 2), (0, 0), (0, 0)))   # wb 14 -> 16
    pt = pt.reshape(n * 14 * 16 * 2, 50)                         # rows = (n,hb,wb,hp)
    y = matmul_bias(pt, p["conv1_w"], p["conv1_b"], relu=True,
                    out_dtype=jnp.bfloat16, tm=4096)             # (448n, 128)
    x2 = y.reshape(n, 224, 256)                                  # s2d conv1 output

    # conv2: Conv2d(64, 64, 5, 2, 0) + ReLU, implicit-im2col Pallas kernel.
    y = conv2_s2d(x2, p["conv2_w3"], p["conv2_b"])               # (n,12,12,64)

    # flatten in (h, w, c) order; fc1 weight rows were permuted to match.
    xf = y.reshape(n, 12 * 12 * 64)

    # Dropout2d(p=0.25) / F.dropout: identity at inference.
    return fc_head(xf, p["fc1_w"], p["fc1_b"], p["fc2_w"], p["fc2_b"])  # (n, 10)


# ----------------------------------------------------------------------------
# Pure-JAX reference (float32) for a correctness check
# ----------------------------------------------------------------------------
def reference_forward(x_nchw, params):
    n = x_nchw.shape[0]
    x = jnp.transpose(x_nchw, (0, 2, 3, 1))
    w1 = jnp.transpose(params["conv1_w"], (2, 3, 1, 0))
    y = jax.lax.conv_general_dilated(x, w1, (1, 1), ((2, 2), (2, 2)),
                                     dimension_numbers=("NHWC", "HWIO", "NHWC"))
    y = jnp.maximum(y + params["conv1_b"], 0.0)
    w2 = jnp.transpose(params["conv2_w"], (2, 3, 1, 0))
    y = jax.lax.conv_general_dilated(y, w2, (2, 2), ((0, 0), (0, 0)),
                                     dimension_numbers=("NHWC", "HWIO", "NHWC"))
    y = jnp.maximum(y + params["conv2_b"], 0.0)
    y = jnp.transpose(y, (0, 3, 1, 2)).reshape(n, -1)            # PyTorch flatten
    y = jnp.maximum(y @ params["fc1_w"].T + params["fc1_b"], 0.0)
    y = y @ params["fc2_w"].T + params["fc2_b"]
    return jax.nn.log_softmax(y, axis=-1)


# ----------------------------------------------------------------------------
if __name__ == "__main__":
    key = jax.random.PRNGKey(0)
    pkey, xkey = jax.random.split(key)
    params = init_params(pkey)
    prepared = prepare_params(params)          # hoisted once, reused per call

    # MNIST-shaped input (fc1 in_features=9216 forces 1x28x28); small batch=2.
    x = jax.random.normal(xkey, (2, 1, 28, 28), jnp.float32)

    fwd = jax.jit(model_a_forward)
    out = jax.block_until_ready(fwd(x, prepared))

    assert out.shape == (2, 10), out.shape
    assert bool(jnp.all(jnp.isfinite(out)))
    # log_softmax rows exp-sum to 1
    assert bool(jnp.allclose(jnp.sum(jnp.exp(out), axis=1), 1.0, atol=1e-3))
    # compare against float32 reference (bf16 matmul operands => ~1e-2 level diffs)
    ref = reference_forward(x, params)
    max_err = float(jnp.max(jnp.abs(out - ref)))
    assert max_err < 1e-1, f"max |diff| vs reference = {max_err}"
    print("KERNEL_OK")
</pallas_src>

<mosaic_0001>
module attributes {stable_mosaic.version = 11 : i64} {
  func.func @matmul_bias_kernel(%arg0: i32, %arg1: memref<896x56xbf16, #tpu.memory_space<vmem>>, %arg2: memref<56x128xbf16, #tpu.memory_space<vmem>>, %arg3: memref<1x128xf32, #tpu.memory_space<vmem>>, %arg4: memref<896x128xbf16, #tpu.memory_space<vmem>>) attributes {dimension_semantics = [#tpu.dimension_semantics<parallel>], iteration_bounds = array<i64: 1>, scalar_prefetch = 0 : i64, scratch_operands = 0 : i64, tpu.core_type = #tpu.core_type<tc>, window_params = [{transform_indices = @transform_0, window_bounds = array<i64: 896, 56>}, {pipeline_mode = #tpu.pipeline_mode<synchronous>, transform_indices = @transform_1, window_bounds = array<i64: 56, 128>}, {pipeline_mode = #tpu.pipeline_mode<synchronous>, transform_indices = @transform_2, window_bounds = array<i64: 1, 128>}, {transform_indices = @transform_3, window_bounds = array<i64: 896, 128>}]} {
    %c0 = arith.constant 0 : index
    %c0_0 = arith.constant 0 : index
    %0 = vector.load %arg1[%c0, %c0_0] : memref<896x56xbf16, #tpu.memory_space<vmem>>, vector<896x56xbf16>
    %c0_1 = arith.constant 0 : index
    %c0_2 = arith.constant 0 : index
    %1 = vector.load %arg2[%c0_1, %c0_2] : memref<56x128xbf16, #tpu.memory_space<vmem>>, vector<56x128xbf16>
    %cst = arith.constant dense<0.000000e+00> : vector<896x128xf32>
    %2 = tpu.matmul %0, %1, %cst {dimension_numbers = #tpu.dot_dimension_numbers<[1], [0], [0], [1], [0, 0, 1, 1], [], []>} : vector<896x56xbf16>, vector<56x128xbf16>, vector<896x128xf32> -> vector<896x128xf32>
    %c0_3 = arith.constant 0 : index
    %c0_4 = arith.constant 0 : index
    %3 = vector.load %arg3[%c0_3, %c0_4] : memref<1x128xf32, #tpu.memory_space<vmem>>, vector<1x128xf32>
    %4 = vector.broadcast %3 : vector<1x128xf32> to vector<896x128xf32>
    %5 = arith.addf %2, %4 : vector<896x128xf32>
    %cst_5 = arith.constant 0.000000e+00 : f32
    %6 = vector.broadcast %cst_5 : f32 to vector<896x128xf32>
    %7 = arith.maximumf %5, %6 : vector<896x128xf32>
    %8 = arith.truncf %7 : vector<896x128xf32> to vector<896x128xbf16>
    %c0_6 = arith.constant 0 : index
    %c0_7 = arith.constant 0 : index
    %9 = vector.load %arg4[%c0_6, %c0_7] : memref<896x128xbf16, #tpu.memory_space<vmem>>, vector<896x128xbf16>
    tpu.vector_store %arg4[%c0_6, %c0_7], %8 {strides = array<i32>} : memref<896x128xbf16, #tpu.memory_space<vmem>>, vector<896x128xbf16>,
    return
  }
  func.func @transform_0(%arg0: i32) -> (i32, i32) {
    %c0_i32 = arith.constant 0 : i32
    %c0_i32_0 = arith.constant 0 : i32
    return %arg0, %c0_i32 : i32, i32
  }
  func.func @transform_1(%arg0: i32) -> (i32, i32) {
    %c0_i32 = arith.constant 0 : i32
    %c0_i32_0 = arith.constant 0 : i32
    %c0_i32_1 = arith.constant 0 : i32
    return %c0_i32, %c0_i32_0 : i32, i32
  }
  func.func @transform_2(%arg0: i32) -> (i32, i32) {
    %c0_i32 = arith.constant 0 : i32
    %c0_i32_0 = arith.constant 0 : i32
    %c0_i32_1 = arith.constant 0 : i32
    return %c0_i32, %c0_i32_0 : i32, i32
  }
  func.func @transform_3(%arg0: i32) -> (i32, i32) {
    %c0_i32 = arith.constant 0 : i32
    %c0_i32_0 = arith.constant 0 : i32
    return %arg0, %c0_i32 : i32, i32
  }
}

module attributes {stable_mosaic.version = 11 : i64} {
  func.func @conv2_s2d_kernel(%arg0: i32, %arg1: memref<2x224x256xbf16, #tpu.memory_space<vmem>>, %arg2: memref<9x256x64xbf16, #tpu.memory_space<vmem>>, %arg3: memref<1x64xf32, #tpu.memory_space<vmem>>, %arg4: memref<2x12x12x64xbf16, #tpu.memory_space<vmem>>) attributes {dimension_semantics = [#tpu.dimension_semantics<parallel>], iteration_bounds = array<i64: 1>, scalar_prefetch = 0 : i64, scratch_operands = 0 : i64, tpu.core_type = #tpu.core_type<tc>, window_params = [{transform_indices = @transform_0, window_bounds = array<i64: 2, 224, 256>}, {pipeline_mode = #tpu.pipeline_mode<synchronous>, transform_indices = @transform_1, window_bounds = array<i64: 9, 256, 64>}, {pipeline_mode = #tpu.pipeline_mode<synchronous>, transform_indices = @transform_2, window_bounds = array<i64: 1, 64>}, {transform_indices = @transform_3, window_bounds = array<i64: 2, 12, 12, 64>}]} {
    %c0 = arith.constant 0 : index
    %c0_0 = arith.constant 0 : index
    %0 = vector.load %arg3[%c0, %c0_0] : memref<1x64xf32, #tpu.memory_space<vmem>>, vector<1x64xf32>
    %cst = arith.constant 0.000000e+00 : f32
    %1 = vector.broadcast %cst : f32 to vector<12x12x64xf32>
    %c0_1 = arith.constant 0 : index
    %c0_2 = arith.constant 0 : index
    %c0_3 = arith.constant 0 : index
    %2 = vector.load %arg1[%c0_1, %c0_2, %c0_3] : memref<2x224x256xbf16, #tpu.memory_space<vmem>>, vector<1x192x256xbf16>
    %3 = vector.shape_cast %2 : vector<1x192x256xbf16> to vector<192x256xbf16>
    %c0_4 = arith.constant 0 : index
    %c0_5 = arith.constant 0 : index
    %c0_6 = arith.constant 0 : index
    %4 = vector.load %arg2[%c0_4, %c0_5, %c0_6] : memref<9x256x64xbf16, #tpu.memory_space<vmem>>, vector<1x256x64xbf16>
    %5 = vector.shape_cast %4 : vector<1x256x64xbf16> to vector<256x64xbf16>
    %cst_7 = arith.constant dense<0.000000e+00> : vector<192x64xf32>
    %6 = tpu.matmul %3, %5, %cst_7 {dimension_numbers = #tpu.dot_dimension_numbers<[1], [0], [0], [1], [0, 0, 1, 1], [], []>} : vector<192x256xbf16>, vector<256x64xbf16>, vector<192x64xf32> -> vector<192x64xf32>
    %7 = vector.shape_cast %6 : vector<192x64xf32> to vector<12x16x64xf32>
    %8 = vector.extract_strided_slice %7 {offsets = [0, 0, 0], sizes = [12, 12, 64], strides = [1, 1, 1]} : vector<12x16x64xf32> to vector<12x12x64xf32>
    %9 = arith.addf %1, %8 : vector<12x12x64xf32>
    %c0_8 = arith.constant 0 : index
    %c0_9 = arith.constant 0 : index
    %c0_10 = arith.constant 0 : index
    %10 = vector.load %arg1[%c0_8, %c0_9, %c0_10] : memref<2x224x256xbf16, #tpu.memory_space<vmem>>, vector<1x192x256xbf16>
    %11 = vector.shape_cast %10 : vector<1x192x256xbf16> to vector<192x256xbf16>
    %c1 = arith.constant 1 : index
    %c0_11 = arith.constant 0 : index
    %c0_12 = arith.constant 0 : index
    %12 = vector.load %arg2[%c1, %c0_11, %c0_12] : memref<9x256x64xbf16, #tpu.memory_space<vmem>>, vector<1x256x64xbf16>
    %13 = vector.shape_cast %12 : vector<1x256x64xbf16> to vector<256x64xbf16>
    %cst_13 = arith.constant dense<0.000000e+00> : vector<192x64xf32>
    %14 = tpu.matmul %11, %13, %cst_13 {dimension_numbers = #tpu.dot_dimension_numbers<[1], [0], [0], [1], [0, 0, 1, 1], [], []>} : vector<192x256xbf16>, vector<256x64xbf16>, vector<192x64xf32> -> vector<192x64xf32>
    %15 = vector.shape_cast %14 : vector<192x64xf32> to vector<12x16x64xf32>
    %16 = vector.extract_strided_slice %15 {offsets = [0, 1, 0], sizes = [12, 12, 64], strides = [1, 1, 1]} : vector<12x16x64xf32> to vector<12x12x64xf32>
    %17 = arith.addf %9, %16 : vector<12x12x64xf32>
    %c0_14 = arith.constant 0 : index
    %c0_15 = arith.constant 0 : index
    %c0_16 = arith.constant 0 : index
    %18 = vector.load %arg1[%c0_14, %c0_15, %c0_16] : memref<2x224x256xbf16, #tpu.memory_space<vmem>>, vector<1x192x256xbf16>
    %19 = vector.shape_cast %18 : vector<1x192x256xbf16> to vector<192x256xbf16>
    %c2 = arith.constant 2 : index
    %c0_17 = arith.constant 0 : index
    %c0_18 = arith.constant 0 : index
    %20 = vector.load %arg2[%c2, %c0_17, %c0_18] : memref<9x256x64xbf16, #tpu.memory_space<vmem>>, vector<1x256x64xbf16>
    %21 = vector.shape_cast %20 : vector<1x256x64xbf16> to vector<256x64xbf16>
    %cst_19 = arith.constant dense<0.000000e+00> : vector<192x64xf32>
    %22 = tpu.matmul %19, %21, %cst_19 {dimension_numbers = #tpu.dot_dimension_numbers<[1], [0], [0], [1], [0, 0, 1, 1], [], []>} : vector<192x256xbf16>, vector<256x64xbf16>, vector<192x64xf32> -> vector<192x64xf32>
    %23 = vector.shape_cast %22 : vector<192x64xf32> to vector<12x16x64xf32>
    %24 = vector.extract_strided_slice %23 {offsets = [0, 2, 0], sizes = [12, 12, 64], strides = [1, 1, 1]} : vector<12x16x64xf32> to vector<12x12x64xf32>
    %25 = arith.addf %17, %24 : vector<12x12x64xf32>
    %c0_20 = arith.constant 0 : index
    %c16 = arith.constant 16 : index
    %c0_21 = arith.constant 0 : index
    %26 = vector.load %arg1[%c0_20, %c16, %c0_21] : memref<2x224x256xbf16, #tpu.memory_space<vmem>>, vector<1x192x256xbf16>
    %27 = vector.shape_cast %26 : vector<1x192x256xbf16> to vector<192x256xbf16>
    %c3 = arith.constant 3 : index
    %c0_22 = arith.constant 0 : index
    %c0_23 = arith.constant 0 : index
    %28 = vector.load %arg2[%c3, %c0_22, %c0_23] : memref<9x256x64xbf16, #tpu.memory_space<vmem>>, vector<1x256x64xbf16>
    %29 = vector.shape_cast %28 : vector<1x256x64xbf16> to vector<256x64xbf16>
    %cst_24 = arith.constant dense<0.000000e+00> : vector<192x64xf32>
    %30 = tpu.matmul %27, %29, %cst_24 {dimension_numbers = #tpu.dot_dimension_numbers<[1], [0], [0], [1], [0, 0, 1, 1], [], []>} : vector<192x256xbf16>, vector<256x64xbf16>, vector<192x64xf32> -> vector<192x64xf32>
    %31 = vector.shape_cast %30 : vector<192x64xf32> to vector<12x16x64xf32>
    %32 = vector.extract_strided_slice %31 {offsets = [0, 0, 0], sizes = [12, 12, 64], strides = [1, 1, 1]} : vector<12x16x64xf32> to vector<12x12x64xf32>
    %33 = arith.addf %25, %32 : vector<12x12x64xf32>
    %c0_25 = arith.constant 0 : index
    %c16_26 = arith.constant 16 : index
    %c0_27 = arith.constant 0 : index
    %34 = vector.load %arg1[%c0_25, %c16_26, %c0_27] : memref<2x224x256xbf16, #tpu.memory_space<vmem>>, vector<1x192x256xbf16>
    %35 = vector.shape_cast %34 : vector<1x192x256xbf16> to vector<192x256xbf16>
    %c4 = arith.constant 4 : index
    %c0_28 = arith.constant 0 : index
    %c0_29 = arith.constant 0 : index
    %36 = vector.load %arg2[%c4, %c0_28, %c0_29] : memref<9x256x64xbf16, #tpu.memory_space<vmem>>, vector<1x256x64xbf16>
    %37 = vector.shape_cast %36 : vector<1x256x64xbf16> to vector<256x64xbf16>
    %cst_30 = arith.constant dense<0.000000e+00> : vector<192x64xf32>
    %38 = tpu.matmul %35, %37, %cst_30 {dimension_numbers = #tpu.dot_dimension_numbers<[1], [0], [0], [1], [0, 0, 1, 1], [], []>} : vector<192x256xbf16>, vector<256x64xbf16>, vector<192x64xf32> -> vector<192x64xf32>
    %39 = vector.shape_cast %38 : vector<192x64xf32> to vector<12x16x64xf32>
    %40 = vector.extract_strided_slice %39 {offsets = [0, 1, 0], sizes = [12, 12, 64], strides = [1, 1, 1]} : vector<12x16x64xf32> to vector<12x12x64xf32>
    %41 = arith.addf %33, %40 : vector<12x12x64xf32>
    %c0_31 = arith.constant 0 : index
    %c16_32 = arith.constant 16 : index
    %c0_33 = arith.constant 0 : index
    %42 = vector.load %arg1[%c0_31, %c16_32, %c0_33] : memref<2x224x256xbf16, #tpu.memory_space<vmem>>, vector<1x192x256xbf16>
    %43 = vector.shape_cast %42 : vector<1x192x256xbf16> to vector<192x256xbf16>
    %c5 = arith.constant 5 : index
    %c0_34 = arith.constant 0 : index
    %c0_35 = arith.constant 0 : index
    %44 = vector.load %arg2[%c5, %c0_34, %c0_35] : memref<9x256x64xbf16, #tpu.memory_space<vmem>>, vector<1x256x64xbf16>
    %45 = vector.shape_cast %44 : vector<1x256x64xbf16> to vector<256x64xbf16>
    %cst_36 = arith.constant dense<0.000000e+00> : vector<192x64xf32>
    %46 = tpu.matmul %43, %45, %cst_36 {dimension_numbers = #tpu.dot_dimension_numbers<[1], [0], [0], [1], [0, 0, 1, 1], [], []>} : vector<192x256xbf16>, vector<256x64xbf16>, vector<192x64xf32> -> vector<192x64xf32>
    %47 = vector.shape_cast %46 : vector<192x64xf32> to vector<12x16x64xf32>
    %48 = vector.extract_strided_slice %47 {offsets = [0, 2, 0], sizes = [12, 12, 64], strides = [1, 1, 1]} : vector<12x16x64xf32> to vector<12x12x64xf32>
    %49 = arith.addf %41, %48 : vector<12x12x64xf32>
    %c0_37 = arith.constant 0 : index
    %c32 = arith.constant 32 : index
    %c0_38 = arith.constant 0 : index
    %50 = vector.load %arg1[%c0_37, %c32, %c0_38] : memref<2x224x256xbf16, #tpu.memory_space<vmem>>, vector<1x192x256xbf16>
    %51 = vector.shape_cast %50 : vector<1x192x256xbf16> to vector<192x256xbf16>
    %c6 = arith.constant 6 : index
    %c0_39 = arith.constant 0 : index
    %c0_40 = arith.constant 0 : index
    %52 = vector.load %arg2[%c6, %c0_39, %c0_40] : memref<9x256x64xbf16, #tpu.memory_space<vmem>>, vector<1x256x64xbf16>
    %53 = vector.shape_cast %52 : vector<1x256x64xbf16> to vector<256x64xbf16>
    %cst_41 = arith.constant dense<0.000000e+00> : vector<192x64xf32>
    %54 = tpu.matmul %51, %53, %cst_41 {dimension_numbers = #tpu.dot_dimension_numbers<[1], [0], [0], [1], [0, 0, 1, 1], [], []>} : vector<192x256xbf16>, vector<256x64xbf16>, vector<192x64xf32> -> vector<192x64xf32>
    %55 = vector.shape_cast %54 : vector<192x64xf32> to vector<12x16x64xf32>
    %56 = vector.extract_strided_slice %55 {offsets = [0, 0, 0], sizes = [12, 12, 64], strides = [1, 1, 1]} : vector<12x16x64xf32> to vector<12x12x64xf32>
    %57 = arith.addf %49, %56 : vector<12x12x64xf32>
    %c0_42 = arith.constant 0 : index
    %c32_43 = arith.constant 32 : index
    %c0_44 = arith.constant 0 : index
    %58 = vector.load %arg1[%c0_42, %c32_43, %c0_44] : memref<2x224x256xbf16, #tpu.memory_space<vmem>>, vector<1x192x256xbf16>
    %59 = vector.shape_cast %58 : vector<1x192x256xbf16> to vector<192x256xbf16>
    %c7 = arith.constant 7 : index
    %c0_45 = arith.constant 0 : index
    %c0_46 = arith.constant 0 : index
    %60 = vector.load %arg2[%c7, %c0_45, %c0_46] : memref<9x256x64xbf16, #tpu.memory_space<vmem>>, vector<1x256x64xbf16>
    %61 = vector.shape_cast %60 : vector<1x256x64xbf16> to vector<256x64xbf16>
    %cst_47 = arith.constant dense<0.000000e+00> : vector<192x64xf32>
    %62 = tpu.matmul %59, %61, %cst_47 {dimension_numbers = #tpu.dot_dimension_numbers<[1], [0], [0], [1], [0, 0, 1, 1], [], []>} : vector<192x256xbf16>, vector<256x64xbf16>, vector<192x64xf32> -> vector<192x64xf32>
    %63 = vector.shape_cast %62 : vector<192x64xf32> to vector<12x16x64xf32>
    %64 = vector.extract_strided_slice %63 {offsets = [0, 1, 0], sizes = [12, 12, 64], strides = [1, 1, 1]} : vector<12x16x64xf32> to vector<12x12x64xf32>
    %65 = arith.addf %57, %64 : vector<12x12x64xf32>
    %c0_48 = arith.constant 0 : index
    %c32_49 = arith.constant 32 : index
    %c0_50 = arith.constant 0 : index
    %66 = vector.load %arg1[%c0_48, %c32_49, %c0_50] : memref<2x224x256xbf16, #tpu.memory_space<vmem>>, vector<1x192x256xbf16>
    %67 = vector.shape_cast %66 : vector<1x192x256xbf16> to vector<192x256xbf16>
    %c8 = arith.constant 8 : index
    %c0_51 = arith.constant 0 : index
    %c0_52 = arith.constant 0 : index
    %68 = vector.load %arg2[%c8, %c0_51, %c0_52] : memref<9x256x64xbf16, #tpu.memory_space<vmem>>, vector<1x256x64xbf16>
    %69 = vector.shape_cast %68 : vector<1x256x64xbf16> to vector<256x64xbf16>
    %cst_53 = arith.constant dense<0.000000e+00> : vector<192x64xf32>
    %70 = tpu.matmul %67, %69, %cst_53 {dimension_numbers = #tpu.dot_dimension_numbers<[1], [0], [0], [1], [0, 0, 1, 1], [], []>} : vector<192x256xbf16>, vector<256x64xbf16>, vector<192x64xf32> -> vector<192x64xf32>
    %71 = vector.shape_cast %70 : vector<192x64xf32> to vector<12x16x64xf32>
    %72 = vector.extract_strided_slice %71 {offsets = [0, 2, 0], sizes = [12, 12, 64], strides = [1, 1, 1]} : vector<12x16x64xf32> to vector<12x12x64xf32>
    %73 = arith.addf %65, %72 : vector<12x12x64xf32>
    %74 = vector.shape_cast %0 : vector<1x64xf32> to vector<1x1x64xf32>
    %75 = vector.broadcast %74 : vector<1x1x64xf32> to vector<12x12x64xf32>
    %76 = arith.addf %73, %75 : vector<12x12x64xf32>
    %cst_54 = arith.constant 0.000000e+00 : f32
    %77 = vector.broadcast %cst_54 : f32 to vector<12x12x64xf32>
    %78 = arith.maximumf %76, %77 : vector<12x12x64xf32>
    %79 = arith.truncf %78 : vector<12x12x64xf32> to vector<12x12x64xbf16>
    %c0_55 = arith.constant 0 : index
    %c0_56 = arith.constant 0 : index
    %c0_57 = arith.constant 0 : index
    %c0_58 = arith.constant 0 : index
    %80 = vector.load %arg4[%c0_55, %c0_56, %c0_57, %c0_58] : memref<2x12x12x64xbf16, #tpu.memory_space<vmem>>, vector<1x12x12x64xbf16>
    %81 = vector.shape_cast %80 : vector<1x12x12x64xbf16> to vector<12x12x64xbf16>
    %82 = vector.shape_cast %79 : vector<12x12x64xbf16> to vector<1x12x12x64xbf16>
    tpu.vector_store %arg4[%c0_55, %c0_56, %c0_57, %c0_58], %82 {strides = array<i32>} : memref<2x12x12x64xbf16, #tpu.memory_space<vmem>>, vector<1x12x12x64xbf16>,
    %cst_59 = arith.constant 0.000000e+00 : f32
    %83 = vector.broadcast %cst_59 : f32 to vector<12x12x64xf32>
    %c1_60 = arith.constant 1 : index
    %c0_61 = arith.constant 0 : index
    %c0_62 = arith.constant 0 : index
    %84 = vector.load %arg1[%c1_60, %c0_61, %c0_62] : memref<2x224x256xbf16, #tpu.memory_space<vmem>>, vector<1x192x256xbf16>
    %85 = vector.shape_cast %84 : vector<1x192x256xbf16> to vector<192x256xbf16>
    %c0_63 = arith.constant 0 : index
    %c0_64 = arith.constant 0 : index
    %c0_65 = arith.constant 0 : index
    %86 = vector.load %arg2[%c0_63, %c0_64, %c0_65] : memref<9x256x64xbf16, #tpu.memory_space<vmem>>, vector<1x256x64xbf16>
    %87 = vector.shape_cast %86 : vector<1x256x64xbf16> to vector<256x64xbf16>
    %cst_66 = arith.constant dense<0.000000e+00> : vector<192x64xf32>
    %88 = tpu.matmul %85, %87, %cst_66 {dimension_numbers = #tpu.dot_dimension_numbers<[1], [0], [0], [1], [0, 0, 1, 1], [], []>} : vector<192x256xbf16>, vector<256x64xbf16>, vector<192x64xf32> -> vector<192x64xf32>
    %89 = vector.shape_cast %88 : vector<192x64xf32> to vector<12x16x64xf32>
    %90 = vector.extract_strided_slice %89 {offsets = [0, 0, 0], sizes = [12, 12, 64], strides = [1, 1, 1]} : vector<12x16x64xf32> to vector<12x12x64xf32>
    %91 = arith.addf %83, %90 : vector<12x12x64xf32>
    %c1_67 = arith.constant 1 : index
    %c0_68 = arith.constant 0 : index
    %c0_69 = arith.constant 0 : index
    %92 = vector.load %arg1[%c1_67, %c0_68, %c0_69] : memref<2x224x256xbf16, #tpu.memory_space<vmem>>, vector<1x192x256xbf16>
    %93 = vector.shape_cast %92 : vector<1x192x256xbf16> to vector<192x256xbf16>
    %c1_70 = arith.constant 1 : index
    %c0_71 = arith.constant 0 : index
    %c0_72 = arith.constant 0 : index
    %94 = vector.load %arg2[%c1_70, %c0_71, %c0_72] : memref<9x256x64xbf16, #tpu.memory_space<vmem>>, vector<1x256x64xbf16>
    %95 = vector.shape_cast %94 : vector<1x256x64xbf16> to vector<256x64xbf16>
    %cst_73 = arith.constant dense<0.000000e+00> : vector<192x64xf32>
    %96 = tpu.matmul %93, %95, %cst_73 {dimension_numbers = #tpu.dot_dimension_numbers<[1], [0], [0], [1], [0, 0, 1, 1], [], []>} : vector<192x256xbf16>, vector<256x64xbf16>, vector<192x64xf32> -> vector<192x64xf32>
    %97 = vector.shape_cast %96 : vector<192x64xf32> to vector<12x16x64xf32>
    %98 = vector.extract_strided_slice %97 {offsets = [0, 1, 0], sizes = [12, 12, 64], strides = [1, 1, 1]} : vector<12x16x64xf32> to vector<12x12x64xf32>
    %99 = arith.addf %91, %98 : vector<12x12x64xf32>
    %c1_74 = arith.constant 1 : index
    %c0_75 = arith.constant 0 : index
    %c0_76 = arith.constant 0 : index
    %100 = vector.load %arg1[%c1_74, %c0_75, %c0_76] : memref<2x224x256xbf16, #tpu.memory_space<vmem>>, vector<1x192x256xbf16>
    %101 = vector.shape_cast %100 : vector<1x192x256xbf16> to vector<192x256xbf16>
    %c2_77 = arith.constant 2 : index
    %c0_78 = arith.constant 0 : index
    %c0_79 = arith.constant 0 : index
    %102 = vector.load %arg2[%c2_77, %c0_78, %c0_79] : memref<9x256x64xbf16, #tpu.memory_space<vmem>>, vector<1x256x64xbf16>
    %103 = vector.shape_cast %102 : vector<1x256x64xbf16> to vector<256x64xbf16>
    %cst_80 = arith.constant dense<0.000000e+00> : vector<192x64xf32>
    %104 = tpu.matmul %101, %103, %cst_80 {dimension_numbers = #tpu.dot_dimension_numbers<[1], [0], [0], [1], [0, 0, 1, 1], [], []>} : vector<192x256xbf16>, vector<256x64xbf16>, vector<192x64xf32> -> vector<192x64xf32>
    %105 = vector.shape_cast %104 : vector<192x64xf32> to vector<12x16x64xf32>
    %106 = vector.extract_strided_slice %105 {offsets = [0, 2, 0], sizes = [12, 12, 64], strides = [1, 1, 1]} : vector<12x16x64xf32> to vector<12x12x64xf32>
    %107 = arith.addf %99, %106 : vector<12x12x64xf32>
    %c1_81 = arith.constant 1 : index
    %c16_82 = arith.constant 16 : index
    %c0_83 = arith.constant 0 : index
    %108 = vector.load %arg1[%c1_81, %c16_82, %c0_83] : memref<2x224x256xbf16, #tpu.memory_space<vmem>>, vector<1x192x256xbf16>
    %109 = vector.shape_cast %108 : vector<1x192x256xbf16> to vector<192x256xbf16>
    %c3_84 = arith.constant 3 : index
    %c0_85 = arith.constant 0 : index
    %c0_86 = arith.constant 0 : index
    %110 = vector.load %arg2[%c3_84, %c0_85, %c0_86] : memref<9x256x64xbf16, #tpu.memory_space<vmem>>, vector<1x256x64xbf16>
    %111 = vector.shape_cast %110 : vector<1x256x64xbf16> to vector<256x64xbf16>
    %cst_87 = arith.constant dense<0.000000e+00> : vector<192x64xf32>
    %112 = tpu.matmul %109, %111, %cst_87 {dimension_numbers = #tpu.dot_dimension_numbers<[1], [0], [0], [1], [0, 0, 1, 1], [], []>} : vector<192x256xbf16>, vector<256x64xbf16>, vector<192x64xf32> -> vector<192x64xf32>
    %113 = vector.shape_cast %112 : vector<192x64xf32> to vector<12x16x64xf32>
    %114 = vector.extract_strided_slice %113 {offsets = [0, 0, 0], sizes = [12, 12, 64], strides = [1, 1, 1]} : vector<12x16x64xf32> to vector<12x12x64xf32>
    %115 = arith.addf %107, %114 : vector<12x12x64xf32>
    %c1_88 = arith.constant 1 : index
    %c16_89 = arith.constant 16 : index
    %c0_90 = arith.constant 0 : index
    %116 = vector.load %arg1[%c1_88, %c16_89, %c0_90] : memref<2x224x256xbf16, #tpu.memory_space<vmem>>, vector<1x192x256xbf16>
    %117 = vector.shape_cast %116 : vector<1x192x256xbf16> to vector<192x256xbf16>
    %c4_91 = arith.constant 4 : index
    %c0_92 = arith.constant 0 : index
    %c0_93 = arith.constant 0 : index
    %118 = vector.load %arg2[%c4_91, %c0_92, %c0_93] : memref<9x256x64xbf16, #tpu.memory_space<vmem>>, vector<1x256x64xbf16>
    %119 = vector.shape_cast %118 : vector<1x256x64xbf16> to vector<256x64xbf16>
    %cst_94 = arith.constant dense<0.000000e+00> : vector<192x64xf32>
    %120 = tpu.matmul %117, %119, %cst_94 {dimension_numbers = #tpu.dot_dimension_numbers<[1], [0], [0], [1], [0, 0, 1, 1], [], []>} : vector<192x256xbf16>, vector<256x64xbf16>, vector<192x64xf32> -> vector<192x64xf32>
    %121 = vector.shape_cast %120 : vector<192x64xf32> to vector<12x16x64xf32>
    %122 = vector.extract_strided_slice %121 {offsets = [0, 1, 0], sizes = [12, 12, 64], strides = [1, 1, 1]} : vector<12x16x64xf32> to vector<12x12x64xf32>
    %123 = arith.addf %115, %122 : vector<12x12x64xf32>
    %c1_95 = arith.constant 1 : index
    %c16_96 = arith.constant 16 : index
    %c0_97 = arith.constant 0 : index
    %124 = vector.load %arg1[%c1_95, %c16_96, %c0_97] : memref<2x224x256xbf16, #tpu.memory_space<vmem>>, vector<1x192x256xbf16>
    %125 = vector.shape_cast %124 : vector<1x192x256xbf16> to vector<192x256xbf16>
    %c5_98 = arith.constant 5 : index
    %c0_99 = arith.constant 0 : index
    %c0_100 = arith.constant 0 : index
    %126 = vector.load %arg2[%c5_98, %c0_99, %c0_100] : memref<9x256x64xbf16, #tpu.memory_space<vmem>>, vector<1x256x64xbf16>
    %127 = vector.shape_cast %126 : vector<1x256x64xbf16> to vector<256x64xbf16>
    %cst_101 = arith.constant dense<0.000000e+00> : vector<192x64xf32>
    %128 = tpu.matmul %125, %127, %cst_101 {dimension_numbers = #tpu.dot_dimension_numbers<[1], [0], [0], [1], [0, 0, 1, 1], [], []>} : vector<192x256xbf16>, vector<256x64xbf16>, vector<192x64xf32> -> vector<192x64xf32>
    %129 = vector.shape_cast %128 : vector<192x64xf32> to vector<12x16x64xf32>
    %130 = vector.extract_strided_slice %129 {offsets = [0, 2, 0], sizes = [12, 12, 64], strides = [1, 1, 1]} : vector<12x16x64xf32> to vector<12x12x64xf32>
    %131 = arith.addf %123, %130 : vector<12x12x64xf32>
    %c1_102 = arith.constant 1 : index
    %c32_103 = arith.constant 32 : index
    %c0_104 = arith.constant 0 : index
    %132 = vector.load %arg1[%c1_102, %c32_103, %c0_104] : memref<2x224x256xbf16, #tpu.memory_space<vmem>>, vector<1x192x256xbf16>
    %133 = vector.shape_cast %132 : vector<1x192x256xbf16> to vector<192x256xbf16>
    %c6_105 = arith.constant 6 : index
    %c0_106 = arith.constant 0 : index
    %c0_107 = arith.constant 0 : index
    %134 = vector.load %arg2[%c6_105, %c0_106, %c0_107] : memref<9x256x64xbf16, #tpu.memory_space<vmem>>, vector<1x256x64xbf16>
    %135 = vector.shape_cast %134 : vector<1x256x64xbf16> to vector<256x64xbf16>
    %cst_108 = arith.constant dense<0.000000e+00> : vector<192x64xf32>
    %136 = tpu.matmul %133, %135, %cst_108 {dimension_numbers = #tpu.dot_dimension_numbers<[1], [0], [0], [1], [0, 0, 1, 1], [], []>} : vector<192x256xbf16>, vector<256x64xbf16>, vector<192x64xf32> -> vector<192x64xf32>
    %137 = vector.shape_cast %136 : vector<192x64xf32> to vector<12x16x64xf32>
    %138 = vector.extract_strided_slice %137 {offsets = [0, 0, 0], sizes = [12, 12, 64], strides = [1, 1, 1]} : vector<12x16x64xf32> to vector<12x12x64xf32>
    %139 = arith.addf %131, %138 : vector<12x12x64xf32>
    %c1_109 = arith.constant 1 : index
    %c32_110 = arith.constant 32 : index
    %c0_111 = arith.constant 0 : index
    %140 = vector.load %arg1[%c1_109, %c32_110, %c0_111] : memref<2x224x256xbf16, #tpu.memory_space<vmem>>, vector<1x192x256xbf16>
    %141 = vector.shape_cast %140 : vector<1x192x256xbf16> to vector<192x256xbf16>
    %c7_112 = arith.constant 7 : index
    %c0_113 = arith.constant 0 : index
    %c0_114 = arith.constant 0 : index
    %142 = vector.load %arg2[%c7_112, %c0_113, %c0_114] : memref<9x256x64xbf16, #tpu.memory_space<vmem>>, vector<1x256x64xbf16>
    %143 = vector.shape_cast %142 : vector<1x256x64xbf16> to vector<256x64xbf16>
    %cst_115 = arith.constant dense<0.000000e+00> : vector<192x64xf32>
    %144 = tpu.matmul %141, %143, %cst_115 {dimension_numbers = #tpu.dot_dimension_numbers<[1], [0], [0], [1], [0, 0, 1, 1], [], []>} : vector<192x256xbf16>, vector<256x64xbf16>, vector<192x64xf32> -> vector<192x64xf32>
    %145 = vector.shape_cast %144 : vector<192x64xf32> to vector<12x16x64xf32>
    %146 = vector.extract_strided_slice %145 {offsets = [0, 1, 0], sizes = [12, 12, 64], strides = [1, 1, 1]} : vector<12x16x64xf32> to vector<12x12x64xf32>
    %147 = arith.addf %139, %146 : vector<12x12x64xf32>
    %c1_116 = arith.constant 1 : index
    %c32_117 = arith.constant 32 : index
    %c0_118 = arith.constant 0 : index
    %148 = vector.load %arg1[%c1_116, %c32_117, %c0_118] : memref<2x224x256xbf16, #tpu.memory_space<vmem>>, vector<1x192x256xbf16>
    %149 = vector.shape_cast %148 : vector<1x192x256xbf16> to vector<192x256xbf16>
    %c8_119 = arith.constant 8 : index
    %c0_120 = arith.constant 0 : index
    %c0_121 = arith.constant 0 : index
    %150 = vector.load %arg2[%c8_119, %c0_120, %c0_121] : memref<9x256x64xbf16, #tpu.memory_space<vmem>>, vector<1x256x64xbf16>
    %151 = vector.shape_cast %150 : vector<1x256x64xbf16> to vector<256x64xbf16>
    %cst_122 = arith.constant dense<0.000000e+00> : vector<192x64xf32>
    %152 = tpu.matmul %149, %151, %cst_122 {dimension_numbers = #tpu.dot_dimension_numbers<[1], [0], [0], [1], [0, 0, 1, 1], [], []>} : vector<192x256xbf16>, vector<256x64xbf16>, vector<192x64xf32> -> vector<192x64xf32>
    %153 = vector.shape_cast %152 : vector<192x64xf32> to vector<12x16x64xf32>
    %154 = vector.extract_strided_slice %153 {offsets = [0, 2, 0], sizes = [12, 12, 64], strides = [1, 1, 1]} : vector<12x16x64xf32> to vector<12x12x64xf32>
    %155 = arith.addf %147, %154 : vector<12x12x64xf32>
    %156 = vector.shape_cast %0 : vector<1x64xf32> to vector<1x1x64xf32>
    %157 = vector.broadcast %156 : vector<1x1x64xf32> to vector<12x12x64xf32>
    %158 = arith.addf %155, %157 : vector<12x12x64xf32>
    %cst_123 = arith.constant 0.000000e+00 : f32
    %159 = vector.broadcast %cst_123 : f32 to vector<12x12x64xf32>
    %160 = arith.maximumf %158, %159 : vector<12x12x64xf32>
    %161 = arith.truncf %160 : vector<12x12x64xf32> to vector<12x12x64xbf16>
    %c1_124 = arith.constant 1 : index
    %c0_125 = arith.constant 0 : index
    %c0_126 = arith.constant 0 : index
    %c0_127 = arith.constant 0 : index
    %162 = vector.load %arg4[%c1_124, %c0_125, %c0_126, %c0_127] : memref<2x12x12x64xbf16, #tpu.memory_space<vmem>>, vector<1x12x12x64xbf16>
    %163 = vector.shape_cast %162 : vector<1x12x12x64xbf16> to vector<12x12x64xbf16>
    %164 = vector.shape_cast %161 : vector<12x12x64xbf16> to vector<1x12x12x64xbf16>
    tpu.vector_store %arg4[%c1_124, %c0_125, %c0_126, %c0_127], %164 {strides = array<i32>} : memref<2x12x12x64xbf16, #tpu.memory_space<vmem>>, vector<1x12x12x64xbf16>,
    return
  }
  func.func @transform_0(%arg0: i32) -> (i32, i32, i32) {
    %c0_i32 = arith.constant 0 : i32
    %c0_i32_0 = arith.constant 0 : i32
    %c0_i32_1 = arith.constant 0 : i32
    return %arg0, %c0_i32, %c0_i32_0 : i32, i32, i32
  }
  func.func @transform_1(%arg0: i32) -> (i32, i32, i32) {
    %c0_i32 = arith.constant 0 : i32
    %c0_i32_0 = arith.constant 0 : i32
    %c0_i32_1 = arith.constant 0 : i32
    %c0_i32_2 = arith.constant 0 : i32
    return %c0_i32, %c0_i32_0, %c0_i32_1 : i32, i32, i32
  }
  func.func @transform_2(%arg0: i32) -> (i32, i32) {
    %c0_i32 = arith.constant 0 : i32
    %c0_i32_0 = arith.constant 0 : i32
    %c0_i32_1 = arith.constant 0 : i32
    return %c0_i32, %c0_i32_0 : i32, i32
  }
  func.func @transform_3(%arg0: i32) -> (i32, i32, i32, i32) {
    %c0_i32 = arith.constant 0 : i32
    %c0_i32_0 = arith.constant 0 : i32
    %c0_i32_1 = arith.constant 0 : i32
    %c0_i32_2 = arith.constant 0 : i32
    return %arg0, %c0_i32, %c0_i32_0, %c0_i32_1 : i32, i32, i32, i32
  }
}

module attributes {stable_mosaic.version = 11 : i64} {
  func.func @head_kernel(%arg0: i32, %arg1: i32, %arg2: memref<8x9216xbf16, #tpu.memory_space<vmem>>, %arg3: memref<9216x128xbf16, #tpu.memory_space<vmem>>, %arg4: memref<1x128xf32, #tpu.memory_space<vmem>>, %arg5: memref<128x128xbf16, #tpu.memory_space<vmem>>, %arg6: memref<1x128xf32, #tpu.memory_space<vmem>>, %arg7: memref<8x128xf32, #tpu.memory_space<vmem>>, %arg8: memref<8x128xf32, #tpu.memory_space<vmem>>) attributes {dimension_semantics = [#tpu.dimension_semantics<parallel>, #tpu.dimension_semantics<arbitrary>], iteration_bounds = array<i64: 1, 1>, scalar_prefetch = 0 : i64, scratch_operands = 1 : i64, tpu.core_type = #tpu.core_type<tc>, window_params = [{transform_indices = @transform_0, window_bounds = array<i64: 8, 9216>}, {transform_indices = @transform_1, window_bounds = array<i64: 9216, 128>}, {pipeline_mode = #tpu.pipeline_mode<synchronous>, transform_indices = @transform_2, window_bounds = array<i64: 1, 128>}, {pipeline_mode = #tpu.pipeline_mode<synchronous>, transform_indices = @transform_3, window_bounds = array<i64: 128, 128>}, {pipeline_mode = #tpu.pipeline_mode<synchronous>, transform_indices = @transform_4, window_bounds = array<i64: 1, 128>}, {transform_indices = @transform_5, window_bounds = array<i64: 8, 128>}]} {
    %c0_i32 = arith.constant 0 : i32
    %0 = arith.cmpi eq, %arg1, %c0_i32 : i32
    %1 = arith.extui %0 : i1 to i32
    %c0_i32_0 = arith.constant 0 : i32
    %2 = arith.cmpi ne, %1, %c0_i32_0 : i32
    scf.if %2 {
      %cst_10 = arith.constant 0.000000e+00 : f32
      %12 = vector.broadcast %cst_10 : f32 to vector<8x128xf32>
      %c0_11 = arith.constant 0 : index
      %c0_12 = arith.constant 0 : index
      %13 = vector.load %arg8[%c0_11, %c0_12] : memref<8x128xf32, #tpu.memory_space<vmem>>, vector<8x128xf32>
      tpu.vector_store %arg8[%c0_11, %c0_12], %12 {strides = array<i32>} : memref<8x128xf32, #tpu.memory_space<vmem>>, vector<8x128xf32>,
    } else {
    }
    %c0 = arith.constant 0 : index
    %c0_1 = arith.constant 0 : index
    %3 = vector.load %arg8[%c0, %c0_1] : memref<8x128xf32, #tpu.memory_space<vmem>>, vector<8x128xf32>
    %c0_2 = arith.constant 0 : index
    %c0_3 = arith.constant 0 : index
    %4 = vector.load %arg2[%c0_2, %c0_3] : memref<8x9216xbf16, #tpu.memory_space<vmem>>, vector<8x9216xbf16>
    %c0_4 = arith.constant 0 : index
    %c0_5 = arith.constant 0 : index
    %5 = vector.load %arg3[%c0_4, %c0_5] : memref<9216x128xbf16, #tpu.memory_space<vmem>>, vector<9216x128xbf16>
    %cst = arith.constant dense<0.000000e+00> : vector<8x128xf32>
    %6 = tpu.matmul %4, %5, %cst {dimension_numbers = #tpu.dot_dimension_numbers<[1], [0], [0], [1], [0, 0, 1, 1], [], []>} : vector<8x9216xbf16>, vector<9216x128xbf16>, vector<8x128xf32> -> vector<8x128xf32>
    %7 = arith.addf %3, %6 : vector<8x128xf32>
    %c0_6 = arith.constant 0 : index
    %c0_7 = arith.constant 0 : index
    %8 = vector.load %arg8[%c0_6, %c0_7] : memref<8x128xf32, #tpu.memory_space<vmem>>, vector<8x128xf32>
    tpu.vector_store %arg8[%c0_6, %c0_7], %7 {strides = array<i32>} : memref<8x128xf32, #tpu.memory_space<vmem>>, vector<8x128xf32>,
    %c0_i32_8 = arith.constant 0 : i32
    %9 = arith.cmpi eq, %arg1, %c0_i32_8 : i32
    %10 = arith.extui %9 : i1 to i32
    %c0_i32_9 = arith.constant 0 : i32
    %11 = arith.cmpi ne, %10, %c0_i32_9 : i32
    scf.if %11 {
      %c0_10 = arith.constant 0 : index
      %c0_11 = arith.constant 0 : index
      %12 = vector.load %arg8[%c0_10, %c0_11] : memref<8x128xf32, #tpu.memory_space<vmem>>, vector<8x128xf32>
      %c0_12 = arith.constant 0 : index
      %c0_13 = arith.constant 0 : index
      %13 = vector.load %arg4[%c0_12, %c0_13] : memref<1x128xf32, #tpu.memory_space<vmem>>, vector<1x128xf32>
      %14 = vector.broadcast %13 : vector<1x128xf32> to vector<8x128xf32>
      %15 = arith.addf %12, %14 : vector<8x128xf32>
      %cst_14 = arith.constant 0.000000e+00 : f32
      %16 = vector.broadcast %cst_14 : f32 to vector<8x128xf32>
      %17 = arith.maximumf %15, %16 : vector<8x128xf32>
      %18 = arith.truncf %17 : vector<8x128xf32> to vector<8x128xbf16>
      %c0_15 = arith.constant 0 : index
      %c0_16 = arith.constant 0 : index
      %19 = vector.load %arg5[%c0_15, %c0_16] : memref<128x128xbf16, #tpu.memory_space<vmem>>, vector<128x128xbf16>
      %cst_17 = arith.constant dense<0.000000e+00> : vector<8x128xf32>
      %20 = tpu.matmul %18, %19, %cst_17 {dimension_numbers = #tpu.dot_dimension_numbers<[1], [0], [0], [1], [0, 0, 1, 1], [], []>} : vector<8x128xbf16>, vector<128x128xbf16>, vector<8x128xf32> -> vector<8x128xf32>
      %c0_18 = arith.constant 0 : index
      %c0_19 = arith.constant 0 : index
      %21 = vector.load %arg6[%c0_18, %c0_19] : memref<1x128xf32, #tpu.memory_space<vmem>>, vector<1x128xf32>
      %22 = vector.broadcast %21 : vector<1x128xf32> to vector<8x128xf32>
      %23 = arith.addf %20, %22 : vector<8x128xf32>
      %24 = tpu.iota {dimensions = array<i32: 1>} : vector<8x128xi32>
      %c10_i32 = arith.constant 10 : i32
      %25 = vector.broadcast %c10_i32 : i32 to vector<8x128xi32>
      %26 = arith.cmpi slt, %24, %25 : vector<8x128xi32>
      %cst_20 = arith.constant -1.000000e+30 : f32
      %27 = vector.broadcast %cst_20 : f32 to vector<8x128xf32>
      %28 = arith.select %26, %23, %27 : vector<8x128xi1>, vector<8x128xf32>
      %cst_21 = arith.constant dense<0xFF800000> : vector<8xf32>
      %29 = vector.multi_reduction <maximumf>, %28, %cst_21 [1] : vector<8x128xf32> to vector<8xf32>
      %30 = vector.shape_cast %29 : vector<8xf32> to vector<8x1xf32>
      %31 = vector.broadcast %30 : vector<8x1xf32> to vector<8x128xf32>
      %32 = arith.subf %28, %31 : vector<8x128xf32>
      %33 = math.exp %32 : vector<8x128xf32>
      %cst_22 = arith.constant dense<0.000000e+00> : vector<8xf32>
      %34 = vector.multi_reduction <add>, %33, %cst_22 [1] : vector<8x128xf32> to vector<8xf32>
      %35 = vector.shape_cast %34 : vector<8xf32> to vector<8x1xf32>
      %36 = math.log %35 : vector<8x1xf32>
      %37 = vector.broadcast %36 : vector<8x1xf32> to vector<8x128xf32>
      %38 = arith.subf %32, %37 : vector<8x128xf32>
      %c0_23 = arith.constant 0 : index
      %c0_24 = arith.constant 0 : index
      %39 = vector.load %arg7[%c0_23, %c0_24] : memref<8x128xf32, #tpu.memory_space<vmem>>, vector<8x128xf32>
      tpu.vector_store %arg7[%c0_23, %c0_24], %38 {strides = array<i32>} : memref<8x128xf32, #tpu.memory_space<vmem>>, vector<8x128xf32>,
    } else {
    }
    return
  }
  func.func @transform_0(%arg0: i32, %arg1: i32) -> (i32, i32) {
    %c0_i32 = arith.constant 0 : i32
    return %arg0, %arg1 : i32, i32
  }
  func.func @transform_1(%arg0: i32, %arg1: i32) -> (i32, i32) {
    %c0_i32 = arith.constant 0 : i32
    %c0_i32_0 = arith.constant 0 : i32
    return %arg1, %c0_i32 : i32, i32
  }
  func.func @transform_2(%arg0: i32, %arg1: i32) -> (i32, i32) {
    %c0_i32 = arith.constant 0 : i32
    %c0_i32_0 = arith.constant 0 : i32
    %c0_i32_1 = arith.constant 0 : i32
    return %c0_i32, %c0_i32_0 : i32, i32
  }
  func.func @transform_3(%arg0: i32, %arg1: i32) -> (i32, i32) {
    %c0_i32 = arith.constant 0 : i32
    %c0_i32_0 = arith.constant 0 : i32
    %c0_i32_1 = arith.constant 0 : i32
    return %c0_i32, %c0_i32_0 : i32, i32
  }
  func.func @transform_4(%arg0: i32, %arg1: i32) -> (i32, i32) {
    %c0_i32 = arith.constant 0 : i32
    %c0_i32_0 = arith.constant 0 : i32
    %c0_i32_1 = arith.constant 0 : i32
    return %c0_i32, %c0_i32_0 : i32, i32
  }
  func.func @transform_5(%arg0: i32, %arg1: i32) -> (i32, i32) {
    %c0_i32 = arith.constant 0 : i32
    %c0_i32_0 = arith.constant 0 : i32
    return %arg0, %c0_i32 : i32, i32
  }
}

</mosaic_0001>

<llo_original>
// kernel: model_a_forward.3
$region0: #{model_a_forward.3}
  #allocation0 [shape = 'u32[]', space=smem, size = 0x4, offset = 0x4, fixed_abs, tag = 'smem constant byte address 0x4 - core index']
  #allocation1 [shape = 'u32[72,128]{1,0:T(1,128)}', space=vmem, size = 0x9000, scoped, tag = 'internal scratch']
  %s0 = inlined_call_operand.vmem [shape: bf16[896,56], index: 0, kind: input, shape index: {}]
  %s1 = inlined_call_operand.vmem [shape: bf16[56,128], index: 1, kind: input, shape index: {}]
  %s2 = inlined_call_operand.vmem [shape: f32[1,128], index: 2, kind: input, shape index: {}]
  %s3 = inlined_call_operand.vmem [shape: bf16[896,128], index: 3, kind: output, shape index: {}]
  %s4 = sld [smem:[#allocation0]]
  $region22: #{model_a_forward.3} parent=0
    _
  %s6 = ssub.s32 1, %s4
  %s7 = scalar_select 0, %s6, %s4
  // Predicated region
  $region2: #{model_a_forward.3} parent=0 // pred_check
    _
  $region3: #{model_a_forward.3} parent=0 // pred_check_branch
    %9 = sbr.rel (0) target = $region5
  $region4: #{model_a_forward.3} parent=0 // pred_region
    _
  $region5: #{model_a_forward.3} parent=0 // pred_fallthru
    _
  // Predicated region
  $region6: #{model_a_forward.3} parent=0 // pred_check
    _
  $region7: #{model_a_forward.3} parent=0 // pred_check_branch
    %11 = sbr.rel (0) target = $region9
  $region8: #{model_a_forward.3} parent=0 // pred_region
    _
  $region9: #{model_a_forward.3} parent=0 // pred_fallthru
    _
  // Predicated region
  $region10: #{model_a_forward.3} parent=0 // pred_check
    _
  $region11: #{model_a_forward.3} parent=0 // pred_check_branch
    %13 = sbr.rel (0) target = $region13
  $region12: #{model_a_forward.3} parent=0 // pred_region
    _
  $region13: #{model_a_forward.3} parent=0 // pred_fallthru
    _
  %v15 = vld [vmem:[%s0] sm:$0xf]
  %v16 = vld [vmem:[%s0 + $0x4] sm:$0xf]
  %v17 = vld [vmem:[%s0 + $0x8] sm:$0xf]
  %v18 = vld [vmem:[%s0 + $0xc] sm:$0xf]
  %v19 = vld [vmem:[%s0 + $0x10] sm:$0xf]
  %v20 = vld [vmem:[%s0 + $0x14] sm:$0xf]
  %v21 = vld [vmem:[%s0 + $0x18] sm:$0xf]
  %v22 = vld [vmem:[%s0 + $0x1c] sm:$0xf]
  %v23 = vld [vmem:[%s0 + $0x20] sm:$0xf]
  %v24 = vld [vmem:[%s0 + $0x24] sm:$0xf]
  %v25 = vld [vmem:[%s0 + $0x28] sm:$0xf]
  %v26 = vld [vmem:[%s0 + $0x2c] sm:$0xf]
  %v27 = vld [vmem:[%s0 + $0x30] sm:$0xf]
  %v28 = vld [vmem:[%s0 + $0x34] sm:$0xf]
  %v29 = vld [vmem:[%s0 + $0x38] sm:$0xf]
  %v30 = vld [vmem:[%s0 + $0x3c] sm:$0xf]
  %v31 = vld [vmem:[%s0 + $0x40] sm:$0xf]
  %v32 = vld [vmem:[%s0 + $0x44] sm:$0xf]
  %v33 = vld [vmem:[%s0 + $0x48] sm:$0xf]
  %v34 = vld [vmem:[%s0 + $0x4c] sm:$0xf]
  %v35 = vld [vmem:[%s0 + $0x50] sm:$0xf]
  %v36 = vld [vmem:[%s0 + $0x54] sm:$0xf]
  %v37 = vld [vmem:[%s0 + $0x58] sm:$0xf]
  %v38 = vld [vmem:[%s0 + $0x5c] sm:$0xf]
  %v39 = vld [vmem:[%s0 + $0x60] sm:$0xf]
  %v40 = vld [vmem:[%s0 + $0x64] sm:$0xf]
  %v41 = vld [vmem:[%s0 + $0x68] sm:$0xf]
  %v42 = vld [vmem:[%s0 + $0x6c] sm:$0xf]
  %v43 = vld [vmem:[%s0 + $0x70] sm:$0xf]
  %v44 = vld [vmem:[%s0 + $0x74] sm:$0xf]
  %v45 = vld [vmem:[%s0 + $0x78] sm:$0xf]
  %v46 = vld [vmem:[%s0 + $0x7c] sm:$0xf]
  %v47 = vld [vmem:[%s0 + $0x80] sm:$0xf]
  %v48 = vld [vmem:[%s0 + $0x84] sm:$0xf]
  %v49 = vld [vmem:[%s0 + $0x88] sm:$0xf]
  %v50 = vld [vmem:[%s0 + $0x8c] sm:$0xf]
  %v51 = vld [vmem:[%s0 + $0x90] sm:$0xf]
  %v52 = vld [vmem:[%s0 + $0x94] sm:$0xf]
  %v53 = vld [vmem:[%s0 + $0x98] sm:$0xf]
  %v54 = vld [vmem:[%s0 + $0x9c] sm:$0xf]
  %v55 = vld [vmem:[%s0 + $0xa0] sm:$0xf]
  %v56 = vld [vmem:[%s0 + $0xa4] sm:$0xf]
  %v57 = vld [vmem:[%s0 + $0xa8] sm:$0xf]
  %v58 = vld [vmem:[%s0 + $0xac] sm:$0xf]
  %v59 = vld [vmem:[%s0 + $0xb0] sm:$0xf]
  %v60 = vld [vmem:[%s0 + $0xb4] sm:$0xf]
  %v61 = vld [vmem:[%s0 + $0xb8] sm:$0xf]
  %v62 = vld [vmem:[%s0 + $0xbc] sm:$0xf]
  %v63 = vld [vmem:[%s0 + $0xc0] sm:$0xf]
  %v64 = vld [vmem:[%s0 + $0xc4] sm:$0xf]
  %v65 = vld [vmem:[%s0 + $0xc8] sm:$0xf]
  %v66 = vld [vmem:[%s0 + $0xcc] sm:$0xf]
  %v67 = vld [vmem:[%s0 + $0xd0] sm:$0xf]
  %v68 = vld [vmem:[%s0 + $0xd4] sm:$0xf]
  %v69 = vld [vmem:[%s0 + $0xd8] sm:$0xf]
  %v70 = vld [vmem:[%s0 + $0xdc] sm:$0xf]
  %v71 = vld [vmem:[%s0 + $0xe0] sm:$0xf]
  %v72 = vld [vmem:[%s0 + $0xe4] sm:$0xf]
  %v73 = vld [vmem:[%s0 + $0xe8] sm:$0xf]
  %v74 = vld [vmem:[%s0 + $0xec] sm:$0xf]
  %v75 = vld [vmem:[%s0 + $0xf0] sm:$0xf]
  %v76 = vld [vmem:[%s0 + $0xf4] sm:$0xf]
  %v77 = vld [vmem:[%s0 + $0xf8] sm:$0xf]
  %v78 = vld [vmem:[%s0 + $0xfc] sm:$0xf]
  %v79 = vld [vmem:[%s0 + $0x100] sm:$0xf]
  %v80 = vld [vmem:[%s0 + $0x104] sm:$0xf]
  %v81 = vld [vmem:[%s0 + $0x108] sm:$0xf]
  %v82 = vld [vmem:[%s0 + $0x10c] sm:$0xf]
  %v83 = vld [vmem:[%s0 + $0x110] sm:$0xf]
  %v84 = vld [vmem:[%s0 + $0x114] sm:$0xf]
  %v85 = vld [vmem:[%s0 + $0x118] sm:$0xf]
  %v86 = vld [vmem:[%s0 + $0x11c] sm:$0xf]
  %v87 = vld [vmem:[%s0 + $0x120] sm:$0xf]
  %v88 = vld [vmem:[%s0 + $0x124] sm:$0xf]
  %v89 = vld [vmem:[%s0 + $0x128] sm:$0xf]
  %v90 = vld [vmem:[%s0 + $0x12c] sm:$0xf]
  %v91 = vld [vmem:[%s0 + $0x130] sm:$0xf]
  %v92 = vld [vmem:[%s0 + $0x134] sm:$0xf]
  %v93 = vld [vmem:[%s0 + $0x138] sm:$0xf]
  %v94 = vld [vmem:[%s0 + $0x13c] sm:$0xf]
  %v95 = vld [vmem:[%s0 + $0x140] sm:$0xf]
  %v96 = vld [vmem:[%s0 + $0x144] sm:$0xf]
  %v97 = vld [vmem:[%s0 + $0x148] sm:$0xf]
  %v98 = vld [vmem:[%s0 + $0x14c] sm:$0xf]
  %v99 = vld [vmem:[%s0 + $0x150] sm:$0xf]
  %v100 = vld [vmem:[%s0 + $0x154] sm:$0xf]
  %v101 = vld [vmem:[%s0 + $0x158] sm:$0xf]
  %v102 = vld [vmem:[%s0 + $0x15c] sm:$0xf]
  %v103 = vld [vmem:[%s0 + $0x160] sm:$0xf]
  %v104 = vld [vmem:[%s0 + $0x164] sm:$0xf]
  %v105 = vld [vmem:[%s0 + $0x168] sm:$0xf]
  %v106 = vld [vmem:[%s0 + $0x16c] sm:$0xf]
  %v107 = vld [vmem:[%s0 + $0x170] sm:$0xf]
  %v108 = vld [vmem:[%s0 + $0x174] sm:$0xf]
  %v109 = vld [vmem:[%s0 + $0x178] sm:$0xf]
  %v110 = vld [vmem:[%s0 + $0x17c] sm:$0xf]
  %v111 = vld [vmem:[%s0 + $0x180] sm:$0xf]
  %v112 = vld [vmem:[%s0 + $0x184] sm:$0xf]
  %v113 = vld [vmem:[%s0 + $0x188] sm:$0xf]
  %v114 = vld [vmem:[%s0 + $0x18c] sm:$0xf]
  %v115 = vld [vmem:[%s0 + $0x190] sm:$0xf]
  %v116 = vld [vmem:[%s0 + $0x194] sm:$0xf]
  %v117 = vld [vmem:[%s0 + $0x198] sm:$0xf]
  %v118 = vld [vmem:[%s0 + $0x19c] sm:$0xf]
  %v119 = vld [vmem:[%s0 + $0x1a0] sm:$0xf]
  %v120 = vld [vmem:[%s0 + $0x1a4] sm:$0xf]
  %v121 = vld [vmem:[%s0 + $0x1a8] sm:$0xf]
  %v122 = vld [vmem:[%s0 + $0x1ac] sm:$0xf]
  %v123 = vld [vmem:[%s0 + $0x1b0] sm:$0xf]
  %v124 = vld [vmem:[%s0 + $0x1b4] sm:$0xf]
  %v125 = vld [vmem:[%s0 + $0x1b8] sm:$0xf]
  %v126 = vld [vmem:[%s0 + $0x1bc] sm:$0xf]
  %v127 = vld [vmem:[%s1] sm:$0xf]
  %v128 = vld [vmem:[%s1 + $0x4] sm:$0xf]
  %v129 = vld [vmem:[%s1 + $0x8] sm:$0xf]
  %v130 = vld [vmem:[%s1 + $0xc] sm:$0xf]
  %v131 = vld [vmem:[%s1 + $0x10] sm:$0xf]
  %v132 = vld [vmem:[%s1 + $0x14] sm:$0xf]
  %v133 = vld [vmem:[%s1 + $0x18] sm:$0xf]
  %v134 = vld [vmem:[%s2] sm:$0x1]
  %v136 = vperm.slane %v134, 0
  %v250 = vunpack.c.l.b16 %v15
  %v251 = vunpack.c.l.b16 %v16
  %v252 = vunpack.c.l.b16 %v17
  %v253 = vunpack.c.l.b16 %v18
  %v254 = vunpack.c.l.b16 %v19
  %v255 = vunpack.c.l.b16 %v20
  %v256 = vunpack.c.l.b16 %v21
  %v257 = vunpack.c.l.b16 %v22
  %v258 = vunpack.c.l.b16 %v23
  %v259 = vunpack.c.l.b16 %v24
  %v260 = vunpack.c.l.b16 %v25
  %v261 = vunpack.c.l.b16 %v26
  %v262 = vunpack.c.l.b16 %v27
  %v263 = vunpack.c.l.b16 %v28
  %v264 = vunpack.c.l.b16 %v29
  %v265 = vunpack.c.l.b16 %v30
  %v266 = vunpack.c.l.b16 %v31
  %v267 = vunpack.c.l.b16 %v32
  %v268 = vunpack.c.l.b16 %v33
  %v269 = vunpack.c.l.b16 %v34
  %v270 = vunpack.c.l.b16 %v35
  %v271 = vunpack.c.l.b16 %v36
  %v272 = vunpack.c.l.b16 %v37
  %v273 = vunpack.c.l.b16 %v38
  %v274 = vunpack.c.l.b16 %v39
  %v275 = vunpack.c.l.b16 %v40
  %v276 = vunpack.c.l.b16 %v41
  %v277 = vunpack.c.l.b16 %v42
  %v278 = vunpack.c.l.b16 %v43
  %v279 = vunpack.c.l.b16 %v44
  %v280 = vunpack.c.l.b16 %v45
  %v281 = vunpack.c.l.b16 %v46
  %v282 = vunpack.c.l.b16 %v47
  %v283 = vunpack.c.l.b16 %v48
  %v284 = vunpack.c.l.b16 %v49
  %v285 = vunpack.c.l.b16 %v50
  %v286 = vunpack.c.l.b16 %v51
  %v287 = vunpack.c.l.b16 %v52
  %v288 = vunpack.c.l.b16 %v53
  %v289 = vunpack.c.l.b16 %v54
  %v290 = vunpack.c.l.b16 %v55
  %v291 = vunpack.c.l.b16 %v56
  %v292 = vunpack.c.l.b16 %v57
  %v293 = vunpack.c.l.b16 %v58
  %v294 = vunpack.c.l.b16 %v59
  %v295 = vunpack.c.l.b16 %v60
  %v296 = vunpack.c.l.b16 %v61
  %v297 = vunpack.c.l.b16 %v62
  %v298 = vunpack.c.l.b16 %v63
  %v299 = vunpack.c.l.b16 %v64
  %v300 = vunpack.c.l.b16 %v65
  %v301 = vunpack.c.l.b16 %v66
  %v302 = vunpack.c.l.b16 %v67
  %v303 = vunpack.c.l.b16 %v68
  %v304 = vunpack.c.l.b16 %v69
  %v305 = vunpack.c.l.b16 %v70
  %v306 = vunpack.c.l.b16 %v71
  %v307 = vunpack.c.l.b16 %v72
  %v308 = vunpack.c.l.b16 %v73
  %v309 = vunpack.c.l.b16 %v74
  %v310 = vunpack.c.l.b16 %v75
  %v311 = vunpack.c.l.b16 %v76
  %v312 = vunpack.c.l.b16 %v77
  %v313 = vunpack.c.l.b16 %v78
  %v314 = vunpack.c.l.b16 %v79
  %v315 = vunpack.c.l.b16 %v80
  %v316 = vunpack.c.l.b16 %v81
  %v317 = vunpack.c.l.b16 %v82
  %v318 = vunpack.c.l.b16 %v83
  %v319 = vunpack.c.l.b16 %v84
  %v320 = vunpack.c.l.b16 %v85
  %v321 = vunpack.c.l.b16 %v86
  %v322 = vunpack.c.l.b16 %v87
  %v323 = vunpack.c.l.b16 %v88
  %v324 = vunpack.c.l.b16 %v89
  %v325 = vunpack.c.l.b16 %v90
  %v326 = vunpack.c.l.b16 %v91
  %v327 = vunpack.c.l.b16 %v92
  %v328 = vunpack.c.l.b16 %v93
  %v329 = vunpack.c.l.b16 %v94
  %v330 = vunpack.c.l.b16 %v95
  %v331 = vunpack.c.l.b16 %v96
  %v332 = vunpack.c.l.b16 %v97
  %v333 = vunpack.c.l.b16 %v98
  %v334 = vunpack.c.l.b16 %v99
  %v335 = vunpack.c.l.b16 %v100
  %v336 = vunpack.c.l.b16 %v101
  %v337 = vunpack.c.l.b16 %v102
  %v338 = vunpack.c.l.b16 %v103
  %v339 = vunpack.c.l.b16 %v104
  %v340 = vunpack.c.l.b16 %v105
  %v341 = vunpack.c.l.b16 %v106
  %v342 = vunpack.c.l.b16 %v107
  %v343 = vunpack.c.l.b16 %v108
  %v344 = vunpack.c.l.b16 %v109
  %v345 = vunpack.c.l.b16 %v110
  %v346 = vunpack.c.l.b16 %v111
  %v347 = vunpack.c.l.b16 %v112
  %v348 = vunpack.c.l.b16 %v113
  %v349 = vunpack.c.l.b16 %v114
  %v350 = vunpack.c.l.b16 %v115
  %v351 = vunpack.c.l.b16 %v116
  %v352 = vunpack.c.l.b16 %v117
  %v353 = vunpack.c.l.b16 %v118
  %v354 = vunpack.c.l.b16 %v119
  %v355 = vunpack.c.l.b16 %v120
  %v356 = vunpack.c.l.b16 %v121
  %v357 = vunpack.c.l.b16 %v122
  %v358 = vunpack.c.l.b16 %v123
  %v359 = vunpack.c.l.b16 %v124
  %v360 = vunpack.c.l.b16 %v125
  %v361 = vunpack.c.l.b16 %v126
  %v362 = vpack.c.b16 %v251, %v250
  %v363 = vpack.c.b16 %v253, %v252
  %v364 = vpack.c.b16 %v255, %v254
  %v365 = vpack.c.b16 %v257, %v256
  %v366 = vpack.c.b16 %v259, %v258
  %v367 = vpack.c.b16 %v261, %v260
  %v368 = vpack.c.b16 %v263, %v262
  %v369 = vpack.c.b16 %v265, %v264
  %v370 = vpack.c.b16 %v267, %v266
  %v371 = vpack.c.b16 %v269, %v268
  %v372 = vpack.c.b16 %v271, %v270
  %v373 = vpack.c.b16 %v273, %v272
  %v374 = vpack.c.b16 %v275, %v274
  %v375 = vpack.c.b16 %v277, %v276
  %v376 = vpack.c.b16 %v279, %v278
  %v377 = vpack.c.b16 %v281, %v280
  %v378 = vpack.c.b16 %v283, %v282
  %v379 = vpack.c.b16 %v285, %v284
  %v380 = vpack.c.b16 %v287, %v286
  %v381 = vpack.c.b16 %v289, %v288
  %v382 = vpack.c.b16 %v291, %v290
  %v383 = vpack.c.b16 %v293, %v292
  %v384 = vpack.c.b16 %v295, %v294
  %v385 = vpack.c.b16 %v297, %v296
  %v386 = vpack.c.b16 %v299, %v298
  %v387 = vpack.c.b16 %v301, %v300
  %v388 = vpack.c.b16 %v303, %v302
  %v389 = vpack.c.b16 %v305, %v304
  %v390 = vpack.c.b16 %v307, %v306
  %v391 = vpack.c.b16 %v309, %v308
  %v392 = vpack.c.b16 %v311, %v310
  %v393 = vpack.c.b16 %v313, %v312
  %v394 = vpack.c.b16 %v315, %v314
  %v395 = vpack.c.b16 %v317, %v316
  %v396 = vpack.c.b16 %v319, %v318
  %v397 = vpack.c.b16 %v321, %v320
  %v398 = vpack.c.b16 %v323, %v322
  %v399 = vpack.c.b16 %v325, %v324
  %v400 = vpack.c.b16 %v327, %v326
  %v401 = vpack.c.b16 %v329, %v328
  %v402 = vpack.c.b16 %v331, %v330
  %v403 = vpack.c.b16 %v333, %v332
  %v404 = vpack.c.b16 %v335, %v334
  %v405 = vpack.c.b16 %v337, %v336
  %v406 = vpack.c.b16 %v339, %v338
  %v407 = vpack.c.b16 %v341, %v340
  %v408 = vpack.c.b16 %v343, %v342
  %v409 = vpack.c.b16 %v345, %v344
  %v410 = vpack.c.b16 %v347, %v346
  %v411 = vpack.c.b16 %v349, %v348
  %v412 = vpack.c.b16 %v351, %v350
  %v413 = vpack.c.b16 %v353, %v352
  %v414 = vpack.c.b16 %v355, %v354
  %v415 = vpack.c.b16 %v357, %v356
  %v416 = vpack.c.b16 %v359, %v358
  %v417 = vpack.c.b16 %v361, %v360
  %v425 = vunpack.c.l.b16 %v127
  %v426 = vunpack.c.l.b16 %v128
  %v427 = vunpack.c.l.b16 %v129
  %v428 = vunpack.c.l.b16 %v130
  %v429 = vunpack.c.l.b16 %v131
  %v430 = vunpack.c.l.b16 %v132
  %v431 = vunpack.c.l.b16 %v133
  %v432 = vpack.c.b16 %v426, %v425
  %v433 = vpack.c.b16 %v428, %v427
  %v434 = vpack.c.b16 %v430, %v429
  %v435 = vpack.c.b16 %v431, %v431
  %vm439 = vcmask 457728
  %v441 = vsel %vm439, %v362, 0
  %v444 = vsel %vm439, %v363, 0
  %v447 = vsel %vm439, %v364, 0
  %v450 = vsel %vm439, %v365, 0
  %v453 = vsel %vm439, %v366, 0
  %v456 = vsel %vm439, %v367, 0
  %v459 = vsel %vm439, %v368, 0
  %v462 = vsel %vm439, %v369, 0
  %v465 = vsel %vm439, %v370, 0
  %v468 = vsel %vm439, %v371, 0
  %v471 = vsel %vm439, %v372, 0
  %v474 = vsel %vm439, %v373, 0
  %v477 = vsel %vm439, %v374, 0
  %v480 = vsel %vm439, %v375, 0
  %v483 = vsel %vm439, %v376, 0
  %v486 = vsel %vm439, %v377, 0
  %v489 = vsel %vm439, %v378, 0
  %v492 = vsel %vm439, %v379, 0
  %v495 = vsel %vm439, %v380, 0
  %v498 = vsel %vm439, %v381, 0
  %v501 = vsel %vm439, %v382, 0
  %v504 = vsel %vm439, %v383, 0
  %v507 = vsel %vm439, %v384, 0
  %v510 = vsel %vm439, %v385, 0
  %v513 = vsel %vm439, %v386, 0
  %v516 = vsel %vm439, %v387, 0
  %v519 = vsel %vm439, %v388, 0
  %v522 = vsel %vm439, %v389, 0
  %v525 = vsel %vm439, %v390, 0
  %v528 = vsel %vm439, %v391, 0
  %v531 = vsel %vm439, %v392, 0
  %v534 = vsel %vm439, %v393, 0
  %v537 = vsel %vm439, %v394, 0
  %v540 = vsel %vm439, %v395, 0
  %v543 = vsel %vm439, %v396, 0
  %v546 = vsel %vm439, %v397, 0
  %v549 = vsel %vm439, %v398, 0
  %v552 = vsel %vm439, %v399, 0
  %v555 = vsel %vm439, %v400, 0
  %v558 = vsel %vm439, %v401, 0
  %v561 = vsel %vm439, %v402, 0
  %v564 = vsel %vm439, %v403, 0
  %v567 = vsel %vm439, %v404, 0
  %v570 = vsel %vm439, %v405, 0
  %v573 = vsel %vm439, %v406, 0
  %v576 = vsel %vm439, %v407, 0
  %v579 = vsel %vm439, %v408, 0
  %v582 = vsel %vm439, %v409, 0
  %v585 = vsel %vm439, %v410, 0
  %v588 = vsel %vm439, %v411, 0
  %v591 = vsel %vm439, %v412, 0
  %v594 = vsel %vm439, %v413, 0
  %v597 = vsel %vm439, %v414, 0
  %v600 = vsel %vm439, %v415, 0
  %v603 = vsel %vm439, %v416, 0
  %v606 = vsel %vm439, %v417, 0
  %vm608 = vcmask 1043456
  %v610 = vsel %vm608, %v435, 0
  %612 = vmatpush.bf16.msra.mxu0 0
  %613 = vmatpush.bf16.msra.mxu0 0
  %614 = vmatpush.bf16.msra.mxu0 0
  %615 = vmatpush.bf16.msra.mxu0 0
  %616 = vmatpush.bf16.msra.mxu0 %v610
  %617 = vmatpush.bf16.msra.mxu0 %v434
  %618 = vmatpush.bf16.msra.mxu0 %v433
  %619 = vmatpush.bf16.msra.mxu0 %v432
  %620 = vmatmul.bf16.gmra.mxu0 %v441
  %v621 = vpop.f32.mrf.mxu0
  %v622 = vadd.f32 %v136, %v621
  %v623 = vpop.f32.mrf.mxu0
  %v624 = vadd.f32 %v136, %v623
  %625 = vmatmul.bf16.gmra.mxu0 %v444
  %v626 = vpop.f32.mrf.mxu0
  %v627 = vadd.f32 %v136, %v626
  %v628 = vpop.f32.mrf.mxu0
  %v629 = vadd.f32 %v136, %v628
  %630 = vmatmul.bf16.gmra.mxu0 %v447
  %v631 = vpop.f32.mrf.mxu0
  %v632 = vadd.f32 %v136, %v631
  %v633 = vpop.f32.mrf.mxu0
  %v634 = vadd.f32 %v136, %v633
  %635 = vmatmul.bf16.gmra.mxu0 %v450
  %v636 = vpop.f32.mrf.mxu0
  %v637 = vadd.f32 %v136, %v636
  %v638 = vpop.f32.mrf.mxu0
  %v639 = vadd.f32 %v136, %v638
  %640 = vmatmul.bf16.gmra.mxu0 %v453
  %v641 = vpop.f32.mrf.mxu0
  %v642 = vadd.f32 %v136, %v641
  %v643 = vpop.f32.mrf.mxu0
  %v644 = vadd.f32 %v136, %v643
  %645 = vmatmul.bf16.gmra.mxu0 %v456
  %v646 = vpop.f32.mrf.mxu0
  %v647 = vadd.f32 %v136, %v646
  %v648 = vpop.f32.mrf.mxu0
  %v649 = vadd.f32 %v136, %v648
  %650 = vmatmul.bf16.gmra.mxu0 %v459
  %v651 = vpop.f32.mrf.mxu0
  %v652 = vadd.f32 %v136, %v651
  %v653 = vpop.f32.mrf.mxu0
  %v654 = vadd.f32 %v136, %v653
  %655 = vmatmul.bf16.gmra.mxu0 %v462
  %v656 = vpop.f32.mrf.mxu0
  %v657 = vadd.f32 %v136, %v656
  %v658 = vpop.f32.mrf.mxu0
  %v659 = vadd.f32 %v136, %v658
  %660 = vmatmul.bf16.gmra.mxu0 %v465
  %v661 = vpop.f32.mrf.mxu0
  %v662 = vadd.f32 %v136, %v661
  %v663 = vpop.f32.mrf.mxu0
  %v664 = vadd.f32 %v136, %v663
  %665 = vmatmul.bf16.gmra.mxu0 %v468
  %v666 = vpop.f32.mrf.mxu0
  %v667 = vadd.f32 %v136, %v666
  %v668 = vpop.f32.mrf.mxu0
  %v669 = vadd.f32 %v136, %v668
  %670 = vmatmul.bf16.gmra.mxu0 %v471
  %v671 = vpop.f32.mrf.mxu0
  %v672 = vadd.f32 %v136, %v671
  %v673 = vpop.f32.mrf.mxu0
  %v674 = vadd.f32 %v136, %v673
  %675 = vmatmul.bf16.gmra.mxu0 %v474
  %v676 = vpop.f32.mrf.mxu0
  %v677 = vadd.f32 %v136, %v676
  %v678 = vpop.f32.mrf.mxu0
  %v679 = vadd.f32 %v136, %v678
  %680 = vmatmul.bf16.gmra.mxu0 %v477
  %v681 = vpop.f32.mrf.mxu0
  %v682 = vadd.f32 %v136, %v681
  %v683 = vpop.f32.mrf.mxu0
  %v684 = vadd.f32 %v136, %v683
  %685 = vmatmul.bf16.gmra.mxu0 %v480
  %v686 = vpop.f32.mrf.mxu0
  %v687 = vadd.f32 %v136, %v686
  %v688 = vpop.f32.mrf.mxu0
  %v689 = vadd.f32 %v136, %v688
  %690 = vmatmul.bf16.gmra.mxu0 %v483
  %v691 = vpop.f32.mrf.mxu0
  %v692 = vadd.f32 %v136, %v691
  %v693 = vpop.f32.mrf.mxu0
  %v694 = vadd.f32 %v136, %v693
  %695 = vmatmul.bf16.gmra.mxu0 %v486
  %v696 = vpop.f32.mrf.mxu0
  %v697 = vadd.f32 %v136, %v696
  %v698 = vpop.f32.mrf.mxu0
  %v699 = vadd.f32 %v136, %v698
  %700 = vmatmul.bf16.gmra.mxu0 %v489
  %v701 = vpop.f32.mrf.mxu0
  %v702 = vadd.f32 %v136, %v701
  %v703 = vpop.f32.mrf.mxu0
  %v704 = vadd.f32 %v136, %v703
  %705 = vmatmul.bf16.gmra.mxu0 %v492
  %v706 = vpop.f32.mrf.mxu0
  %v707 = vadd.f32 %v136, %v706
  %v708 = vpop.f32.mrf.mxu0
  %v709 = vadd.f32 %v136, %v708
  %710 = vmatmul.bf16.gmra.mxu0 %v495
  %v711 = vpop.f32.mrf.mxu0
  %v712 = vadd.f32 %v136, %v711
  %v713 = vpop.f32.mrf.mxu0
  %v714 = vadd.f32 %v136, %v713
  %715 = vmatmul.bf16.gmra.mxu0 %v498
  %v716 = vpop.f32.mrf.mxu0
  %v717 = vadd.f32 %v136, %v716
  %v718 = vpop.f32.mrf.mxu0
  %v719 = vadd.f32 %v136, %v718
  %720 = vmatmul.bf16.gmra.mxu0 %v501
  %v721 = vpop.f32.mrf.mxu0
  %v722 = vadd.f32 %v136, %v721
  %v723 = vpop.f32.mrf.mxu0
  %v724 = vadd.f32 %v136, %v723
  %725 = vmatmul.bf16.gmra.mxu0 %v504
  %v726 = vpop.f32.mrf.mxu0
  %v727 = vadd.f32 %v136, %v726
  %v728 = vpop.f32.mrf.mxu0
  %v729 = vadd.f32 %v136, %v728
  %730 = vmatmul.bf16.gmra.mxu0 %v507
  %v731 = vpop.f32.mrf.mxu0
  %v732 = vadd.f32 %v136, %v731
  %v733 = vpop.f32.mrf.mxu0
  %v734 = vadd.f32 %v136, %v733
  %735 = vmatmul.bf16.gmra.mxu0 %v510
  %v736 = vpop.f32.mrf.mxu0
  %v737 = vadd.f32 %v136, %v736
  %v738 = vpop.f32.mrf.mxu0
  %v739 = vadd.f32 %v136, %v738
  %740 = vmatmul.bf16.gmra.mxu0 %v513
  %v741 = vpop.f32.mrf.mxu0
  %v742 = vadd.f32 %v136, %v741
  %v743 = vpop.f32.mrf.mxu0
  %v744 = vadd.f32 %v136, %v743
  %745 = vmatmul.bf16.gmra.mxu0 %v516
  %v746 = vpop.f32.mrf.mxu0
  %v747 = vadd.f32 %v136, %v746
  %v748 = vpop.f32.mrf.mxu0
  %v749 = vadd.f32 %v136, %v748
  %750 = vmatmul.bf16.gmra.mxu0 %v519
  %v751 = vpop.f32.mrf.mxu0
  %v752 = vadd.f32 %v136, %v751
  %v753 = vpop.f32.mrf.mxu0
  %v754 = vadd.f32 %v136, %v753
  %755 = vmatmul.bf16.gmra.mxu0 %v522
  %v756 = vpop.f32.mrf.mxu0
  %v757 = vadd.f32 %v136, %v756
  %v758 = vpop.f32.mrf.mxu0
  %v759 = vadd.f32 %v136, %v758
  %760 = vmatmul.bf16.gmra.mxu0 %v525
  %v761 = vpop.f32.mrf.mxu0
  %v762 = vadd.f32 %v136, %v761
  %v763 = vpop.f32.mrf.mxu0
  %v764 = vadd.f32 %v136, %v763
  %765 = vmatmul.bf16.gmra.mxu0 %v528
  %v766 = vpop.f32.mrf.mxu0
  %v767 = vadd.f32 %v136, %v766
  %v768 = vpop.f32.mrf.mxu0
  %v769 = vadd.f32 %v136, %v768
  %770 = vmatmul.bf16.gmra.mxu0 %v531
  %v771 = vpop.f32.mrf.mxu0
  %v772 = vadd.f32 %v136, %v771
  %v773 = vpop.f32.mrf.mxu0
  %v774 = vadd.f32 %v136, %v773
  %775 = vmatmul.bf16.gmra.mxu0 %v534
  %v776 = vpop.f32.mrf.mxu0
  %v777 = vadd.f32 %v136, %v776
  %v778 = vpop.f32.mrf.mxu0
  %v779 = vadd.f32 %v136, %v778
  %780 = vmatmul.bf16.gmra.mxu0 %v537
  %v781 = vpop.f32.mrf.mxu0
  %v782 = vadd.f32 %v136, %v781
  %v783 = vpop.f32.mrf.mxu0
  %v784 = vadd.f32 %v136, %v783
  %785 = vmatmul.bf16.gmra.mxu0 %v540
  %v786 = vpop.f32.mrf.mxu0
  %v787 = vadd.f32 %v136, %v786
  %v788 = vpop.f32.mrf.mxu0
  %v789 = vadd.f32 %v136, %v788
  %790 = vmatmul.bf16.gmra.mxu0 %v543
  %v791 = vpop.f32.mrf.mxu0
  %v792 = vadd.f32 %v136, %v791
  %v793 = vpop.f32.mrf.mxu0
  %v794 = vadd.f32 %v136, %v793
  %795 = vmatmul.bf16.gmra.mxu0 %v546
  %v796 = vpop.f32.mrf.mxu0
  %v797 = vadd.f32 %v136, %v796
  %v798 = vpop.f32.mrf.mxu0
  %v799 = vadd.f32 %v136, %v798
  %800 = vmatmul.bf16.gmra.mxu0 %v549
  %v801 = vpop.f32.mrf.mxu0
  %v802 = vadd.f32 %v136, %v801
  %v803 = vpop.f32.mrf.mxu0
  %v804 = vadd.f32 %v136, %v803
  %805 = vmatmul.bf16.gmra.mxu0 %v552
  %v806 = vpop.f32.mrf.mxu0
  %v807 = vadd.f32 %v136, %v806
  %v808 = vpop.f32.mrf.mxu0
  %v809 = vadd.f32 %v136, %v808
  %810 = vmatmul.bf16.gmra.mxu0 %v555
  %v811 = vpop.f32.mrf.mxu0
  %v812 = vadd.f32 %v136, %v811
  %v813 = vpop.f32.mrf.mxu0
  %v814 = vadd.f32 %v136, %v813
  %815 = vmatmul.bf16.gmra.mxu0 %v558
  %v816 = vpop.f32.mrf.mxu0
  %v817 = vadd.f32 %v136, %v816
  %v818 = vpop.f32.mrf.mxu0
  %v819 = vadd.f32 %v136, %v818
  %820 = vmatmul.bf16.gmra.mxu0 %v561
  %v821 = vpop.f32.mrf.mxu0
  %v822 = vadd.f32 %v136, %v821
  %v823 = vpop.f32.mrf.mxu0
  %v824 = vadd.f32 %v136, %v823
  %825 = vmatmul.bf16.gmra.mxu0 %v564
  %v826 = vpop.f32.mrf.mxu0
  %v827 = vadd.f32 %v136, %v826
  %v828 = vpop.f32.mrf.mxu0
  %v829 = vadd.f32 %v136, %v828
  %830 = vmatmul.bf16.gmra.mxu0 %v567
  %v831 = vpop.f32.mrf.mxu0
  %v832 = vadd.f32 %v136, %v831
  %v833 = vpop.f32.mrf.mxu0
  %v834 = vadd.f32 %v136, %v833
  %835 = vmatmul.bf16.gmra.mxu0 %v570
  %v836 = vpop.f32.mrf.mxu0
  %v837 = vadd.f32 %v136, %v836
  %v838 = vpop.f32.mrf.mxu0
  %v839 = vadd.f32 %v136, %v838
  %840 = vmatmul.bf16.gmra.mxu0 %v573
  %v841 = vpop.f32.mrf.mxu0
  %v842 = vadd.f32 %v136, %v841
  %v843 = vpop.f32.mrf.mxu0
  %v844 = vadd.f32 %v136, %v843
  %845 = vmatmul.bf16.gmra.mxu0 %v576
  %v846 = vpop.f32.mrf.mxu0
  %v847 = vadd.f32 %v136, %v846
  %v848 = vpop.f32.mrf.mxu0
  %v849 = vadd.f32 %v136, %v848
  %850 = vmatmul.bf16.gmra.mxu0 %v579
  %v851 = vpop.f32.mrf.mxu0
  %v852 = vadd.f32 %v136, %v851
  %v853 = vpop.f32.mrf.mxu0
  %v854 = vadd.f32 %v136, %v853
  %855 = vmatmul.bf16.gmra.mxu0 %v582
  %v856 = vpop.f32.mrf.mxu0
  %v857 = vadd.f32 %v136, %v856
  %v858 = vpop.f32.mrf.mxu0
  %v859 = vadd.f32 %v136, %v858
  %860 = vmatmul.bf16.gmra.mxu0 %v585
  %v861 = vpop.f32.mrf.mxu0
  %v862 = vadd.f32 %v136, %v861
  %v863 = vpop.f32.mrf.mxu0
  %v864 = vadd.f32 %v136, %v863
  %865 = vmatmul.bf16.gmra.mxu0 %v588
  %v866 = vpop.f32.mrf.mxu0
  %v867 = vadd.f32 %v136, %v866
  %v868 = vpop.f32.mrf.mxu0
  %v869 = vadd.f32 %v136, %v868
  %870 = vmatmul.bf16.gmra.mxu0 %v591
  %v871 = vpop.f32.mrf.mxu0
  %v872 = vadd.f32 %v136, %v871
  %v873 = vpop.f32.mrf.mxu0
  %v874 = vadd.f32 %v136, %v873
  %875 = vmatmul.bf16.gmra.mxu0 %v594
  %v876 = vpop.f32.mrf.mxu0
  %v877 = vadd.f32 %v136, %v876
  %v878 = vpop.f32.mrf.mxu0
  %v879 = vadd.f32 %v136, %v878
  %880 = vmatmul.bf16.gmra.mxu0 %v597
  %v881 = vpop.f32.mrf.mxu0
  %v882 = vadd.f32 %v136, %v881
  %v883 = vpop.f32.mrf.mxu0
  %v884 = vadd.f32 %v136, %v883
  %885 = vmatmul.bf16.gmra.mxu0 %v600
  %v886 = vpop.f32.mrf.mxu0
  %v887 = vadd.f32 %v136, %v886
  %v888 = vpop.f32.mrf.mxu0
  %v889 = vadd.f32 %v136, %v888
  %890 = vmatmul.bf16.gmra.mxu0 %v603
  %v891 = vpop.f32.mrf.mxu0
  %v892 = vadd.f32 %v136, %v891
  %v893 = vpop.f32.mrf.mxu0
  %v894 = vadd.f32 %v136, %v893
  %895 = vmatmul.bf16.gmra.mxu0 %v606
  %v896 = vpop.f32.mrf.mxu0
  %v897 = vadd.f32 %v136, %v896
  %v898 = vpop.f32.mrf.mxu0
  %v899 = vadd.f32 %v136, %v898
  %900 = vdwg.mxu0
  %v901 = vmax.f32 %v622, 0.0
  %v902 = vmax.f32 %v624, 0.0
  %v903 = vmax.f32 %v627, 0.0
  %v904 = vmax.f32 %v629, 0.0
  %v905 = vmax.f32 %v632, 0.0
  %v906 = vmax.f32 %v634, 0.0
  %v907 = vmax.f32 %v637, 0.0
  %v908 = vmax.f32 %v639, 0.0
  %v909 = vmax.f32 %v642, 0.0
  %v910 = vmax.f32 %v644, 0.0
  %v911 = vmax.f32 %v647, 0.0
  %v912 = vmax.f32 %v649, 0.0
  %v913 = vmax.f32 %v652, 0.0
  %v914 = vmax.f32 %v654, 0.0
  %v915 = vmax.f32 %v657, 0.0
  %v916 = vmax.f32 %v659, 0.0
  %v917 = vmax.f32 %v662, 0.0
  %v918 = vmax.f32 %v664, 0.0
  %v919 = vmax.f32 %v667, 0.0
  %v920 = vmax.f32 %v669, 0.0
  %v921 = vmax.f32 %v672, 0.0
  %v922 = vmax.f32 %v674, 0.0
  %v923 = vmax.f32 %v677, 0.0
  %v924 = vmax.f32 %v679, 0.0
  %v925 = vmax.f32 %v682, 0.0
  %v926 = vmax.f32 %v684, 0.0
  %v927 = vmax.f32 %v687, 0.0
  %v928 = vmax.f32 %v689, 0.0
  %v929 = vmax.f32 %v692, 0.0
  %v930 = vmax.f32 %v694, 0.0
  %v931 = vmax.f32 %v697, 0.0
  %v932 = vmax.f32 %v699, 0.0
  %v933 = vmax.f32 %v702, 0.0
  %v934 = vmax.f32 %v704, 0.0
  %v935 = vmax.f32 %v707, 0.0
  %v936 = vmax.f32 %v709, 0.0
  %v937 = vmax.f32 %v712, 0.0
  %v938 = vmax.f32 %v714, 0.0
  %v939 = vmax.f32 %v717, 0.0
  %v940 = vmax.f32 %v719, 0.0
  %v941 = vmax.f32 %v722, 0.0
  %v942 = vmax.f32 %v724, 0.0
  %v943 = vmax.f32 %v727, 0.0
  %v944 = vmax.f32 %v729, 0.0
  %v945 = vmax.f32 %v732, 0.0
  %v946 = vmax.f32 %v734, 0.0
  %v947 = vmax.f32 %v737, 0.0
  %v948 = vmax.f32 %v739, 0.0
  %v949 = vmax.f32 %v742, 0.0
  %v950 = vmax.f32 %v744, 0.0
  %v951 = vmax.f32 %v747, 0.0
  %v952 = vmax.f32 %v749, 0.0
  %v953 = vmax.f32 %v752, 0.0
  %v954 = vmax.f32 %v754, 0.0
  %v955 = vmax.f32 %v757, 0.0
  %v956 = vmax.f32 %v759, 0.0
  %v957 = vmax.f32 %v762, 0.0
  %v958 = vmax.f32 %v764, 0.0
  %v959 = vmax.f32 %v767, 0.0
  %v960 = vmax.f32 %v769, 0.0
  %v961 = vmax.f32 %v772, 0.0
  %v962 = vmax.f32 %v774, 0.0
  %v963 = vmax.f32 %v777, 0.0
  %v964 = vmax.f32 %v779, 0.0
  %v965 = vmax.f32 %v782, 0.0
  %v966 = vmax.f32 %v784, 0.0
  %v967 = vmax.f32 %v787, 0.0
  %v968 = vmax.f32 %v789, 0.0
  %v969 = vmax.f32 %v792, 0.0
  %v970 = vmax.f32 %v794, 0.0
  %v971 = vmax.f32 %v797, 0.0
  %v972 = vmax.f32 %v799, 0.0
  %v973 = vmax.f32 %v802, 0.0
  %v974 = vmax.f32 %v804, 0.0
  %v975 = vmax.f32 %v807, 0.0
  %v976 = vmax.f32 %v809, 0.0
  %v977 = vmax.f32 %v812, 0.0
  %v978 = vmax.f32 %v814, 0.0
  %v979 = vmax.f32 %v817, 0.0
  %v980 = vmax.f32 %v819, 0.0
  %v981 = vmax.f32 %v822, 0.0
  %v982 = vmax.f32 %v824, 0.0
  %v983 = vmax.f32 %v827, 0.0
  %v984 = vmax.f32 %v829, 0.0
  %v985 = vmax.f32 %v832, 0.0
  %v986 = vmax.f32 %v834, 0.0
  %v987 = vmax.f32 %v837, 0.0
  %v988 = vmax.f32 %v839, 0.0
  %v989 = vmax.f32 %v842, 0.0
  %v990 = vmax.f32 %v844, 0.0
  %v991 = vmax.f32 %v847, 0.0
  %v992 = vmax.f32 %v849, 0.0
  %v993 = vmax.f32 %v852, 0.0
  %v994 = vmax.f32 %v854, 0.0
  %v995 = vmax.f32 %v857, 0.0
  %v996 = vmax.f32 %v859, 0.0
  %v997 = vmax.f32 %v862, 0.0
  %v998 = vmax.f32 %v864, 0.0
  %v999 = vmax.f32 %v867, 0.0
  %v1000 = vmax.f32 %v869, 0.0
  %v1001 = vmax.f32 %v872, 0.0
  %v1002 = vmax.f32 %v874, 0.0
  %v1003 = vmax.f32 %v877, 0.0
  %v1004 = vmax.f32 %v879, 0.0
  %v1005 = vmax.f32 %v882, 0.0
  %v1006 = vmax.f32 %v884, 0.0
  %v1007 = vmax.f32 %v887, 0.0
  %v1008 = vmax.f32 %v889, 0.0
  %v1009 = vmax.f32 %v892, 0.0
  %v1010 = vmax.f32 %v894, 0.0
  %v1011 = vmax.f32 %v897, 0.0
  %v1012 = vmax.f32 %v899, 0.0
  %v1013 = vpack.c.bf16 %v901, %v901
  %v1014 = vpack.c.bf16 %v902, %v902
  %v1015 = vpack.c.bf16 %v903, %v903
  %v1016 = vpack.c.bf16 %v904, %v904
  %v1017 = vpack.c.bf16 %v905, %v905
  %v1018 = vpack.c.bf16 %v906, %v906
  %v1019 = vpack.c.bf16 %v907, %v907
  %v1020 = vpack.c.bf16 %v908, %v908
  %v1021 = vpack.c.bf16 %v909, %v909
  %v1022 = vpack.c.bf16 %v910, %v910
  %v1023 = vpack.c.bf16 %v911, %v911
  %v1024 = vpack.c.bf16 %v912, %v912
  %v1025 = vpack.c.bf16 %v913, %v913
  %v1026 = vpack.c.bf16 %v914, %v914
  %v1027 = vpack.c.bf16 %v915, %v915
  %v1028 = vpack.c.bf16 %v916, %v916
  %v1029 = vpack.c.bf16 %v917, %v917
  %v1030 = vpack.c.bf16 %v918, %v918
  %v1031 = vpack.c.bf16 %v919, %v919
  %v1032 = vpack.c.bf16 %v920, %v920
  %v1033 = vpack.c.bf16 %v921, %v921
  %v1034 = vpack.c.bf16 %v922, %v922
  %v1035 = vpack.c.bf16 %v923, %v923
  %v1036 = vpack.c.bf16 %v924, %v924
  %v1037 = vpack.c.bf16 %v925, %v925
  %v1038 = vpack.c.bf16 %v926, %v926
  %v1039 = vpack.c.bf16 %v927, %v927
  %v1040 = vpack.c.bf16 %v928, %v928
  %v1041 = vpack.c.bf16 %v929, %v929
  %v1042 = vpack.c.bf16 %v930, %v930
  %v1043 = vpack.c.bf16 %v931, %v931
  %v1044 = vpack.c.bf16 %v932, %v932
  %v1045 = vpack.c.bf16 %v933, %v933
  %v1046 = vpack.c.bf16 %v934, %v934
  %v1047 = vpack.c.bf16 %v935, %v935
  %v1048 = vpack.c.bf16 %v936, %v936
  %v1049 = vpack.c.bf16 %v937, %v937
  %v1050 = vpack.c.bf16 %v938, %v938
  %v1051 = vpack.c.bf16 %v939, %v939
  %v1052 = vpack.c.bf16 %v940, %v940
  %v1053 = vpack.c.bf16 %v941, %v941
  %v1054 = vpack.c.bf16 %v942, %v942
  %v1055 = vpack.c.bf16 %v943, %v943
  %v1056 = vpack.c.bf16 %v944, %v944
  %v1057 = vpack.c.bf16 %v945, %v945
  %v1058 = vpack.c.bf16 %v946, %v946
  %v1059 = vpack.c.bf16 %v947, %v947
  %v1060 = vpack.c.bf16 %v948, %v948
  %v1061 = vpack.c.bf16 %v949, %v949
  %v1062 = vpack.c.bf16 %v950, %v950
  %v1063 = vpack.c.bf16 %v951, %v951
  %v1064 = vpack.c.bf16 %v952, %v952
  %v1065 = vpack.c.bf16 %v953, %v953
  %v1066 = vpack.c.bf16 %v954, %v954
  %v1067 = vpack.c.bf16 %v955, %v955
  %v1068 = vpack.c.bf16 %v956, %v956
  %v1069 = vpack.c.bf16 %v957, %v957
  %v1070 = vpack.c.bf16 %v958, %v958
  %v1071 = vpack.c.bf16 %v959, %v959
  %v1072 = vpack.c.bf16 %v960, %v960
  %v1073 = vpack.c.bf16 %v961, %v961
  %v1074 = vpack.c.bf16 %v962, %v962
  %v1075 = vpack.c.bf16 %v963, %v963
  %v1076 = vpack.c.bf16 %v964, %v964
  %v1077 = vpack.c.bf16 %v965, %v965
  %v1078 = vpack.c.bf16 %v966, %v966
  %v1079 = vpack.c.bf16 %v967, %v967
  %v1080 = vpack.c.bf16 %v968, %v968
  %v1081 = vpack.c.bf16 %v969, %v969
  %v1082 = vpack.c.bf16 %v970, %v970
  %v1083 = vpack.c.bf16 %v971, %v971
  %v1084 = vpack.c.bf16 %v972, %v972
  %v1085 = vpack.c.bf16 %v973, %v973
  %v1086 = vpack.c.bf16 %v974, %v974
  %v1087 = vpack.c.bf16 %v975, %v975
  %v1088 = vpack.c.bf16 %v976, %v976
  %v1089 = vpack.c.bf16 %v977, %v977
  %v1090 = vpack.c.bf16 %v978, %v978
  %v1091 = vpack.c.bf16 %v979, %v979
  %v1092 = vpack.c.bf16 %v980, %v980
  %v1093 = vpack.c.bf16 %v981, %v981
  %v1094 = vpack.c.bf16 %v982, %v982
  %v1095 = vpack.c.bf16 %v983, %v983
  %v1096 = vpack.c.bf16 %v984, %v984
  %v1097 = vpack.c.bf16 %v985, %v985
  %v1098 = vpack.c.bf16 %v986, %v986
  %v1099 = vpack.c.bf16 %v987, %v987
  %v1100 = vpack.c.bf16 %v988, %v988
  %v1101 = vpack.c.bf16 %v989, %v989
  %v1102 = vpack.c.bf16 %v990, %v990
  %v1103 = vpack.c.bf16 %v991, %v991
  %v1104 = vpack.c.bf16 %v992, %v992
  %v1105 = vpack.c.bf16 %v993, %v993
  %v1106 = vpack.c.bf16 %v994, %v994
  %v1107 = vpack.c.bf16 %v995, %v995
  %v1108 = vpack.c.bf16 %v996, %v996
  %v1109 = vpack.c.bf16 %v997, %v997
  %v1110 = vpack.c.bf16 %v998, %v998
  %v1111 = vpack.c.bf16 %v999, %v999
  %v1112 = vpack.c.bf16 %v1000, %v1000
  %v1113 = vpack.c.bf16 %v1001, %v1001
  %v1114 = vpack.c.bf16 %v1002, %v1002
  %v1115 = vpack.c.bf16 %v1003, %v1003
  %v1116 = vpack.c.bf16 %v1004, %v1004
  %v1117 = vpack.c.bf16 %v1005, %v1005
  %v1118 = vpack.c.bf16 %v1006, %v1006
  %v1119 = vpack.c.bf16 %v1007, %v1007
  %v1120 = vpack.c.bf16 %v1008, %v1008
  %v1121 = vpack.c.bf16 %v1009, %v1009
  %v1122 = vpack.c.bf16 %v1010, %v1010
  %v1123 = vpack.c.bf16 %v1011, %v1011
  %v1124 = vpack.c.bf16 %v1012, %v1012
  %1125 = vst [vmem:[%s3] sm:$0xf] %v1013
  %1126 = vst [vmem:[%s3 + $0x4] sm:$0xf] %v1014
  %1127 = vst [vmem:[%s3 + $0x8] sm:$0xf] %v1015
  %1128 = vst [vmem:[%s3 + $0xc] sm:$0xf] %v1016
  %1129 = vst [vmem:[%s3 + $0x10] sm:$0xf] %v1017
  %1130 = vst [vmem:[%s3 + $0x14] sm:$0xf] %v1018
  %1131 = vst [vmem:[%s3 + $0x18] sm:$0xf] %v1019
  %1132 = vst [vmem:[%s3 + $0x1c] sm:$0xf] %v1020
  %1133 = vst [vmem:[%s3 + $0x20] sm:$0xf] %v1021
  %1134 = vst [vmem:[%s3 + $0x24] sm:$0xf] %v1022
  %1135 = vst [vmem:[%s3 + $0x28] sm:$0xf] %v1023
  %1136 = vst [vmem:[%s3 + $0x2c] sm:$0xf] %v1024
  %1137 = vst [vmem:[%s3 + $0x30] sm:$0xf] %v1025
  %1138 = vst [vmem:[%s3 + $0x34] sm:$0xf] %v1026
  %1139 = vst [vmem:[%s3 + $0x38] sm:$0xf] %v1027
  %1140 = vst [vmem:[%s3 + $0x3c] sm:$0xf] %v1028
  %1141 = vst [vmem:[%s3 + $0x40] sm:$0xf] %v1029
  %1142 = vst [vmem:[%s3 + $0x44] sm:$0xf] %v1030
  %1143 = vst [vmem:[%s3 + $0x48] sm:$0xf] %v1031
  %1144 = vst [vmem:[%s3 + $0x4c] sm:$0xf] %v1032
  %1145 = vst [vmem:[%s3 + $0x50] sm:$0xf] %v1033
  %1146 = vst [vmem:[%s3 + $0x54] sm:$0xf] %v1034
  %1147 = vst [vmem:[%s3 + $0x58] sm:$0xf] %v1035
  %1148 = vst [vmem:[%s3 + $0x5c] sm:$0xf] %v1036
  %1149 = vst [vmem:[%s3 + $0x60] sm:$0xf] %v1037
  %1150 = vst [vmem:[%s3 + $0x64] sm:$0xf] %v1038
  %1151 = vst [vmem:[%s3 + $0x68] sm:$0xf] %v1039
  %1152 = vst [vmem:[%s3 + $0x6c] sm:$0xf] %v1040
  %1153 = vst [vmem:[%s3 + $0x70] sm:$0xf] %v1041
  %1154 = vst [vmem:[%s3 + $0x74] sm:$0xf] %v1042
  %1155 = vst [vmem:[%s3 + $0x78] sm:$0xf] %v1043
  %1156 = vst [vmem:[%s3 + $0x7c] sm:$0xf] %v1044
  %1157 = vst [vmem:[%s3 + $0x80] sm:$0xf] %v1045
  %1158 = vst [vmem:[%s3 + $0x84] sm:$0xf] %v1046
  %1159 = vst [vmem:[%s3 + $0x88] sm:$0xf] %v1047
  %1160 = vst [vmem:[%s3 + $0x8c] sm:$0xf] %v1048
  %1161 = vst [vmem:[%s3 + $0x90] sm:$0xf] %v1049
  %1162 = vst [vmem:[%s3 + $0x94] sm:$0xf] %v1050
  %1163 = vst [vmem:[%s3 + $0x98] sm:$0xf] %v1051
  %1164 = vst [vmem:[%s3 + $0x9c] sm:$0xf] %v1052
  %1165 = vst [vmem:[%s3 + $0xa0] sm:$0xf] %v1053
  %1166 = vst [vmem:[%s3 + $0xa4] sm:$0xf] %v1054
  %1167 = vst [vmem:[%s3 + $0xa8] sm:$0xf] %v1055
  %1168 = vst [vmem:[%s3 + $0xac] sm:$0xf] %v1056
  %1169 = vst [vmem:[%s3 + $0xb0] sm:$0xf] %v1057
  %1170 = vst [vmem:[%s3 + $0xb4] sm:$0xf] %v1058
  %1171 = vst [vmem:[%s3 + $0xb8] sm:$0xf] %v1059
  %1172 = vst [vmem:[%s3 + $0xbc] sm:$0xf] %v1060
  %1173 = vst [vmem:[%s3 + $0xc0] sm:$0xf] %v1061
  %1174 = vst [vmem:[%s3 + $0xc4] sm:$0xf] %v1062
  %1175 = vst [vmem:[%s3 + $0xc8] sm:$0xf] %v1063
  %1176 = vst [vmem:[%s3 + $0xcc] sm:$0xf] %v1064
  %1177 = vst [vmem:[%s3 + $0xd0] sm:$0xf] %v1065
  %1178 = vst [vmem:[%s3 + $0xd4] sm:$0xf] %v1066
  %1179 = vst [vmem:[%s3 + $0xd8] sm:$0xf] %v1067
  %1180 = vst [vmem:[%s3 + $0xdc] sm:$0xf] %v1068
  %1181 = vst [vmem:[%s3 + $0xe0] sm:$0xf] %v1069
  %1182 = vst [vmem:[%s3 + $0xe4] sm:$0xf] %v1070
  %1183 = vst [vmem:[%s3 + $0xe8] sm:$0xf] %v1071
  %1184 = vst [vmem:[%s3 + $0xec] sm:$0xf] %v1072
  %1185 = vst [vmem:[%s3 + $0xf0] sm:$0xf] %v1073
  %1186 = vst [vmem:[%s3 + $0xf4] sm:$0xf] %v1074
  %1187 = vst [vmem:[%s3 + $0xf8] sm:$0xf] %v1075
  %1188 = vst [vmem:[%s3 + $0xfc] sm:$0xf] %v1076
  %1189 = vst [vmem:[%s3 + $0x100] sm:$0xf] %v1077
  %1190 = vst [vmem:[%s3 + $0x104] sm:$0xf] %v1078
  %1191 = vst [vmem:[%s3 + $0x108] sm:$0xf] %v1079
  %1192 = vst [vmem:[%s3 + $0x10c] sm:$0xf] %v1080
  %1193 = vst [vmem:[%s3 + $0x110] sm:$0xf] %v1081
  %1194 = vst [vmem:[%s3 + $0x114] sm:$0xf] %v1082
  %1195 = vst [vmem:[%s3 + $0x118] sm:$0xf] %v1083
  %1196 = vst [vmem:[%s3 + $0x11c] sm:$0xf] %v1084
  %1197 = vst [vmem:[%s3 + $0x120] sm:$0xf] %v1085
  %1198 = vst [vmem:[%s3 + $0x124] sm:$0xf] %v1086
  %1199 = vst [vmem:[%s3 + $0x128] sm:$0xf] %v1087
  %1200 = vst [vmem:[%s3 + $0x12c] sm:$0xf] %v1088
  %1201 = vst [vmem:[%s3 + $0x130] sm:$0xf] %v1089
  %1202 = vst [vmem:[%s3 + $0x134] sm:$0xf] %v1090
  %1203 = vst [vmem:[%s3 + $0x138] sm:$0xf] %v1091
  %1204 = vst [vmem:[%s3 + $0x13c] sm:$0xf] %v1092
  %1205 = vst [vmem:[%s3 + $0x140] sm:$0xf] %v1093
  %1206 = vst [vmem:[%s3 + $0x144] sm:$0xf] %v1094
  %1207 = vst [vmem:[%s3 + $0x148] sm:$0xf] %v1095
  %1208 = vst [vmem:[%s3 + $0x14c] sm:$0xf] %v1096
  %1209 = vst [vmem:[%s3 + $0x150] sm:$0xf] %v1097
  %1210 = vst [vmem:[%s3 + $0x154] sm:$0xf] %v1098
  %1211 = vst [vmem:[%s3 + $0x158] sm:$0xf] %v1099
  %1212 = vst [vmem:[%s3 + $0x15c] sm:$0xf] %v1100
  %1213 = vst [vmem:[%s3 + $0x160] sm:$0xf] %v1101
  %1214 = vst [vmem:[%s3 + $0x164] sm:$0xf] %v1102
  %1215 = vst [vmem:[%s3 + $0x168] sm:$0xf] %v1103
  %1216 = vst [vmem:[%s3 + $0x16c] sm:$0xf] %v1104
  %1217 = vst [vmem:[%s3 + $0x170] sm:$0xf] %v1105
  %1218 = vst [vmem:[%s3 + $0x174] sm:$0xf] %v1106
  %1219 = vst [vmem:[%s3 + $0x178] sm:$0xf] %v1107
  %1220 = vst [vmem:[%s3 + $0x17c] sm:$0xf] %v1108
  %1221 = vst [vmem:[%s3 + $0x180] sm:$0xf] %v1109
  %1222 = vst [vmem:[%s3 + $0x184] sm:$0xf] %v1110
  %1223 = vst [vmem:[%s3 + $0x188] sm:$0xf] %v1111
  %1224 = vst [vmem:[%s3 + $0x18c] sm:$0xf] %v1112
  %1225 = vst [vmem:[%s3 + $0x190] sm:$0xf] %v1113
  %1226 = vst [vmem:[%s3 + $0x194] sm:$0xf] %v1114
  %1227 = vst [vmem:[%s3 + $0x198] sm:$0xf] %v1115
  %1228 = vst [vmem:[%s3 + $0x19c] sm:$0xf] %v1116
  %1229 = vst [vmem:[%s3 + $0x1a0] sm:$0xf] %v1117
  %1230 = vst [vmem:[%s3 + $0x1a4] sm:$0xf] %v1118
  %1231 = vst [vmem:[%s3 + $0x1a8] sm:$0xf] %v1119
  %1232 = vst [vmem:[%s3 + $0x1ac] sm:$0xf] %v1120
  %1233 = vst [vmem:[%s3 + $0x1b0] sm:$0xf] %v1121
  %1234 = vst [vmem:[%s3 + $0x1b4] sm:$0xf] %v1122
  %1235 = vst [vmem:[%s3 + $0x1b8] sm:$0xf] %v1123
  %1236 = vst [vmem:[%s3 + $0x1bc] sm:$0xf] %v1124
  // Predicated region
  $region14: #{model_a_forward.3} parent=0 // pred_check
    _
  $region15: #{model_a_forward.3} parent=0 // pred_check_branch
    %1238 = sbr.rel (0) target = $region17
  $region16: #{model_a_forward.3} parent=0 // pred_region
    _
  $region17: #{model_a_forward.3} parent=0 // pred_fallthru
    _
  // Predicated region
  $region18: #{model_a_forward.3} parent=0 // pred_check
    _
  $region19: #{model_a_forward.3} parent=0 // pred_check_branch
    %1240 = sbr.rel (0) target = $region21
  $region20: #{model_a_forward.3} parent=0 // pred_region
    _
  $region21: #{model_a_forward.3} parent=0 // pred_fallthru
    _

// kernel: model_a_forward.4
$region0: #{model_a_forward.4}
  #allocation0 [shape = 'u32[]', space=smem, size = 0x4, offset = 0x4, fixed_abs, tag = 'smem constant byte address 0x4 - core index']
  #allocation1 [shape = 'u32[72,128]{1,0:T(1,128)}', space=vmem, size = 0x9000, scoped, tag = 'internal scratch']
  %s0 = inlined_call_operand.vmem [shape: bf16[2,224,256], index: 0, kind: input, shape index: {}]
  %s1 = inlined_call_operand.vmem [shape: bf16[9,256,64], index: 1, kind: input, shape index: {}]
  %s2 = inlined_call_operand.vmem [shape: f32[1,64], index: 2, kind: input, shape index: {}]
  %s3 = inlined_call_operand.vmem [shape: bf16[2,12,12,64], index: 3, kind: output, shape index: {}]
  %s4 = sld [smem:[#allocation0]]
  $region22: #{model_a_forward.4} parent=0
    _
  %s6 = ssub.s32 1, %s4
  %s7 = scalar_select 0, %s6, %s4
  // Predicated region
  $region2: #{model_a_forward.4} parent=0 // pred_check
    _
  $region3: #{model_a_forward.4} parent=0 // pred_check_branch
    %9 = sbr.rel (0) target = $region5
  $region4: #{model_a_forward.4} parent=0 // pred_region
    _
  $region5: #{model_a_forward.4} parent=0 // pred_fallthru
    _
  // Predicated region
  $region6: #{model_a_forward.4} parent=0 // pred_check
    _
  $region7: #{model_a_forward.4} parent=0 // pred_check_branch
    %11 = sbr.rel (0) target = $region9
  $region8: #{model_a_forward.4} parent=0 // pred_region
    _
  $region9: #{model_a_forward.4} parent=0 // pred_fallthru
    _
  // Predicated region
  $region10: #{model_a_forward.4} parent=0 // pred_check
    _
  $region11: #{model_a_forward.4} parent=0 // pred_check_branch
    %13 = sbr.rel (0) target = $region13
  $region12: #{model_a_forward.4} parent=0 // pred_region
    _
  $region13: #{model_a_forward.4} parent=0 // pred_fallthru
    _
  %v14 = vld [vmem:[%s2] sm:$0x1]
  %v15 = vld [vmem:[%s0] sm:$0xff]
  %v16 = vld [vmem:[%s0 + $0x8] sm:$0xff]
  %v17 = vld [vmem:[%s0 + $0x10] sm:$0xff]
  %v18 = vld [vmem:[%s0 + $0x18] sm:$0xff]
  %v19 = vld [vmem:[%s0 + $0x20] sm:$0xff]
  %v20 = vld [vmem:[%s0 + $0x28] sm:$0xff]
  %v21 = vld [vmem:[%s0 + $0x30] sm:$0xff]
  %v22 = vld [vmem:[%s0 + $0x38] sm:$0xff]
  %v23 = vld [vmem:[%s0 + $0x40] sm:$0xff]
  %v24 = vld [vmem:[%s0 + $0x48] sm:$0xff]
  %v25 = vld [vmem:[%s0 + $0x50] sm:$0xff]
  %v26 = vld [vmem:[%s0 + $0x58] sm:$0xff]
  %v27 = vld [vmem:[%s0 + $0x60] sm:$0xff]
  %v28 = vld [vmem:[%s0 + $0x68] sm:$0xff]
  %v29 = vld [vmem:[%s0 + $0x70] sm:$0xff]
  %v30 = vld [vmem:[%s0 + $0x78] sm:$0xff]
  %v31 = vld [vmem:[%s0 + $0x80] sm:$0xff]
  %v32 = vld [vmem:[%s0 + $0x88] sm:$0xff]
  %v33 = vld [vmem:[%s0 + $0x90] sm:$0xff]
  %v34 = vld [vmem:[%s0 + $0x98] sm:$0xff]
  %v35 = vld [vmem:[%s0 + $0xa0] sm:$0xff]
  %v36 = vld [vmem:[%s0 + $0xa8] sm:$0xff]
  %v37 = vld [vmem:[%s0 + $0xb0] sm:$0xff]
  %v38 = vld [vmem:[%s0 + $0xb8] sm:$0xff]
  %v39 = vld [vmem:[%s1] sm:$0xf]
  %v40 = vld [vmem:[%s1 + $0x4] sm:$0xf]
  %v41 = vld [vmem:[%s1 + $0x8] sm:$0xf]
  %v42 = vld [vmem:[%s1 + $0xc] sm:$0xf]
  %v43 = vld [vmem:[%s1 + $0x10] sm:$0xf]
  %v44 = vld [vmem:[%s1 + $0x14] sm:$0xf]
  %v45 = vld [vmem:[%s1 + $0x18] sm:$0xf]
  %v46 = vld [vmem:[%s1 + $0x1c] sm:$0xf]
  %v47 = vld [vmem:[%s1 + $0x20] sm:$0xf]
  %v48 = vld [vmem:[%s1 + $0x24] sm:$0xf]
  %v49 = vld [vmem:[%s1 + $0x28] sm:$0xf]
  %v50 = vld [vmem:[%s1 + $0x2c] sm:$0xf]
  %v51 = vld [vmem:[%s1 + $0x30] sm:$0xf]
  %v52 = vld [vmem:[%s1 + $0x34] sm:$0xf]
  %v53 = vld [vmem:[%s1 + $0x38] sm:$0xf]
  %v54 = vld [vmem:[%s1 + $0x3c] sm:$0xf]
  %v55 = vld [vmem:[%s1 + $0x40] sm:$0xf]
  %v56 = vld [vmem:[%s1 + $0x44] sm:$0xf]
  %v57 = vld [vmem:[%s1 + $0x48] sm:$0xf]
  %v58 = vld [vmem:[%s1 + $0x4c] sm:$0xf]
  %v59 = vld [vmem:[%s1 + $0x50] sm:$0xf]
  %v60 = vld [vmem:[%s1 + $0x54] sm:$0xf]
  %v61 = vld [vmem:[%s1 + $0x58] sm:$0xf]
  %v62 = vld [vmem:[%s1 + $0x5c] sm:$0xf]
  %v63 = vld [vmem:[%s1 + $0x60] sm:$0xf]
  %v64 = vld [vmem:[%s1 + $0x64] sm:$0xf]
  %v65 = vld [vmem:[%s1 + $0x68] sm:$0xf]
  %v66 = vld [vmem:[%s1 + $0x6c] sm:$0xf]
  %v67 = vld [vmem:[%s1 + $0x70] sm:$0xf]
  %v68 = vld [vmem:[%s1 + $0x74] sm:$0xf]
  %v69 = vld [vmem:[%s1 + $0x78] sm:$0xf]
  %v70 = vld [vmem:[%s1 + $0x7c] sm:$0xf]
  %v95 = vunpack.c.l.b16 %v15
  %v96 = vunpack.c.h.b16 %v15
  %v97 = vunpack.c.l.b16 %v16
  %v98 = vunpack.c.h.b16 %v16
  %v99 = vunpack.c.l.b16 %v17
  %v100 = vunpack.c.h.b16 %v17
  %v101 = vunpack.c.l.b16 %v18
  %v102 = vunpack.c.h.b16 %v18
  %v103 = vunpack.c.l.b16 %v19
  %v104 = vunpack.c.h.b16 %v19
  %v105 = vunpack.c.l.b16 %v20
  %v106 = vunpack.c.h.b16 %v20
  %v107 = vunpack.c.l.b16 %v21
  %v108 = vunpack.c.h.b16 %v21
  %v109 = vunpack.c.l.b16 %v22
  %v110 = vunpack.c.h.b16 %v22
  %v111 = vunpack.c.l.b16 %v23
  %v112 = vunpack.c.h.b16 %v23
  %v113 = vunpack.c.l.b16 %v24
  %v114 = vunpack.c.h.b16 %v24
  %v115 = vunpack.c.l.b16 %v25
  %v116 = vunpack.c.h.b16 %v25
  %v117 = vunpack.c.l.b16 %v26
  %v118 = vunpack.c.h.b16 %v26
  %v119 = vunpack.c.l.b16 %v27
  %v120 = vunpack.c.h.b16 %v27
  %v121 = vunpack.c.l.b16 %v28
  %v122 = vunpack.c.h.b16 %v28
  %v123 = vunpack.c.l.b16 %v29
  %v124 = vunpack.c.h.b16 %v29
  %v125 = vunpack.c.l.b16 %v30
  %v126 = vunpack.c.h.b16 %v30
  %v127 = vunpack.c.l.b16 %v31
  %v128 = vunpack.c.h.b16 %v31
  %v129 = vunpack.c.l.b16 %v32
  %v130 = vunpack.c.h.b16 %v32
  %v131 = vunpack.c.l.b16 %v33
  %v132 = vunpack.c.h.b16 %v33
  %v133 = vunpack.c.l.b16 %v34
  %v134 = vunpack.c.h.b16 %v34
  %v135 = vunpack.c.l.b16 %v35
  %v136 = vunpack.c.h.b16 %v35
  %v137 = vunpack.c.l.b16 %v36
  %v138 = vunpack.c.h.b16 %v36
  %v139 = vunpack.c.l.b16 %v37
  %v140 = vunpack.c.h.b16 %v37
  %v141 = vunpack.c.l.b16 %v38
  %v142 = vunpack.c.h.b16 %v38
  %v143 = vpack.c.b16 %v97, %v95
  %v144 = vpack.c.b16 %v98, %v96
  %v145 = vpack.c.b16 %v101, %v99
  %v146 = vpack.c.b16 %v102, %v100
  %v147 = vpack.c.b16 %v105, %v103
  %v148 = vpack.c.b16 %v106, %v104
  %v149 = vpack.c.b16 %v109, %v107
  %v150 = vpack.c.b16 %v110, %v108
  %v151 = vpack.c.b16 %v113, %v111
  %v152 = vpack.c.b16 %v114, %v112
  %v153 = vpack.c.b16 %v117, %v115
  %v154 = vpack.c.b16 %v118, %v116
  %v155 = vpack.c.b16 %v121, %v119
  %v156 = vpack.c.b16 %v122, %v120
  %v157 = vpack.c.b16 %v125, %v123
  %v158 = vpack.c.b16 %v126, %v124
  %v159 = vpack.c.b16 %v129, %v127
  %v160 = vpack.c.b16 %v130, %v128
  %v161 = vpack.c.b16 %v133, %v131
  %v162 = vpack.c.b16 %v134, %v132
  %v163 = vpack.c.b16 %v137, %v135
  %v164 = vpack.c.b16 %v138, %v136
  %v165 = vpack.c.b16 %v141, %v139
  %v166 = vpack.c.b16 %v142, %v140
  %v223 = vunpack.c.l.b16 %v39
  %v224 = vunpack.c.l.b16 %v40
  %v225 = vunpack.c.l.b16 %v41
  %v226 = vunpack.c.l.b16 %v42
  %v227 = vunpack.c.l.b16 %v43
  %v228 = vunpack.c.l.b16 %v44
  %v229 = vunpack.c.l.b16 %v45
  %v230 = vunpack.c.l.b16 %v46
  %v231 = vunpack.c.l.b16 %v47
  %v232 = vunpack.c.l.b16 %v48
  %v233 = vunpack.c.l.b16 %v49
  %v234 = vunpack.c.l.b16 %v50
  %v235 = vunpack.c.l.b16 %v51
  %v236 = vunpack.c.l.b16 %v52
  %v237 = vunpack.c.l.b16 %v53
  %v238 = vunpack.c.l.b16 %v54
  %v239 = vunpack.c.l.b16 %v55
  %v240 = vunpack.c.l.b16 %v56
  %v241 = vunpack.c.l.b16 %v57
  %v242 = vunpack.c.l.b16 %v58
  %v243 = vunpack.c.l.b16 %v59
  %v244 = vunpack.c.l.b16 %v60
  %v245 = vunpack.c.l.b16 %v61
  %v246 = vunpack.c.l.b16 %v62
  %v247 = vunpack.c.l.b16 %v63
  %v248 = vunpack.c.l.b16 %v64
  %v249 = vunpack.c.l.b16 %v65
  %v250 = vunpack.c.l.b16 %v66
  %v251 = vunpack.c.l.b16 %v67
  %v252 = vunpack.c.l.b16 %v68
  %v253 = vunpack.c.l.b16 %v69
  %v254 = vunpack.c.l.b16 %v70
  %v255 = vpack.c.b16 %v224, %v223
  %v256 = vpack.c.b16 %v226, %v225
  %v257 = vpack.c.b16 %v228, %v227
  %v258 = vpack.c.b16 %v230, %v229
  %v259 = vpack.c.b16 %v232, %v231
  %v260 = vpack.c.b16 %v234, %v233
  %v261 = vpack.c.b16 %v236, %v235
  %v262 = vpack.c.b16 %v238, %v237
  %v263 = vpack.c.b16 %v240, %v239
  %v264 = vpack.c.b16 %v242, %v241
  %v265 = vpack.c.b16 %v244, %v243
  %v266 = vpack.c.b16 %v246, %v245
  %v267 = vpack.c.b16 %v248, %v247
  %v268 = vpack.c.b16 %v250, %v249
  %v269 = vpack.c.b16 %v252, %v251
  %v270 = vpack.c.b16 %v254, %v253
  %287 = vmatpush.bf16.msra.mxu0 %v262
  %288 = vmatpush.bf16.msra.mxu0 %v261
  %289 = vmatpush.bf16.msra.mxu0 %v260
  %290 = vmatpush.bf16.msra.mxu0 %v259
  %291 = vmatpush.bf16.msra.mxu0 %v258
  %292 = vmatpush.bf16.msra.mxu0 %v257
  %293 = vmatpush.bf16.msra.mxu0 %v256
  %294 = vmatpush.bf16.msra.mxu0 %v255
  %295 = vmatmul.bf16.gmra.mxu0 %v143
  %v296 = vpop.f32.mrf.mxu0
  %v297 = vadd.f32 0.0, %v296
  %v298 = vpop.f32.mrf.mxu0
  %v299 = vadd.f32 0.0, %v298
  %300 = vmatmul.bf16.gmra.mxu0 %v145
  %v301 = vpop.f32.mrf.mxu0
  %v302 = vadd.f32 0.0, %v301
  %v303 = vpop.f32.mrf.mxu0
  %v304 = vadd.f32 0.0, %v303
  %305 = vmatmul.bf16.gmra.mxu0 %v147
  %v306 = vpop.f32.mrf.mxu0
  %v307 = vadd.f32 0.0, %v306
  %v308 = vpop.f32.mrf.mxu0
  %v309 = vadd.f32 0.0, %v308
  %310 = vmatmul.bf16.gmra.mxu0 %v149
  %v311 = vpop.f32.mrf.mxu0
  %v312 = vadd.f32 0.0, %v311
  %v313 = vpop.f32.mrf.mxu0
  %v314 = vadd.f32 0.0, %v313
  %315 = vmatmul.bf16.gmra.mxu0 %v151
  %v316 = vpop.f32.mrf.mxu0
  %v317 = vadd.f32 0.0, %v316
  %v318 = vpop.f32.mrf.mxu0
  %v319 = vadd.f32 0.0, %v318
  %320 = vmatmul.bf16.gmra.mxu0 %v153
  %v321 = vpop.f32.mrf.mxu0
  %v322 = vadd.f32 0.0, %v321
  %v323 = vpop.f32.mrf.mxu0
  %v324 = vadd.f32 0.0, %v323
  %325 = vmatmul.bf16.gmra.mxu0 %v155
  %v326 = vpop.f32.mrf.mxu0
  %v327 = vadd.f32 0.0, %v326
  %v328 = vpop.f32.mrf.mxu0
  %v329 = vadd.f32 0.0, %v328
  %330 = vmatmul.bf16.gmra.mxu0 %v157
  %v331 = vpop.f32.mrf.mxu0
  %v332 = vadd.f32 0.0, %v331
  %v333 = vpop.f32.mrf.mxu0
  %v334 = vadd.f32 0.0, %v333
  %335 = vmatmul.bf16.gmra.mxu0 %v159
  %v336 = vpop.f32.mrf.mxu0
  %v337 = vadd.f32 0.0, %v336
  %v338 = vpop.f32.mrf.mxu0
  %v339 = vadd.f32 0.0, %v338
  %340 = vmatmul.bf16.gmra.mxu0 %v161
  %v341 = vpop.f32.mrf.mxu0
  %v342 = vadd.f32 0.0, %v341
  %v343 = vpop.f32.mrf.mxu0
  %v344 = vadd.f32 0.0, %v343
  %345 = vmatmul.bf16.gmra.mxu0 %v163
  %v346 = vpop.f32.mrf.mxu0
  %v347 = vadd.f32 0.0, %v346
  %v348 = vpop.f32.mrf.mxu0
  %v349 = vadd.f32 0.0, %v348
  %350 = vmatmul.bf16.gmra.mxu0 %v165
  %v351 = vpop.f32.mrf.mxu0
  %v352 = vadd.f32 0.0, %v351
  %v353 = vpop.f32.mrf.mxu0
  %v354 = vadd.f32 0.0, %v353
  %355 = vdwg.mxu0
  %356 = vmatpush.bf16.msra.mxu0 %v270
  %357 = vmatpush.bf16.msra.mxu0 %v269
  %358 = vmatpush.bf16.msra.mxu0 %v268
  %359 = vmatpush.bf16.msra.mxu0 %v267
  %360 = vmatpush.bf16.msra.mxu0 %v266
  %361 = vmatpush.bf16.msra.mxu0 %v265
  %362 = vmatpush.bf16.msra.mxu0 %v264
  %363 = vmatpush.bf16.msra.mxu0 %v263
  %364 = vmatmul.bf16.gmra.mxu0 %v144
  %v365 = vpop.f32.mrf.mxu0
  %v366 = vadd.f32 %v297, %v365
  %v367 = vpop.f32.mrf.mxu0
  %v368 = vadd.f32 %v299, %v367
  %369 = vmatmul.bf16.gmra.mxu0 %v146
  %v370 = vpop.f32.mrf.mxu0
  %v371 = vadd.f32 %v302, %v370
  %v372 = vpop.f32.mrf.mxu0
  %v373 = vadd.f32 %v304, %v372
  %374 = vmatmul.bf16.gmra.mxu0 %v148
  %v375 = vpop.f32.mrf.mxu0
  %v376 = vadd.f32 %v307, %v375
  %v377 = vpop.f32.mrf.mxu0
  %v378 = vadd.f32 %v309, %v377
  %379 = vmatmul.bf16.gmra.mxu0 %v150
  %v380 = vpop.f32.mrf.mxu0
  %v381 = vadd.f32 %v312, %v380
  %v382 = vpop.f32.mrf.mxu0
  %v383 = vadd.f32 %v314, %v382
  %384 = vmatmul.bf16.gmra.mxu0 %v152
  %v385 = vpop.f32.mrf.mxu0
  %v386 = vadd.f32 %v317, %v385
  %v387 = vpop.f32.mrf.mxu0
  %v388 = vadd.f32 %v319, %v387
  %389 = vmatmul.bf16.gmra.mxu0 %v154
  %v390 = vpop.f32.mrf.mxu0
  %v391 = vadd.f32 %v322, %v390
  %v392 = vpop.f32.mrf.mxu0
  %v393 = vadd.f32 %v324, %v392
  %394 = vmatmul.bf16.gmra.mxu0 %v156
  %v395 = vpop.f32.mrf.mxu0
  %v396 = vadd.f32 %v327, %v395
  %v397 = vpop.f32.mrf.mxu0
  %v398 = vadd.f32 %v329, %v397
  %399 = vmatmul.bf16.gmra.mxu0 %v158
  %v400 = vpop.f32.mrf.mxu0
  %v401 = vadd.f32 %v332, %v400
  %v402 = vpop.f32.mrf.mxu0
  %v403 = vadd.f32 %v334, %v402
  %404 = vmatmul.bf16.gmra.mxu0 %v160
  %v405 = vpop.f32.mrf.mxu0
  %v406 = vadd.f32 %v337, %v405
  %v407 = vpop.f32.mrf.mxu0
  %v408 = vadd.f32 %v339, %v407
  %409 = vmatmul.bf16.gmra.mxu0 %v162
  %v410 = vpop.f32.mrf.mxu0
  %v411 = vadd.f32 %v342, %v410
  %v412 = vpop.f32.mrf.mxu0
  %v413 = vadd.f32 %v344, %v412
  %414 = vmatmul.bf16.gmra.mxu0 %v164
  %v415 = vpop.f32.mrf.mxu0
  %v416 = vadd.f32 %v347, %v415
  %v417 = vpop.f32.mrf.mxu0
  %v418 = vadd.f32 %v349, %v417
  %419 = vmatmul.bf16.gmra.mxu0 %v166
  %v420 = vpop.f32.mrf.mxu0
  %v421 = vadd.f32 %v352, %v420
  %v422 = vpop.f32.mrf.mxu0
  %v423 = vadd.f32 %v354, %v422
  %424 = vdwg.mxu0
  %v425 = vadd.f32 %v366, 0.0
  %v426 = vadd.f32 %v368, 0.0
  %v427 = vadd.f32 %v371, 0.0
  %v428 = vadd.f32 %v373, 0.0
  %v429 = vadd.f32 %v376, 0.0
  %v430 = vadd.f32 %v378, 0.0
  %v431 = vadd.f32 %v381, 0.0
  %v432 = vadd.f32 %v383, 0.0
  %v433 = vadd.f32 %v386, 0.0
  %v434 = vadd.f32 %v388, 0.0
  %v435 = vadd.f32 %v391, 0.0
  %v436 = vadd.f32 %v393, 0.0
  %v437 = vadd.f32 %v396, 0.0
  %v438 = vadd.f32 %v398, 0.0
  %v439 = vadd.f32 %v401, 0.0
  %v440 = vadd.f32 %v403, 0.0
  %v441 = vadd.f32 %v406, 0.0
  %v442 = vadd.f32 %v408, 0.0
  %v443 = vadd.f32 %v411, 0.0
  %v444 = vadd.f32 %v413, 0.0
  %v445 = vadd.f32 %v416, 0.0
  %v446 = vadd.f32 %v418, 0.0
  %v447 = vadd.f32 %v421, 0.0
  %v448 = vadd.f32 %v423, 0.0
  %s449 = scalar_lea.vmem %s1, 128
  %v450 = vld [vmem:[%s449] sm:$0xf]
  %v451 = vld [vmem:[%s449 + $0x4] sm:$0xf]
  %v452 = vld [vmem:[%s449 + $0x8] sm:$0xf]
  %v453 = vld [vmem:[%s449 + $0xc] sm:$0xf]
  %v454 = vld [vmem:[%s449 + $0x10] sm:$0xf]
  %v455 = vld [vmem:[%s449 + $0x14] sm:$0xf]
  %v456 = vld [vmem:[%s449 + $0x18] sm:$0xf]
  %v457 = vld [vmem:[%s449 + $0x1c] sm:$0xf]
  %v458 = vld [vmem:[%s449 + $0x20] sm:$0xf]
  %v459 = vld [vmem:[%s449 + $0x24] sm:$0xf]
  %v460 = vld [vmem:[%s449 + $0x28] sm:$0xf]
  %v461 = vld [vmem:[%s449 + $0x2c] sm:$0xf]
  %v462 = vld [vmem:[%s449 + $0x30] sm:$0xf]
  %v463 = vld [vmem:[%s449 + $0x34] sm:$0xf]
  %v464 = vld [vmem:[%s449 + $0x38] sm:$0xf]
  %v465 = vld [vmem:[%s449 + $0x3c] sm:$0xf]
  %v466 = vld [vmem:[%s449 + $0x40] sm:$0xf]
  %v467 = vld [vmem:[%s449 + $0x44] sm:$0xf]
  %v468 = vld [vmem:[%s449 + $0x48] sm:$0xf]
  %v469 = vld [vmem:[%s449 + $0x4c] sm:$0xf]
  %v470 = vld [vmem:[%s449 + $0x50] sm:$0xf]
  %v471 = vld [vmem:[%s449 + $0x54] sm:$0xf]
  %v472 = vld [vmem:[%s449 + $0x58] sm:$0xf]
  %v473 = vld [vmem:[%s449 + $0x5c] sm:$0xf]
  %v474 = vld [vmem:[%s449 + $0x60] sm:$0xf]
  %v475 = vld [vmem:[%s449 + $0x64] sm:$0xf]
  %v476 = vld [vmem:[%s449 + $0x68] sm:$0xf]
  %v477 = vld [vmem:[%s449 + $0x6c] sm:$0xf]
  %v478 = vld [vmem:[%s449 + $0x70] sm:$0xf]
  %v479 = vld [vmem:[%s449 + $0x74] sm:$0xf]
  %v480 = vld [vmem:[%s449 + $0x78] sm:$0xf]
  %v481 = vld [vmem:[%s449 + $0x7c] sm:$0xf]
  %v514 = vunpack.c.l.b16 %v450
  %v515 = vunpack.c.l.b16 %v451
  %v516 = vunpack.c.l.b16 %v452
  %v517 = vunpack.c.l.b16 %v453
  %v518 = vunpack.c.l.b16 %v454
  %v519 = vunpack.c.l.b16 %v455
  %v520 = vunpack.c.l.b16 %v456
  %v521 = vunpack.c.l.b16 %v457
  %v522 = vunpack.c.l.b16 %v458
  %v523 = vunpack.c.l.b16 %v459
  %v524 = vunpack.c.l.b16 %v460
  %v525 = vunpack.c.l.b16 %v461
  %v526 = vunpack.c.l.b16 %v462
  %v527 = vunpack.c.l.b16 %v463
  %v528 = vunpack.c.l.b16 %v464
  %v529 = vunpack.c.l.b16 %v465
  %v530 = vunpack.c.l.b16 %v466
  %v531 = vunpack.c.l.b16 %v467
  %v532 = vunpack.c.l.b16 %v468
  %v533 = vunpack.c.l.b16 %v469
  %v534 = vunpack.c.l.b16 %v470
  %v535 = vunpack.c.l.b16 %v471
  %v536 = vunpack.c.l.b16 %v472
  %v537 = vunpack.c.l.b16 %v473
  %v538 = vunpack.c.l.b16 %v474
  %v539 = vunpack.c.l.b16 %v475
  %v540 = vunpack.c.l.b16 %v476
  %v541 = vunpack.c.l.b16 %v477
  %v542 = vunpack.c.l.b16 %v478
  %v543 = vunpack.c.l.b16 %v479
  %v544 = vunpack.c.l.b16 %v480
  %v545 = vunpack.c.l.b16 %v481
  %v546 = vpack.c.b16 %v515, %v514
  %v547 = vpack.c.b16 %v517, %v516
  %v548 = vpack.c.b16 %v519, %v518
  %v549 = vpack.c.b16 %v521, %v520
  %v550 = vpack.c.b16 %v523, %v522
  %v551 = vpack.c.b16 %v525, %v524
  %v552 = vpack.c.b16 %v527, %v526
  %v553 = vpack.c.b16 %v529, %v528
  %v554 = vpack.c.b16 %v531, %v530
  %v555 = vpack.c.b16 %v533, %v532
  %v556 = vpack.c.b16 %v535, %v534
  %v557 = vpack.c.b16 %v537, %v536
  %v558 = vpack.c.b16 %v539, %v538
  %v559 = vpack.c.b16 %v541, %v540
  %v560 = vpack.c.b16 %v543, %v542
  %v561 = vpack.c.b16 %v545, %v544
  %578 = vmatpush.bf16.msra.mxu0 %v553
  %579 = vmatpush.bf16.msra.mxu0 %v552
  %580 = vmatpush.bf16.msra.mxu0 %v551
  %581 = vmatpush.bf16.msra.mxu0 %v550
  %582 = vmatpush.bf16.msra.mxu0 %v549
  %583 = vmatpush.bf16.msra.mxu0 %v548
  %584 = vmatpush.bf16.msra.mxu0 %v547
  %585 = vmatpush.bf16.msra.mxu0 %v546
  %586 = vmatmul.bf16.gmra.mxu0 %v143
  %v587 = vpop.f32.mrf.mxu0
  %v588 = vadd.f32 0.0, %v587
  %v589 = vpop.f32.mrf.mxu0
  %v590 = vadd.f32 0.0, %v589
  %591 = vmatmul.bf16.gmra.mxu0 %v145
  %v592 = vpop.f32.mrf.mxu0
  %v593 = vadd.f32 0.0, %v592
  %v594 = vpop.f32.mrf.mxu0
  %v595 = vadd.f32 0.0, %v594
  %596 = vmatmul.bf16.gmra.mxu0 %v147
  %v597 = vpop.f32.mrf.mxu0
  %v598 = vadd.f32 0.0, %v597
  %v599 = vpop.f32.mrf.mxu0
  %v600 = vadd.f32 0.0, %v599
  %601 = vmatmul.bf16.gmra.mxu0 %v149
  %v602 = vpop.f32.mrf.mxu0
  %v603 = vadd.f32 0.0, %v602
  %v604 = vpop.f32.mrf.mxu0
  %v605 = vadd.f32 0.0, %v604
  %606 = vmatmul.bf16.gmra.mxu0 %v151
  %v607 = vpop.f32.mrf.mxu0
  %v608 = vadd.f32 0.0, %v607
  %v609 = vpop.f32.mrf.mxu0
  %v610 = vadd.f32 0.0, %v609
  %611 = vmatmul.bf16.gmra.mxu0 %v153
  %v612 = vpop.f32.mrf.mxu0
  %v613 = vadd.f32 0.0, %v612
  %v614 = vpop.f32.mrf.mxu0
  %v615 = vadd.f32 0.0, %v614
  %616 = vmatmul.bf16.gmra.mxu0 %v155
  %v617 = vpop.f32.mrf.mxu0
  %v618 = vadd.f32 0.0, %v617
  %v619 = vpop.f32.mrf.mxu0
  %v620 = vadd.f32 0.0, %v619
  %621 = vmatmul.bf16.gmra.mxu0 %v157
  %v622 = vpop.f32.mrf.mxu0
  %v623 = vadd.f32 0.0, %v622
  %v624 = vpop.f32.mrf.mxu0
  %v625 = vadd.f32 0.0, %v624
  %626 = vmatmul.bf16.gmra.mxu0 %v159
  %v627 = vpop.f32.mrf.mxu0
  %v628 = vadd.f32 0.0, %v627
  %v629 = vpop.f32.mrf.mxu0
  %v630 = vadd.f32 0.0, %v629
  %631 = vmatmul.bf16.gmra.mxu0 %v161
  %v632 = vpop.f32.mrf.mxu0
  %v633 = vadd.f32 0.0, %v632
  %v634 = vpop.f32.mrf.mxu0
  %v635 = vadd.f32 0.0, %v634
  %636 = vmatmul.bf16.gmra.mxu0 %v163
  %v637 = vpop.f32.mrf.mxu0
  %v638 = vadd.f32 0.0, %v637
  %v639 = vpop.f32.mrf.mxu0
  %v640 = vadd.f32 0.0, %v639
  %641 = vmatmul.bf16.gmra.mxu0 %v165
  %v642 = vpop.f32.mrf.mxu0
  %v643 = vadd.f32 0.0, %v642
  %v644 = vpop.f32.mrf.mxu0
  %v645 = vadd.f32 0.0, %v644
  %646 = vdwg.mxu0
  %647 = vmatpush.bf16.msra.mxu0 %v561
  %648 = vmatpush.bf16.msra.mxu0 %v560
  %649 = vmatpush.bf16.msra.mxu0 %v559
  %650 = vmatpush.bf16.msra.mxu0 %v558
  %651 = vmatpush.bf16.msra.mxu0 %v557
  %652 = vmatpush.bf16.msra.mxu0 %v556
  %653 = vmatpush.bf16.msra.mxu0 %v555
  %654 = vmatpush.bf16.msra.mxu0 %v554
  %655 = vmatmul.bf16.gmra.mxu0 %v144
  %v656 = vpop.f32.mrf.mxu0
  %v657 = vadd.f32 %v588, %v656
  %v658 = vpop.f32.mrf.mxu0
  %v659 = vadd.f32 %v590, %v658
  %660 = vmatmul.bf16.gmra.mxu0 %v146
  %v661 = vpop.f32.mrf.mxu0
  %v662 = vadd.f32 %v593, %v661
  %v663 = vpop.f32.mrf.mxu0
  %v664 = vadd.f32 %v595, %v663
  %665 = vmatmul.bf16.gmra.mxu0 %v148
  %v666 = vpop.f32.mrf.mxu0
  %v667 = vadd.f32 %v598, %v666
  %v668 = vpop.f32.mrf.mxu0
  %v669 = vadd.f32 %v600, %v668
  %670 = vmatmul.bf16.gmra.mxu0 %v150
  %v671 = vpop.f32.mrf.mxu0
  %v672 = vadd.f32 %v603, %v671
  %v673 = vpop.f32.mrf.mxu0
  %v674 = vadd.f32 %v605, %v673
  %675 = vmatmul.bf16.gmra.mxu0 %v152
  %v676 = vpop.f32.mrf.mxu0
  %v677 = vadd.f32 %v608, %v676
  %v678 = vpop.f32.mrf.mxu0
  %v679 = vadd.f32 %v610, %v678
  %680 = vmatmul.bf16.gmra.mxu0 %v154
  %v681 = vpop.f32.mrf.mxu0
  %v682 = vadd.f32 %v613, %v681
  %v683 = vpop.f32.mrf.mxu0
  %v684 = vadd.f32 %v615, %v683
  %685 = vmatmul.bf16.gmra.mxu0 %v156
  %v686 = vpop.f32.mrf.mxu0
  %v687 = vadd.f32 %v618, %v686
  %v688 = vpop.f32.mrf.mxu0
  %v689 = vadd.f32 %v620, %v688
  %690 = vmatmul.bf16.gmra.mxu0 %v158
  %v691 = vpop.f32.mrf.mxu0
  %v692 = vadd.f32 %v623, %v691
  %v693 = vpop.f32.mrf.mxu0
  %v694 = vadd.f32 %v625, %v693
  %695 = vmatmul.bf16.gmra.mxu0 %v160
  %v696 = vpop.f32.mrf.mxu0
  %v697 = vadd.f32 %v628, %v696
  %v698 = vpop.f32.mrf.mxu0
  %v699 = vadd.f32 %v630, %v698
  %700 = vmatmul.bf16.gmra.mxu0 %v162
  %v701 = vpop.f32.mrf.mxu0
  %v702 = vadd.f32 %v633, %v701
  %v703 = vpop.f32.mrf.mxu0
  %v704 = vadd.f32 %v635, %v703
  %705 = vmatmul.bf16.gmra.mxu0 %v164
  %v706 = vpop.f32.mrf.mxu0
  %v707 = vadd.f32 %v638, %v706
  %v708 = vpop.f32.mrf.mxu0
  %v709 = vadd.f32 %v640, %v708
  %710 = vmatmul.bf16.gmra.mxu0 %v166
  %v711 = vpop.f32.mrf.mxu0
  %v712 = vadd.f32 %v643, %v711
  %v713 = vpop.f32.mrf.mxu0
  %v714 = vadd.f32 %v645, %v713
  %715 = vdwg.mxu0
  %vm740 = vcmask 1046528
  %v741 = vrot.slane %v657, 1
  %v742 = vrot.slane %v659, 1
  %v743 = vsel %vm740, %v741, %v742
  %v744 = vrot.slane %v662, 1
  %v745 = vrot.slane %v664, 1
  %v746 = vsel %vm740, %v744, %v745
  %v747 = vrot.slane %v667, 1
  %v748 = vrot.slane %v669, 1
  %v749 = vsel %vm740, %v747, %v748
  %v750 = vrot.slane %v672, 1
  %v751 = vrot.slane %v674, 1
  %v752 = vsel %vm740, %v750, %v751
  %v753 = vrot.slane %v677, 1
  %v754 = vrot.slane %v679, 1
  %v755 = vsel %vm740, %v753, %v754
  %v756 = vrot.slane %v682, 1
  %v757 = vrot.slane %v684, 1
  %v758 = vsel %vm740, %v756, %v757
  %v759 = vrot.slane %v687, 1
  %v760 = vrot.slane %v689, 1
  %v761 = vsel %vm740, %v759, %v760
  %v762 = vrot.slane %v692, 1
  %v763 = vrot.slane %v694, 1
  %v764 = vsel %vm740, %v762, %v763
  %v765 = vrot.slane %v697, 1
  %v766 = vrot.slane %v699, 1
  %v767 = vsel %vm740, %v765, %v766
  %v768 = vrot.slane %v702, 1
  %v769 = vrot.slane %v704, 1
  %v770 = vsel %vm740, %v768, %v769
  %v771 = vrot.slane %v707, 1
  %v772 = vrot.slane %v709, 1
  %v773 = vsel %vm740, %v771, %v772
  %v774 = vrot.slane %v712, 1
  %v775 = vrot.slane %v714, 1
  %v776 = vsel %vm740, %v774, %v775
  %v801 = vadd.f32 %v425, %v743
  %v802 = vadd.f32 %v426, %v742
  %v803 = vadd.f32 %v427, %v746
  %v804 = vadd.f32 %v428, %v745
  %v805 = vadd.f32 %v429, %v749
  %v806 = vadd.f32 %v430, %v748
  %v807 = vadd.f32 %v431, %v752
  %v808 = vadd.f32 %v432, %v751
  %v809 = vadd.f32 %v433, %v755
  %v810 = vadd.f32 %v434, %v754
  %v811 = vadd.f32 %v435, %v758
  %v812 = vadd.f32 %v436, %v757
  %v813 = vadd.f32 %v437, %v761
  %v814 = vadd.f32 %v438, %v760
  %v815 = vadd.f32 %v439, %v764
  %v816 = vadd.f32 %v440, %v763
  %v817 = vadd.f32 %v441, %v767
  %v818 = vadd.f32 %v442, %v766
  %v819 = vadd.f32 %v443, %v770
  %v820 = vadd.f32 %v444, %v769
  %v821 = vadd.f32 %v445, %v773
  %v822 = vadd.f32 %v446, %v772
  %v823 = vadd.f32 %v447, %v776
  %v824 = vadd.f32 %v448, %v775
  %s825 = scalar_lea.vmem %s1, 256
  %v826 = vld [vmem:[%s825] sm:$0xf]
  %v827 = vld [vmem:[%s825 + $0x4] sm:$0xf]
  %v828 = vld [vmem:[%s825 + $0x8] sm:$0xf]
  %v829 = vld [vmem:[%s825 + $0xc] sm:$0xf]
  %v830 = vld [vmem:[%s825 + $0x10] sm:$0xf]
  %v831 = vld [vmem:[%s825 + $0x14] sm:$0xf]
  %v832 = vld [vmem:[%s825 + $0x18] sm:$0xf]
  %v833 = vld [vmem:[%s825 + $0x1c] sm:$0xf]
  %v834 = vld [vmem:[%s825 + $0x20] sm:$0xf]
  %v835 = vld [vmem:[%s825 + $0x24] sm:$0xf]
  %v836 = vld [vmem:[%s825 + $0x28] sm:$0xf]
  %v837 = vld [vmem:[%s825 + $0x2c] sm:$0xf]
  %v838 = vld [vmem:[%s825 + $0x30] sm:$0xf]
  %v839 = vld [vmem:[%s825 + $0x34] sm:$0xf]
  %v840 = vld [vmem:[%s825 + $0x38] sm:$0xf]
  %v841 = vld [vmem:[%s825 + $0x3c] sm:$0xf]
  %v842 = vld [vmem:[%s825 + $0x40] sm:$0xf]
  %v843 = vld [vmem:[%s825 + $0x44] sm:$0xf]
  %v844 = vld [vmem:[%s825 + $0x48] sm:$0xf]
  %v845 = vld [vmem:[%s825 + $0x4c] sm:$0xf]
  %v846 = vld [vmem:[%s825 + $0x50] sm:$0xf]
  %v847 = vld [vmem:[%s825 + $0x54] sm:$0xf]
  %v848 = vld [vmem:[%s825 + $0x58] sm:$0xf]
  %v849 = vld [vmem:[%s825 + $0x5c] sm:$0xf]
  %v850 = vld [vmem:[%s825 + $0x60] sm:$0xf]
  %v851 = vld [vmem:[%s825 + $0x64] sm:$0xf]
  %v852 = vld [vmem:[%s825 + $0x68] sm:$0xf]
  %v853 = vld [vmem:[%s825 + $0x6c] sm:$0xf]
  %v854 = vld [vmem:[%s825 + $0x70] sm:$0xf]
  %v855 = vld [vmem:[%s825 + $0x74] sm:$0xf]
  %v856 = vld [vmem:[%s825 + $0x78] sm:$0xf]
  %v857 = vld [vmem:[%s825 + $0x7c] sm:$0xf]
  %v890 = vunpack.c.l.b16 %v826
  %v891 = vunpack.c.l.b16 %v827
  %v892 = vunpack.c.l.b16 %v828
  %v893 = vunpack.c.l.b16 %v829
  %v894 = vunpack.c.l.b16 %v830
  %v895 = vunpack.c.l.b16 %v831
  %v896 = vunpack.c.l.b16 %v832
  %v897 = vunpack.c.l.b16 %v833
  %v898 = vunpack.c.l.b16 %v834
  %v899 = vunpack.c.l.b16 %v835
  %v900 = vunpack.c.l.b16 %v836
  %v901 = vunpack.c.l.b16 %v837
  %v902 = vunpack.c.l.b16 %v838
  %v903 = vunpack.c.l.b16 %v839
  %v904 = vunpack.c.l.b16 %v840
  %v905 = vunpack.c.l.b16 %v841
  %v906 = vunpack.c.l.b16 %v842
  %v907 = vunpack.c.l.b16 %v843
  %v908 = vunpack.c.l.b16 %v844
  %v909 = vunpack.c.l.b16 %v845
  %v910 = vunpack.c.l.b16 %v846
  %v911 = vunpack.c.l.b16 %v847
  %v912 = vunpack.c.l.b16 %v848
  %v913 = vunpack.c.l.b16 %v849
  %v914 = vunpack.c.l.b16 %v850
  %v915 = vunpack.c.l.b16 %v851
  %v916 = vunpack.c.l.b16 %v852
  %v917 = vunpack.c.l.b16 %v853
  %v918 = vunpack.c.l.b16 %v854
  %v919 = vunpack.c.l.b16 %v855
  %v920 = vunpack.c.l.b16 %v856
  %v921 = vunpack.c.l.b16 %v857
  %v922 = vpack.c.b16 %v891, %v890
  %v923 = vpack.c.b16 %v893, %v892
  %v924 = vpack.c.b16 %v895, %v894
  %v925 = vpack.c.b16 %v897, %v896
  %v926 = vpack.c.b16 %v899, %v898
  %v927 = vpack.c.b16 %v901, %v900
  %v928 = vpack.c.b16 %v903, %v902
  %v929 = vpack.c.b16 %v905, %v904
  %v930 = vpack.c.b16 %v907, %v906
  %v931 = vpack.c.b16 %v909, %v908
  %v932 = vpack.c.b16 %v911, %v910
  %v933 = vpack.c.b16 %v913, %v912
  %v934 = vpack.c.b16 %v915, %v914
  %v935 = vpack.c.b16 %v917, %v916
  %v936 = vpack.c.b16 %v919, %v918
  %v937 = vpack.c.b16 %v921, %v920
  %954 = vmatpush.bf16.msra.mxu0 %v929
  %955 = vmatpush.bf16.msra.mxu0 %v928
  %956 = vmatpush.bf16.msra.mxu0 %v927
  %957 = vmatpush.bf16.msra.mxu0 %v926
  %958 = vmatpush.bf16.msra.mxu0 %v925
  %959 = vmatpush.bf16.msra.mxu0 %v924
  %960 = vmatpush.bf16.msra.mxu0 %v923
  %961 = vmatpush.bf16.msra.mxu0 %v922
  %962 = vmatmul.bf16.gmra.mxu0 %v143
  %v963 = vpop.f32.mrf.mxu0
  %v964 = vadd.f32 0.0, %v963
  %v965 = vpop.f32.mrf.mxu0
  %v966 = vadd.f32 0.0, %v965
  %967 = vmatmul.bf16.gmra.mxu0 %v145
  %v968 = vpop.f32.mrf.mxu0
  %v969 = vadd.f32 0.0, %v968
  %v970 = vpop.f32.mrf.mxu0
  %v971 = vadd.f32 0.0, %v970
  %972 = vmatmul.bf16.gmra.mxu0 %v147
  %v973 = vpop.f32.mrf.mxu0
  %v974 = vadd.f32 0.0, %v973
  %v975 = vpop.f32.mrf.mxu0
  %v976 = vadd.f32 0.0, %v975
  %977 = vmatmul.bf16.gmra.mxu0 %v149
  %v978 = vpop.f32.mrf.mxu0
  %v979 = vadd.f32 0.0, %v978
  %v980 = vpop.f32.mrf.mxu0
  %v981 = vadd.f32 0.0, %v980
  %982 = vmatmul.bf16.gmra.mxu0 %v151
  %v983 = vpop.f32.mrf.mxu0
  %v984 = vadd.f32 0.0, %v983
  %v985 = vpop.f32.mrf.mxu0
  %v986 = vadd.f32 0.0, %v985
  %987 = vmatmul.bf16.gmra.mxu0 %v153
  %v988 = vpop.f32.mrf.mxu0
  %v989 = vadd.f32 0.0, %v988
  %v990 = vpop.f32.mrf.mxu0
  %v991 = vadd.f32 0.0, %v990
  %992 = vmatmul.bf16.gmra.mxu0 %v155
  %v993 = vpop.f32.mrf.mxu0
  %v994 = vadd.f32 0.0, %v993
  %v995 = vpop.f32.mrf.mxu0
  %v996 = vadd.f32 0.0, %v995
  %997 = vmatmul.bf16.gmra.mxu0 %v157
  %v998 = vpop.f32.mrf.mxu0
  %v999 = vadd.f32 0.0, %v998
  %v1000 = vpop.f32.mrf.mxu0
  %v1001 = vadd.f32 0.0, %v1000
  %1002 = vmatmul.bf16.gmra.mxu0 %v159
  %v1003 = vpop.f32.mrf.mxu0
  %v1004 = vadd.f32 0.0, %v1003
  %v1005 = vpop.f32.mrf.mxu0
  %v1006 = vadd.f32 0.0, %v1005
  %1007 = vmatmul.bf16.gmra.mxu0 %v161
  %v1008 = vpop.f32.mrf.mxu0
  %v1009 = vadd.f32 0.0, %v1008
  %v1010 = vpop.f32.mrf.mxu0
  %v1011 = vadd.f32 0.0, %v1010
  %1012 = vmatmul.bf16.gmra.mxu0 %v163
  %v1013 = vpop.f32.mrf.mxu0
  %v1014 = vadd.f32 0.0, %v1013
  %v1015 = vpop.f32.mrf.mxu0
  %v1016 = vadd.f32 0.0, %v1015
  %1017 = vmatmul.bf16.gmra.mxu0 %v165
  %v1018 = vpop.f32.mrf.mxu0
  %v1019 = vadd.f32 0.0, %v1018
  %v1020 = vpop.f32.mrf.mxu0
  %v1021 = vadd.f32 0.0, %v1020
  %1022 = vdwg.mxu0
  %1023 = vmatpush.bf16.msra.mxu0 %v937
  %1024 = vmatpush.bf16.msra.mxu0 %v936
  %1025 = vmatpush.bf16.msra.mxu0 %v935
  %1026 = vmatpush.bf16.msra.mxu0 %v934
  %1027 = vmatpush.bf16.msra.mxu0 %v933
  %1028 = vmatpush.bf16.msra.mxu0 %v932
  %1029 = vmatpush.bf16.msra.mxu0 %v931
  %1030 = vmatpush.bf16.msra.mxu0 %v930
  %1031 = vmatmul.bf16.gmra.mxu0 %v144
  %v1032 = vpop.f32.mrf.mxu0
  %v1033 = vadd.f32 %v964, %v1032
  %v1034 = vpop.f32.mrf.mxu0
  %v1035 = vadd.f32 %v966, %v1034
  %1036 = vmatmul.bf16.gmra.mxu0 %v146
  %v1037 = vpop.f32.mrf.mxu0
  %v1038 = vadd.f32 %v969, %v1037
  %v1039 = vpop.f32.mrf.mxu0
  %v1040 = vadd.f32 %v971, %v1039
  %1041 = vmatmul.bf16.gmra.mxu0 %v148
  %v1042 = vpop.f32.mrf.mxu0
  %v1043 = vadd.f32 %v974, %v1042
  %v1044 = vpop.f32.mrf.mxu0
  %v1045 = vadd.f32 %v976, %v1044
  %1046 = vmatmul.bf16.gmra.mxu0 %v150
  %v1047 = vpop.f32.mrf.mxu0
  %v1048 = vadd.f32 %v979, %v1047
  %v1049 = vpop.f32.mrf.mxu0
  %v1050 = vadd.f32 %v981, %v1049
  %1051 = vmatmul.bf16.gmra.mxu0 %v152
  %v1052 = vpop.f32.mrf.mxu0
  %v1053 = vadd.f32 %v984, %v1052
  %v1054 = vpop.f32.mrf.mxu0
  %v1055 = vadd.f32 %v986, %v1054
  %1056 = vmatmul.bf16.gmra.mxu0 %v154
  %v1057 = vpop.f32.mrf.mxu0
  %v1058 = vadd.f32 %v989, %v1057
  %v1059 = vpop.f32.mrf.mxu0
  %v1060 = vadd.f32 %v991, %v1059
  %1061 = vmatmul.bf16.gmra.mxu0 %v156
  %v1062 = vpop.f32.mrf.mxu0
  %v1063 = vadd.f32 %v994, %v1062
  %v1064 = vpop.f32.mrf.mxu0
  %v1065 = vadd.f32 %v996, %v1064
  %1066 = vmatmul.bf16.gmra.mxu0 %v158
  %v1067 = vpop.f32.mrf.mxu0
  %v1068 = vadd.f32 %v999, %v1067
  %v1069 = vpop.f32.mrf.mxu0
  %v1070 = vadd.f32 %v1001, %v1069
  %1071 = vmatmul.bf16.gmra.mxu0 %v160
  %v1072 = vpop.f32.mrf.mxu0
  %v1073 = vadd.f32 %v1004, %v1072
  %v1074 = vpop.f32.mrf.mxu0
  %v1075 = vadd.f32 %v1006, %v1074
  %1076 = vmatmul.bf16.gmra.mxu0 %v162
  %v1077 = vpop.f32.mrf.mxu0
  %v1078 = vadd.f32 %v1009, %v1077
  %v1079 = vpop.f32.mrf.mxu0
  %v1080 = vadd.f32 %v1011, %v1079
  %1081 = vmatmul.bf16.gmra.mxu0 %v164
  %v1082 = vpop.f32.mrf.mxu0
  %v1083 = vadd.f32 %v1014, %v1082
  %v1084 = vpop.f32.mrf.mxu0
  %v1085 = vadd.f32 %v1016, %v1084
  %1086 = vmatmul.bf16.gmra.mxu0 %v166
  %v1087 = vpop.f32.mrf.mxu0
  %v1088 = vadd.f32 %v1019, %v1087
  %v1089 = vpop.f32.mrf.mxu0
  %v1090 = vadd.f32 %v1021, %v1089
  %1091 = vdwg.mxu0
  %vm1116 = vcmask 1045504
  %v1117 = vrot.slane %v1033, 2
  %v1118 = vrot.slane %v1035, 2
  %v1119 = vsel %vm1116, %v1117, %v1118
  %v1120 = vrot.slane %v1038, 2
  %v1121 = vrot.slane %v1040, 2
  %v1122 = vsel %vm1116, %v1120, %v1121
  %v1123 = vrot.slane %v1043, 2
  %v1124 = vrot.slane %v1045, 2
  %v1125 = vsel %vm1116, %v1123, %v1124
  %v1126 = vrot.slane %v1048, 2
  %v1127 = vrot.slane %v1050, 2
  %v1128 = vsel %vm1116, %v1126, %v1127
  %v1129 = vrot.slane %v1053, 2
  %v1130 = vrot.slane %v1055, 2
  %v1131 = vsel %vm1116, %v1129, %v1130
  %v1132 = vrot.slane %v1058, 2
  %v1133 = vrot.slane %v1060, 2
  %v1134 = vsel %vm1116, %v1132, %v1133
  %v1135 = vrot.slane %v1063, 2
  %v1136 = vrot.slane %v1065, 2
  %v1137 = vsel %vm1116, %v1135, %v1136
  %v1138 = vrot.slane %v1068, 2
  %v1139 = vrot.slane %v1070, 2
  %v1140 = vsel %vm1116, %v1138, %v1139
  %v1141 = vrot.slane %v1073, 2
  %v1142 = vrot.slane %v1075, 2
  %v1143 = vsel %vm1116, %v1141, %v1142
  %v1144 = vrot.slane %v1078, 2
  %v1145 = vrot.slane %v1080, 2
  %v1146 = vsel %vm1116, %v1144, %v1145
  %v1147 = vrot.slane %v1083, 2
  %v1148 = vrot.slane %v1085, 2
  %v1149 = vsel %vm1116, %v1147, %v1148
  %v1150 = vrot.slane %v1088, 2
  %v1151 = vrot.slane %v1090, 2
  %v1152 = vsel %vm1116, %v1150, %v1151
  %v1177 = vadd.f32 %v801, %v1119
  %v1178 = vadd.f32 %v802, %v1118
  %v1179 = vadd.f32 %v803, %v1122
  %v1180 = vadd.f32 %v804, %v1121
  %v1181 = vadd.f32 %v805, %v1125
  %v1182 = vadd.f32 %v806, %v1124
  %v1183 = vadd.f32 %v807, %v1128
  %v1184 = vadd.f32 %v808, %v1127
  %v1185 = vadd.f32 %v809, %v1131
  %v1186 = vadd.f32 %v810, %v1130
  %v1187 = vadd.f32 %v811, %v1134
  %v1188 = vadd.f32 %v812, %v1133
  %v1189 = vadd.f32 %v813, %v1137
  %v1190 = vadd.f32 %v814, %v1136
  %v1191 = vadd.f32 %v815, %v1140
  %v1192 = vadd.f32 %v816, %v1139
  %v1193 = vadd.f32 %v817, %v1143
  %v1194 = vadd.f32 %v818, %v1142
  %v1195 = vadd.f32 %v819, %v1146
  %v1196 = vadd.f32 %v820, %v1145
  %v1197 = vadd.f32 %v821, %v1149
  %v1198 = vadd.f32 %v822, %v1148
  %v1199 = vadd.f32 %v823, %v1152
  %v1200 = vadd.f32 %v824, %v1151
  %v1201 = vld [vmem:[%s0 + $0x10] sm:$0xff]
  %v1202 = vld [vmem:[%s0 + $0x18] sm:$0xff]
  %v1203 = vld [vmem:[%s0 + $0x20] sm:$0xff]
  %v1204 = vld [vmem:[%s0 + $0x28] sm:$0xff]
  %v1205 = vld [vmem:[%s0 + $0x30] sm:$0xff]
  %v1206 = vld [vmem:[%s0 + $0x38] sm:$0xff]
  %v1207 = vld [vmem:[%s0 + $0x40] sm:$0xff]
  %v1208 = vld [vmem:[%s0 + $0x48] sm:$0xff]
  %v1209 = vld [vmem:[%s0 + $0x50] sm:$0xff]
  %v1210 = vld [vmem:[%s0 + $0x58] sm:$0xff]
  %v1211 = vld [vmem:[%s0 + $0x60] sm:$0xff]
  %v1212 = vld [vmem:[%s0 + $0x68] sm:$0xff]
  %v1213 = vld [vmem:[%s0 + $0x70] sm:$0xff]
  %v1214 = vld [vmem:[%s0 + $0x78] sm:$0xff]
  %v1215 = vld [vmem:[%s0 + $0x80] sm:$0xff]
  %v1216 = vld [vmem:[%s0 + $0x88] sm:$0xff]
  %v1217 = vld [vmem:[%s0 + $0x90] sm:$0xff]
  %v1218 = vld [vmem:[%s0 + $0x98] sm:$0xff]
  %v1219 = vld [vmem:[%s0 + $0xa0] sm:$0xff]
  %v1220 = vld [vmem:[%s0 + $0xa8] sm:$0xff]
  %v1221 = vld [vmem:[%s0 + $0xb0] sm:$0xff]
  %v1222 = vld [vmem:[%s0 + $0xb8] sm:$0xff]
  %v1223 = vld [vmem:[%s0 + $0xc0] sm:$0xff]
  %v1224 = vld [vmem:[%s0 + $0xc8] sm:$0xff]
  %s1225 = scalar_lea.vmem %s1, 384
  %v1226 = vld [vmem:[%s1225] sm:$0xf]
  %v1227 = vld [vmem:[%s1225 + $0x4] sm:$0xf]
  %v1228 = vld [vmem:[%s1225 + $0x8] sm:$0xf]
  %v1229 = vld [vmem:[%s1225 + $0xc] sm:$0xf]
  %v1230 = vld [vmem:[%s1225 + $0x10] sm:$0xf]
  %v1231 = vld [vmem:[%s1225 + $0x14] sm:$0xf]
  %v1232 = vld [vmem:[%s1225 + $0x18] sm:$0xf]
  %v1233 = vld [vmem:[%s1225 + $0x1c] sm:$0xf]
  %v1234 = vld [vmem:[%s1225 + $0x20] sm:$0xf]
  %v1235 = vld [vmem:[%s1225 + $0x24] sm:$0xf]
  %v1236 = vld [vmem:[%s1225 + $0x28] sm:$0xf]
  %v1237 = vld [vmem:[%s1225 + $0x2c] sm:$0xf]
  %v1238 = vld [vmem:[%s1225 + $0x30] sm:$0xf]
  %v1239 = vld [vmem:[%s1225 + $0x34] sm:$0xf]
  %v1240 = vld [vmem:[%s1225 + $0x38] sm:$0xf]
  %v1241 = vld [vmem:[%s1225 + $0x3c] sm:$0xf]
  %v1242 = vld [vmem:[%s1225 + $0x40] sm:$0xf]
  %v1243 = vld [vmem:[%s1225 + $0x44] sm:$0xf]
  %v1244 = vld [vmem:[%s1225 + $0x48] sm:$0xf]
  %v1245 = vld [vmem:[%s1225 + $0x4c] sm:$0xf]
  %v1246 = vld [vmem:[%s1225 + $0x50] sm:$0xf]
  %v1247 = vld [vmem:[%s1225 + $0x54] sm:$0xf]
  %v1248 = vld [vmem:[%s1225 + $0x58] sm:$0xf]
  %v1249 = vld [vmem:[%s1225 + $0x5c] sm:$0xf]
  %v1250 = vld [vmem:[%s1225 + $0x60] sm:$0xf]
  %v1251 = vld [vmem:[%s1225 + $0x64] sm:$0xf]
  %v1252 = vld [vmem:[%s1225 + $0x68] sm:$0xf]
  %v1253 = vld [vmem:[%s1225 + $0x6c] sm:$0xf]
  %v1254 = vld [vmem:[%s1225 + $0x70] sm:$0xf]
  %v1255 = vld [vmem:[%s1225 + $0x74] sm:$0xf]
  %v1256 = vld [vmem:[%s1225 + $0x78] sm:$0xf]
  %v1257 = vld [vmem:[%s1225 + $0x7c] sm:$0xf]
  %v1282 = vunpack.c.l.b16 %v1201
  %v1283 = vunpack.c.h.b16 %v1201
  %v1284 = vunpack.c.l.b16 %v1202
  %v1285 = vunpack.c.h.b16 %v1202
  %v1286 = vunpack.c.l.b16 %v1203
  %v1287 = vunpack.c.h.b16 %v1203
  %v1288 = vunpack.c.l.b16 %v1204
  %v1289 = vunpack.c.h.b16 %v1204
  %v1290 = vunpack.c.l.b16 %v1205
  %v1291 = vunpack.c.h.b16 %v1205
  %v1292 = vunpack.c.l.b16 %v1206
  %v1293 = vunpack.c.h.b16 %v1206
  %v1294 = vunpack.c.l.b16 %v1207
  %v1295 = vunpack.c.h.b16 %v1207
  %v1296 = vunpack.c.l.b16 %v1208
  %v1297 = vunpack.c.h.b16 %v1208
  %v1298 = vunpack.c.l.b16 %v1209
  %v1299 = vunpack.c.h.b16 %v1209
  %v1300 = vunpack.c.l.b16 %v1210
  %v1301 = vunpack.c.h.b16 %v1210
  %v1302 = vunpack.c.l.b16 %v1211
  %v1303 = vunpack.c.h.b16 %v1211
  %v1304 = vunpack.c.l.b16 %v1212
  %v1305 = vunpack.c.h.b16 %v1212
  %v1306 = vunpack.c.l.b16 %v1213
  %v1307 = vunpack.c.h.b16 %v1213
  %v1308 = vunpack.c.l.b16 %v1214
  %v1309 = vunpack.c.h.b16 %v1214
  %v1310 = vunpack.c.l.b16 %v1215
  %v1311 = vunpack.c.h.b16 %v1215
  %v1312 = vunpack.c.l.b16 %v1216
  %v1313 = vunpack.c.h.b16 %v1216
  %v1314 = vunpack.c.l.b16 %v1217
  %v1315 = vunpack.c.h.b16 %v1217
  %v1316 = vunpack.c.l.b16 %v1218
  %v1317 = vunpack.c.h.b16 %v1218
  %v1318 = vunpack.c.l.b16 %v1219
  %v1319 = vunpack.c.h.b16 %v1219
  %v1320 = vunpack.c.l.b16 %v1220
  %v1321 = vunpack.c.h.b16 %v1220
  %v1322 = vunpack.c.l.b16 %v1221
  %v1323 = vunpack.c.h.b16 %v1221
  %v1324 = vunpack.c.l.b16 %v1222
  %v1325 = vunpack.c.h.b16 %v1222
  %v1326 = vunpack.c.l.b16 %v1223
  %v1327 = vunpack.c.h.b16 %v1223
  %v1328 = vunpack.c.l.b16 %v1224
  %v1329 = vunpack.c.h.b16 %v1224
  %v1330 = vpack.c.b16 %v1284, %v1282
  %v1331 = vpack.c.b16 %v1285, %v1283
  %v1332 = vpack.c.b16 %v1288, %v1286
  %v1333 = vpack.c.b16 %v1289, %v1287
  %v1334 = vpack.c.b16 %v1292, %v1290
  %v1335 = vpack.c.b16 %v1293, %v1291
  %v1336 = vpack.c.b16 %v1296, %v1294
  %v1337 = vpack.c.b16 %v1297, %v1295
  %v1338 = vpack.c.b16 %v1300, %v1298
  %v1339 = vpack.c.b16 %v1301, %v1299
  %v1340 = vpack.c.b16 %v1304, %v1302
  %v1341 = vpack.c.b16 %v1305, %v1303
  %v1342 = vpack.c.b16 %v1308, %v1306
  %v1343 = vpack.c.b16 %v1309, %v1307
  %v1344 = vpack.c.b16 %v1312, %v1310
  %v1345 = vpack.c.b16 %v1313, %v1311
  %v1346 = vpack.c.b16 %v1316, %v1314
  %v1347 = vpack.c.b16 %v1317, %v1315
  %v1348 = vpack.c.b16 %v1320, %v1318
  %v1349 = vpack.c.b16 %v1321, %v1319
  %v1350 = vpack.c.b16 %v1324, %v1322
  %v1351 = vpack.c.b16 %v1325, %v1323
  %v1352 = vpack.c.b16 %v1328, %v1326
  %v1353 = vpack.c.b16 %v1329, %v1327
  %v1410 = vunpack.c.l.b16 %v1226
  %v1411 = vunpack.c.l.b16 %v1227
  %v1412 = vunpack.c.l.b16 %v1228
  %v1413 = vunpack.c.l.b16 %v1229
  %v1414 = vunpack.c.l.b16 %v1230
  %v1415 = vunpack.c.l.b16 %v1231
  %v1416 = vunpack.c.l.b16 %v1232
  %v1417 = vunpack.c.l.b16 %v1233
  %v1418 = vunpack.c.l.b16 %v1234
  %v1419 = vunpack.c.l.b16 %v1235
  %v1420 = vunpack.c.l.b16 %v1236
  %v1421 = vunpack.c.l.b16 %v1237
  %v1422 = vunpack.c.l.b16 %v1238
  %v1423 = vunpack.c.l.b16 %v1239
  %v1424 = vunpack.c.l.b16 %v1240
  %v1425 = vunpack.c.l.b16 %v1241
  %v1426 = vunpack.c.l.b16 %v1242
  %v1427 = vunpack.c.l.b16 %v1243
  %v1428 = vunpack.c.l.b16 %v1244
  %v1429 = vunpack.c.l.b16 %v1245
  %v1430 = vunpack.c.l.b16 %v1246
  %v1431 = vunpack.c.l.b16 %v1247
  %v1432 = vunpack.c.l.b16 %v1248
  %v1433 = vunpack.c.l.b16 %v1249
  %v1434 = vunpack.c.l.b16 %v1250
  %v1435 = vunpack.c.l.b16 %v1251
  %v1436 = vunpack.c.l.b16 %v1252
  %v1437 = vunpack.c.l.b16 %v1253
  %v1438 = vunpack.c.l.b16 %v1254
  %v1439 = vunpack.c.l.b16 %v1255
  %v1440 = vunpack.c.l.b16 %v1256
  %v1441 = vunpack.c.l.b16 %v1257
  %v1442 = vpack.c.b16 %v1411, %v1410
  %v1443 = vpack.c.b16 %v1413, %v1412
  %v1444 = vpack.c.b16 %v1415, %v1414
  %v1445 = vpack.c.b16 %v1417, %v1416
  %v1446 = vpack.c.b16 %v1419, %v1418
  %v1447 = vpack.c.b16 %v1421, %v1420
  %v1448 = vpack.c.b16 %v1423, %v1422
  %v1449 = vpack.c.b16 %v1425, %v1424
  %v1450 = vpack.c.b16 %v1427, %v1426
  %v1451 = vpack.c.b16 %v1429, %v1428
  %v1452 = vpack.c.b16 %v1431, %v1430
  %v1453 = vpack.c.b16 %v1433, %v1432
  %v1454 = vpack.c.b16 %v1435, %v1434
  %v1455 = vpack.c.b16 %v1437, %v1436
  %v1456 = vpack.c.b16 %v1439, %v1438
  %v1457 = vpack.c.b16 %v1441, %v1440
  %1474 = vmatpush.bf16.msra.mxu0 %v1449
  %1475 = vmatpush.bf16.msra.mxu0 %v1448
  %1476 = vmatpush.bf16.msra.mxu0 %v1447
  %1477 = vmatpush.bf16.msra.mxu0 %v1446
  %1478 = vmatpush.bf16.msra.mxu0 %v1445
  %1479 = vmatpush.bf16.msra.mxu0 %v1444
  %1480 = vmatpush.bf16.msra.mxu0 %v1443
  %1481 = vmatpush.bf16.msra.mxu0 %v1442
  %1482 = vmatmul.bf16.gmra.mxu0 %v1330
  %v1483 = vpop.f32.mrf.mxu0
  %v1484 = vadd.f32 0.0, %v1483
  %v1485 = vpop.f32.mrf.mxu0
  %v1486 = vadd.f32 0.0, %v1485
  %1487 = vmatmul.bf16.gmra.mxu0 %v1332
  %v1488 = vpop.f32.mrf.mxu0
  %v1489 = vadd.f32 0.0, %v1488
  %v1490 = vpop.f32.mrf.mxu0
  %v1491 = vadd.f32 0.0, %v1490
  %1492 = vmatmul.bf16.gmra.mxu0 %v1334
  %v1493 = vpop.f32.mrf.mxu0
  %v1494 = vadd.f32 0.0, %v1493
  %v1495 = vpop.f32.mrf.mxu0
  %v1496 = vadd.f32 0.0, %v1495
  %1497 = vmatmul.bf16.gmra.mxu0 %v1336
  %v1498 = vpop.f32.mrf.mxu0
  %v1499 = vadd.f32 0.0, %v1498
  %v1500 = vpop.f32.mrf.mxu0
  %v1501 = vadd.f32 0.0, %v1500
  %1502 = vmatmul.bf16.gmra.mxu0 %v1338
  %v1503 = vpop.f32.mrf.mxu0
  %v1504 = vadd.f32 0.0, %v1503
  %v1505 = vpop.f32.mrf.mxu0
  %v1506 = vadd.f32 0.0, %v1505
  %1507 = vmatmul.bf16.gmra.mxu0 %v1340
  %v1508 = vpop.f32.mrf.mxu0
  %v1509 = vadd.f32 0.0, %v1508
  %v1510 = vpop.f32.mrf.mxu0
  %v1511 = vadd.f32 0.0, %v1510
  %1512 = vmatmul.bf16.gmra.mxu0 %v1342
  %v1513 = vpop.f32.mrf.mxu0
  %v1514 = vadd.f32 0.0, %v1513
  %v1515 = vpop.f32.mrf.mxu0
  %v1516 = vadd.f32 0.0, %v1515
  %1517 = vmatmul.bf16.gmra.mxu0 %v1344
  %v1518 = vpop.f32.mrf.mxu0
  %v1519 = vadd.f32 0.0, %v1518
  %v1520 = vpop.f32.mrf.mxu0
  %v1521 = vadd.f32 0.0, %v1520
  %1522 = vmatmul.bf16.gmra.mxu0 %v1346
  %v1523 = vpop.f32.mrf.mxu0
  %v1524 = vadd.f32 0.0, %v1523
  %v1525 = vpop.f32.mrf.mxu0
  %v1526 = vadd.f32 0.0, %v1525
  %1527 = vmatmul.bf16.gmra.mxu0 %v1348
  %v1528 = vpop.f32.mrf.mxu0
  %v1529 = vadd.f32 0.0, %v1528
  %v1530 = vpop.f32.mrf.mxu0
  %v1531 = vadd.f32 0.0, %v1530
  %1532 = vmatmul.bf16.gmra.mxu0 %v1350
  %v1533 = vpop.f32.mrf.mxu0
  %v1534 = vadd.f32 0.0, %v1533
  %v1535 = vpop.f32.mrf.mxu0
  %v1536 = vadd.f32 0.0, %v1535
  %1537 = vmatmul.bf16.gmra.mxu0 %v1352
  %v1538 = vpop.f32.mrf.mxu0
  %v1539 = vadd.f32 0.0, %v1538
  %v1540 = vpop.f32.mrf.mxu0
  %v1541 = vadd.f32 0.0, %v1540
  %1542 = vdwg.mxu0
  %1543 = vmatpush.bf16.msra.mxu0 %v1457
  %1544 = vmatpush.bf16.msra.mxu0 %v1456
  %1545 = vmatpush.bf16.msra.mxu0 %v1455
  %1546 = vmatpush.bf16.msra.mxu0 %v1454
  %1547 = vmatpush.bf16.msra.mxu0 %v1453
  %1548 = vmatpush.bf16.msra.mxu0 %v1452
  %1549 = vmatpush.bf16.msra.mxu0 %v1451
  %1550 = vmatpush.bf16.msra.mxu0 %v1450
  %1551 = vmatmul.bf16.gmra.mxu0 %v1331
  %v1552 = vpop.f32.mrf.mxu0
  %v1553 = vadd.f32 %v1484, %v1552
  %v1554 = vpop.f32.mrf.mxu0
  %v1555 = vadd.f32 %v1486, %v1554
  %1556 = vmatmul.bf16.gmra.mxu0 %v1333
  %v1557 = vpop.f32.mrf.mxu0
  %v1558 = vadd.f32 %v1489, %v1557
  %v1559 = vpop.f32.mrf.mxu0
  %v1560 = vadd.f32 %v1491, %v1559
  %1561 = vmatmul.bf16.gmra.mxu0 %v1335
  %v1562 = vpop.f32.mrf.mxu0
  %v1563 = vadd.f32 %v1494, %v1562
  %v1564 = vpop.f32.mrf.mxu0
  %v1565 = vadd.f32 %v1496, %v1564
  %1566 = vmatmul.bf16.gmra.mxu0 %v1337
  %v1567 = vpop.f32.mrf.mxu0
  %v1568 = vadd.f32 %v1499, %v1567
  %v1569 = vpop.f32.mrf.mxu0
  %v1570 = vadd.f32 %v1501, %v1569
  %1571 = vmatmul.bf16.gmra.mxu0 %v1339
  %v1572 = vpop.f32.mrf.mxu0
  %v1573 = vadd.f32 %v1504, %v1572
  %v1574 = vpop.f32.mrf.mxu0
  %v1575 = vadd.f32 %v1506, %v1574
  %1576 = vmatmul.bf16.gmra.mxu0 %v1341
  %v1577 = vpop.f32.mrf.mxu0
  %v1578 = vadd.f32 %v1509, %v1577
  %v1579 = vpop.f32.mrf.mxu0
  %v1580 = vadd.f32 %v1511, %v1579
  %1581 = vmatmul.bf16.gmra.mxu0 %v1343
  %v1582 = vpop.f32.mrf.mxu0
  %v1583 = vadd.f32 %v1514, %v1582
  %v1584 = vpop.f32.mrf.mxu0
  %v1585 = vadd.f32 %v1516, %v1584
  %1586 = vmatmul.bf16.gmra.mxu0 %v1345
  %v1587 = vpop.f32.mrf.mxu0
  %v1588 = vadd.f32 %v1519, %v1587
  %v1589 = vpop.f32.mrf.mxu0
  %v1590 = vadd.f32 %v1521, %v1589
  %1591 = vmatmul.bf16.gmra.mxu0 %v1347
  %v1592 = vpop.f32.mrf.mxu0
  %v1593 = vadd.f32 %v1524, %v1592
  %v1594 = vpop.f32.mrf.mxu0
  %v1595 = vadd.f32 %v1526, %v1594
  %1596 = vmatmul.bf16.gmra.mxu0 %v1349
  %v1597 = vpop.f32.mrf.mxu0
  %v1598 = vadd.f32 %v1529, %v1597
  %v1599 = vpop.f32.mrf.mxu0
  %v1600 = vadd.f32 %v1531, %v1599
  %1601 = vmatmul.bf16.gmra.mxu0 %v1351
  %v1602 = vpop.f32.mrf.mxu0
  %v1603 = vadd.f32 %v1534, %v1602
  %v1604 = vpop.f32.mrf.mxu0
  %v1605 = vadd.f32 %v1536, %v1604
  %1606 = vmatmul.bf16.gmra.mxu0 %v1353
  %v1607 = vpop.f32.mrf.mxu0
  %v1608 = vadd.f32 %v1539, %v1607
  %v1609 = vpop.f32.mrf.mxu0
  %v1610 = vadd.f32 %v1541, %v1609
  %1611 = vdwg.mxu0
  %v1612 = vadd.f32 %v1177, %v1553
  %v1613 = vadd.f32 %v1178, %v1555
  %v1614 = vadd.f32 %v1179, %v1558
  %v1615 = vadd.f32 %v1180, %v1560
  %v1616 = vadd.f32 %v1181, %v1563
  %v1617 = vadd.f32 %v1182, %v1565
  %v1618 = vadd.f32 %v1183, %v1568
  %v1619 = vadd.f32 %v1184, %v1570
  %v1620 = vadd.f32 %v1185, %v1573
  %v1621 = vadd.f32 %v1186, %v1575
  %v1622 = vadd.f32 %v1187, %v1578
  %v1623 = vadd.f32 %v1188, %v1580
  %v1624 = vadd.f32 %v1189, %v1583
  %v1625 = vadd.f32 %v1190, %v1585
  %v1626 = vadd.f32 %v1191, %v1588
  %v1627 = vadd.f32 %v1192, %v1590
  %v1628 = vadd.f32 %v1193, %v1593
  %v1629 = vadd.f32 %v1194, %v1595
  %v1630 = vadd.f32 %v1195, %v1598
  %v1631 = vadd.f32 %v1196, %v1600
  %v1632 = vadd.f32 %v1197, %v1603
  %v1633 = vadd.f32 %v1198, %v1605
  %v1634 = vadd.f32 %v1199, %v1608
  %v1635 = vadd.f32 %v1200, %v1610
  %s1636 = scalar_lea.vmem %s1, 512
  %v1637 = vld [vmem:[%s1636] sm:$0xf]
  %v1638 = vld [vmem:[%s1636 + $0x4] sm:$0xf]
  %v1639 = vld [vmem:[%s1636 + $0x8] sm:$0xf]
  %v1640 = vld [vmem:[%s1636 + $0xc] sm:$0xf]
  %v1641 = vld [vmem:[%s1636 + $0x10] sm:$0xf]
  %v1642 = vld [vmem:[%s1636 + $0x14] sm:$0xf]
  %v1643 = vld [vmem:[%s1636 + $0x18] sm:$0xf]
  %v1644 = vld [vmem:[%s1636 + $0x1c] sm:$0xf]
  %v1645 = vld [vmem:[%s1636 + $0x20] sm:$0xf]
  %v1646 = vld [vmem:[%s1636 + $0x24] sm:$0xf]
  %v1647 = vld [vmem:[%s1636 + $0x28] sm:$0xf]
  %v1648 = vld [vmem:[%s1636 + $0x2c] sm:$0xf]
  %v1649 = vld [vmem:[%s1636 + $0x30] sm:$0xf]
  %v1650 = vld [vmem:[%s1636 + $0x34] sm:$0xf]
  %v1651 = vld [vmem:[%s1636 + $0x38] sm:$0xf]
  %v1652 = vld [vmem:[%s1636 + $0x3c] sm:$0xf]
  %v1653 = vld [vmem:[%s1636 + $0x40] sm:$0xf]
  %v1654 = vld [vmem:[%s1636 + $0x44] sm:$0xf]
  %v1655 = vld [vmem:[%s1636 + $0x48] sm:$0xf]
  %v1656 = vld [vmem:[%s1636 + $0x4c] sm:$0xf]
  %v1657 = vld [vmem:[%s1636 + $0x50] sm:$0xf]
  %v1658 = vld [vmem:[%s1636 + $0x54] sm:$0xf]
  %v1659 = vld [vmem:[%s1636 + $0x58] sm:$0xf]
  %v1660 = vld [vmem:[%s1636 + $0x5c] sm:$0xf]
  %v1661 = vld [vmem:[%s1636 + $0x60] sm:$0xf]
  %v1662 = vld [vmem:[%s1636 + $0x64] sm:$0xf]
  %v1663 = vld [vmem:[%s1636 + $0x68] sm:$0xf]
  %v1664 = vld [vmem:[%s1636 + $0x6c] sm:$0xf]
  %v1665 = vld [vmem:[%s1636 + $0x70] sm:$0xf]
  %v1666 = vld [vmem:[%s1636 + $0x74] sm:$0xf]
  %v1667 = vld [vmem:[%s1636 + $0x78] sm:$0xf]
  %v1668 = vld [vmem:[%s1636 + $0x7c] sm:$0xf]
  %v1701 = vunpack.c.l.b16 %v1637
  %v1702 = vunpack.c.l.b16 %v1638
  %v1703 = vunpack.c.l.b16 %v1639
  %v1704 = vunpack.c.l.b16 %v1640
  %v1705 = vunpack.c.l.b16 %v1641
  %v1706 = vunpack.c.l.b16 %v1642
  %v1707 = vunpack.c.l.b16 %v1643
  %v1708 = vunpack.c.l.b16 %v1644
  %v1709 = vunpack.c.l.b16 %v1645
  %v1710 = vunpack.c.l.b16 %v1646
  %v1711 = vunpack.c.l.b16 %v1647
  %v1712 = vunpack.c.l.b16 %v1648
  %v1713 = vunpack.c.l.b16 %v1649
  %v1714 = vunpack.c.l.b16 %v1650
  %v1715 = vunpack.c.l.b16 %v1651
  %v1716 = vunpack.c.l.b16 %v1652
  %v1717 = vunpack.c.l.b16 %v1653
  %v1718 = vunpack.c.l.b16 %v1654
  %v1719 = vunpack.c.l.b16 %v1655
  %v1720 = vunpack.c.l.b16 %v1656
  %v1721 = vunpack.c.l.b16 %v1657
  %v1722 = vunpack.c.l.b16 %v1658
  %v1723 = vunpack.c.l.b16 %v1659
  %v1724 = vunpack.c.l.b16 %v1660
  %v1725 = vunpack.c.l.b16 %v1661
  %v1726 = vunpack.c.l.b16 %v1662
  %v1727 = vunpack.c.l.b16 %v1663
  %v1728 = vunpack.c.l.b16 %v1664
  %v1729 = vunpack.c.l.b16 %v1665
  %v1730 = vunpack.c.l.b16 %v1666
  %v1731 = vunpack.c.l.b16 %v1667
  %v1732 = vunpack.c.l.b16 %v1668
  %v1733 = vpack.c.b16 %v1702, %v1701
  %v1734 = vpack.c.b16 %v1704, %v1703
  %v1735 = vpack.c.b16 %v1706, %v1705
  %v1736 = vpack.c.b16 %v1708, %v1707
  %v1737 = vpack.c.b16 %v1710, %v1709
  %v1738 = vpack.c.b16 %v1712, %v1711
  %v1739 = vpack.c.b16 %v1714, %v1713
  %v1740 = vpack.c.b16 %v1716, %v1715
  %v1741 = vpack.c.b16 %v1718, %v1717
  %v1742 = vpack.c.b16 %v1720, %v1719
  %v1743 = vpack.c.b16 %v1722, %v1721
  %v1744 = vpack.c.b16 %v1724, %v1723
  %v1745 = vpack.c.b16 %v1726, %v1725
  %v1746 = vpack.c.b16 %v1728, %v1727
  %v1747 = vpack.c.b16 %v1730, %v1729
  %v1748 = vpack.c.b16 %v1732, %v1731
  %1765 = vmatpush.bf16.msra.mxu0 %v1740
  %1766 = vmatpush.bf16.msra.mxu0 %v1739
  %1767 = vmatpush.bf16.msra.mxu0 %v1738
  %1768 = vmatpush.bf16.msra.mxu0 %v1737
  %1769 = vmatpush.bf16.msra.mxu0 %v1736
  %1770 = vmatpush.bf16.msra.mxu0 %v1735
  %1771 = vmatpush.bf16.msra.mxu0 %v1734
  %1772 = vmatpush.bf16.msra.mxu0 %v1733
  %1773 = vmatmul.bf16.gmra.mxu0 %v1330
  %v1774 = vpop.f32.mrf.mxu0
  %v1775 = vadd.f32 0.0, %v1774
  %v1776 = vpop.f32.mrf.mxu0
  %v1777 = vadd.f32 0.0, %v1776
  %1778 = vmatmul.bf16.gmra.mxu0 %v1332
  %v1779 = vpop.f32.mrf.mxu0
  %v1780 = vadd.f32 0.0, %v1779
  %v1781 = vpop.f32.mrf.mxu0
  %v1782 = vadd.f32 0.0, %v1781
  %1783 = vmatmul.bf16.gmra.mxu0 %v1334
  %v1784 = vpop.f32.mrf.mxu0
  %v1785 = vadd.f32 0.0, %v1784
  %v1786 = vpop.f32.mrf.mxu0
  %v1787 = vadd.f32 0.0, %v1786
  %1788 = vmatmul.bf16.gmra.mxu0 %v1336
  %v1789 = vpop.f32.mrf.mxu0
  %v1790 = vadd.f32 0.0, %v1789
  %v1791 = vpop.f32.mrf.mxu0
  %v1792 = vadd.f32 0.0, %v1791
  %1793 = vmatmul.bf16.gmra.mxu0 %v1338
  %v1794 = vpop.f32.mrf.mxu0
  %v1795 = vadd.f32 0.0, %v1794
  %v1796 = vpop.f32.mrf.mxu0
  %v1797 = vadd.f32 0.0, %v1796
  %1798 = vmatmul.bf16.gmra.mxu0 %v1340
  %v1799 = vpop.f32.mrf.mxu0
  %v1800 = vadd.f32 0.0, %v1799
  %v1801 = vpop.f32.mrf.mxu0
  %v1802 = vadd.f32 0.0, %v1801
  %1803 = vmatmul.bf16.gmra.mxu0 %v1342
  %v1804 = vpop.f32.mrf.mxu0
  %v1805 = vadd.f32 0.0, %v1804
  %v1806 = vpop.f32.mrf.mxu0
  %v1807 = vadd.f32 0.0, %v1806
  %1808 = vmatmul.bf16.gmra.mxu0 %v1344
  %v1809 = vpop.f32.mrf.mxu0
  %v1810 = vadd.f32 0.0, %v1809
  %v1811 = vpop.f32.mrf.mxu0
  %v1812 = vadd.f32 0.0, %v1811
  %1813 = vmatmul.bf16.gmra.mxu0 %v1346
  %v1814 = vpop.f32.mrf.mxu0
  %v1815 = vadd.f32 0.0, %v1814
  %v1816 = vpop.f32.mrf.mxu0
  %v1817 = vadd.f32 0.0, %v1816
  %1818 = vmatmul.bf16.gmra.mxu0 %v1348
  %v1819 = vpop.f32.mrf.mxu0
  %v1820 = vadd.f32 0.0, %v1819
  %v1821 = vpop.f32.mrf.mxu0
  %v1822 = vadd.f32 0.0, %v1821
  %1823 = vmatmul.bf16.gmra.mxu0 %v1350
  %v1824 = vpop.f32.mrf.mxu0
  %v1825 = vadd.f32 0.0, %v1824
  %v1826 = vpop.f32.mrf.mxu0
  %v1827 = vadd.f32 0.0, %v1826
  %1828 = vmatmul.bf16.gmra.mxu0 %v1352
  %v1829 = vpop.f32.mrf.mxu0
  %v1830 = vadd.f32 0.0, %v1829
  %v1831 = vpop.f32.mrf.mxu0
  %v1832 = vadd.f32 0.0, %v1831
  %1833 = vdwg.mxu0
  %1834 = vmatpush.bf16.msra.mxu0 %v1748
  %1835 = vmatpush.bf16.msra.mxu0 %v1747
  %1836 = vmatpush.bf16.msra.mxu0 %v1746
  %1837 = vmatpush.bf16.msra.mxu0 %v1745
  %1838 = vmatpush.bf16.msra.mxu0 %v1744
  %1839 = vmatpush.bf16.msra.mxu0 %v1743
  %1840 = vmatpush.bf16.msra.mxu0 %v1742
  %1841 = vmatpush.bf16.msra.mxu0 %v1741
  %1842 = vmatmul.bf16.gmra.mxu0 %v1331
  %v1843 = vpop.f32.mrf.mxu0
  %v1844 = vadd.f32 %v1775, %v1843
  %v1845 = vpop.f32.mrf.mxu0
  %v1846 = vadd.f32 %v1777, %v1845
  %1847 = vmatmul.bf16.gmra.mxu0 %v1333
  %v1848 = vpop.f32.mrf.mxu0
  %v1849 = vadd.f32 %v1780, %v1848
  %v1850 = vpop.f32.mrf.mxu0
  %v1851 = vadd.f32 %v1782, %v1850
  %1852 = vmatmul.bf16.gmra.mxu0 %v1335
  %v1853 = vpop.f32.mrf.mxu0
  %v1854 = vadd.f32 %v1785, %v1853
  %v1855 = vpop.f32.mrf.mxu0
  %v1856 = vadd.f32 %v1787, %v1855
  %1857 = vmatmul.bf16.gmra.mxu0 %v1337
  %v1858 = vpop.f32.mrf.mxu0
  %v1859 = vadd.f32 %v1790, %v1858
  %v1860 = vpop.f32.mrf.mxu0
  %v1861 = vadd.f32 %v1792, %v1860
  %1862 = vmatmul.bf16.gmra.mxu0 %v1339
  %v1863 = vpop.f32.mrf.mxu0
  %v1864 = vadd.f32 %v1795, %v1863
  %v1865 = vpop.f32.mrf.mxu0
  %v1866 = vadd.f32 %v1797, %v1865
  %1867 = vmatmul.bf16.gmra.mxu0 %v1341
  %v1868 = vpop.f32.mrf.mxu0
  %v1869 = vadd.f32 %v1800, %v1868
  %v1870 = vpop.f32.mrf.mxu0
  %v1871 = vadd.f32 %v1802, %v1870
  %1872 = vmatmul.bf16.gmra.mxu0 %v1343
  %v1873 = vpop.f32.mrf.mxu0
  %v1874 = vadd.f32 %v1805, %v1873
  %v1875 = vpop.f32.mrf.mxu0
  %v1876 = vadd.f32 %v1807, %v1875
  %1877 = vmatmul.bf16.gmra.mxu0 %v1345
  %v1878 = vpop.f32.mrf.mxu0
  %v1879 = vadd.f32 %v1810, %v1878
  %v1880 = vpop.f32.mrf.mxu0
  %v1881 = vadd.f32 %v1812, %v1880
  %1882 = vmatmul.bf16.gmra.mxu0 %v1347
  %v1883 = vpop.f32.mrf.mxu0
  %v1884 = vadd.f32 %v1815, %v1883
  %v1885 = vpop.f32.mrf.mxu0
  %v1886 = vadd.f32 %v1817, %v1885
  %1887 = vmatmul.bf16.gmra.mxu0 %v1349
  %v1888 = vpop.f32.mrf.mxu0
  %v1889 = vadd.f32 %v1820, %v1888
  %v1890 = vpop.f32.mrf.mxu0
  %v1891 = vadd.f32 %v1822, %v1890
  %1892 = vmatmul.bf16.gmra.mxu0 %v1351
  %v1893 = vpop.f32.mrf.mxu0
  %v1894 = vadd.f32 %v1825, %v1893
  %v1895 = vpop.f32.mrf.mxu0
  %v1896 = vadd.f32 %v1827, %v1895
  %1897 = vmatmul.bf16.gmra.mxu0 %v1353
  %v1898 = vpop.f32.mrf.mxu0
  %v1899 = vadd.f32 %v1830, %v1898
  %v1900 = vpop.f32.mrf.mxu0
  %v1901 = vadd.f32 %v1832, %v1900
  %1902 = vdwg.mxu0
  %v1927 = vrot.slane %v1844, 1
  %v1928 = vrot.slane %v1846, 1
  %v1929 = vsel %vm740, %v1927, %v1928
  %v1930 = vrot.slane %v1849, 1
  %v1931 = vrot.slane %v1851, 1
  %v1932 = vsel %vm740, %v1930, %v1931
  %v1933 = vrot.slane %v1854, 1
  %v1934 = vrot.slane %v1856, 1
  %v1935 = vsel %vm740, %v1933, %v1934
  %v1936 = vrot.slane %v1859, 1
  %v1937 = vrot.slane %v1861, 1
  %v1938 = vsel %vm740, %v1936, %v1937
  %v1939 = vrot.slane %v1864, 1
  %v1940 = vrot.slane %v1866, 1
  %v1941 = vsel %vm740, %v1939, %v1940
  %v1942 = vrot.slane %v1869, 1
  %v1943 = vrot.slane %v1871, 1
  %v1944 = vsel %vm740, %v1942, %v1943
  %v1945 = vrot.slane %v1874, 1
  %v1946 = vrot.slane %v1876, 1
  %v1947 = vsel %vm740, %v1945, %v1946
  %v1948 = vrot.slane %v1879, 1
  %v1949 = vrot.slane %v1881, 1
  %v1950 = vsel %vm740, %v1948, %v1949
  %v1951 = vrot.slane %v1884, 1
  %v1952 = vrot.slane %v1886, 1
  %v1953 = vsel %vm740, %v1951, %v1952
  %v1954 = vrot.slane %v1889, 1
  %v1955 = vrot.slane %v1891, 1
  %v1956 = vsel %vm740, %v1954, %v1955
  %v1957 = vrot.slane %v1894, 1
  %v1958 = vrot.slane %v1896, 1
  %v1959 = vsel %vm740, %v1957, %v1958
  %v1960 = vrot.slane %v1899, 1
  %v1961 = vrot.slane %v1901, 1
  %v1962 = vsel %vm740, %v1960, %v1961
  %v1987 = vadd.f32 %v1612, %v1929
  %v1988 = vadd.f32 %v1613, %v1928
  %v1989 = vadd.f32 %v1614, %v1932
  %v1990 = vadd.f32 %v1615, %v1931
  %v1991 = vadd.f32 %v1616, %v1935
  %v1992 = vadd.f32 %v1617, %v1934
  %v1993 = vadd.f32 %v1618, %v1938
  %v1994 = vadd.f32 %v1619, %v1937
  %v1995 = vadd.f32 %v1620, %v1941
  %v1996 = vadd.f32 %v1621, %v1940
  %v1997 = vadd.f32 %v1622, %v1944
  %v1998 = vadd.f32 %v1623, %v1943
  %v1999 = vadd.f32 %v1624, %v1947
  %v2000 = vadd.f32 %v1625, %v1946
  %v2001 = vadd.f32 %v1626, %v1950
  %v2002 = vadd.f32 %v1627, %v1949
  %v2003 = vadd.f32 %v1628, %v1953
  %v2004 = vadd.f32 %v1629, %v1952
  %v2005 = vadd.f32 %v1630, %v1956
  %v2006 = vadd.f32 %v1631, %v1955
  %v2007 = vadd.f32 %v1632, %v1959
  %v2008 = vadd.f32 %v1633, %v1958
  %v2009 = vadd.f32 %v1634, %v1962
  %v2010 = vadd.f32 %v1635, %v1961
  %s2011 = scalar_lea.vmem %s1, 640
  %v2012 = vld [vmem:[%s2011] sm:$0xf]
  %v2013 = vld [vmem:[%s2011 + $0x4] sm:$0xf]
  %v2014 = vld [vmem:[%s2011 + $0x8] sm:$0xf]
  %v2015 = vld [vmem:[%s2011 + $0xc] sm:$0xf]
  %v2016 = vld [vmem:[%s2011 + $0x10] sm:$0xf]
  %v2017 = vld [vmem:[%s2011 + $0x14] sm:$0xf]
  %v2018 = vld [vmem:[%s2011 + $0x18] sm:$0xf]
  %v2019 = vld [vmem:[%s2011 + $0x1c] sm:$0xf]
  %v2020 = vld [vmem:[%s2011 + $0x20] sm:$0xf]
  %v2021 = vld [vmem:[%s2011 + $0x24] sm:$0xf]
  %v2022 = vld [vmem:[%s2011 + $0x28] sm:$0xf]
  %v2023 = vld [vmem:[%s2011 + $0x2c] sm:$0xf]
  %v2024 = vld [vmem:[%s2011 + $0x30] sm:$0xf]
  %v2025 = vld [vmem:[%s2011 + $0x34] sm:$0xf]
  %v2026 = vld [vmem:[%s2011 + $0x38] sm:$0xf]
  %v2027 = vld [vmem:[%s2011 + $0x3c] sm:$0xf]
  %v2028 = vld [vmem:[%s2011 + $0x40] sm:$0xf]
  %v2029 = vld [vmem:[%s2011 + $0x44] sm:$0xf]
  %v2030 = vld [vmem:[%s2011 + $0x48] sm:$0xf]
  %v2031 = vld [vmem:[%s2011 + $0x4c] sm:$0xf]
  %v2032 = vld [vmem:[%s2011 + $0x50] sm:$0xf]
  %v2033 = vld [vmem:[%s2011 + $0x54] sm:$0xf]
  %v2034 = vld [vmem:[%s2011 + $0x58] sm:$0xf]
  %v2035 = vld [vmem:[%s2011 + $0x5c] sm:$0xf]
  %v2036 = vld [vmem:[%s2011 + $0x60] sm:$0xf]
  %v2037 = vld [vmem:[%s2011 + $0x64] sm:$0xf]
  %v2038 = vld [vmem:[%s2011 + $0x68] sm:$0xf]
  %v2039 = vld [vmem:[%s2011 + $0x6c] sm:$0xf]
  %v2040 = vld [vmem:[%s2011 + $0x70] sm:$0xf]
  %v2041 = vld [vmem:[%s2011 + $0x74] sm:$0xf]
  %v2042 = vld [vmem:[%s2011 + $0x78] sm:$0xf]
  %v2043 = vld [vmem:[%s2011 + $0x7c] sm:$0xf]
  %v2076 = vunpack.c.l.b16 %v2012
  %v2077 = vunpack.c.l.b16 %v2013
  %v2078 = vunpack.c.l.b16 %v2014
  %v2079 = vunpack.c.l.b16 %v2015
  %v2080 = vunpack.c.l.b16 %v2016
  %v2081 = vunpack.c.l.b16 %v2017
  %v2082 = vunpack.c.l.b16 %v2018
  %v2083 = vunpack.c.l.b16 %v2019
  %v2084 = vunpack.c.l.b16 %v2020
  %v2085 = vunpack.c.l.b16 %v2021
  %v2086 = vunpack.c.l.b16 %v2022
  %v2087 = vunpack.c.l.b16 %v2023
  %v2088 = vunpack.c.l.b16 %v2024
  %v2089 = vunpack.c.l.b16 %v2025
  %v2090 = vunpack.c.l.b16 %v2026
  %v2091 = vunpack.c.l.b16 %v2027
  %v2092 = vunpack.c.l.b16 %v2028
  %v2093 = vunpack.c.l.b16 %v2029
  %v2094 = vunpack.c.l.b16 %v2030
  %v2095 = vunpack.c.l.b16 %v2031
  %v2096 = vunpack.c.l.b16 %v2032
  %v2097 = vunpack.c.l.b16 %v2033
  %v2098 = vunpack.c.l.b16 %v2034
  %v2099 = vunpack.c.l.b16 %v2035
  %v2100 = vunpack.c.l.b16 %v2036
  %v2101 = vunpack.c.l.b16 %v2037
  %v2102 = vunpack.c.l.b16 %v2038
  %v2103 = vunpack.c.l.b16 %v2039
  %v2104 = vunpack.c.l.b16 %v2040
  %v2105 = vunpack.c.l.b16 %v2041
  %v2106 = vunpack.c.l.b16 %v2042
  %v2107 = vunpack.c.l.b16 %v2043
  %v2108 = vpack.c.b16 %v2077, %v2076
  %v2109 = vpack.c.b16 %v2079, %v2078
  %v2110 = vpack.c.b16 %v2081, %v2080
  %v2111 = vpack.c.b16 %v2083, %v2082
  %v2112 = vpack.c.b16 %v2085, %v2084
  %v2113 = vpack.c.b16 %v2087, %v2086
  %v2114 = vpack.c.b16 %v2089, %v2088
  %v2115 = vpack.c.b16 %v2091, %v2090
  %v2116 = vpack.c.b16 %v2093, %v2092
  %v2117 = vpack.c.b16 %v2095, %v2094
  %v2118 = vpack.c.b16 %v2097, %v2096
  %v2119 = vpack.c.b16 %v2099, %v2098
  %v2120 = vpack.c.b16 %v2101, %v2100
  %v2121 = vpack.c.b16 %v2103, %v2102
  %v2122 = vpack.c.b16 %v2105, %v2104
  %v2123 = vpack.c.b16 %v2107, %v2106
  %2140 = vmatpush.bf16.msra.mxu0 %v2115
  %2141 = vmatpush.bf16.msra.mxu0 %v2114
  %2142 = vmatpush.bf16.msra.mxu0 %v2113
  %2143 = vmatpush.bf16.msra.mxu0 %v2112
  %2144 = vmatpush.bf16.msra.mxu0 %v2111
  %2145 = vmatpush.bf16.msra.mxu0 %v2110
  %2146 = vmatpush.bf16.msra.mxu0 %v2109
  %2147 = vmatpush.bf16.msra.mxu0 %v2108
  %2148 = vmatmul.bf16.gmra.mxu0 %v1330
  %v2149 = vpop.f32.mrf.mxu0
  %v2150 = vadd.f32 0.0, %v2149
  %v2151 = vpop.f32.mrf.mxu0
  %v2152 = vadd.f32 0.0, %v2151
  %2153 = vmatmul.bf16.gmra.mxu0 %v1332
  %v2154 = vpop.f32.mrf.mxu0
  %v2155 = vadd.f32 0.0, %v2154
  %v2156 = vpop.f32.mrf.mxu0
  %v2157 = vadd.f32 0.0, %v2156
  %2158 = vmatmul.bf16.gmra.mxu0 %v1334
  %v2159 = vpop.f32.mrf.mxu0
  %v2160 = vadd.f32 0.0, %v2159
  %v2161 = vpop.f32.mrf.mxu0
  %v2162 = vadd.f32 0.0, %v2161
  %2163 = vmatmul.bf16.gmra.mxu0 %v1336
  %v2164 = vpop.f32.mrf.mxu0
  %v2165 = vadd.f32 0.0, %v2164
  %v2166 = vpop.f32.mrf.mxu0
  %v2167 = vadd.f32 0.0, %v2166
  %2168 = vmatmul.bf16.gmra.mxu0 %v1338
  %v2169 = vpop.f32.mrf.mxu0
  %v2170 = vadd.f32 0.0, %v2169
  %v2171 = vpop.f32.mrf.mxu0
  %v2172 = vadd.f32 0.0, %v2171
  %2173 = vmatmul.bf16.gmra.mxu0 %v1340
  %v2174 = vpop.f32.mrf.mxu0
  %v2175 = vadd.f32 0.0, %v2174
  %v2176 = vpop.f32.mrf.mxu0
  %v2177 = vadd.f32 0.0, %v2176
  %2178 = vmatmul.bf16.gmra.mxu0 %v1342
  %v2179 = vpop.f32.mrf.mxu0
  %v2180 = vadd.f32 0.0, %v2179
  %v2181 = vpop.f32.mrf.mxu0
  %v2182 = vadd.f32 0.0, %v2181
  %2183 = vmatmul.bf16.gmra.mxu0 %v1344
  %v2184 = vpop.f32.mrf.mxu0
  %v2185 = vadd.f32 0.0, %v2184
  %v2186 = vpop.f32.mrf.mxu0
  %v2187 = vadd.f32 0.0, %v2186
  %2188 = vmatmul.bf16.gmra.mxu0 %v1346
  %v2189 = vpop.f32.mrf.mxu0
  %v2190 = vadd.f32 0.0, %v2189
  %v2191 = vpop.f32.mrf.mxu0
  %v2192 = vadd.f32 0.0, %v2191
  %2193 = vmatmul.bf16.gmra.mxu0 %v1348
  %v2194 = vpop.f32.mrf.mxu0
  %v2195 = vadd.f32 0.0, %v2194
  %v2196 = vpop.f32.mrf.mxu0
  %v2197 = vadd.f32 0.0, %v2196
  %2198 = vmatmul.bf16.gmra.mxu0 %v1350
  %v2199 = vpop.f32.mrf.mxu0
  %v2200 = vadd.f32 0.0, %v2199
  %v2201 = vpop.f32.mrf.mxu0
  %v2202 = vadd.f32 0.0, %v2201
  %2203 = vmatmul.bf16.gmra.mxu0 %v1352
  %v2204 = vpop.f32.mrf.mxu0
  %v2205 = vadd.f32 0.0, %v2204
  %v2206 = vpop.f32.mrf.mxu0
  %v2207 = vadd.f32 0.0, %v2206
  %2208 = vdwg.mxu0
  %2209 = vmatpush.bf16.msra.mxu0 %v2123
  %2210 = vmatpush.bf16.msra.mxu0 %v2122
  %2211 = vmatpush.bf16.msra.mxu0 %v2121
  %2212 = vmatpush.bf16.msra.mxu0 %v2120
  %2213 = vmatpush.bf16.msra.mxu0 %v2119
  %2214 = vmatpush.bf16.msra.mxu0 %v2118
  %2215 = vmatpush.bf16.msra.mxu0 %v2117
  %2216 = vmatpush.bf16.msra.mxu0 %v2116
  %2217 = vmatmul.bf16.gmra.mxu0 %v1331
  %v2218 = vpop.f32.mrf.mxu0
  %v2219 = vadd.f32 %v2150, %v2218
  %v2220 = vpop.f32.mrf.mxu0
  %v2221 = vadd.f32 %v2152, %v2220
  %2222 = vmatmul.bf16.gmra.mxu0 %v1333
  %v2223 = vpop.f32.mrf.mxu0
  %v2224 = vadd.f32 %v2155, %v2223
  %v2225 = vpop.f32.mrf.mxu0
  %v2226 = vadd.f32 %v2157, %v2225
  %2227 = vmatmul.bf16.gmra.mxu0 %v1335
  %v2228 = vpop.f32.mrf.mxu0
  %v2229 = vadd.f32 %v2160, %v2228
  %v2230 = vpop.f32.mrf.mxu0
  %v2231 = vadd.f32 %v2162, %v2230
  %2232 = vmatmul.bf16.gmra.mxu0 %v1337
  %v2233 = vpop.f32.mrf.mxu0
  %v2234 = vadd.f32 %v2165, %v2233
  %v2235 = vpop.f32.mrf.mxu0
  %v2236 = vadd.f32 %v2167, %v2235
  %2237 = vmatmul.bf16.gmra.mxu0 %v1339
  %v2238 = vpop.f32.mrf.mxu0
  %v2239 = vadd.f32 %v2170, %v2238
  %v2240 = vpop.f32.mrf.mxu0
  %v2241 = vadd.f32 %v2172, %v2240
  %2242 = vmatmul.bf16.gmra.mxu0 %v1341
  %v2243 = vpop.f32.mrf.mxu0
  %v2244 = vadd.f32 %v2175, %v2243
  %v2245 = vpop.f32.mrf.mxu0
  %v2246 = vadd.f32 %v2177, %v2245
  %2247 = vmatmul.bf16.gmra.mxu0 %v1343
  %v2248 = vpop.f32.mrf.mxu0
  %v2249 = vadd.f32 %v2180, %v2248
  %v2250 = vpop.f32.mrf.mxu0
  %v2251 = vadd.f32 %v2182, %v2250
  %2252 = vmatmul.bf16.gmra.mxu0 %v1345
  %v2253 = vpop.f32.mrf.mxu0
  %v2254 = vadd.f32 %v2185, %v2253
  %v2255 = vpop.f32.mrf.mxu0
  %v2256 = vadd.f32 %v2187, %v2255
  %2257 = vmatmul.bf16.gmra.mxu0 %v1347
  %v2258 = vpop.f32.mrf.mxu0
  %v2259 = vadd.f32 %v2190, %v2258
  %v2260 = vpop.f32.mrf.mxu0
  %v2261 = vadd.f32 %v2192, %v2260
  %2262 = vmatmul.bf16.gmra.mxu0 %v1349
  %v2263 = vpop.f32.mrf.mxu0
  %v2264 = vadd.f32 %v2195, %v2263
  %v2265 = vpop.f32.mrf.mxu0
  %v2266 = vadd.f32 %v2197, %v2265
  %2267 = vmatmul.bf16.gmra.mxu0 %v1351
  %v2268 = vpop.f32.mrf.mxu0
  %v2269 = vadd.f32 %v2200, %v2268
  %v2270 = vpop.f32.mrf.mxu0
  %v2271 = vadd.f32 %v2202, %v2270
  %2272 = vmatmul.bf16.gmra.mxu0 %v1353
  %v2273 = vpop.f32.mrf.mxu0
  %v2274 = vadd.f32 %v2205, %v2273
  %v2275 = vpop.f32.mrf.mxu0
  %v2276 = vadd.f32 %v2207, %v2275
  %2277 = vdwg.mxu0
  %v2302 = vrot.slane %v2219, 2
  %v2303 = vrot.slane %v2221, 2
  %v2304 = vsel %vm1116, %v2302, %v2303
  %v2305 = vrot.slane %v2224, 2
  %v2306 = vrot.slane %v2226, 2
  %v2307 = vsel %vm1116, %v2305, %v2306
  %v2308 = vrot.slane %v2229, 2
  %v2309 = vrot.slane %v2231, 2
  %v2310 = vsel %vm1116, %v2308, %v2309
  %v2311 = vrot.slane %v2234, 2
  %v2312 = vrot.slane %v2236, 2
  %v2313 = vsel %vm1116, %v2311, %v2312
  %v2314 = vrot.slane %v2239, 2
  %v2315 = vrot.slane %v2241, 2
  %v2316 = vsel %vm1116, %v2314, %v2315
  %v2317 = vrot.slane %v2244, 2
  %v2318 = vrot.slane %v2246, 2
  %v2319 = vsel %vm1116, %v2317, %v2318
  %v2320 = vrot.slane %v2249, 2
  %v2321 = vrot.slane %v2251, 2
  %v2322 = vsel %vm1116, %v2320, %v2321
  %v2323 = vrot.slane %v2254, 2
  %v2324 = vrot.slane %v2256, 2
  %v2325 = vsel %vm1116, %v2323, %v2324
  %v2326 = vrot.slane %v2259, 2
  %v2327 = vrot.slane %v2261, 2
  %v2328 = vsel %vm1116, %v2326, %v2327
  %v2329 = vrot.slane %v2264, 2
  %v2330 = vrot.slane %v2266, 2
  %v2331 = vsel %vm1116, %v2329, %v2330
  %v2332 = vrot.slane %v2269, 2
  %v2333 = vrot.slane %v2271, 2
  %v2334 = vsel %vm1116, %v2332, %v2333
  %v2335 = vrot.slane %v2274, 2
  %v2336 = vrot.slane %v2276, 2
  %v2337 = vsel %vm1116, %v2335, %v2336
  %v2362 = vadd.f32 %v1987, %v2304
  %v2363 = vadd.f32 %v1988, %v2303
  %v2364 = vadd.f32 %v1989, %v2307
  %v2365 = vadd.f32 %v1990, %v2306
  %v2366 = vadd.f32 %v1991, %v2310
  %v2367 = vadd.f32 %v1992, %v2309
  %v2368 = vadd.f32 %v1993, %v2313
  %v2369 = vadd.f32 %v1994, %v2312
  %v2370 = vadd.f32 %v1995, %v2316
  %v2371 = vadd.f32 %v1996, %v2315
  %v2372 = vadd.f32 %v1997, %v2319
  %v2373 = vadd.f32 %v1998, %v2318
  %v2374 = vadd.f32 %v1999, %v2322
  %v2375 = vadd.f32 %v2000, %v2321
  %v2376 = vadd.f32 %v2001, %v2325
  %v2377 = vadd.f32 %v2002, %v2324
  %v2378 = vadd.f32 %v2003, %v2328
  %v2379 = vadd.f32 %v2004, %v2327
  %v2380 = vadd.f32 %v2005, %v2331
  %v2381 = vadd.f32 %v2006, %v2330
  %v2382 = vadd.f32 %v2007, %v2334
  %v2383 = vadd.f32 %v2008, %v2333
  %v2384 = vadd.f32 %v2009, %v2337
  %v2385 = vadd.f32 %v2010, %v2336
  %v2386 = vld [vmem:[%s0 + $0x20] sm:$0xff]
  %v2387 = vld [vmem:[%s0 + $0x28] sm:$0xff]
  %v2388 = vld [vmem:[%s0 + $0x30] sm:$0xff]
  %v2389 = vld [vmem:[%s0 + $0x38] sm:$0xff]
  %v2390 = vld [vmem:[%s0 + $0x40] sm:$0xff]
  %v2391 = vld [vmem:[%s0 + $0x48] sm:$0xff]
  %v2392 = vld [vmem:[%s0 + $0x50] sm:$0xff]
  %v2393 = vld [vmem:[%s0 + $0x58] sm:$0xff]
  %v2394 = vld [vmem:[%s0 + $0x60] sm:$0xff]
  %v2395 = vld [vmem:[%s0 + $0x68] sm:$0xff]
  %v2396 = vld [vmem:[%s0 + $0x70] sm:$0xff]
  %v2397 = vld [vmem:[%s0 + $0x78] sm:$0xff]
  %v2398 = vld [vmem:[%s0 + $0x80] sm:$0xff]
  %v2399 = vld [vmem:[%s0 + $0x88] sm:$0xff]
  %v2400 = vld [vmem:[%s0 + $0x90] sm:$0xff]
  %v2401 = vld [vmem:[%s0 + $0x98] sm:$0xff]
  %v2402 = vld [vmem:[%s0 + $0xa0] sm:$0xff]
  %v2403 = vld [vmem:[%s0 + $0xa8] sm:$0xff]
  %v2404 = vld [vmem:[%s0 + $0xb0] sm:$0xff]
  %v2405 = vld [vmem:[%s0 + $0xb8] sm:$0xff]
  %v2406 = vld [vmem:[%s0 + $0xc0] sm:$0xff]
  %v2407 = vld [vmem:[%s0 + $0xc8] sm:$0xff]
  %v2408 = vld [vmem:[%s0 + $0xd0] sm:$0xff]
  %v2409 = vld [vmem:[%s0 + $0xd8] sm:$0xff]
  %s2410 = scalar_lea.vmem %s1, 768
  %v2411 = vld [vmem:[%s2410] sm:$0xf]
  %v2412 = vld [vmem:[%s2410 + $0x4] sm:$0xf]
  %v2413 = vld [vmem:[%s2410 + $0x8] sm:$0xf]
  %v2414 = vld [vmem:[%s2410 + $0xc] sm:$0xf]
  %v2415 = vld [vmem:[%s2410 + $0x10] sm:$0xf]
  %v2416 = vld [vmem:[%s2410 + $0x14] sm:$0xf]
  %v2417 = vld [vmem:[%s2410 + $0x18] sm:$0xf]
  %v2418 = vld [vmem:[%s2410 + $0x1c] sm:$0xf]
  %v2419 = vld [vmem:[%s2410 + $0x20] sm:$0xf]
  %v2420 = vld [vmem:[%s2410 + $0x24] sm:$0xf]
  %v2421 = vld [vmem:[%s2410 + $0x28] sm:$0xf]
  %v2422 = vld [vmem:[%s2410 + $0x2c] sm:$0xf]
  %v2423 = vld [vmem:[%s2410 + $0x30] sm:$0xf]
  %v2424 = vld [vmem:[%s2410 + $0x34] sm:$0xf]
  %v2425 = vld [vmem:[%s2410 + $0x38] sm:$0xf]
  %v2426 = vld [vmem:[%s2410 + $0x3c] sm:$0xf]
  %v2427 = vld [vmem:[%s2410 + $0x40] sm:$0xf]
  %v2428 = vld [vmem:[%s2410 + $0x44] sm:$0xf]
  %v2429 = vld [vmem:[%s2410 + $0x48] sm:$0xf]
  %v2430 = vld [vmem:[%s2410 + $0x4c] sm:$0xf]
  %v2431 = vld [vmem:[%s2410 + $0x50] sm:$0xf]
  %v2432 = vld [vmem:[%s2410 + $0x54] sm:$0xf]
  %v2433 = vld [vmem:[%s2410 + $0x58] sm:$0xf]
  %v2434 = vld [vmem:[%s2410 + $0x5c] sm:$0xf]
  %v2435 = vld [vmem:[%s2410 + $0x60] sm:$0xf]
  %v2436 = vld [vmem:[%s2410 + $0x64] sm:$0xf]
  %v2437 = vld [vmem:[%s2410 + $0x68] sm:$0xf]
  %v2438 = vld [vmem:[%s2410 + $0x6c] sm:$0xf]
  %v2439 = vld [vmem:[%s2410 + $0x70] sm:$0xf]
  %v2440 = vld [vmem:[%s2410 + $0x74] sm:$0xf]
  %v2441 = vld [vmem:[%s2410 + $0x78] sm:$0xf]
  %v2442 = vld [vmem:[%s2410 + $0x7c] sm:$0xf]
  %v2467 = vunpack.c.l.b16 %v2386
  %v2468 = vunpack.c.h.b16 %v2386
  %v2469 = vunpack.c.l.b16 %v2387
  %v2470 = vunpack.c.h.b16 %v2387
  %v2471 = vunpack.c.l.b16 %v2388
  %v2472 = vunpack.c.h.b16 %v2388
  %v2473 = vunpack.c.l.b16 %v2389
  %v2474 = vunpack.c.h.b16 %v2389
  %v2475 = vunpack.c.l.b16 %v2390
  %v2476 = vunpack.c.h.b16 %v2390
  %v2477 = vunpack.c.l.b16 %v2391
  %v2478 = vunpack.c.h.b16 %v2391
  %v2479 = vunpack.c.l.b16 %v2392
  %v2480 = vunpack.c.h.b16 %v2392
  %v2481 = vunpack.c.l.b16 %v2393
  %v2482 = vunpack.c.h.b16 %v2393
  %v2483 = vunpack.c.l.b16 %v2394
  %v2484 = vunpack.c.h.b16 %v2394
  %v2485 = vunpack.c.l.b16 %v2395
  %v2486 = vunpack.c.h.b16 %v2395
  %v2487 = vunpack.c.l.b16 %v2396
  %v2488 = vunpack.c.h.b16 %v2396
  %v2489 = vunpack.c.l.b16 %v2397
  %v2490 = vunpack.c.h.b16 %v2397
  %v2491 = vunpack.c.l.b16 %v2398
  %v2492 = vunpack.c.h.b16 %v2398
  %v2493 = vunpack.c.l.b16 %v2399
  %v2494 = vunpack.c.h.b16 %v2399
  %v2495 = vunpack.c.l.b16 %v2400
  %v2496 = vunpack.c.h.b16 %v2400
  %v2497 = vunpack.c.l.b16 %v2401
  %v2498 = vunpack.c.h.b16 %v2401
  %v2499 = vunpack.c.l.b16 %v2402
  %v2500 = vunpack.c.h.b16 %v2402
  %v2501 = vunpack.c.l.b16 %v2403
  %v2502 = vunpack.c.h.b16 %v2403
  %v2503 = vunpack.c.l.b16 %v2404
  %v2504 = vunpack.c.h.b16 %v2404
  %v2505 = vunpack.c.l.b16 %v2405
  %v2506 = vunpack.c.h.b16 %v2405
  %v2507 = vunpack.c.l.b16 %v2406
  %v2508 = vunpack.c.h.b16 %v2406
  %v2509 = vunpack.c.l.b16 %v2407
  %v2510 = vunpack.c.h.b16 %v2407
  %v2511 = vunpack.c.l.b16 %v2408
  %v2512 = vunpack.c.h.b16 %v2408
  %v2513 = vunpack.c.l.b16 %v2409
  %v2514 = vunpack.c.h.b16 %v2409
  %v2515 = vpack.c.b16 %v2469, %v2467
  %v2516 = vpack.c.b16 %v2470, %v2468
  %v2517 = vpack.c.b16 %v2473, %v2471
  %v2518 = vpack.c.b16 %v2474, %v2472
  %v2519 = vpack.c.b16 %v2477, %v2475
  %v2520 = vpack.c.b16 %v2478, %v2476
  %v2521 = vpack.c.b16 %v2481, %v2479
  %v2522 = vpack.c.b16 %v2482, %v2480
  %v2523 = vpack.c.b16 %v2485, %v2483
  %v2524 = vpack.c.b16 %v2486, %v2484
  %v2525 = vpack.c.b16 %v2489, %v2487
  %v2526 = vpack.c.b16 %v2490, %v2488
  %v2527 = vpack.c.b16 %v2493, %v2491
  %v2528 = vpack.c.b16 %v2494, %v2492
  %v2529 = vpack.c.b16 %v2497, %v2495
  %v2530 = vpack.c.b16 %v2498, %v2496
  %v2531 = vpack.c.b16 %v2501, %v2499
  %v2532 = vpack.c.b16 %v2502, %v2500
  %v2533 = vpack.c.b16 %v2505, %v2503
  %v2534 = vpack.c.b16 %v2506, %v2504
  %v2535 = vpack.c.b16 %v2509, %v2507
  %v2536 = vpack.c.b16 %v2510, %v2508
  %v2537 = vpack.c.b16 %v2513, %v2511
  %v2538 = vpack.c.b16 %v2514, %v2512
  %v2595 = vunpack.c.l.b16 %v2411
  %v2596 = vunpack.c.l.b16 %v2412
  %v2597 = vunpack.c.l.b16 %v2413
  %v2598 = vunpack.c.l.b16 %v2414
  %v2599 = vunpack.c.l.b16 %v2415
  %v2600 = vunpack.c.l.b16 %v2416
  %v2601 = vunpack.c.l.b16 %v2417
  %v2602 = vunpack.c.l.b16 %v2418
  %v2603 = vunpack.c.l.b16 %v2419
  %v2604 = vunpack.c.l.b16 %v2420
  %v2605 = vunpack.c.l.b16 %v2421
  %v2606 = vunpack.c.l.b16 %v2422
  %v2607 = vunpack.c.l.b16 %v2423
  %v2608 = vunpack.c.l.b16 %v2424
  %v2609 = vunpack.c.l.b16 %v2425
  %v2610 = vunpack.c.l.b16 %v2426
  %v2611 = vunpack.c.l.b16 %v2427
  %v2612 = vunpack.c.l.b16 %v2428
  %v2613 = vunpack.c.l.b16 %v2429
  %v2614 = vunpack.c.l.b16 %v2430
  %v2615 = vunpack.c.l.b16 %v2431
  %v2616 = vunpack.c.l.b16 %v2432
  %v2617 = vunpack.c.l.b16 %v2433
  %v2618 = vunpack.c.l.b16 %v2434
  %v2619 = vunpack.c.l.b16 %v2435
  %v2620 = vunpack.c.l.b16 %v2436
  %v2621 = vunpack.c.l.b16 %v2437
  %v2622 = vunpack.c.l.b16 %v2438
  %v2623 = vunpack.c.l.b16 %v2439
  %v2624 = vunpack.c.l.b16 %v2440
  %v2625 = vunpack.c.l.b16 %v2441
  %v2626 = vunpack.c.l.b16 %v2442
  %v2627 = vpack.c.b16 %v2596, %v2595
  %v2628 = vpack.c.b16 %v2598, %v2597
  %v2629 = vpack.c.b16 %v2600, %v2599
  %v2630 = vpack.c.b16 %v2602, %v2601
  %v2631 = vpack.c.b16 %v2604, %v2603
  %v2632 = vpack.c.b16 %v2606, %v2605
  %v2633 = vpack.c.b16 %v2608, %v2607
  %v2634 = vpack.c.b16 %v2610, %v2609
  %v2635 = vpack.c.b16 %v2612, %v2611
  %v2636 = vpack.c.b16 %v2614, %v2613
  %v2637 = vpack.c.b16 %v2616, %v2615
  %v2638 = vpack.c.b16 %v2618, %v2617
  %v2639 = vpack.c.b16 %v2620, %v2619
  %v2640 = vpack.c.b16 %v2622, %v2621
  %v2641 = vpack.c.b16 %v2624, %v2623
  %v2642 = vpack.c.b16 %v2626, %v2625
  %2659 = vmatpush.bf16.msra.mxu0 %v2634
  %2660 = vmatpush.bf16.msra.mxu0 %v2633
  %2661 = vmatpush.bf16.msra.mxu0 %v2632
  %2662 = vmatpush.bf16.msra.mxu0 %v2631
  %2663 = vmatpush.bf16.msra.mxu0 %v2630
  %2664 = vmatpush.bf16.msra.mxu0 %v2629
  %2665 = vmatpush.bf16.msra.mxu0 %v2628
  %2666 = vmatpush.bf16.msra.mxu0 %v2627
  %2667 = vmatmul.bf16.gmra.mxu0 %v2515
  %v2668 = vpop.f32.mrf.mxu0
  %v2669 = vadd.f32 0.0, %v2668
  %v2670 = vpop.f32.mrf.mxu0
  %v2671 = vadd.f32 0.0, %v2670
  %2672 = vmatmul.bf16.gmra.mxu0 %v2517
  %v2673 = vpop.f32.mrf.mxu0
  %v2674 = vadd.f32 0.0, %v2673
  %v2675 = vpop.f32.mrf.mxu0
  %v2676 = vadd.f32 0.0, %v2675
  %2677 = vmatmul.bf16.gmra.mxu0 %v2519
  %v2678 = vpop.f32.mrf.mxu0
  %v2679 = vadd.f32 0.0, %v2678
  %v2680 = vpop.f32.mrf.mxu0
  %v2681 = vadd.f32 0.0, %v2680
  %2682 = vmatmul.bf16.gmra.mxu0 %v2521
  %v2683 = vpop.f32.mrf.mxu0
  %v2684 = vadd.f32 0.0, %v2683
  %v2685 = vpop.f32.mrf.mxu0
  %v2686 = vadd.f32 0.0, %v2685
  %2687 = vmatmul.bf16.gmra.mxu0 %v2523
  %v2688 = vpop.f32.mrf.mxu0
  %v2689 = vadd.f32 0.0, %v2688
  %v2690 = vpop.f32.mrf.mxu0
  %v2691 = vadd.f32 0.0, %v2690
  %2692 = vmatmul.bf16.gmra.mxu0 %v2525
  %v2693 = vpop.f32.mrf.mxu0
  %v2694 = vadd.f32 0.0, %v2693
  %v2695 = vpop.f32.mrf.mxu0
  %v2696 = vadd.f32 0.0, %v2695
  %2697 = vmatmul.bf16.gmra.mxu0 %v2527
  %v2698 = vpop.f32.mrf.mxu0
  %v2699 = vadd.f32 0.0, %v2698
  %v2700 = vpop.f32.mrf.mxu0
  %v2701 = vadd.f32 0.0, %v2700
  %2702 = vmatmul.bf16.gmra.mxu0 %v2529
  %v2703 = vpop.f32.mrf.mxu0
  %v2704 = vadd.f32 0.0, %v2703
  %v2705 = vpop.f32.mrf.mxu0
  %v2706 = vadd.f32 0.0, %v2705
  %2707 = vmatmul.bf16.gmra.mxu0 %v2531
  %v2708 = vpop.f32.mrf.mxu0
  %v2709 = vadd.f32 0.0, %v2708
  %v2710 = vpop.f32.mrf.mxu0
  %v2711 = vadd.f32 0.0, %v2710
  %2712 = vmatmul.bf16.gmra.mxu0 %v2533
  %v2713 = vpop.f32.mrf.mxu0
  %v2714 = vadd.f32 0.0, %v2713
  %v2715 = vpop.f32.mrf.mxu0
  %v2716 = vadd.f32 0.0, %v2715
  %2717 = vmatmul.bf16.gmra.mxu0 %v2535
  %v2718 = vpop.f32.mrf.mxu0
  %v2719 = vadd.f32 0.0, %v2718
  %v2720 = vpop.f32.mrf.mxu0
  %v2721 = vadd.f32 0.0, %v2720
  %2722 = vmatmul.bf16.gmra.mxu0 %v2537
  %v2723 = vpop.f32.mrf.mxu0
  %v2724 = vadd.f32 0.0, %v2723
  %v2725 = vpop.f32.mrf.mxu0
  %v2726 = vadd.f32 0.0, %v2725
  %2727 = vdwg.mxu0
  %2728 = vmatpush.bf16.msra.mxu0 %v2642
  %2729 = vmatpush.bf16.msra.mxu0 %v2641
  %2730 = vmatpush.bf16.msra.mxu0 %v2640
  %2731 = vmatpush.bf16.msra.mxu0 %v2639
  %2732 = vmatpush.bf16.msra.mxu0 %v2638
  %2733 = vmatpush.bf16.msra.mxu0 %v2637
  %2734 = vmatpush.bf16.msra.mxu0 %v2636
  %2735 = vmatpush.bf16.msra.mxu0 %v2635
  %2736 = vmatmul.bf16.gmra.mxu0 %v2516
  %v2737 = vpop.f32.mrf.mxu0
  %v2738 = vadd.f32 %v2669, %v2737
  %v2739 = vpop.f32.mrf.mxu0
  %v2740 = vadd.f32 %v2671, %v2739
  %2741 = vmatmul.bf16.gmra.mxu0 %v2518
  %v2742 = vpop.f32.mrf.mxu0
  %v2743 = vadd.f32 %v2674, %v2742
  %v2744 = vpop.f32.mrf.mxu0
  %v2745 = vadd.f32 %v2676, %v2744
  %2746 = vmatmul.bf16.gmra.mxu0 %v2520
  %v2747 = vpop.f32.mrf.mxu0
  %v2748 = vadd.f32 %v2679, %v2747
  %v2749 = vpop.f32.mrf.mxu0
  %v2750 = vadd.f32 %v2681, %v2749
  %2751 = vmatmul.bf16.gmra.mxu0 %v2522
  %v2752 = vpop.f32.mrf.mxu0
  %v2753 = vadd.f32 %v2684, %v2752
  %v2754 = vpop.f32.mrf.mxu0
  %v2755 = vadd.f32 %v2686, %v2754
  %2756 = vmatmul.bf16.gmra.mxu0 %v2524
  %v2757 = vpop.f32.mrf.mxu0
  %v2758 = vadd.f32 %v2689, %v2757
  %v2759 = vpop.f32.mrf.mxu0
  %v2760 = vadd.f32 %v2691, %v2759
  %2761 = vmatmul.bf16.gmra.mxu0 %v2526
  %v2762 = vpop.f32.mrf.mxu0
  %v2763 = vadd.f32 %v2694, %v2762
  %v2764 = vpop.f32.mrf.mxu0
  %v2765 = vadd.f32 %v2696, %v2764
  %2766 = vmatmul.bf16.gmra.mxu0 %v2528
  %v2767 = vpop.f32.mrf.mxu0
  %v2768 = vadd.f32 %v2699, %v2767
  %v2769 = vpop.f32.mrf.mxu0
  %v2770 = vadd.f32 %v2701, %v2769
  %2771 = vmatmul.bf16.gmra.mxu0 %v2530
  %v2772 = vpop.f32.mrf.mxu0
  %v2773 = vadd.f32 %v2704, %v2772
  %v2774 = vpop.f32.mrf.mxu0
  %v2775 = vadd.f32 %v2706, %v2774
  %2776 = vmatmul.bf16.gmra.mxu0 %v2532
  %v2777 = vpop.f32.mrf.mxu0
  %v2778 = vadd.f32 %v2709, %v2777
  %v2779 = vpop.f32.mrf.mxu0
  %v2780 = vadd.f32 %v2711, %v2779
  %2781 = vmatmul.bf16.gmra.mxu0 %v2534
  %v2782 = vpop.f32.mrf.mxu0
  %v2783 = vadd.f32 %v2714, %v2782
  %v2784 = vpop.f32.mrf.mxu0
  %v2785 = vadd.f32 %v2716, %v2784
  %2786 = vmatmul.bf16.gmra.mxu0 %v2536
  %v2787 = vpop.f32.mrf.mxu0
  %v2788 = vadd.f32 %v2719, %v2787
  %v2789 = vpop.f32.mrf.mxu0
  %v2790 = vadd.f32 %v2721, %v2789
  %2791 = vmatmul.bf16.gmra.mxu0 %v2538
  %v2792 = vpop.f32.mrf.mxu0
  %v2793 = vadd.f32 %v2724, %v2792
  %v2794 = vpop.f32.mrf.mxu0
  %v2795 = vadd.f32 %v2726, %v2794
  %2796 = vdwg.mxu0
  %v2797 = vadd.f32 %v2362, %v2738
  %v2798 = vadd.f32 %v2363, %v2740
  %v2799 = vadd.f32 %v2364, %v2743
  %v2800 = vadd.f32 %v2365, %v2745
  %v2801 = vadd.f32 %v2366, %v2748
  %v2802 = vadd.f32 %v2367, %v2750
  %v2803 = vadd.f32 %v2368, %v2753
  %v2804 = vadd.f32 %v2369, %v2755
  %v2805 = vadd.f32 %v2370, %v2758
  %v2806 = vadd.f32 %v2371, %v2760
  %v2807 = vadd.f32 %v2372, %v2763
  %v2808 = vadd.f32 %v2373, %v2765
  %v2809 = vadd.f32 %v2374, %v2768
  %v2810 = vadd.f32 %v2375, %v2770
  %v2811 = vadd.f32 %v2376, %v2773
  %v2812 = vadd.f32 %v2377, %v2775
  %v2813 = vadd.f32 %v2378, %v2778
  %v2814 = vadd.f32 %v2379, %v2780
  %v2815 = vadd.f32 %v2380, %v2783
  %v2816 = vadd.f32 %v2381, %v2785
  %v2817 = vadd.f32 %v2382, %v2788
  %v2818 = vadd.f32 %v2383, %v2790
  %v2819 = vadd.f32 %v2384, %v2793
  %v2820 = vadd.f32 %v2385, %v2795
  %s2821 = scalar_lea.vmem %s1, 896
  %v2822 = vld [vmem:[%s2821] sm:$0xf]
  %v2823 = vld [vmem:[%s2821 + $0x4] sm:$0xf]
  %v2824 = vld [vmem:[%s2821 + $0x8] sm:$0xf]
  %v2825 = vld [vmem:[%s2821 + $0xc] sm:$0xf]
  %v2826 = vld [vmem:[%s2821 + $0x10] sm:$0xf]
  %v2827 = vld [vmem:[%s2821 + $0x14] sm:$0xf]
  %v2828 = vld [vmem:[%s2821 + $0x18] sm:$0xf]
  %v2829 = vld [vmem:[%s2821 + $0x1c] sm:$0xf]
  %v2830 = vld [vmem:[%s2821 + $0x20] sm:$0xf]
  %v2831 = vld [vmem:[%s2821 + $0x24] sm:$0xf]
  %v2832 = vld [vmem:[%s2821 + $0x28] sm:$0xf]
  %v2833 = vld [vmem:[%s2821 + $0x2c] sm:$0xf]
  %v2834 = vld [vmem:[%s2821 + $0x30] sm:$0xf]
  %v2835 = vld [vmem:[%s2821 + $0x34] sm:$0xf]
  %v2836 = vld [vmem:[%s2821 + $0x38] sm:$0xf]
  %v2837 = vld [vmem:[%s2821 + $0x3c] sm:$0xf]
  %v2838 = vld [vmem:[%s2821 + $0x40] sm:$0xf]
  %v2839 = vld [vmem:[%s2821 + $0x44] sm:$0xf]
  %v2840 = vld [vmem:[%s2821 + $0x48] sm:$0xf]
  %v2841 = vld [vmem:[%s2821 + $0x4c] sm:$0xf]
  %v2842 = vld [vmem:[%s2821 + $0x50] sm:$0xf]
  %v2843 = vld [vmem:[%s2821 + $0x54] sm:$0xf]
  %v2844 = vld [vmem:[%s2821 + $0x58] sm:$0xf]
  %v2845 = vld [vmem:[%s2821 + $0x5c] sm:$0xf]
  %v2846 = vld [vmem:[%s2821 + $0x60] sm:$0xf]
  %v2847 = vld [vmem:[%s2821 + $0x64] sm:$0xf]
  %v2848 = vld [vmem:[%s2821 + $0x68] sm:$0xf]
  %v2849 = vld [vmem:[%s2821 + $0x6c] sm:$0xf]
  %v2850 = vld [vmem:[%s2821 + $0x70] sm:$0xf]
  %v2851 = vld [vmem:[%s2821 + $0x74] sm:$0xf]
  %v2852 = vld [vmem:[%s2821 + $0x78] sm:$0xf]
  %v2853 = vld [vmem:[%s2821 + $0x7c] sm:$0xf]
  %v2886 = vunpack.c.l.b16 %v2822
  %v2887 = vunpack.c.l.b16 %v2823
  %v2888 = vunpack.c.l.b16 %v2824
  %v2889 = vunpack.c.l.b16 %v2825
  %v2890 = vunpack.c.l.b16 %v2826
  %v2891 = vunpack.c.l.b16 %v2827
  %v2892 = vunpack.c.l.b16 %v2828
  %v2893 = vunpack.c.l.b16 %v2829
  %v2894 = vunpack.c.l.b16 %v2830
  %v2895 = vunpack.c.l.b16 %v2831
  %v2896 = vunpack.c.l.b16 %v2832
  %v2897 = vunpack.c.l.b16 %v2833
  %v2898 = vunpack.c.l.b16 %v2834
  %v2899 = vunpack.c.l.b16 %v2835
  %v2900 = vunpack.c.l.b16 %v2836
  %v2901 = vunpack.c.l.b16 %v2837
  %v2902 = vunpack.c.l.b16 %v2838
  %v2903 = vunpack.c.l.b16 %v2839
  %v2904 = vunpack.c.l.b16 %v2840
  %v2905 = vunpack.c.l.b16 %v2841
  %v2906 = vunpack.c.l.b16 %v2842
  %v2907 = vunpack.c.l.b16 %v2843
  %v2908 = vunpack.c.l.b16 %v2844
  %v2909 = vunpack.c.l.b16 %v2845
  %v2910 = vunpack.c.l.b16 %v2846
  %v2911 = vunpack.c.l.b16 %v2847
  %v2912 = vunpack.c.l.b16 %v2848
  %v2913 = vunpack.c.l.b16 %v2849
  %v2914 = vunpack.c.l.b16 %v2850
  %v2915 = vunpack.c.l.b16 %v2851
  %v2916 = vunpack.c.l.b16 %v2852
  %v2917 = vunpack.c.l.b16 %v2853
  %v2918 = vpack.c.b16 %v2887, %v2886
  %v2919 = vpack.c.b16 %v2889, %v2888
  %v2920 = vpack.c.b16 %v2891, %v2890
  %v2921 = vpack.c.b16 %v2893, %v2892
  %v2922 = vpack.c.b16 %v2895, %v2894
  %v2923 = vpack.c.b16 %v2897, %v2896
  %v2924 = vpack.c.b16 %v2899, %v2898
  %v2925 = vpack.c.b16 %v2901, %v2900
  %v2926 = vpack.c.b16 %v2903, %v2902
  %v2927 = vpack.c.b16 %v2905, %v2904
  %v2928 = vpack.c.b16 %v2907, %v2906
  %v2929 = vpack.c.b16 %v2909, %v2908
  %v2930 = vpack.c.b16 %v2911, %v2910
  %v2931 = vpack.c.b16 %v2913, %v2912
  %v2932 = vpack.c.b16 %v2915, %v2914
  %v2933 = vpack.c.b16 %v2917, %v2916
  %2950 = vmatpush.bf16.msra.mxu0 %v2925
  %2951 = vmatpush.bf16.msra.mxu0 %v2924
  %2952 = vmatpush.bf16.msra.mxu0 %v2923
  %2953 = vmatpush.bf16.msra.mxu0 %v2922
  %2954 = vmatpush.bf16.msra.mxu0 %v2921
  %2955 = vmatpush.bf16.msra.mxu0 %v2920
  %2956 = vmatpush.bf16.msra.mxu0 %v2919
  %2957 = vmatpush.bf16.msra.mxu0 %v2918
  %2958 = vmatmul.bf16.gmra.mxu0 %v2515
  %v2959 = vpop.f32.mrf.mxu0
  %v2960 = vadd.f32 0.0, %v2959
  %v2961 = vpop.f32.mrf.mxu0
  %v2962 = vadd.f32 0.0, %v2961
  %2963 = vmatmul.bf16.gmra.mxu0 %v2517
  %v2964 = vpop.f32.mrf.mxu0
  %v2965 = vadd.f32 0.0, %v2964
  %v2966 = vpop.f32.mrf.mxu0
  %v2967 = vadd.f32 0.0, %v2966
  %2968 = vmatmul.bf16.gmra.mxu0 %v2519
  %v2969 = vpop.f32.mrf.mxu0
  %v2970 = vadd.f32 0.0, %v2969
  %v2971 = vpop.f32.mrf.mxu0
  %v2972 = vadd.f32 0.0, %v2971
  %2973 = vmatmul.bf16.gmra.mxu0 %v2521
  %v2974 = vpop.f32.mrf.mxu0
  %v2975 = vadd.f32 0.0, %v2974
  %v2976 = vpop.f32.mrf.mxu0
  %v2977 = vadd.f32 0.0, %v2976
  %2978 = vmatmul.bf16.gmra.mxu0 %v2523
  %v2979 = vpop.f32.mrf.mxu0
  %v2980 = vadd.f32 0.0, %v2979
  %v2981 = vpop.f32.mrf.mxu0
  %v2982 = vadd.f32 0.0, %v2981
  %2983 = vmatmul.bf16.gmra.mxu0 %v2525
  %v2984 = vpop.f32.mrf.mxu0
  %v2985 = vadd.f32 0.0, %v2984
  %v2986 = vpop.f32.mrf.mxu0
  %v2987 = vadd.f32 0.0, %v2986
  %2988 = vmatmul.bf16.gmra.mxu0 %v2527
  %v2989 = vpop.f32.mrf.mxu0
  %v2990 = vadd.f32 0.0, %v2989
  %v2991 = vpop.f32.mrf.mxu0
  %v2992 = vadd.f32 0.0, %v2991
  %2993 = vmatmul.bf16.gmra.mxu0 %v2529
  %v2994 = vpop.f32.mrf.mxu0
  %v2995 = vadd.f32 0.0, %v2994
  %v2996 = vpop.f32.mrf.mxu0
  %v2997 = vadd.f32 0.0, %v2996
  %2998 = vmatmul.bf16.gmra.mxu0 %v2531
  %v2999 = vpop.f32.mrf.mxu0
  %v3000 = vadd.f32 0.0, %v2999
  %v3001 = vpop.f32.mrf.mxu0
  %v3002 = vadd.f32 0.0, %v3001
  %3003 = vmatmul.bf16.gmra.mxu0 %v2533
  %v3004 = vpop.f32.mrf.mxu0
  %v3005 = vadd.f32 0.0, %v3004
  %v3006 = vpop.f32.mrf.mxu0
  %v3007 = vadd.f32 0.0, %v3006
  %3008 = vmatmul.bf16.gmra.mxu0 %v2535
  %v3009 = vpop.f32.mrf.mxu0
  %v3010 = vadd.f32 0.0, %v3009
  %v3011 = vpop.f32.mrf.mxu0
  %v3012 = vadd.f32 0.0, %v3011
  %3013 = vmatmul.bf16.gmra.mxu0 %v2537
  %v3014 = vpop.f32.mrf.mxu0
  %v3015 = vadd.f32 0.0, %v3014
  %v3016 = vpop.f32.mrf.mxu0
  %v3017 = vadd.f32 0.0, %v3016
  %3018 = vdwg.mxu0
  %3019 = vmatpush.bf16.msra.mxu0 %v2933
  %3020 = vmatpush.bf16.msra.mxu0 %v2932
  %3021 = vmatpush.bf16.msra.mxu0 %v2931
  %3022 = vmatpush.bf16.msra.mxu0 %v2930
  %3023 = vmatpush.bf16.msra.mxu0 %v2929
  %3024 = vmatpush.bf16.msra.mxu0 %v2928
  %3025 = vmatpush.bf16.msra.mxu0 %v2927
  %3026 = vmatpush.bf16.msra.mxu0 %v2926
  %3027 = vmatmul.bf16.gmra.mxu0 %v2516
  %v3028 = vpop.f32.mrf.mxu0
  %v3029 = vadd.f32 %v2960, %v3028
  %v3030 = vpop.f32.mrf.mxu0
  %v3031 = vadd.f32 %v2962, %v3030
  %3032 = vmatmul.bf16.gmra.mxu0 %v2518
  %v3033 = vpop.f32.mrf.mxu0
  %v3034 = vadd.f32 %v2965, %v3033
  %v3035 = vpop.f32.mrf.mxu0
  %v3036 = vadd.f32 %v2967, %v3035
  %3037 = vmatmul.bf16.gmra.mxu0 %v2520
  %v3038 = vpop.f32.mrf.mxu0
  %v3039 = vadd.f32 %v2970, %v3038
  %v3040 = vpop.f32.mrf.mxu0
  %v3041 = vadd.f32 %v2972, %v3040
  %3042 = vmatmul.bf16.gmra.mxu0 %v2522
  %v3043 = vpop.f32.mrf.mxu0
  %v3044 = vadd.f32 %v2975, %v3043
  %v3045 = vpop.f32.mrf.mxu0
  %v3046 = vadd.f32 %v2977, %v3045
  %3047 = vmatmul.bf16.gmra.mxu0 %v2524
  %v3048 = vpop.f32.mrf.mxu0
  %v3049 = vadd.f32 %v2980, %v3048
  %v3050 = vpop.f32.mrf.mxu0
  %v3051 = vadd.f32 %v2982, %v3050
  %3052 = vmatmul.bf16.gmra.mxu0 %v2526
  %v3053 = vpop.f32.mrf.mxu0
  %v3054 = vadd.f32 %v2985, %v3053
  %v3055 = vpop.f32.mrf.mxu0
  %v3056 = vadd.f32 %v2987, %v3055
  %3057 = vmatmul.bf16.gmra.mxu0 %v2528
  %v3058 = vpop.f32.mrf.mxu0
  %v3059 = vadd.f32 %v2990, %v3058
  %v3060 = vpop.f32.mrf.mxu0
  %v3061 = vadd.f32 %v2992, %v3060
  %3062 = vmatmul.bf16.gmra.mxu0 %v2530
  %v3063 = vpop.f32.mrf.mxu0
  %v3064 = vadd.f32 %v2995, %v3063
  %v3065 = vpop.f32.mrf.mxu0
  %v3066 = vadd.f32 %v2997, %v3065
  %3067 = vmatmul.bf16.gmra.mxu0 %v2532
  %v3068 = vpop.f32.mrf.mxu0
  %v3069 = vadd.f32 %v3000, %v3068
  %v3070 = vpop.f32.mrf.mxu0
  %v3071 = vadd.f32 %v3002, %v3070
  %3072 = vmatmul.bf16.gmra.mxu0 %v2534
  %v3073 = vpop.f32.mrf.mxu0
  %v3074 = vadd.f32 %v3005, %v3073
  %v3075 = vpop.f32.mrf.mxu0
  %v3076 = vadd.f32 %v3007, %v3075
  %3077 = vmatmul.bf16.gmra.mxu0 %v2536
  %v3078 = vpop.f32.mrf.mxu0
  %v3079 = vadd.f32 %v3010, %v3078
  %v3080 = vpop.f32.mrf.mxu0
  %v3081 = vadd.f32 %v3012, %v3080
  %3082 = vmatmul.bf16.gmra.mxu0 %v2538
  %v3083 = vpop.f32.mrf.mxu0
  %v3084 = vadd.f32 %v3015, %v3083
  %v3085 = vpop.f32.mrf.mxu0
  %v3086 = vadd.f32 %v3017, %v3085
  %3087 = vdwg.mxu0
  %v3112 = vrot.slane %v3029, 1
  %v3113 = vrot.slane %v3031, 1
  %v3114 = vsel %vm740, %v3112, %v3113
  %v3115 = vrot.slane %v3034, 1
  %v3116 = vrot.slane %v3036, 1
  %v3117 = vsel %vm740, %v3115, %v3116
  %v3118 = vrot.slane %v3039, 1
  %v3119 = vrot.slane %v3041, 1
  %v3120 = vsel %vm740, %v3118, %v3119
  %v3121 = vrot.slane %v3044, 1
  %v3122 = vrot.slane %v3046, 1
  %v3123 = vsel %vm740, %v3121, %v3122
  %v3124 = vrot.slane %v3049, 1
  %v3125 = vrot.slane %v3051, 1
  %v3126 = vsel %vm740, %v3124, %v3125
  %v3127 = vrot.slane %v3054, 1
  %v3128 = vrot.slane %v3056, 1
  %v3129 = vsel %vm740, %v3127, %v3128
  %v3130 = vrot.slane %v3059, 1
  %v3131 = vrot.slane %v3061, 1
  %v3132 = vsel %vm740, %v3130, %v3131
  %v3133 = vrot.slane %v3064, 1
  %v3134 = vrot.slane %v3066, 1
  %v3135 = vsel %vm740, %v3133, %v3134
  %v3136 = vrot.slane %v3069, 1
  %v3137 = vrot.slane %v3071, 1
  %v3138 = vsel %vm740, %v3136, %v3137
  %v3139 = vrot.slane %v3074, 1
  %v3140 = vrot.slane %v3076, 1
  %v3141 = vsel %vm740, %v3139, %v3140
  %v3142 = vrot.slane %v3079, 1
  %v3143 = vrot.slane %v3081, 1
  %v3144 = vsel %vm740, %v3142, %v3143
  %v3145 = vrot.slane %v3084, 1
  %v3146 = vrot.slane %v3086, 1
  %v3147 = vsel %vm740, %v3145, %v3146
  %v3172 = vadd.f32 %v2797, %v3114
  %v3173 = vadd.f32 %v2798, %v3113
  %v3174 = vadd.f32 %v2799, %v3117
  %v3175 = vadd.f32 %v2800, %v3116
  %v3176 = vadd.f32 %v2801, %v3120
  %v3177 = vadd.f32 %v2802, %v3119
  %v3178 = vadd.f32 %v2803, %v3123
  %v3179 = vadd.f32 %v2804, %v3122
  %v3180 = vadd.f32 %v2805, %v3126
  %v3181 = vadd.f32 %v2806, %v3125
  %v3182 = vadd.f32 %v2807, %v3129
  %v3183 = vadd.f32 %v2808, %v3128
  %v3184 = vadd.f32 %v2809, %v3132
  %v3185 = vadd.f32 %v2810, %v3131
  %v3186 = vadd.f32 %v2811, %v3135
  %v3187 = vadd.f32 %v2812, %v3134
  %v3188 = vadd.f32 %v2813, %v3138
  %v3189 = vadd.f32 %v2814, %v3137
  %v3190 = vadd.f32 %v2815, %v3141
  %v3191 = vadd.f32 %v2816, %v3140
  %v3192 = vadd.f32 %v2817, %v3144
  %v3193 = vadd.f32 %v2818, %v3143
  %v3194 = vadd.f32 %v2819, %v3147
  %v3195 = vadd.f32 %v2820, %v3146
  %s3196 = scalar_lea.vmem %s1, 1024
  %v3197 = vld [vmem:[%s3196] sm:$0xf]
  %v3198 = vld [vmem:[%s3196 + $0x4] sm:$0xf]
  %v3199 = vld [vmem:[%s3196 + $0x8] sm:$0xf]
  %v3200 = vld [vmem:[%s3196 + $0xc] sm:$0xf]
  %v3201 = vld [vmem:[%s3196 + $0x10] sm:$0xf]
  %v3202 = vld [vmem:[%s3196 + $0x14] sm:$0xf]
  %v3203 = vld [vmem:[%s3196 + $0x18] sm:$0xf]
  %v3204 = vld [vmem:[%s3196 + $0x1c] sm:$0xf]
  %v3205 = vld [vmem:[%s3196 + $0x20] sm:$0xf]
  %v3206 = vld [vmem:[%s3196 + $0x24] sm:$0xf]
  %v3207 = vld [vmem:[%s3196 + $0x28] sm:$0xf]
  %v3208 = vld [vmem:[%s3196 + $0x2c] sm:$0xf]
  %v3209 = vld [vmem:[%s3196 + $0x30] sm:$0xf]
  %v3210 = vld [vmem:[%s3196 + $0x34] sm:$0xf]
  %v3211 = vld [vmem:[%s3196 + $0x38] sm:$0xf]
  %v3212 = vld [vmem:[%s3196 + $0x3c] sm:$0xf]
  %v3213 = vld [vmem:[%s3196 + $0x40] sm:$0xf]
  %v3214 = vld [vmem:[%s3196 + $0x44] sm:$0xf]
  %v3215 = vld [vmem:[%s3196 + $0x48] sm:$0xf]
  %v3216 = vld [vmem:[%s3196 + $0x4c] sm:$0xf]
  %v3217 = vld [vmem:[%s3196 + $0x50] sm:$0xf]
  %v3218 = vld [vmem:[%s3196 + $0x54] sm:$0xf]
  %v3219 = vld [vmem:[%s3196 + $0x58] sm:$0xf]
  %v3220 = vld [vmem:[%s3196 + $0x5c] sm:$0xf]
  %v3221 = vld [vmem:[%s3196 + $0x60] sm:$0xf]
  %v3222 = vld [vmem:[%s3196 + $0x64] sm:$0xf]
  %v3223 = vld [vmem:[%s3196 + $0x68] sm:$0xf]
  %v3224 = vld [vmem:[%s3196 + $0x6c] sm:$0xf]
  %v3225 = vld [vmem:[%s3196 + $0x70] sm:$0xf]
  %v3226 = vld [vmem:[%s3196 + $0x74] sm:$0xf]
  %v3227 = vld [vmem:[%s3196 + $0x78] sm:$0xf]
  %v3228 = vld [vmem:[%s3196 + $0x7c] sm:$0xf]
  %v3261 = vunpack.c.l.b16 %v3197
  %v3262 = vunpack.c.l.b16 %v3198
  %v3263 = vunpack.c.l.b16 %v3199
  %v3264 = vunpack.c.l.b16 %v3200
  %v3265 = vunpack.c.l.b16 %v3201
  %v3266 = vunpack.c.l.b16 %v3202
  %v3267 = vunpack.c.l.b16 %v3203
  %v3268 = vunpack.c.l.b16 %v3204
  %v3269 = vunpack.c.l.b16 %v3205
  %v3270 = vunpack.c.l.b16 %v3206
  %v3271 = vunpack.c.l.b16 %v3207
  %v3272 = vunpack.c.l.b16 %v3208
  %v3273 = vunpack.c.l.b16 %v3209
  %v3274 = vunpack.c.l.b16 %v3210
  %v3275 = vunpack.c.l.b16 %v3211
  %v3276 = vunpack.c.l.b16 %v3212
  %v3277 = vunpack.c.l.b16 %v3213
  %v3278 = vunpack.c.l.b16 %v3214
  %v3279 = vunpack.c.l.b16 %v3215
  %v3280 = vunpack.c.l.b16 %v3216
  %v3281 = vunpack.c.l.b16 %v3217
  %v3282 = vunpack.c.l.b16 %v3218
  %v3283 = vunpack.c.l.b16 %v3219
  %v3284 = vunpack.c.l.b16 %v3220
  %v3285 = vunpack.c.l.b16 %v3221
  %v3286 = vunpack.c.l.b16 %v3222
  %v3287 = vunpack.c.l.b16 %v3223
  %v3288 = vunpack.c.l.b16 %v3224
  %v3289 = vunpack.c.l.b16 %v3225
  %v3290 = vunpack.c.l.b16 %v3226
  %v3291 = vunpack.c.l.b16 %v3227
  %v3292 = vunpack.c.l.b16 %v3228
  %v3293 = vpack.c.b16 %v3262, %v3261
  %v3294 = vpack.c.b16 %v3264, %v3263
  %v3295 = vpack.c.b16 %v3266, %v3265
  %v3296 = vpack.c.b16 %v3268, %v3267
  %v3297 = vpack.c.b16 %v3270, %v3269
  %v3298 = vpack.c.b16 %v3272, %v3271
  %v3299 = vpack.c.b16 %v3274, %v3273
  %v3300 = vpack.c.b16 %v3276, %v3275
  %v3301 = vpack.c.b16 %v3278, %v3277
  %v3302 = vpack.c.b16 %v3280, %v3279
  %v3303 = vpack.c.b16 %v3282, %v3281
  %v3304 = vpack.c.b16 %v3284, %v3283
  %v3305 = vpack.c.b16 %v3286, %v3285
  %v3306 = vpack.c.b16 %v3288, %v3287
  %v3307 = vpack.c.b16 %v3290, %v3289
  %v3308 = vpack.c.b16 %v3292, %v3291
  %3325 = vmatpush.bf16.msra.mxu0 %v3300
  %3326 = vmatpush.bf16.msra.mxu0 %v3299
  %3327 = vmatpush.bf16.msra.mxu0 %v3298
  %3328 = vmatpush.bf16.msra.mxu0 %v3297
  %3329 = vmatpush.bf16.msra.mxu0 %v3296
  %3330 = vmatpush.bf16.msra.mxu0 %v3295
  %3331 = vmatpush.bf16.msra.mxu0 %v3294
  %3332 = vmatpush.bf16.msra.mxu0 %v3293
  %3333 = vmatmul.bf16.gmra.mxu0 %v2515
  %v3334 = vpop.f32.mrf.mxu0
  %v3335 = vadd.f32 0.0, %v3334
  %v3336 = vpop.f32.mrf.mxu0
  %v3337 = vadd.f32 0.0, %v3336
  %3338 = vmatmul.bf16.gmra.mxu0 %v2517
  %v3339 = vpop.f32.mrf.mxu0
  %v3340 = vadd.f32 0.0, %v3339
  %v3341 = vpop.f32.mrf.mxu0
  %v3342 = vadd.f32 0.0, %v3341
  %3343 = vmatmul.bf16.gmra.mxu0 %v2519
  %v3344 = vpop.f32.mrf.mxu0
  %v3345 = vadd.f32 0.0, %v3344
  %v3346 = vpop.f32.mrf.mxu0
  %v3347 = vadd.f32 0.0, %v3346
  %3348 = vmatmul.bf16.gmra.mxu0 %v2521
  %v3349 = vpop.f32.mrf.mxu0
  %v3350 = vadd.f32 0.0, %v3349
  %v3351 = vpop.f32.mrf.mxu0
  %v3352 = vadd.f32 0.0, %v3351
  %3353 = vmatmul.bf16.gmra.mxu0 %v2523
  %v3354 = vpop.f32.mrf.mxu0
  %v3355 = vadd.f32 0.0, %v3354
  %v3356 = vpop.f32.mrf.mxu0
  %v3357 = vadd.f32 0.0, %v3356
  %3358 = vmatmul.bf16.gmra.mxu0 %v2525
  %v3359 = vpop.f32.mrf.mxu0
  %v3360 = vadd.f32 0.0, %v3359
  %v3361 = vpop.f32.mrf.mxu0
  %v3362 = vadd.f32 0.0, %v3361
  %3363 = vmatmul.bf16.gmra.mxu0 %v2527
  %v3364 = vpop.f32.mrf.mxu0
  %v3365 = vadd.f32 0.0, %v3364
  %v3366 = vpop.f32.mrf.mxu0
  %v3367 = vadd.f32 0.0, %v3366
  %3368 = vmatmul.bf16.gmra.mxu0 %v2529
  %v3369 = vpop.f32.mrf.mxu0
  %v3370 = vadd.f32 0.0, %v3369
  %v3371 = vpop.f32.mrf.mxu0
  %v3372 = vadd.f32 0.0, %v3371
  %3373 = vmatmul.bf16.gmra.mxu0 %v2531
  %v3374 = vpop.f32.mrf.mxu0
  %v3375 = vadd.f32 0.0, %v3374
  %v3376 = vpop.f32.mrf.mxu0
  %v3377 = vadd.f32 0.0, %v3376
  %3378 = vmatmul.bf16.gmra.mxu0 %v2533
  %v3379 = vpop.f32.mrf.mxu0
  %v3380 = vadd.f32 0.0, %v3379
  %v3381 = vpop.f32.mrf.mxu0
  %v3382 = vadd.f32 0.0, %v3381
  %3383 = vmatmul.bf16.gmra.mxu0 %v2535
  %v3384 = vpop.f32.mrf.mxu0
  %v3385 = vadd.f32 0.0, %v3384
  %v3386 = vpop.f32.mrf.mxu0
  %v3387 = vadd.f32 0.0, %v3386
  %3388 = vmatmul.bf16.gmra.mxu0 %v2537
  %v3389 = vpop.f32.mrf.mxu0
  %v3390 = vadd.f32 0.0, %v3389
  %v3391 = vpop.f32.mrf.mxu0
  %v3392 = vadd.f32 0.0, %v3391
  %3393 = vdwg.mxu0
  %3394 = vmatpush.bf16.msra.mxu0 %v3308
  %3395 = vmatpush.bf16.msra.mxu0 %v3307
  %3396 = vmatpush.bf16.msra.mxu0 %v3306
  %3397 = vmatpush.bf16.msra.mxu0 %v3305
  %3398 = vmatpush.bf16.msra.mxu0 %v3304
  %3399 = vmatpush.bf16.msra.mxu0 %v3303
  %3400 = vmatpush.bf16.msra.mxu0 %v3302
  %3401 = vmatpush.bf16.msra.mxu0 %v3301
  %3402 = vmatmul.bf16.gmra.mxu0 %v2516
  %v3403 = vpop.f32.mrf.mxu0
  %v3404 = vadd.f32 %v3335, %v3403
  %v3405 = vpop.f32.mrf.mxu0
  %v3406 = vadd.f32 %v3337, %v3405
  %3407 = vmatmul.bf16.gmra.mxu0 %v2518
  %v3408 = vpop.f32.mrf.mxu0
  %v3409 = vadd.f32 %v3340, %v3408
  %v3410 = vpop.f32.mrf.mxu0
  %v3411 = vadd.f32 %v3342, %v3410
  %3412 = vmatmul.bf16.gmra.mxu0 %v2520
  %v3413 = vpop.f32.mrf.mxu0
  %v3414 = vadd.f32 %v3345, %v3413
  %v3415 = vpop.f32.mrf.mxu0
  %v3416 = vadd.f32 %v3347, %v3415
  %3417 = vmatmul.bf16.gmra.mxu0 %v2522
  %v3418 = vpop.f32.mrf.mxu0
  %v3419 = vadd.f32 %v3350, %v3418
  %v3420 = vpop.f32.mrf.mxu0
  %v3421 = vadd.f32 %v3352, %v3420
  %3422 = vmatmul.bf16.gmra.mxu0 %v2524
  %v3423 = vpop.f32.mrf.mxu0
  %v3424 = vadd.f32 %v3355, %v3423
  %v3425 = vpop.f32.mrf.mxu0
  %v3426 = vadd.f32 %v3357, %v3425
  %3427 = vmatmul.bf16.gmra.mxu0 %v2526
  %v3428 = vpop.f32.mrf.mxu0
  %v3429 = vadd.f32 %v3360, %v3428
  %v3430 = vpop.f32.mrf.mxu0
  %v3431 = vadd.f32 %v3362, %v3430
  %3432 = vmatmul.bf16.gmra.mxu0 %v2528
  %v3433 = vpop.f32.mrf.mxu0
  %v3434 = vadd.f32 %v3365, %v3433
  %v3435 = vpop.f32.mrf.mxu0
  %v3436 = vadd.f32 %v3367, %v3435
  %3437 = vmatmul.bf16.gmra.mxu0 %v2530
  %v3438 = vpop.f32.mrf.mxu0
  %v3439 = vadd.f32 %v3370, %v3438
  %v3440 = vpop.f32.mrf.mxu0
  %v3441 = vadd.f32 %v3372, %v3440
  %3442 = vmatmul.bf16.gmra.mxu0 %v2532
  %v3443 = vpop.f32.mrf.mxu0
  %v3444 = vadd.f32 %v3375, %v3443
  %v3445 = vpop.f32.mrf.mxu0
  %v3446 = vadd.f32 %v3377, %v3445
  %3447 = vmatmul.bf16.gmra.mxu0 %v2534
  %v3448 = vpop.f32.mrf.mxu0
  %v3449 = vadd.f32 %v3380, %v3448
  %v3450 = vpop.f32.mrf.mxu0
  %v3451 = vadd.f32 %v3382, %v3450
  %3452 = vmatmul.bf16.gmra.mxu0 %v2536
  %v3453 = vpop.f32.mrf.mxu0
  %v3454 = vadd.f32 %v3385, %v3453
  %v3455 = vpop.f32.mrf.mxu0
  %v3456 = vadd.f32 %v3387, %v3455
  %3457 = vmatmul.bf16.gmra.mxu0 %v2538
  %v3458 = vpop.f32.mrf.mxu0
  %v3459 = vadd.f32 %v3390, %v3458
  %v3460 = vpop.f32.mrf.mxu0
  %v3461 = vadd.f32 %v3392, %v3460
  %3462 = vdwg.mxu0
  %v3487 = vrot.slane %v3404, 2
  %v3488 = vrot.slane %v3406, 2
  %v3489 = vsel %vm1116, %v3487, %v3488
  %v3490 = vrot.slane %v3409, 2
  %v3491 = vrot.slane %v3411, 2
  %v3492 = vsel %vm1116, %v3490, %v3491
  %v3493 = vrot.slane %v3414, 2
  %v3494 = vrot.slane %v3416, 2
  %v3495 = vsel %vm1116, %v3493, %v3494
  %v3496 = vrot.slane %v3419, 2
  %v3497 = vrot.slane %v3421, 2
  %v3498 = vsel %vm1116, %v3496, %v3497
  %v3499 = vrot.slane %v3424, 2
  %v3500 = vrot.slane %v3426, 2
  %v3501 = vsel %vm1116, %v3499, %v3500
  %v3502 = vrot.slane %v3429, 2
  %v3503 = vrot.slane %v3431, 2
  %v3504 = vsel %vm1116, %v3502, %v3503
  %v3505 = vrot.slane %v3434, 2
  %v3506 = vrot.slane %v3436, 2
  %v3507 = vsel %vm1116, %v3505, %v3506
  %v3508 = vrot.slane %v3439, 2
  %v3509 = vrot.slane %v3441, 2
  %v3510 = vsel %vm1116, %v3508, %v3509
  %v3511 = vrot.slane %v3444, 2
  %v3512 = vrot.slane %v3446, 2
  %v3513 = vsel %vm1116, %v3511, %v3512
  %v3514 = vrot.slane %v3449, 2
  %v3515 = vrot.slane %v3451, 2
  %v3516 = vsel %vm1116, %v3514, %v3515
  %v3517 = vrot.slane %v3454, 2
  %v3518 = vrot.slane %v3456, 2
  %v3519 = vsel %vm1116, %v3517, %v3518
  %v3520 = vrot.slane %v3459, 2
  %v3521 = vrot.slane %v3461, 2
  %v3522 = vsel %vm1116, %v3520, %v3521
  %v3547 = vadd.f32 %v3172, %v3489
  %v3548 = vadd.f32 %v3173, %v3488
  %v3549 = vadd.f32 %v3174, %v3492
  %v3550 = vadd.f32 %v3175, %v3491
  %v3551 = vadd.f32 %v3176, %v3495
  %v3552 = vadd.f32 %v3177, %v3494
  %v3553 = vadd.f32 %v3178, %v3498
  %v3554 = vadd.f32 %v3179, %v3497
  %v3555 = vadd.f32 %v3180, %v3501
  %v3556 = vadd.f32 %v3181, %v3500
  %v3557 = vadd.f32 %v3182, %v3504
  %v3558 = vadd.f32 %v3183, %v3503
  %v3559 = vadd.f32 %v3184, %v3507
  %v3560 = vadd.f32 %v3185, %v3506
  %v3561 = vadd.f32 %v3186, %v3510
  %v3562 = vadd.f32 %v3187, %v3509
  %v3563 = vadd.f32 %v3188, %v3513
  %v3564 = vadd.f32 %v3189, %v3512
  %v3565 = vadd.f32 %v3190, %v3516
  %v3566 = vadd.f32 %v3191, %v3515
  %v3567 = vadd.f32 %v3192, %v3519
  %v3568 = vadd.f32 %v3193, %v3518
  %v3569 = vadd.f32 %v3194, %v3522
  %v3570 = vadd.f32 %v3195, %v3521
  %v3572 = vperm.slane %v14, 0
  %v3574 = vadd.f32 %v3547, %v3572
  %v3575 = vadd.f32 %v3548, %v3572
  %v3576 = vadd.f32 %v3549, %v3572
  %v3577 = vadd.f32 %v3550, %v3572
  %v3578 = vadd.f32 %v3551, %v3572
  %v3579 = vadd.f32 %v3552, %v3572
  %v3580 = vadd.f32 %v3553, %v3572
  %v3581 = vadd.f32 %v3554, %v3572
  %v3582 = vadd.f32 %v3555, %v3572
  %v3583 = vadd.f32 %v3556, %v3572
  %v3584 = vadd.f32 %v3557, %v3572
  %v3585 = vadd.f32 %v3558, %v3572
  %v3586 = vadd.f32 %v3559, %v3572
  %v3587 = vadd.f32 %v3560, %v3572
  %v3588 = vadd.f32 %v3561, %v3572
  %v3589 = vadd.f32 %v3562, %v3572
  %v3590 = vadd.f32 %v3563, %v3572
  %v3591 = vadd.f32 %v3564, %v3572
  %v3592 = vadd.f32 %v3565, %v3572
  %v3593 = vadd.f32 %v3566, %v3572
  %v3594 = vadd.f32 %v3567, %v3572
  %v3595 = vadd.f32 %v3568, %v3572
  %v3596 = vadd.f32 %v3569, %v3572
  %v3597 = vadd.f32 %v3570, %v3572
  %v3598 = vmax.f32 %v3574, 0.0
  %v3599 = vmax.f32 %v3575, 0.0
  %v3600 = vmax.f32 %v3576, 0.0
  %v3601 = vmax.f32 %v3577, 0.0
  %v3602 = vmax.f32 %v3578, 0.0
  %v3603 = vmax.f32 %v3579, 0.0
  %v3604 = vmax.f32 %v3580, 0.0
  %v3605 = vmax.f32 %v3581, 0.0
  %v3606 = vmax.f32 %v3582, 0.0
  %v3607 = vmax.f32 %v3583, 0.0
  %v3608 = vmax.f32 %v3584, 0.0
  %v3609 = vmax.f32 %v3585, 0.0
  %v3610 = vmax.f32 %v3586, 0.0
  %v3611 = vmax.f32 %v3587, 0.0
  %v3612 = vmax.f32 %v3588, 0.0
  %v3613 = vmax.f32 %v3589, 0.0
  %v3614 = vmax.f32 %v3590, 0.0
  %v3615 = vmax.f32 %v3591, 0.0
  %v3616 = vmax.f32 %v3592, 0.0
  %v3617 = vmax.f32 %v3593, 0.0
  %v3618 = vmax.f32 %v3594, 0.0
  %v3619 = vmax.f32 %v3595, 0.0
  %v3620 = vmax.f32 %v3596, 0.0
  %v3621 = vmax.f32 %v3597, 0.0
  %v3622 = vpack.c.bf16 %v3598, %v3598
  %v3623 = vpack.c.bf16 %v3599, %v3599
  %v3624 = vpack.c.bf16 %v3600, %v3600
  %v3625 = vpack.c.bf16 %v3601, %v3601
  %v3626 = vpack.c.bf16 %v3602, %v3602
  %v3627 = vpack.c.bf16 %v3603, %v3603
  %v3628 = vpack.c.bf16 %v3604, %v3604
  %v3629 = vpack.c.bf16 %v3605, %v3605
  %v3630 = vpack.c.bf16 %v3606, %v3606
  %v3631 = vpack.c.bf16 %v3607, %v3607
  %v3632 = vpack.c.bf16 %v3608, %v3608
  %v3633 = vpack.c.bf16 %v3609, %v3609
  %v3634 = vpack.c.bf16 %v3610, %v3610
  %v3635 = vpack.c.bf16 %v3611, %v3611
  %v3636 = vpack.c.bf16 %v3612, %v3612
  %v3637 = vpack.c.bf16 %v3613, %v3613
  %v3638 = vpack.c.bf16 %v3614, %v3614
  %v3639 = vpack.c.bf16 %v3615, %v3615
  %v3640 = vpack.c.bf16 %v3616, %v3616
  %v3641 = vpack.c.bf16 %v3617, %v3617
  %v3642 = vpack.c.bf16 %v3618, %v3618
  %v3643 = vpack.c.bf16 %v3619, %v3619
  %v3644 = vpack.c.bf16 %v3620, %v3620
  %v3645 = vpack.c.bf16 %v3621, %v3621
  %vm3646 = vcmask 519168
  %3647 = vst.msk [vmem:[%s3] sm:$0xf] %vm3646, %v3622
  %vm3648 = vcmask 517120
  %3649 = vst.msk [vmem:[%s3 + $0x4] sm:$0x3] %vm3648, %v3623
  %3650 = vst.msk [vmem:[%s3 + $0x8] sm:$0xf] %vm3646, %v3624
  %3651 = vst.msk [vmem:[%s3 + $0xc] sm:$0x3] %vm3648, %v3625
  %3652 = vst.msk [vmem:[%s3 + $0x10] sm:$0xf] %vm3646, %v3626
  %3653 = vst.msk [vmem:[%s3 + $0x14] sm:$0x3] %vm3648, %v3627
  %3654 = vst.msk [vmem:[%s3 + $0x18] sm:$0xf] %vm3646, %v3628
  %3655 = vst.msk [vmem:[%s3 + $0x1c] sm:$0x3] %vm3648, %v3629
  %3656 = vst.msk [vmem:[%s3 + $0x20] sm:$0xf] %vm3646, %v3630
  %3657 = vst.msk [vmem:[%s3 + $0x24] sm:$0x3] %vm3648, %v3631
  %3658 = vst.msk [vmem:[%s3 + $0x28] sm:$0xf] %vm3646, %v3632
  %3659 = vst.msk [vmem:[%s3 + $0x2c] sm:$0x3] %vm3648, %v3633
  %3660 = vst.msk [vmem:[%s3 + $0x30] sm:$0xf] %vm3646, %v3634
  %3661 = vst.msk [vmem:[%s3 + $0x34] sm:$0x3] %vm3648, %v3635
  %3662 = vst.msk [vmem:[%s3 + $0x38] sm:$0xf] %vm3646, %v3636
  %3663 = vst.msk [vmem:[%s3 + $0x3c] sm:$0x3] %vm3648, %v3637
  %3664 = vst.msk [vmem:[%s3 + $0x40] sm:$0xf] %vm3646, %v3638
  %3665 = vst.msk [vmem:[%s3 + $0x44] sm:$0x3] %vm3648, %v3639
  %3666 = vst.msk [vmem:[%s3 + $0x48] sm:$0xf] %vm3646, %v3640
  %3667 = vst.msk [vmem:[%s3 + $0x4c] sm:$0x3] %vm3648, %v3641
  %3668 = vst.msk [vmem:[%s3 + $0x50] sm:$0xf] %vm3646, %v3642
  %3669 = vst.msk [vmem:[%s3 + $0x54] sm:$0x3] %vm3648, %v3643
  %3670 = vst.msk [vmem:[%s3 + $0x58] sm:$0xf] %vm3646, %v3644
  %3671 = vst.msk [vmem:[%s3 + $0x5c] sm:$0x3] %vm3648, %v3645
  %s3672 = scalar_lea.vmem %s0, 224
  %v3673 = vld [vmem:[%s3672] sm:$0xff]
  %v3674 = vld [vmem:[%s3672 + $0x8] sm:$0xff]
  %v3675 = vld [vmem:[%s3672 + $0x10] sm:$0xff]
  %v3676 = vld [vmem:[%s3672 + $0x18] sm:$0xff]
  %v3677 = vld [vmem:[%s3672 + $0x20] sm:$0xff]
  %v3678 = vld [vmem:[%s3672 + $0x28] sm:$0xff]
  %v3679 = vld [vmem:[%s3672 + $0x30] sm:$0xff]
  %v3680 = vld [vmem:[%s3672 + $0x38] sm:$0xff]
  %v3681 = vld [vmem:[%s3672 + $0x40] sm:$0xff]
  %v3682 = vld [vmem:[%s3672 + $0x48] sm:$0xff]
  %v3683 = vld [vmem:[%s3672 + $0x50] sm:$0xff]
  %v3684 = vld [vmem:[%s3672 + $0x58] sm:$0xff]
  %v3685 = vld [vmem:[%s3672 + $0x60] sm:$0xff]
  %v3686 = vld [vmem:[%s3672 + $0x68] sm:$0xff]
  %v3687 = vld [vmem:[%s3672 + $0x70] sm:$0xff]
  %v3688 = vld [vmem:[%s3672 + $0x78] sm:$0xff]
  %v3689 = vld [vmem:[%s3672 + $0x80] sm:$0xff]
  %v3690 = vld [vmem:[%s3672 + $0x88] sm:$0xff]
  %v3691 = vld [vmem:[%s3672 + $0x90] sm:$0xff]
  %v3692 = vld [vmem:[%s3672 + $0x98] sm:$0xff]
  %v3693 = vld [vmem:[%s3672 + $0xa0] sm:$0xff]
  %v3694 = vld [vmem:[%s3672 + $0xa8] sm:$0xff]
  %v3695 = vld [vmem:[%s3672 + $0xb0] sm:$0xff]
  %v3696 = vld [vmem:[%s3672 + $0xb8] sm:$0xff]
  %v3697 = vld [vmem:[%s1] sm:$0xf]
  %v3698 = vld [vmem:[%s1 + $0x4] sm:$0xf]
  %v3699 = vld [vmem:[%s1 + $0x8] sm:$0xf]
  %v3700 = vld [vmem:[%s1 + $0xc] sm:$0xf]
  %v3701 = vld [vmem:[%s1 + $0x10] sm:$0xf]
  %v3702 = vld [vmem:[%s1 + $0x14] sm:$0xf]
  %v3703 = vld [vmem:[%s1 + $0x18] sm:$0xf]
  %v3704 = vld [vmem:[%s1 + $0x1c] sm:$0xf]
  %v3705 = vld [vmem:[%s1 + $0x20] sm:$0xf]
  %v3706 = vld [vmem:[%s1 + $0x24] sm:$0xf]
  %v3707 = vld [vmem:[%s1 + $0x28] sm:$0xf]
  %v3708 = vld [vmem:[%s1 + $0x2c] sm:$0xf]
  %v3709 = vld [vmem:[%s1 + $0x30] sm:$0xf]
  %v3710 = vld [vmem:[%s1 + $0x34] sm:$0xf]
  %v3711 = vld [vmem:[%s1 + $0x38] sm:$0xf]
  %v3712 = vld [vmem:[%s1 + $0x3c] sm:$0xf]
  %v3713 = vld [vmem:[%s1 + $0x40] sm:$0xf]
  %v3714 = vld [vmem:[%s1 + $0x44] sm:$0xf]
  %v3715 = vld [vmem:[%s1 + $0x48] sm:$0xf]
  %v3716 = vld [vmem:[%s1 + $0x4c] sm:$0xf]
  %v3717 = vld [vmem:[%s1 + $0x50] sm:$0xf]
  %v3718 = vld [vmem:[%s1 + $0x54] sm:$0xf]
  %v3719 = vld [vmem:[%s1 + $0x58] sm:$0xf]
  %v3720 = vld [vmem:[%s1 + $0x5c] sm:$0xf]
  %v3721 = vld [vmem:[%s1 + $0x60] sm:$0xf]
  %v3722 = vld [vmem:[%s1 + $0x64] sm:$0xf]
  %v3723 = vld [vmem:[%s1 + $0x68] sm:$0xf]
  %v3724 = vld [vmem:[%s1 + $0x6c] sm:$0xf]
  %v3725 = vld [vmem:[%s1 + $0x70] sm:$0xf]
  %v3726 = vld [vmem:[%s1 + $0x74] sm:$0xf]
  %v3727 = vld [vmem:[%s1 + $0x78] sm:$0xf]
  %v3728 = vld [vmem:[%s1 + $0x7c] sm:$0xf]
  %v3753 = vunpack.c.l.b16 %v3673
  %v3754 = vunpack.c.h.b16 %v3673
  %v3755 = vunpack.c.l.b16 %v3674
  %v3756 = vunpack.c.h.b16 %v3674
  %v3757 = vunpack.c.l.b16 %v3675
  %v3758 = vunpack.c.h.b16 %v3675
  %v3759 = vunpack.c.l.b16 %v3676
  %v3760 = vunpack.c.h.b16 %v3676
  %v3761 = vunpack.c.l.b16 %v3677
  %v3762 = vunpack.c.h.b16 %v3677
  %v3763 = vunpack.c.l.b16 %v3678
  %v3764 = vunpack.c.h.b16 %v3678
  %v3765 = vunpack.c.l.b16 %v3679
  %v3766 = vunpack.c.h.b16 %v3679
  %v3767 = vunpack.c.l.b16 %v3680
  %v3768 = vunpack.c.h.b16 %v3680
  %v3769 = vunpack.c.l.b16 %v3681
  %v3770 = vunpack.c.h.b16 %v3681
  %v3771 = vunpack.c.l.b16 %v3682
  %v3772 = vunpack.c.h.b16 %v3682
  %v3773 = vunpack.c.l.b16 %v3683
  %v3774 = vunpack.c.h.b16 %v3683
  %v3775 = vunpack.c.l.b16 %v3684
  %v3776 = vunpack.c.h.b16 %v3684
  %v3777 = vunpack.c.l.b16 %v3685
  %v3778 = vunpack.c.h.b16 %v3685
  %v3779 = vunpack.c.l.b16 %v3686
  %v3780 = vunpack.c.h.b16 %v3686
  %v3781 = vunpack.c.l.b16 %v3687
  %v3782 = vunpack.c.h.b16 %v3687
  %v3783 = vunpack.c.l.b16 %v3688
  %v3784 = vunpack.c.h.b16 %v3688
  %v3785 = vunpack.c.l.b16 %v3689
  %v3786 = vunpack.c.h.b16 %v3689
  %v3787 = vunpack.c.l.b16 %v3690
  %v3788 = vunpack.c.h.b16 %v3690
  %v3789 = vunpack.c.l.b16 %v3691
  %v3790 = vunpack.c.h.b16 %v3691
  %v3791 = vunpack.c.l.b16 %v3692
  %v3792 = vunpack.c.h.b16 %v3692
  %v3793 = vunpack.c.l.b16 %v3693
  %v3794 = vunpack.c.h.b16 %v3693
  %v3795 = vunpack.c.l.b16 %v3694
  %v3796 = vunpack.c.h.b16 %v3694
  %v3797 = vunpack.c.l.b16 %v3695
  %v3798 = vunpack.c.h.b16 %v3695
  %v3799 = vunpack.c.l.b16 %v3696
  %v3800 = vunpack.c.h.b16 %v3696
  %v3801 = vpack.c.b16 %v3755, %v3753
  %v3802 = vpack.c.b16 %v3756, %v3754
  %v3803 = vpack.c.b16 %v3759, %v3757
  %v3804 = vpack.c.b16 %v3760, %v3758
  %v3805 = vpack.c.b16 %v3763, %v3761
  %v3806 = vpack.c.b16 %v3764, %v3762
  %v3807 = vpack.c.b16 %v3767, %v3765
  %v3808 = vpack.c.b16 %v3768, %v3766
  %v3809 = vpack.c.b16 %v3771, %v3769
  %v3810 = vpack.c.b16 %v3772, %v3770
  %v3811 = vpack.c.b16 %v3775, %v3773
  %v3812 = vpack.c.b16 %v3776, %v3774
  %v3813 = vpack.c.b16 %v3779, %v3777
  %v3814 = vpack.c.b16 %v3780, %v3778
  %v3815 = vpack.c.b16 %v3783, %v3781
  %v3816 = vpack.c.b16 %v3784, %v3782
  %v3817 = vpack.c.b16 %v3787, %v3785
  %v3818 = vpack.c.b16 %v3788, %v3786
  %v3819 = vpack.c.b16 %v3791, %v3789
  %v3820 = vpack.c.b16 %v3792, %v3790
  %v3821 = vpack.c.b16 %v3795, %v3793
  %v3822 = vpack.c.b16 %v3796, %v3794
  %v3823 = vpack.c.b16 %v3799, %v3797
  %v3824 = vpack.c.b16 %v3800, %v3798
  %v3881 = vunpack.c.l.b16 %v3697
  %v3882 = vunpack.c.l.b16 %v3698
  %v3883 = vunpack.c.l.b16 %v3699
  %v3884 = vunpack.c.l.b16 %v3700
  %v3885 = vunpack.c.l.b16 %v3701
  %v3886 = vunpack.c.l.b16 %v3702
  %v3887 = vunpack.c.l.b16 %v3703
  %v3888 = vunpack.c.l.b16 %v3704
  %v3889 = vunpack.c.l.b16 %v3705
  %v3890 = vunpack.c.l.b16 %v3706
  %v3891 = vunpack.c.l.b16 %v3707
  %v3892 = vunpack.c.l.b16 %v3708
  %v3893 = vunpack.c.l.b16 %v3709
  %v3894 = vunpack.c.l.b16 %v3710
  %v3895 = vunpack.c.l.b16 %v3711
  %v3896 = vunpack.c.l.b16 %v3712
  %v3897 = vunpack.c.l.b16 %v3713
  %v3898 = vunpack.c.l.b16 %v3714
  %v3899 = vunpack.c.l.b16 %v3715
  %v3900 = vunpack.c.l.b16 %v3716
  %v3901 = vunpack.c.l.b16 %v3717
  %v3902 = vunpack.c.l.b16 %v3718
  %v3903 = vunpack.c.l.b16 %v3719
  %v3904 = vunpack.c.l.b16 %v3720
  %v3905 = vunpack.c.l.b16 %v3721
  %v3906 = vunpack.c.l.b16 %v3722
  %v3907 = vunpack.c.l.b16 %v3723
  %v3908 = vunpack.c.l.b16 %v3724
  %v3909 = vunpack.c.l.b16 %v3725
  %v3910 = vunpack.c.l.b16 %v3726
  %v3911 = vunpack.c.l.b16 %v3727
  %v3912 = vunpack.c.l.b16 %v3728
  %v3913 = vpack.c.b16 %v3882, %v3881
  %v3914 = vpack.c.b16 %v3884, %v3883
  %v3915 = vpack.c.b16 %v3886, %v3885
  %v3916 = vpack.c.b16 %v3888, %v3887
  %v3917 = vpack.c.b16 %v3890, %v3889
  %v3918 = vpack.c.b16 %v3892, %v3891
  %v3919 = vpack.c.b16 %v3894, %v3893
  %v3920 = vpack.c.b16 %v3896, %v3895
  %v3921 = vpack.c.b16 %v3898, %v3897
  %v3922 = vpack.c.b16 %v3900, %v3899
  %v3923 = vpack.c.b16 %v3902, %v3901
  %v3924 = vpack.c.b16 %v3904, %v3903
  %v3925 = vpack.c.b16 %v3906, %v3905
  %v3926 = vpack.c.b16 %v3908, %v3907
  %v3927 = vpack.c.b16 %v3910, %v3909
  %v3928 = vpack.c.b16 %v3912, %v3911
  %3945 = vmatpush.bf16.msra.mxu0 %v3920
  %3946 = vmatpush.bf16.msra.mxu0 %v3919
  %3947 = vmatpush.bf16.msra.mxu0 %v3918
  %3948 = vmatpush.bf16.msra.mxu0 %v3917
  %3949 = vmatpush.bf16.msra.mxu0 %v3916
  %3950 = vmatpush.bf16.msra.mxu0 %v3915
  %3951 = vmatpush.bf16.msra.mxu0 %v3914
  %3952 = vmatpush.bf16.msra.mxu0 %v3913
  %3953 = vmatmul.bf16.gmra.mxu0 %v3801
  %v3954 = vpop.f32.mrf.mxu0
  %v3955 = vadd.f32 0.0, %v3954
  %v3956 = vpop.f32.mrf.mxu0
  %v3957 = vadd.f32 0.0, %v3956
  %3958 = vmatmul.bf16.gmra.mxu0 %v3803
  %v3959 = vpop.f32.mrf.mxu0
  %v3960 = vadd.f32 0.0, %v3959
  %v3961 = vpop.f32.mrf.mxu0
  %v3962 = vadd.f32 0.0, %v3961
  %3963 = vmatmul.bf16.gmra.mxu0 %v3805
  %v3964 = vpop.f32.mrf.mxu0
  %v3965 = vadd.f32 0.0, %v3964
  %v3966 = vpop.f32.mrf.mxu0
  %v3967 = vadd.f32 0.0, %v3966
  %3968 = vmatmul.bf16.gmra.mxu0 %v3807
  %v3969 = vpop.f32.mrf.mxu0
  %v3970 = vadd.f32 0.0, %v3969
  %v3971 = vpop.f32.mrf.mxu0
  %v3972 = vadd.f32 0.0, %v3971
  %3973 = vmatmul.bf16.gmra.mxu0 %v3809
  %v3974 = vpop.f32.mrf.mxu0
  %v3975 = vadd.f32 0.0, %v3974
  %v3976 = vpop.f32.mrf.mxu0
  %v3977 = vadd.f32 0.0, %v3976
  %3978 = vmatmul.bf16.gmra.mxu0 %v3811
  %v3979 = vpop.f32.mrf.mxu0
  %v3980 = vadd.f32 0.0, %v3979
  %v3981 = vpop.f32.mrf.mxu0
  %v3982 = vadd.f32 0.0, %v3981
  %3983 = vmatmul.bf16.gmra.mxu0 %v3813
  %v3984 = vpop.f32.mrf.mxu0
  %v3985 = vadd.f32 0.0, %v3984
  %v3986 = vpop.f32.mrf.mxu0
  %v3987 = vadd.f32 0.0, %v3986
  %3988 = vmatmul.bf16.gmra.mxu0 %v3815
  %v3989 = vpop.f32.mrf.mxu0
  %v3990 = vadd.f32 0.0, %v3989
  %v3991 = vpop.f32.mrf.mxu0
  %v3992 = vadd.f32 0.0, %v3991
  %3993 = vmatmul.bf16.gmra.mxu0 %v3817
  %v3994 = vpop.f32.mrf.mxu0
  %v3995 = vadd.f32 0.0, %v3994
  %v3996 = vpop.f32.mrf.mxu0
  %v3997 = vadd.f32 0.0, %v3996
  %3998 = vmatmul.bf16.gmra.mxu0 %v3819
  %v3999 = vpop.f32.mrf.mxu0
  %v4000 = vadd.f32 0.0, %v3999
  %v4001 = vpop.f32.mrf.mxu0
  %v4002 = vadd.f32 0.0, %v4001
  %4003 = vmatmul.bf16.gmra.mxu0 %v3821
  %v4004 = vpop.f32.mrf.mxu0
  %v4005 = vadd.f32 0.0, %v4004
  %v4006 = vpop.f32.mrf.mxu0
  %v4007 = vadd.f32 0.0, %v4006
  %4008 = vmatmul.bf16.gmra.mxu0 %v3823
  %v4009 = vpop.f32.mrf.mxu0
  %v4010 = vadd.f32 0.0, %v4009
  %v4011 = vpop.f32.mrf.mxu0
  %v4012 = vadd.f32 0.0, %v4011
  %4013 = vdwg.mxu0
  %4014 = vmatpush.bf16.msra.mxu0 %v3928
  %4015 = vmatpush.bf16.msra.mxu0 %v3927
  %4016 = vmatpush.bf16.msra.mxu0 %v3926
  %4017 = vmatpush.bf16.msra.mxu0 %v3925
  %4018 = vmatpush.bf16.msra.mxu0 %v3924
  %4019 = vmatpush.bf16.msra.mxu0 %v3923
  %4020 = vmatpush.bf16.msra.mxu0 %v3922
  %4021 = vmatpush.bf16.msra.mxu0 %v3921
  %4022 = vmatmul.bf16.gmra.mxu0 %v3802
  %v4023 = vpop.f32.mrf.mxu0
  %v4024 = vadd.f32 %v3955, %v4023
  %v4025 = vpop.f32.mrf.mxu0
  %v4026 = vadd.f32 %v3957, %v4025
  %4027 = vmatmul.bf16.gmra.mxu0 %v3804
  %v4028 = vpop.f32.mrf.mxu0
  %v4029 = vadd.f32 %v3960, %v4028
  %v4030 = vpop.f32.mrf.mxu0
  %v4031 = vadd.f32 %v3962, %v4030
  %4032 = vmatmul.bf16.gmra.mxu0 %v3806
  %v4033 = vpop.f32.mrf.mxu0
  %v4034 = vadd.f32 %v3965, %v4033
  %v4035 = vpop.f32.mrf.mxu0
  %v4036 = vadd.f32 %v3967, %v4035
  %4037 = vmatmul.bf16.gmra.mxu0 %v3808
  %v4038 = vpop.f32.mrf.mxu0
  %v4039 = vadd.f32 %v3970, %v4038
  %v4040 = vpop.f32.mrf.mxu0
  %v4041 = vadd.f32 %v3972, %v4040
  %4042 = vmatmul.bf16.gmra.mxu0 %v3810
  %v4043 = vpop.f32.mrf.mxu0
  %v4044 = vadd.f32 %v3975, %v4043
  %v4045 = vpop.f32.mrf.mxu0
  %v4046 = vadd.f32 %v3977, %v4045
  %4047 = vmatmul.bf16.gmra.mxu0 %v3812
  %v4048 = vpop.f32.mrf.mxu0
  %v4049 = vadd.f32 %v3980, %v4048
  %v4050 = vpop.f32.mrf.mxu0
  %v4051 = vadd.f32 %v3982, %v4050
  %4052 = vmatmul.bf16.gmra.mxu0 %v3814
  %v4053 = vpop.f32.mrf.mxu0
  %v4054 = vadd.f32 %v3985, %v4053
  %v4055 = vpop.f32.mrf.mxu0
  %v4056 = vadd.f32 %v3987, %v4055
  %4057 = vmatmul.bf16.gmra.mxu0 %v3816
  %v4058 = vpop.f32.mrf.mxu0
  %v4059 = vadd.f32 %v3990, %v4058
  %v4060 = vpop.f32.mrf.mxu0
  %v4061 = vadd.f32 %v3992, %v4060
  %4062 = vmatmul.bf16.gmra.mxu0 %v3818
  %v4063 = vpop.f32.mrf.mxu0
  %v4064 = vadd.f32 %v3995, %v4063
  %v4065 = vpop.f32.mrf.mxu0
  %v4066 = vadd.f32 %v3997, %v4065
  %4067 = vmatmul.bf16.gmra.mxu0 %v3820
  %v4068 = vpop.f32.mrf.mxu0
  %v4069 = vadd.f32 %v4000, %v4068
  %v4070 = vpop.f32.mrf.mxu0
  %v4071 = vadd.f32 %v4002, %v4070
  %4072 = vmatmul.bf16.gmra.mxu0 %v3822
  %v4073 = vpop.f32.mrf.mxu0
  %v4074 = vadd.f32 %v4005, %v4073
  %v4075 = vpop.f32.mrf.mxu0
  %v4076 = vadd.f32 %v4007, %v4075
  %4077 = vmatmul.bf16.gmra.mxu0 %v3824
  %v4078 = vpop.f32.mrf.mxu0
  %v4079 = vadd.f32 %v4010, %v4078
  %v4080 = vpop.f32.mrf.mxu0
  %v4081 = vadd.f32 %v4012, %v4080
  %4082 = vdwg.mxu0
  %v4083 = vadd.f32 %v4024, 0.0
  %v4084 = vadd.f32 %v4026, 0.0
  %v4085 = vadd.f32 %v4029, 0.0
  %v4086 = vadd.f32 %v4031, 0.0
  %v4087 = vadd.f32 %v4034, 0.0
  %v4088 = vadd.f32 %v4036, 0.0
  %v4089 = vadd.f32 %v4039, 0.0
  %v4090 = vadd.f32 %v4041, 0.0
  %v4091 = vadd.f32 %v4044, 0.0
  %v4092 = vadd.f32 %v4046, 0.0
  %v4093 = vadd.f32 %v4049, 0.0
  %v4094 = vadd.f32 %v4051, 0.0
  %v4095 = vadd.f32 %v4054, 0.0
  %v4096 = vadd.f32 %v4056, 0.0
  %v4097 = vadd.f32 %v4059, 0.0
  %v4098 = vadd.f32 %v4061, 0.0
  %v4099 = vadd.f32 %v4064, 0.0
  %v4100 = vadd.f32 %v4066, 0.0
  %v4101 = vadd.f32 %v4069, 0.0
  %v4102 = vadd.f32 %v4071, 0.0
  %v4103 = vadd.f32 %v4074, 0.0
  %v4104 = vadd.f32 %v4076, 0.0
  %v4105 = vadd.f32 %v4079, 0.0
  %v4106 = vadd.f32 %v4081, 0.0
  %v4107 = vld [vmem:[%s449] sm:$0xf]
  %v4108 = vld [vmem:[%s449 + $0x4] sm:$0xf]
  %v4109 = vld [vmem:[%s449 + $0x8] sm:$0xf]
  %v4110 = vld [vmem:[%s449 + $0xc] sm:$0xf]
  %v4111 = vld [vmem:[%s449 + $0x10] sm:$0xf]
  %v4112 = vld [vmem:[%s449 + $0x14] sm:$0xf]
  %v4113 = vld [vmem:[%s449 + $0x18] sm:$0xf]
  %v4114 = vld [vmem:[%s449 + $0x1c] sm:$0xf]
  %v4115 = vld [vmem:[%s449 + $0x20] sm:$0xf]
  %v4116 = vld [vmem:[%s449 + $0x24] sm:$0xf]
  %v4117 = vld [vmem:[%s449 + $0x28] sm:$0xf]
  %v4118 = vld [vmem:[%s449 + $0x2c] sm:$0xf]
  %v4119 = vld [vmem:[%s449 + $0x30] sm:$0xf]
  %v4120 = vld [vmem:[%s449 + $0x34] sm:$0xf]
  %v4121 = vld [vmem:[%s449 + $0x38] sm:$0xf]
  %v4122 = vld [vmem:[%s449 + $0x3c] sm:$0xf]
  %v4123 = vld [vmem:[%s449 + $0x40] sm:$0xf]
  %v4124 = vld [vmem:[%s449 + $0x44] sm:$0xf]
  %v4125 = vld [vmem:[%s449 + $0x48] sm:$0xf]
  %v4126 = vld [vmem:[%s449 + $0x4c] sm:$0xf]
  %v4127 = vld [vmem:[%s449 + $0x50] sm:$0xf]
  %v4128 = vld [vmem:[%s449 + $0x54] sm:$0xf]
  %v4129 = vld [vmem:[%s449 + $0x58] sm:$0xf]
  %v4130 = vld [vmem:[%s449 + $0x5c] sm:$0xf]
  %v4131 = vld [vmem:[%s449 + $0x60] sm:$0xf]
  %v4132 = vld [vmem:[%s449 + $0x64] sm:$0xf]
  %v4133 = vld [vmem:[%s449 + $0x68] sm:$0xf]
  %v4134 = vld [vmem:[%s449 + $0x6c] sm:$0xf]
  %v4135 = vld [vmem:[%s449 + $0x70] sm:$0xf]
  %v4136 = vld [vmem:[%s449 + $0x74] sm:$0xf]
  %v4137 = vld [vmem:[%s449 + $0x78] sm:$0xf]
  %v4138 = vld [vmem:[%s449 + $0x7c] sm:$0xf]
  %v4171 = vunpack.c.l.b16 %v4107
  %v4172 = vunpack.c.l.b16 %v4108
  %v4173 = vunpack.c.l.b16 %v4109
  %v4174 = vunpack.c.l.b16 %v4110
  %v4175 = vunpack.c.l.b16 %v4111
  %v4176 = vunpack.c.l.b16 %v4112
  %v4177 = vunpack.c.l.b16 %v4113
  %v4178 = vunpack.c.l.b16 %v4114
  %v4179 = vunpack.c.l.b16 %v4115
  %v4180 = vunpack.c.l.b16 %v4116
  %v4181 = vunpack.c.l.b16 %v4117
  %v4182 = vunpack.c.l.b16 %v4118
  %v4183 = vunpack.c.l.b16 %v4119
  %v4184 = vunpack.c.l.b16 %v4120
  %v4185 = vunpack.c.l.b16 %v4121
  %v4186 = vunpack.c.l.b16 %v4122
  %v4187 = vunpack.c.l.b16 %v4123
  %v4188 = vunpack.c.l.b16 %v4124
  %v4189 = vunpack.c.l.b16 %v4125
  %v4190 = vunpack.c.l.b16 %v4126
  %v4191 = vunpack.c.l.b16 %v4127
  %v4192 = vunpack.c.l.b16 %v4128
  %v4193 = vunpack.c.l.b16 %v4129
  %v4194 = vunpack.c.l.b16 %v4130
  %v4195 = vunpack.c.l.b16 %v4131
  %v4196 = vunpack.c.l.b16 %v4132
  %v4197 = vunpack.c.l.b16 %v4133
  %v4198 = vunpack.c.l.b16 %v4134
  %v4199 = vunpack.c.l.b16 %v4135
  %v4200 = vunpack.c.l.b16 %v4136
  %v4201 = vunpack.c.l.b16 %v4137
  %v4202 = vunpack.c.l.b16 %v4138
  %v4203 = vpack.c.b16 %v4172, %v4171
  %v4204 = vpack.c.b16 %v4174, %v4173
  %v4205 = vpack.c.b16 %v4176, %v4175
  %v4206 = vpack.c.b16 %v4178, %v4177
  %v4207 = vpack.c.b16 %v4180, %v4179
  %v4208 = vpack.c.b16 %v4182, %v4181
  %v4209 = vpack.c.b16 %v4184, %v4183
  %v4210 = vpack.c.b16 %v4186, %v4185
  %v4211 = vpack.c.b16 %v4188, %v4187
  %v4212 = vpack.c.b16 %v4190, %v4189
  %v4213 = vpack.c.b16 %v4192, %v4191
  %v4214 = vpack.c.b16 %v4194, %v4193
  %v4215 = vpack.c.b16 %v4196, %v4195
  %v4216 = vpack.c.b16 %v4198, %v4197
  %v4217 = vpack.c.b16 %v4200, %v4199
  %v4218 = vpack.c.b16 %v4202, %v4201
  %4235 = vmatpush.bf16.msra.mxu0 %v4210
  %4236 = vmatpush.bf16.msra.mxu0 %v4209
  %4237 = vmatpush.bf16.msra.mxu0 %v4208
  %4238 = vmatpush.bf16.msra.mxu0 %v4207
  %4239 = vmatpush.bf16.msra.mxu0 %v4206
  %4240 = vmatpush.bf16.msra.mxu0 %v4205
  %4241 = vmatpush.bf16.msra.mxu0 %v4204
  %4242 = vmatpush.bf16.msra.mxu0 %v4203
  %4243 = vmatmul.bf16.gmra.mxu0 %v3801
  %v4244 = vpop.f32.mrf.mxu0
  %v4245 = vadd.f32 0.0, %v4244
  %v4246 = vpop.f32.mrf.mxu0
  %v4247 = vadd.f32 0.0, %v4246
  %4248 = vmatmul.bf16.gmra.mxu0 %v3803
  %v4249 = vpop.f32.mrf.mxu0
  %v4250 = vadd.f32 0.0, %v4249
  %v4251 = vpop.f32.mrf.mxu0
  %v4252 = vadd.f32 0.0, %v4251
  %4253 = vmatmul.bf16.gmra.mxu0 %v3805
  %v4254 = vpop.f32.mrf.mxu0
  %v4255 = vadd.f32 0.0, %v4254
  %v4256 = vpop.f32.mrf.mxu0
  %v4257 = vadd.f32 0.0, %v4256
  %4258 = vmatmul.bf16.gmra.mxu0 %v3807
  %v4259 = vpop.f32.mrf.mxu0
  %v4260 = vadd.f32 0.0, %v4259
  %v4261 = vpop.f32.mrf.mxu0
  %v4262 = vadd.f32 0.0, %v4261
  %4263 = vmatmul.bf16.gmra.mxu0 %v3809
  %v4264 = vpop.f32.mrf.mxu0
  %v4265 = vadd.f32 0.0, %v4264
  %v4266 = vpop.f32.mrf.mxu0
  %v4267 = vadd.f32 0.0, %v4266
  %4268 = vmatmul.bf16.gmra.mxu0 %v3811
  %v4269 = vpop.f32.mrf.mxu0
  %v4270 = vadd.f32 0.0, %v4269
  %v4271 = vpop.f32.mrf.mxu0
  %v4272 = vadd.f32 0.0, %v4271
  %4273 = vmatmul.bf16.gmra.mxu0 %v3813
  %v4274 = vpop.f32.mrf.mxu0
  %v4275 = vadd.f32 0.0, %v4274
  %v4276 = vpop.f32.mrf.mxu0
  %v4277 = vadd.f32 0.0, %v4276
  %4278 = vmatmul.bf16.gmra.mxu0 %v3815
  %v4279 = vpop.f32.mrf.mxu0
  %v4280 = vadd.f32 0.0, %v4279
  %v4281 = vpop.f32.mrf.mxu0
  %v4282 = vadd.f32 0.0, %v4281
  %4283 = vmatmul.bf16.gmra.mxu0 %v3817
  %v4284 = vpop.f32.mrf.mxu0
  %v4285 = vadd.f32 0.0, %v4284
  %v4286 = vpop.f32.mrf.mxu0
  %v4287 = vadd.f32 0.0, %v4286
  %4288 = vmatmul.bf16.gmra.mxu0 %v3819
  %v4289 = vpop.f32.mrf.mxu0
  %v4290 = vadd.f32 0.0, %v4289
  %v4291 = vpop.f32.mrf.mxu0
  %v4292 = vadd.f32 0.0, %v4291
  %4293 = vmatmul.bf16.gmra.mxu0 %v3821
  %v4294 = vpop.f32.mrf.mxu0
  %v4295 = vadd.f32 0.0, %v4294
  %v4296 = vpop.f32.mrf.mxu0
  %v4297 = vadd.f32 0.0, %v4296
  %4298 = vmatmul.bf16.gmra.mxu0 %v3823
  %v4299 = vpop.f32.mrf.mxu0
  %v4300 = vadd.f32 0.0, %v4299
  %v4301 = vpop.f32.mrf.mxu0
  %v4302 = vadd.f32 0.0, %v4301
  %4303 = vdwg.mxu0
  %4304 = vmatpush.bf16.msra.mxu0 %v4218
  %4305 = vmatpush.bf16.msra.mxu0 %v4217
  %4306 = vmatpush.bf16.msra.mxu0 %v4216
  %4307 = vmatpush.bf16.msra.mxu0 %v4215
  %4308 = vmatpush.bf16.msra.mxu0 %v4214
  %4309 = vmatpush.bf16.msra.mxu0 %v4213
  %4310 = vmatpush.bf16.msra.mxu0 %v4212
  %4311 = vmatpush.bf16.msra.mxu0 %v4211
  %4312 = vmatmul.bf16.gmra.mxu0 %v3802
  %v4313 = vpop.f32.mrf.mxu0
  %v4314 = vadd.f32 %v4245, %v4313
  %v4315 = vpop.f32.mrf.mxu0
  %v4316 = vadd.f32 %v4247, %v4315
  %4317 = vmatmul.bf16.gmra.mxu0 %v3804
  %v4318 = vpop.f32.mrf.mxu0
  %v4319 = vadd.f32 %v4250, %v4318
  %v4320 = vpop.f32.mrf.mxu0
  %v4321 = vadd.f32 %v4252, %v4320
  %4322 = vmatmul.bf16.gmra.mxu0 %v3806
  %v4323 = vpop.f32.mrf.mxu0
  %v4324 = vadd.f32 %v4255, %v4323
  %v4325 = vpop.f32.mrf.mxu0
  %v4326 = vadd.f32 %v4257, %v4325
  %4327 = vmatmul.bf16.gmra.mxu0 %v3808
  %v4328 = vpop.f32.mrf.mxu0
  %v4329 = vadd.f32 %v4260, %v4328
  %v4330 = vpop.f32.mrf.mxu0
  %v4331 = vadd.f32 %v4262, %v4330
  %4332 = vmatmul.bf16.gmra.mxu0 %v3810
  %v4333 = vpop.f32.mrf.mxu0
  %v4334 = vadd.f32 %v4265, %v4333
  %v4335 = vpop.f32.mrf.mxu0
  %v4336 = vadd.f32 %v4267, %v4335
  %4337 = vmatmul.bf16.gmra.mxu0 %v3812
  %v4338 = vpop.f32.mrf.mxu0
  %v4339 = vadd.f32 %v4270, %v4338
  %v4340 = vpop.f32.mrf.mxu0
  %v4341 = vadd.f32 %v4272, %v4340
  %4342 = vmatmul.bf16.gmra.mxu0 %v3814
  %v4343 = vpop.f32.mrf.mxu0
  %v4344 = vadd.f32 %v4275, %v4343
  %v4345 = vpop.f32.mrf.mxu0
  %v4346 = vadd.f32 %v4277, %v4345
  %4347 = vmatmul.bf16.gmra.mxu0 %v3816
  %v4348 = vpop.f32.mrf.mxu0
  %v4349 = vadd.f32 %v4280, %v4348
  %v4350 = vpop.f32.mrf.mxu0
  %v4351 = vadd.f32 %v4282, %v4350
  %4352 = vmatmul.bf16.gmra.mxu0 %v3818
  %v4353 = vpop.f32.mrf.mxu0
  %v4354 = vadd.f32 %v4285, %v4353
  %v4355 = vpop.f32.mrf.mxu0
  %v4356 = vadd.f32 %v4287, %v4355
  %4357 = vmatmul.bf16.gmra.mxu0 %v3820
  %v4358 = vpop.f32.mrf.mxu0
  %v4359 = vadd.f32 %v4290, %v4358
  %v4360 = vpop.f32.mrf.mxu0
  %v4361 = vadd.f32 %v4292, %v4360
  %4362 = vmatmul.bf16.gmra.mxu0 %v3822
  %v4363 = vpop.f32.mrf.mxu0
  %v4364 = vadd.f32 %v4295, %v4363
  %v4365 = vpop.f32.mrf.mxu0
  %v4366 = vadd.f32 %v4297, %v4365
  %4367 = vmatmul.bf16.gmra.mxu0 %v3824
  %v4368 = vpop.f32.mrf.mxu0
  %v4369 = vadd.f32 %v4300, %v4368
  %v4370 = vpop.f32.mrf.mxu0
  %v4371 = vadd.f32 %v4302, %v4370
  %4372 = vdwg.mxu0
  %v4397 = vrot.slane %v4314, 1
  %v4398 = vrot.slane %v4316, 1
  %v4399 = vsel %vm740, %v4397, %v4398
  %v4400 = vrot.slane %v4319, 1
  %v4401 = vrot.slane %v4321, 1
  %v4402 = vsel %vm740, %v4400, %v4401
  %v4403 = vrot.slane %v4324, 1
  %v4404 = vrot.slane %v4326, 1
  %v4405 = vsel %vm740, %v4403, %v4404
  %v4406 = vrot.slane %v4329, 1
  %v4407 = vrot.slane %v4331, 1
  %v4408 = vsel %vm740, %v4406, %v4407
  %v4409 = vrot.slane %v4334, 1
  %v4410 = vrot.slane %v4336, 1
  %v4411 = vsel %vm740, %v4409, %v4410
  %v4412 = vrot.slane %v4339, 1
  %v4413 = vrot.slane %v4341, 1
  %v4414 = vsel %vm740, %v4412, %v4413
  %v4415 = vrot.slane %v4344, 1
  %v4416 = vrot.slane %v4346, 1
  %v4417 = vsel %vm740, %v4415, %v4416
  %v4418 = vrot.slane %v4349, 1
  %v4419 = vrot.slane %v4351, 1
  %v4420 = vsel %vm740, %v4418, %v4419
  %v4421 = vrot.slane %v4354, 1
  %v4422 = vrot.slane %v4356, 1
  %v4423 = vsel %vm740, %v4421, %v4422
  %v4424 = vrot.slane %v4359, 1
  %v4425 = vrot.slane %v4361, 1
  %v4426 = vsel %vm740, %v4424, %v4425
  %v4427 = vrot.slane %v4364, 1
  %v4428 = vrot.slane %v4366, 1
  %v4429 = vsel %vm740, %v4427, %v4428
  %v4430 = vrot.slane %v4369, 1
  %v4431 = vrot.slane %v4371, 1
  %v4432 = vsel %vm740, %v4430, %v4431
  %v4457 = vadd.f32 %v4083, %v4399
  %v4458 = vadd.f32 %v4084, %v4398
  %v4459 = vadd.f32 %v4085, %v4402
  %v4460 = vadd.f32 %v4086, %v4401
  %v4461 = vadd.f32 %v4087, %v4405
  %v4462 = vadd.f32 %v4088, %v4404
  %v4463 = vadd.f32 %v4089, %v4408
  %v4464 = vadd.f32 %v4090, %v4407
  %v4465 = vadd.f32 %v4091, %v4411
  %v4466 = vadd.f32 %v4092, %v4410
  %v4467 = vadd.f32 %v4093, %v4414
  %v4468 = vadd.f32 %v4094, %v4413
  %v4469 = vadd.f32 %v4095, %v4417
  %v4470 = vadd.f32 %v4096, %v4416
  %v4471 = vadd.f32 %v4097, %v4420
  %v4472 = vadd.f32 %v4098, %v4419
  %v4473 = vadd.f32 %v4099, %v4423
  %v4474 = vadd.f32 %v4100, %v4422
  %v4475 = vadd.f32 %v4101, %v4426
  %v4476 = vadd.f32 %v4102, %v4425
  %v4477 = vadd.f32 %v4103, %v4429
  %v4478 = vadd.f32 %v4104, %v4428
  %v4479 = vadd.f32 %v4105, %v4432
  %v4480 = vadd.f32 %v4106, %v4431
  %v4481 = vld [vmem:[%s825] sm:$0xf]
  %v4482 = vld [vmem:[%s825 + $0x4] sm:$0xf]
  %v4483 = vld [vmem:[%s825 + $0x8] sm:$0xf]
  %v4484 = vld [vmem:[%s825 + $0xc] sm:$0xf]
  %v4485 = vld [vmem:[%s825 + $0x10] sm:$0xf]
  %v4486 = vld [vmem:[%s825 + $0x14] sm:$0xf]
  %v4487 = vld [vmem:[%s825 + $0x18] sm:$0xf]
  %v4488 = vld [vmem:[%s825 + $0x1c] sm:$0xf]
  %v4489 = vld [vmem:[%s825 + $0x20] sm:$0xf]
  %v4490 = vld [vmem:[%s825 + $0x24] sm:$0xf]
  %v4491 = vld [vmem:[%s825 + $0x28] sm:$0xf]
  %v4492 = vld [vmem:[%s825 + $0x2c] sm:$0xf]
  %v4493 = vld [vmem:[%s825 + $0x30] sm:$0xf]
  %v4494 = vld [vmem:[%s825 + $0x34] sm:$0xf]
  %v4495 = vld [vmem:[%s825 + $0x38] sm:$0xf]
  %v4496 = vld [vmem:[%s825 + $0x3c] sm:$0xf]
  %v4497 = vld [vmem:[%s825 + $0x40] sm:$0xf]
  %v4498 = vld [vmem:[%s825 + $0x44] sm:$0xf]
  %v4499 = vld [vmem:[%s825 + $0x48] sm:$0xf]
  %v4500 = vld [vmem:[%s825 + $0x4c] sm:$0xf]
  %v4501 = vld [vmem:[%s825 + $0x50] sm:$0xf]
  %v4502 = vld [vmem:[%s825 + $0x54] sm:$0xf]
  %v4503 = vld [vmem:[%s825 + $0x58] sm:$0xf]
  %v4504 = vld [vmem:[%s825 + $0x5c] sm:$0xf]
  %v4505 = vld [vmem:[%s825 + $0x60] sm:$0xf]
  %v4506 = vld [vmem:[%s825 + $0x64] sm:$0xf]
  %v4507 = vld [vmem:[%s825 + $0x68] sm:$0xf]
  %v4508 = vld [vmem:[%s825 + $0x6c] sm:$0xf]
  %v4509 = vld [vmem:[%s825 + $0x70] sm:$0xf]
  %v4510 = vld [vmem:[%s825 + $0x74] sm:$0xf]
  %v4511 = vld [vmem:[%s825 + $0x78] sm:$0xf]
  %v4512 = vld [vmem:[%s825 + $0x7c] sm:$0xf]
  %v4545 = vunpack.c.l.b16 %v4481
  %v4546 = vunpack.c.l.b16 %v4482
  %v4547 = vunpack.c.l.b16 %v4483
  %v4548 = vunpack.c.l.b16 %v4484
  %v4549 = vunpack.c.l.b16 %v4485
  %v4550 = vunpack.c.l.b16 %v4486
  %v4551 = vunpack.c.l.b16 %v4487
  %v4552 = vunpack.c.l.b16 %v4488
  %v4553 = vunpack.c.l.b16 %v4489
  %v4554 = vunpack.c.l.b16 %v4490
  %v4555 = vunpack.c.l.b16 %v4491
  %v4556 = vunpack.c.l.b16 %v4492
  %v4557 = vunpack.c.l.b16 %v4493
  %v4558 = vunpack.c.l.b16 %v4494
  %v4559 = vunpack.c.l.b16 %v4495
  %v4560 = vunpack.c.l.b16 %v4496
  %v4561 = vunpack.c.l.b16 %v4497
  %v4562 = vunpack.c.l.b16 %v4498
  %v4563 = vunpack.c.l.b16 %v4499
  %v4564 = vunpack.c.l.b16 %v4500
  %v4565 = vunpack.c.l.b16 %v4501
  %v4566 = vunpack.c.l.b16 %v4502
  %v4567 = vunpack.c.l.b16 %v4503
  %v4568 = vunpack.c.l.b16 %v4504
  %v4569 = vunpack.c.l.b16 %v4505
  %v4570 = vunpack.c.l.b16 %v4506
  %v4571 = vunpack.c.l.b16 %v4507
  %v4572 = vunpack.c.l.b16 %v4508
  %v4573 = vunpack.c.l.b16 %v4509
  %v4574 = vunpack.c.l.b16 %v4510
  %v4575 = vunpack.c.l.b16 %v4511
  %v4576 = vunpack.c.l.b16 %v4512
  %v4577 = vpack.c.b16 %v4546, %v4545
  %v4578 = vpack.c.b16 %v4548, %v4547
  %v4579 = vpack.c.b16 %v4550, %v4549
  %v4580 = vpack.c.b16 %v4552, %v4551
  %v4581 = vpack.c.b16 %v4554, %v4553
  %v4582 = vpack.c.b16 %v4556, %v4555
  %v4583 = vpack.c.b16 %v4558, %v4557
  %v4584 = vpack.c.b16 %v4560, %v4559
  %v4585 = vpack.c.b16 %v4562, %v4561
  %v4586 = vpack.c.b16 %v4564, %v4563
  %v4587 = vpack.c.b16 %v4566, %v4565
  %v4588 = vpack.c.b16 %v4568, %v4567
  %v4589 = vpack.c.b16 %v4570, %v4569
  %v4590 = vpack.c.b16 %v4572, %v4571
  %v4591 = vpack.c.b16 %v4574, %v4573
  %v4592 = vpack.c.b16 %v4576, %v4575
  %4609 = vmatpush.bf16.msra.mxu0 %v4584
  %4610 = vmatpush.bf16.msra.mxu0 %v4583
  %4611 = vmatpush.bf16.msra.mxu0 %v4582
  %4612 = vmatpush.bf16.msra.mxu0 %v4581
  %4613 = vmatpush.bf16.msra.mxu0 %v4580
  %4614 = vmatpush.bf16.msra.mxu0 %v4579
  %4615 = vmatpush.bf16.msra.mxu0 %v4578
  %4616 = vmatpush.bf16.msra.mxu0 %v4577
  %4617 = vmatmul.bf16.gmra.mxu0 %v3801
  %v4618 = vpop.f32.mrf.mxu0
  %v4619 = vadd.f32 0.0, %v4618
  %v4620 = vpop.f32.mrf.mxu0
  %v4621 = vadd.f32 0.0, %v4620
  %4622 = vmatmul.bf16.gmra.mxu0 %v3803
  %v4623 = vpop.f32.mrf.mxu0
  %v4624 = vadd.f32 0.0, %v4623
  %v4625 = vpop.f32.mrf.mxu0
  %v4626 = vadd.f32 0.0, %v4625
  %4627 = vmatmul.bf16.gmra.mxu0 %v3805
  %v4628 = vpop.f32.mrf.mxu0
  %v4629 = vadd.f32 0.0, %v4628
  %v4630 = vpop.f32.mrf.mxu0
  %v4631 = vadd.f32 0.0, %v4630
  %4632 = vmatmul.bf16.gmra.mxu0 %v3807
  %v4633 = vpop.f32.mrf.mxu0
  %v4634 = vadd.f32 0.0, %v4633
  %v4635 = vpop.f32.mrf.mxu0
  %v4636 = vadd.f32 0.0, %v4635
  %4637 = vmatmul.bf16.gmra.mxu0 %v3809
  %v4638 = vpop.f32.mrf.mxu0
  %v4639 = vadd.f32 0.0, %v4638
  %v4640 = vpop.f32.mrf.mxu0
  %v4641 = vadd.f32 0.0, %v4640
  %4642 = vmatmul.bf16.gmra.mxu0 %v3811
  %v4643 = vpop.f32.mrf.mxu0
  %v4644 = vadd.f32 0.0, %v4643
  %v4645 = vpop.f32.mrf.mxu0
  %v4646 = vadd.f32 0.0, %v4645
  %4647 = vmatmul.bf16.gmra.mxu0 %v3813
  %v4648 = vpop.f32.mrf.mxu0
  %v4649 = vadd.f32 0.0, %v4648
  %v4650 = vpop.f32.mrf.mxu0
  %v4651 = vadd.f32 0.0, %v4650
  %4652 = vmatmul.bf16.gmra.mxu0 %v3815
  %v4653 = vpop.f32.mrf.mxu0
  %v4654 = vadd.f32 0.0, %v4653
  %v4655 = vpop.f32.mrf.mxu0
  %v4656 = vadd.f32 0.0, %v4655
  %4657 = vmatmul.bf16.gmra.mxu0 %v3817
  %v4658 = vpop.f32.mrf.mxu0
  %v4659 = vadd.f32 0.0, %v4658
  %v4660 = vpop.f32.mrf.mxu0
  %v4661 = vadd.f32 0.0, %v4660
  %4662 = vmatmul.bf16.gmra.mxu0 %v3819
  %v4663 = vpop.f32.mrf.mxu0
  %v4664 = vadd.f32 0.0, %v4663
  %v4665 = vpop.f32.mrf.mxu0
  %v4666 = vadd.f32 0.0, %v4665
  %4667 = vmatmul.bf16.gmra.mxu0 %v3821
  %v4668 = vpop.f32.mrf.mxu0
  %v4669 = vadd.f32 0.0, %v4668
  %v4670 = vpop.f32.mrf.mxu0
  %v4671 = vadd.f32 0.0, %v4670
  %4672 = vmatmul.bf16.gmra.mxu0 %v3823
  %v4673 = vpop.f32.mrf.mxu0
  %v4674 = vadd.f32 0.0, %v4673
  %v4675 = vpop.f32.mrf.mxu0
  %v4676 = vadd.f32 0.0, %v4675
  %4677 = vdwg.mxu0
  %4678 = vmatpush.bf16.msra.mxu0 %v4592
  %4679 = vmatpush.bf16.msra.mxu0 %v4591
  %4680 = vmatpush.bf16.msra.mxu0 %v4590
  %4681 = vmatpush.bf16.msra.mxu0 %v4589
  %4682 = vmatpush.bf16.msra.mxu0 %v4588
  %4683 = vmatpush.bf16.msra.mxu0 %v4587
  %4684 = vmatpush.bf16.msra.mxu0 %v4586
  %4685 = vmatpush.bf16.msra.mxu0 %v4585
  %4686 = vmatmul.bf16.gmra.mxu0 %v3802
  %v4687 = vpop.f32.mrf.mxu0
  %v4688 = vadd.f32 %v4619, %v4687
  %v4689 = vpop.f32.mrf.mxu0
  %v4690 = vadd.f32 %v4621, %v4689
  %4691 = vmatmul.bf16.gmra.mxu0 %v3804
  %v4692 = vpop.f32.mrf.mxu0
  %v4693 = vadd.f32 %v4624, %v4692
  %v4694 = vpop.f32.mrf.mxu0
  %v4695 = vadd.f32 %v4626, %v4694
  %4696 = vmatmul.bf16.gmra.mxu0 %v3806
  %v4697 = vpop.f32.mrf.mxu0
  %v4698 = vadd.f32 %v4629, %v4697
  %v4699 = vpop.f32.mrf.mxu0
  %v4700 = vadd.f32 %v4631, %v4699
  %4701 = vmatmul.bf16.gmra.mxu0 %v3808
  %v4702 = vpop.f32.mrf.mxu0
  %v4703 = vadd.f32 %v4634, %v4702
  %v4704 = vpop.f32.mrf.mxu0
  %v4705 = vadd.f32 %v4636, %v4704
  %4706 = vmatmul.bf16.gmra.mxu0 %v3810
  %v4707 = vpop.f32.mrf.mxu0
  %v4708 = vadd.f32 %v4639, %v4707
  %v4709 = vpop.f32.mrf.mxu0
  %v4710 = vadd.f32 %v4641, %v4709
  %4711 = vmatmul.bf16.gmra.mxu0 %v3812
  %v4712 = vpop.f32.mrf.mxu0
  %v4713 = vadd.f32 %v4644, %v4712
  %v4714 = vpop.f32.mrf.mxu0
  %v4715 = vadd.f32 %v4646, %v4714
  %4716 = vmatmul.bf16.gmra.mxu0 %v3814
  %v4717 = vpop.f32.mrf.mxu0
  %v4718 = vadd.f32 %v4649, %v4717
  %v4719 = vpop.f32.mrf.mxu0
  %v4720 = vadd.f32 %v4651, %v4719
  %4721 = vmatmul.bf16.gmra.mxu0 %v3816
  %v4722 = vpop.f32.mrf.mxu0
  %v4723 = vadd.f32 %v4654, %v4722
  %v4724 = vpop.f32.mrf.mxu0
  %v4725 = vadd.f32 %v4656, %v4724
  %4726 = vmatmul.bf16.gmra.mxu0 %v3818
  %v4727 = vpop.f32.mrf.mxu0
  %v4728 = vadd.f32 %v4659, %v4727
  %v4729 = vpop.f32.mrf.mxu0
  %v4730 = vadd.f32 %v4661, %v4729
  %4731 = vmatmul.bf16.gmra.mxu0 %v3820
  %v4732 = vpop.f32.mrf.mxu0
  %v4733 = vadd.f32 %v4664, %v4732
  %v4734 = vpop.f32.mrf.mxu0
  %v4735 = vadd.f32 %v4666, %v4734
  %4736 = vmatmul.bf16.gmra.mxu0 %v3822
  %v4737 = vpop.f32.mrf.mxu0
  %v4738 = vadd.f32 %v4669, %v4737
  %v4739 = vpop.f32.mrf.mxu0
  %v4740 = vadd.f32 %v4671, %v4739
  %4741 = vmatmul.bf16.gmra.mxu0 %v3824
  %v4742 = vpop.f32.mrf.mxu0
  %v4743 = vadd.f32 %v4674, %v4742
  %v4744 = vpop.f32.mrf.mxu0
  %v4745 = vadd.f32 %v4676, %v4744
  %4746 = vdwg.mxu0
  %v4771 = vrot.slane %v4688, 2
  %v4772 = vrot.slane %v4690, 2
  %v4773 = vsel %vm1116, %v4771, %v4772
  %v4774 = vrot.slane %v4693, 2
  %v4775 = vrot.slane %v4695, 2
  %v4776 = vsel %vm1116, %v4774, %v4775
  %v4777 = vrot.slane %v4698, 2
  %v4778 = vrot.slane %v4700, 2
  %v4779 = vsel %vm1116, %v4777, %v4778
  %v4780 = vrot.slane %v4703, 2
  %v4781 = vrot.slane %v4705, 2
  %v4782 = vsel %vm1116, %v4780, %v4781
  %v4783 = vrot.slane %v4708, 2
  %v4784 = vrot.slane %v4710, 2
  %v4785 = vsel %vm1116, %v4783, %v4784
  %v4786 = vrot.slane %v4713, 2
  %v4787 = vrot.slane %v4715, 2
  %v4788 = vsel %vm1116, %v4786, %v4787
  %v4789 = vrot.slane %v4718, 2
  %v4790 = vrot.slane %v4720, 2
  %v4791 = vsel %vm1116, %v4789, %v4790
  %v4792 = vrot.slane %v4723, 2
  %v4793 = vrot.slane %v4725, 2
  %v4794 = vsel %vm1116, %v4792, %v4793
  %v4795 = vrot.slane %v4728, 2
  %v4796 = vrot.slane %v4730, 2
  %v4797 = vsel %vm1116, %v4795, %v4796
  %v4798 = vrot.slane %v4733, 2
  %v4799 = vrot.slane %v4735, 2
  %v4800 = vsel %vm1116, %v4798, %v4799
  %v4801 = vrot.slane %v4738, 2
  %v4802 = vrot.slane %v4740, 2
  %v4803 = vsel %vm1116, %v4801, %v4802
  %v4804 = vrot.slane %v4743, 2
  %v4805 = vrot.slane %v4745, 2
  %v4806 = vsel %vm1116, %v4804, %v4805
  %v4831 = vadd.f32 %v4457, %v4773
  %v4832 = vadd.f32 %v4458, %v4772
  %v4833 = vadd.f32 %v4459, %v4776
  %v4834 = vadd.f32 %v4460, %v4775
  %v4835 = vadd.f32 %v4461, %v4779
  %v4836 = vadd.f32 %v4462, %v4778
  %v4837 = vadd.f32 %v4463, %v4782
  %v4838 = vadd.f32 %v4464, %v4781
  %v4839 = vadd.f32 %v4465, %v4785
  %v4840 = vadd.f32 %v4466, %v4784
  %v4841 = vadd.f32 %v4467, %v4788
  %v4842 = vadd.f32 %v4468, %v4787
  %v4843 = vadd.f32 %v4469, %v4791
  %v4844 = vadd.f32 %v4470, %v4790
  %v4845 = vadd.f32 %v4471, %v4794
  %v4846 = vadd.f32 %v4472, %v4793
  %v4847 = vadd.f32 %v4473, %v4797
  %v4848 = vadd.f32 %v4474, %v4796
  %v4849 = vadd.f32 %v4475, %v4800
  %v4850 = vadd.f32 %v4476, %v4799
  %v4851 = vadd.f32 %v4477, %v4803
  %v4852 = vadd.f32 %v4478, %v4802
  %v4853 = vadd.f32 %v4479, %v4806
  %v4854 = vadd.f32 %v4480, %v4805
  %v4855 = vld [vmem:[%s3672 + $0x10] sm:$0xff]
  %v4856 = vld [vmem:[%s3672 + $0x18] sm:$0xff]
  %v4857 = vld [vmem:[%s3672 + $0x20] sm:$0xff]
  %v4858 = vld [vmem:[%s3672 + $0x28] sm:$0xff]
  %v4859 = vld [vmem:[%s3672 + $0x30] sm:$0xff]
  %v4860 = vld [vmem:[%s3672 + $0x38] sm:$0xff]
  %v4861 = vld [vmem:[%s3672 + $0x40] sm:$0xff]
  %v4862 = vld [vmem:[%s3672 + $0x48] sm:$0xff]
  %v4863 = vld [vmem:[%s3672 + $0x50] sm:$0xff]
  %v4864 = vld [vmem:[%s3672 + $0x58] sm:$0xff]
  %v4865 = vld [vmem:[%s3672 + $0x60] sm:$0xff]
  %v4866 = vld [vmem:[%s3672 + $0x68] sm:$0xff]
  %v4867 = vld [vmem:[%s3672 + $0x70] sm:$0xff]
  %v4868 = vld [vmem:[%s3672 + $0x78] sm:$0xff]
  %v4869 = vld [vmem:[%s3672 + $0x80] sm:$0xff]
  %v4870 = vld [vmem:[%s3672 + $0x88] sm:$0xff]
  %v4871 = vld [vmem:[%s3672 + $0x90] sm:$0xff]
  %v4872 = vld [vmem:[%s3672 + $0x98] sm:$0xff]
  %v4873 = vld [vmem:[%s3672 + $0xa0] sm:$0xff]
  %v4874 = vld [vmem:[%s3672 + $0xa8] sm:$0xff]
  %v4875 = vld [vmem:[%s3672 + $0xb0] sm:$0xff]
  %v4876 = vld [vmem:[%s3672 + $0xb8] sm:$0xff]
  %v4877 = vld [vmem:[%s3672 + $0xc0] sm:$0xff]
  %v4878 = vld [vmem:[%s3672 + $0xc8] sm:$0xff]
  %v4879 = vld [vmem:[%s1225] sm:$0xf]
  %v4880 = vld [vmem:[%s1225 + $0x4] sm:$0xf]
  %v4881 = vld [vmem:[%s1225 + $0x8] sm:$0xf]
  %v4882 = vld [vmem:[%s1225 + $0xc] sm:$0xf]
  %v4883 = vld [vmem:[%s1225 + $0x10] sm:$0xf]
  %v4884 = vld [vmem:[%s1225 + $0x14] sm:$0xf]
  %v4885 = vld [vmem:[%s1225 + $0x18] sm:$0xf]
  %v4886 = vld [vmem:[%s1225 + $0x1c] sm:$0xf]
  %v4887 = vld [vmem:[%s1225 + $0x20] sm:$0xf]
  %v4888 = vld [vmem:[%s1225 + $0x24] sm:$0xf]
  %v4889 = vld [vmem:[%s1225 + $0x28] sm:$0xf]
  %v4890 = vld [vmem:[%s1225 + $0x2c] sm:$0xf]
  %v4891 = vld [vmem:[%s1225 + $0x30] sm:$0xf]
  %v4892 = vld [vmem:[%s1225 + $0x34] sm:$0xf]
  %v4893 = vld [vmem:[%s1225 + $0x38] sm:$0xf]
  %v4894 = vld [vmem:[%s1225 + $0x3c] sm:$0xf]
  %v4895 = vld [vmem:[%s1225 + $0x40] sm:$0xf]
  %v4896 = vld [vmem:[%s1225 + $0x44] sm:$0xf]
  %v4897 = vld [vmem:[%s1225 + $0x48] sm:$0xf]
  %v4898 = vld [vmem:[%s1225 + $0x4c] sm:$0xf]
  %v4899 = vld [vmem:[%s1225 + $0x50] sm:$0xf]
  %v4900 = vld [vmem:[%s1225 + $0x54] sm:$0xf]
  %v4901 = vld [vmem:[%s1225 + $0x58] sm:$0xf]
  %v4902 = vld [vmem:[%s1225 + $0x5c] sm:$0xf]
  %v4903 = vld [vmem:[%s1225 + $0x60] sm:$0xf]
  %v4904 = vld [vmem:[%s1225 + $0x64] sm:$0xf]
  %v4905 = vld [vmem:[%s1225 + $0x68] sm:$0xf]
  %v4906 = vld [vmem:[%s1225 + $0x6c] sm:$0xf]
  %v4907 = vld [vmem:[%s1225 + $0x70] sm:$0xf]
  %v4908 = vld [vmem:[%s1225 + $0x74] sm:$0xf]
  %v4909 = vld [vmem:[%s1225 + $0x78] sm:$0xf]
  %v4910 = vld [vmem:[%s1225 + $0x7c] sm:$0xf]
  %v4935 = vunpack.c.l.b16 %v4855
  %v4936 = vunpack.c.h.b16 %v4855
  %v4937 = vunpack.c.l.b16 %v4856
  %v4938 = vunpack.c.h.b16 %v4856
  %v4939 = vunpack.c.l.b16 %v4857
  %v4940 = vunpack.c.h.b16 %v4857
  %v4941 = vunpack.c.l.b16 %v4858
  %v4942 = vunpack.c.h.b16 %v4858
  %v4943 = vunpack.c.l.b16 %v4859
  %v4944 = vunpack.c.h.b16 %v4859
  %v4945 = vunpack.c.l.b16 %v4860
  %v4946 = vunpack.c.h.b16 %v4860
  %v4947 = vunpack.c.l.b16 %v4861
  %v4948 = vunpack.c.h.b16 %v4861
  %v4949 = vunpack.c.l.b16 %v4862
  %v4950 = vunpack.c.h.b16 %v4862
  %v4951 = vunpack.c.l.b16 %v4863
  %v4952 = vunpack.c.h.b16 %v4863
  %v4953 = vunpack.c.l.b16 %v4864
  %v4954 = vunpack.c.h.b16 %v4864
  %v4955 = vunpack.c.l.b16 %v4865
  %v4956 = vunpack.c.h.b16 %v4865
  %v4957 = vunpack.c.l.b16 %v4866
  %v4958 = vunpack.c.h.b16 %v4866
  %v4959 = vunpack.c.l.b16 %v4867
  %v4960 = vunpack.c.h.b16 %v4867
  %v4961 = vunpack.c.l.b16 %v4868
  %v4962 = vunpack.c.h.b16 %v4868
  %v4963 = vunpack.c.l.b16 %v4869
  %v4964 = vunpack.c.h.b16 %v4869
  %v4965 = vunpack.c.l.b16 %v4870
  %v4966 = vunpack.c.h.b16 %v4870
  %v4967 = vunpack.c.l.b16 %v4871
  %v4968 = vunpack.c.h.b16 %v4871
  %v4969 = vunpack.c.l.b16 %v4872
  %v4970 = vunpack.c.h.b16 %v4872
  %v4971 = vunpack.c.l.b16 %v4873
  %v4972 = vunpack.c.h.b16 %v4873
  %v4973 = vunpack.c.l.b16 %v4874
  %v4974 = vunpack.c.h.b16 %v4874
  %v4975 = vunpack.c.l.b16 %v4875
  %v4976 = vunpack.c.h.b16 %v4875
  %v4977 = vunpack.c.l.b16 %v4876
  %v4978 = vunpack.c.h.b16 %v4876
  %v4979 = vunpack.c.l.b16 %v4877
  %v4980 = vunpack.c.h.b16 %v4877
  %v4981 = vunpack.c.l.b16 %v4878
  %v4982 = vunpack.c.h.b16 %v4878
  %v4983 = vpack.c.b16 %v4937, %v4935
  %v4984 = vpack.c.b16 %v4938, %v4936
  %v4985 = vpack.c.b16 %v4941, %v4939
  %v4986 = vpack.c.b16 %v4942, %v4940
  %v4987 = vpack.c.b16 %v4945, %v4943
  %v4988 = vpack.c.b16 %v4946, %v4944
  %v4989 = vpack.c.b16 %v4949, %v4947
  %v4990 = vpack.c.b16 %v4950, %v4948
  %v4991 = vpack.c.b16 %v4953, %v4951
  %v4992 = vpack.c.b16 %v4954, %v4952
  %v4993 = vpack.c.b16 %v4957, %v4955
  %v4994 = vpack.c.b16 %v4958, %v4956
  %v4995 = vpack.c.b16 %v4961, %v4959
  %v4996 = vpack.c.b16 %v4962, %v4960
  %v4997 = vpack.c.b16 %v4965, %v4963
  %v4998 = vpack.c.b16 %v4966, %v4964
  %v4999 = vpack.c.b16 %v4969, %v4967
  %v5000 = vpack.c.b16 %v4970, %v4968
  %v5001 = vpack.c.b16 %v4973, %v4971
  %v5002 = vpack.c.b16 %v4974, %v4972
  %v5003 = vpack.c.b16 %v4977, %v4975
  %v5004 = vpack.c.b16 %v4978, %v4976
  %v5005 = vpack.c.b16 %v4981, %v4979
  %v5006 = vpack.c.b16 %v4982, %v4980
  %v5063 = vunpack.c.l.b16 %v4879
  %v5064 = vunpack.c.l.b16 %v4880
  %v5065 = vunpack.c.l.b16 %v4881
  %v5066 = vunpack.c.l.b16 %v4882
  %v5067 = vunpack.c.l.b16 %v4883
  %v5068 = vunpack.c.l.b16 %v4884
  %v5069 = vunpack.c.l.b16 %v4885
  %v5070 = vunpack.c.l.b16 %v4886
  %v5071 = vunpack.c.l.b16 %v4887
  %v5072 = vunpack.c.l.b16 %v4888
  %v5073 = vunpack.c.l.b16 %v4889
  %v5074 = vunpack.c.l.b16 %v4890
  %v5075 = vunpack.c.l.b16 %v4891
  %v5076 = vunpack.c.l.b16 %v4892
  %v5077 = vunpack.c.l.b16 %v4893
  %v5078 = vunpack.c.l.b16 %v4894
  %v5079 = vunpack.c.l.b16 %v4895
  %v5080 = vunpack.c.l.b16 %v4896
  %v5081 = vunpack.c.l.b16 %v4897
  %v5082 = vunpack.c.l.b16 %v4898
  %v5083 = vunpack.c.l.b16 %v4899
  %v5084 = vunpack.c.l.b16 %v4900
  %v5085 = vunpack.c.l.b16 %v4901
  %v5086 = vunpack.c.l.b16 %v4902
  %v5087 = vunpack.c.l.b16 %v4903
  %v5088 = vunpack.c.l.b16 %v4904
  %v5089 = vunpack.c.l.b16 %v4905
  %v5090 = vunpack.c.l.b16 %v4906
  %v5091 = vunpack.c.l.b16 %v4907
  %v5092 = vunpack.c.l.b16 %v4908
  %v5093 = vunpack.c.l.b16 %v4909
  %v5094 = vunpack.c.l.b16 %v4910
  %v5095 = vpack.c.b16 %v5064, %v5063
  %v5096 = vpack.c.b16 %v5066, %v5065
  %v5097 = vpack.c.b16 %v5068, %v5067
  %v5098 = vpack.c.b16 %v5070, %v5069
  %v5099 = vpack.c.b16 %v5072, %v5071
  %v5100 = vpack.c.b16 %v5074, %v5073
  %v5101 = vpack.c.b16 %v5076, %v5075
  %v5102 = vpack.c.b16 %v5078, %v5077
  %v5103 = vpack.c.b16 %v5080, %v5079
  %v5104 = vpack.c.b16 %v5082, %v5081
  %v5105 = vpack.c.b16 %v5084, %v5083
  %v5106 = vpack.c.b16 %v5086, %v5085
  %v5107 = vpack.c.b16 %v5088, %v5087
  %v5108 = vpack.c.b16 %v5090, %v5089
  %v5109 = vpack.c.b16 %v5092, %v5091
  %v5110 = vpack.c.b16 %v5094, %v5093
  %5127 = vmatpush.bf16.msra.mxu0 %v5102
  %5128 = vmatpush.bf16.msra.mxu0 %v5101
  %5129 = vmatpush.bf16.msra.mxu0 %v5100
  %5130 = vmatpush.bf16.msra.mxu0 %v5099
  %5131 = vmatpush.bf16.msra.mxu0 %v5098
  %5132 = vmatpush.bf16.msra.mxu0 %v5097
  %5133 = vmatpush.bf16.msra.mxu0 %v5096
  %5134 = vmatpush.bf16.msra.mxu0 %v5095
  %5135 = vmatmul.bf16.gmra.mxu0 %v4983
  %v5136 = vpop.f32.mrf.mxu0
  %v5137 = vadd.f32 0.0, %v5136
  %v5138 = vpop.f32.mrf.mxu0
  %v5139 = vadd.f32 0.0, %v5138
  %5140 = vmatmul.bf16.gmra.mxu0 %v4985
  %v5141 = vpop.f32.mrf.mxu0
  %v5142 = vadd.f32 0.0, %v5141
  %v5143 = vpop.f32.mrf.mxu0
  %v5144 = vadd.f32 0.0, %v5143
  %5145 = vmatmul.bf16.gmra.mxu0 %v4987
  %v5146 = vpop.f32.mrf.mxu0
  %v5147 = vadd.f32 0.0, %v5146
  %v5148 = vpop.f32.mrf.mxu0
  %v5149 = vadd.f32 0.0, %v5148
  %5150 = vmatmul.bf16.gmra.mxu0 %v4989
  %v5151 = vpop.f32.mrf.mxu0
  %v5152 = vadd.f32 0.0, %v5151
  %v5153 = vpop.f32.mrf.mxu0
  %v5154 = vadd.f32 0.0, %v5153
  %5155 = vmatmul.bf16.gmra.mxu0 %v4991
  %v5156 = vpop.f32.mrf.mxu0
  %v5157 = vadd.f32 0.0, %v5156
  %v5158 = vpop.f32.mrf.mxu0
  %v5159 = vadd.f32 0.0, %v5158
  %5160 = vmatmul.bf16.gmra.mxu0 %v4993
  %v5161 = vpop.f32.mrf.mxu0
  %v5162 = vadd.f32 0.0, %v5161
  %v5163 = vpop.f32.mrf.mxu0
  %v5164 = vadd.f32 0.0, %v5163
  %5165 = vmatmul.bf16.gmra.mxu0 %v4995
  %v5166 = vpop.f32.mrf.mxu0
  %v5167 = vadd.f32 0.0, %v5166
  %v5168 = vpop.f32.mrf.mxu0
  %v5169 = vadd.f32 0.0, %v5168
  %5170 = vmatmul.bf16.gmra.mxu0 %v4997
  %v5171 = vpop.f32.mrf.mxu0
  %v5172 = vadd.f32 0.0, %v5171
  %v5173 = vpop.f32.mrf.mxu0
  %v5174 = vadd.f32 0.0, %v5173
  %5175 = vmatmul.bf16.gmra.mxu0 %v4999
  %v5176 = vpop.f32.mrf.mxu0
  %v5177 = vadd.f32 0.0, %v5176
  %v5178 = vpop.f32.mrf.mxu0
  %v5179 = vadd.f32 0.0, %v5178
  %5180 = vmatmul.bf16.gmra.mxu0 %v5001
  %v5181 = vpop.f32.mrf.mxu0
  %v5182 = vadd.f32 0.0, %v5181
  %v5183 = vpop.f32.mrf.mxu0
  %v5184 = vadd.f32 0.0, %v5183
  %5185 = vmatmul.bf16.gmra.mxu0 %v5003
  %v5186 = vpop.f32.mrf.mxu0
  %v5187 = vadd.f32 0.0, %v5186
  %v5188 = vpop.f32.mrf.mxu0
  %v5189 = vadd.f32 0.0, %v5188
  %5190 = vmatmul.bf16.gmra.mxu0 %v5005
  %v5191 = vpop.f32.mrf.mxu0
  %v5192 = vadd.f32 0.0, %v5191
  %v5193 = vpop.f32.mrf.mxu0
  %v5194 = vadd.f32 0.0, %v5193
  %5195 = vdwg.mxu0
  %5196 = vmatpush.bf16.msra.mxu0 %v5110
  %5197 = vmatpush.bf16.msra.mxu0 %v5109
  %5198 = vmatpush.bf16.msra.mxu0 %v5108
  %5199 = vmatpush.bf16.msra.mxu0 %v5107
  %5200 = vmatpush.bf16.msra.mxu0 %v5106
  %5201 = vmatpush.bf16.msra.mxu0 %v5105
  %5202 = vmatpush.bf16.msra.mxu0 %v5104
  %5203 = vmatpush.bf16.msra.mxu0 %v5103
  %5204 = vmatmul.bf16.gmra.mxu0 %v4984
  %v5205 = vpop.f32.mrf.mxu0
  %v5206 = vadd.f32 %v5137, %v5205
  %v5207 = vpop.f32.mrf.mxu0
  %v5208 = vadd.f32 %v5139, %v5207
  %5209 = vmatmul.bf16.gmra.mxu0 %v4986
  %v5210 = vpop.f32.mrf.mxu0
  %v5211 = vadd.f32 %v5142, %v5210
  %v5212 = vpop.f32.mrf.mxu0
  %v5213 = vadd.f32 %v5144, %v5212
  %5214 = vmatmul.bf16.gmra.mxu0 %v4988
  %v5215 = vpop.f32.mrf.mxu0
  %v5216 = vadd.f32 %v5147, %v5215
  %v5217 = vpop.f32.mrf.mxu0
  %v5218 = vadd.f32 %v5149, %v5217
  %5219 = vmatmul.bf16.gmra.mxu0 %v4990
  %v5220 = vpop.f32.mrf.mxu0
  %v5221 = vadd.f32 %v5152, %v5220
  %v5222 = vpop.f32.mrf.mxu0
  %v5223 = vadd.f32 %v5154, %v5222
  %5224 = vmatmul.bf16.gmra.mxu0 %v4992
  %v5225 = vpop.f32.mrf.mxu0
  %v5226 = vadd.f32 %v5157, %v5225
  %v5227 = vpop.f32.mrf.mxu0
  %v5228 = vadd.f32 %v5159, %v5227
  %5229 = vmatmul.bf16.gmra.mxu0 %v4994
  %v5230 = vpop.f32.mrf.mxu0
  %v5231 = vadd.f32 %v5162, %v5230
  %v5232 = vpop.f32.mrf.mxu0
  %v5233 = vadd.f32 %v5164, %v5232
  %5234 = vmatmul.bf16.gmra.mxu0 %v4996
  %v5235 = vpop.f32.mrf.mxu0
  %v5236 = vadd.f32 %v5167, %v5235
  %v5237 = vpop.f32.mrf.mxu0
  %v5238 = vadd.f32 %v5169, %v5237
  %5239 = vmatmul.bf16.gmra.mxu0 %v4998
  %v5240 = vpop.f32.mrf.mxu0
  %v5241 = vadd.f32 %v5172, %v5240
  %v5242 = vpop.f32.mrf.mxu0
  %v5243 = vadd.f32 %v5174, %v5242
  %5244 = vmatmul.bf16.gmra.mxu0 %v5000
  %v5245 = vpop.f32.mrf.mxu0
  %v5246 = vadd.f32 %v5177, %v5245
  %v5247 = vpop.f32.mrf.mxu0
  %v5248 = vadd.f32 %v5179, %v5247
  %5249 = vmatmul.bf16.gmra.mxu0 %v5002
  %v5250 = vpop.f32.mrf.mxu0
  %v5251 = vadd.f32 %v5182, %v5250
  %v5252 = vpop.f32.mrf.mxu0
  %v5253 = vadd.f32 %v5184, %v5252
  %5254 = vmatmul.bf16.gmra.mxu0 %v5004
  %v5255 = vpop.f32.mrf.mxu0
  %v5256 = vadd.f32 %v5187, %v5255
  %v5257 = vpop.f32.mrf.mxu0
  %v5258 = vadd.f32 %v5189, %v5257
  %5259 = vmatmul.bf16.gmra.mxu0 %v5006
  %v5260 = vpop.f32.mrf.mxu0
  %v5261 = vadd.f32 %v5192, %v5260
  %v5262 = vpop.f32.mrf.mxu0
  %v5263 = vadd.f32 %v5194, %v5262
  %5264 = vdwg.mxu0
  %v5265 = vadd.f32 %v4831, %v5206
  %v5266 = vadd.f32 %v4832, %v5208
  %v5267 = vadd.f32 %v4833, %v5211
  %v5268 = vadd.f32 %v4834, %v5213
  %v5269 = vadd.f32 %v4835, %v5216
  %v5270 = vadd.f32 %v4836, %v5218
  %v5271 = vadd.f32 %v4837, %v5221
  %v5272 = vadd.f32 %v4838, %v5223
  %v5273 = vadd.f32 %v4839, %v5226
  %v5274 = vadd.f32 %v4840, %v5228
  %v5275 = vadd.f32 %v4841, %v5231
  %v5276 = vadd.f32 %v4842, %v5233
  %v5277 = vadd.f32 %v4843, %v5236
  %v5278 = vadd.f32 %v4844, %v5238
  %v5279 = vadd.f32 %v4845, %v5241
  %v5280 = vadd.f32 %v4846, %v5243
  %v5281 = vadd.f32 %v4847, %v5246
  %v5282 = vadd.f32 %v4848, %v5248
  %v5283 = vadd.f32 %v4849, %v5251
  %v5284 = vadd.f32 %v4850, %v5253
  %v5285 = vadd.f32 %v4851, %v5256
  %v5286 = vadd.f32 %v4852, %v5258
  %v5287 = vadd.f32 %v4853, %v5261
  %v5288 = vadd.f32 %v4854, %v5263
  %v5289 = vld [vmem:[%s1636] sm:$0xf]
  %v5290 = vld [vmem:[%s1636 + $0x4] sm:$0xf]
  %v5291 = vld [vmem:[%s1636 + $0x8] sm:$0xf]
  %v5292 = vld [vmem:[%s1636 + $0xc] sm:$0xf]
  %v5293 = vld [vmem:[%s1636 + $0x10] sm:$0xf]
  %v5294 = vld [vmem:[%s1636 + $0x14] sm:$0xf]
  %v5295 = vld [vmem:[%s1636 + $0x18] sm:$0xf]
  %v5296 = vld [vmem:[%s1636 + $0x1c] sm:$0xf]
  %v5297 = vld [vmem:[%s1636 + $0x20] sm:$0xf]
  %v5298 = vld [vmem:[%s1636 + $0x24] sm:$0xf]
  %v5299 = vld [vmem:[%s1636 + $0x28] sm:$0xf]
  %v5300 = vld [vmem:[%s1636 + $0x2c] sm:$0xf]
  %v5301 = vld [vmem:[%s1636 + $0x30] sm:$0xf]
  %v5302 = vld [vmem:[%s1636 + $0x34] sm:$0xf]
  %v5303 = vld [vmem:[%s1636 + $0x38] sm:$0xf]
  %v5304 = vld [vmem:[%s1636 + $0x3c] sm:$0xf]
  %v5305 = vld [vmem:[%s1636 + $0x40] sm:$0xf]
  %v5306 = vld [vmem:[%s1636 + $0x44] sm:$0xf]
  %v5307 = vld [vmem:[%s1636 + $0x48] sm:$0xf]
  %v5308 = vld [vmem:[%s1636 + $0x4c] sm:$0xf]
  %v5309 = vld [vmem:[%s1636 + $0x50] sm:$0xf]
  %v5310 = vld [vmem:[%s1636 + $0x54] sm:$0xf]
  %v5311 = vld [vmem:[%s1636 + $0x58] sm:$0xf]
  %v5312 = vld [vmem:[%s1636 + $0x5c] sm:$0xf]
  %v5313 = vld [vmem:[%s1636 + $0x60] sm:$0xf]
  %v5314 = vld [vmem:[%s1636 + $0x64] sm:$0xf]
  %v5315 = vld [vmem:[%s1636 + $0x68] sm:$0xf]
  %v5316 = vld [vmem:[%s1636 + $0x6c] sm:$0xf]
  %v5317 = vld [vmem:[%s1636 + $0x70] sm:$0xf]
  %v5318 = vld [vmem:[%s1636 + $0x74] sm:$0xf]
  %v5319 = vld [vmem:[%s1636 + $0x78] sm:$0xf]
  %v5320 = vld [vmem:[%s1636 + $0x7c] sm:$0xf]
  %v5353 = vunpack.c.l.b16 %v5289
  %v5354 = vunpack.c.l.b16 %v5290
  %v5355 = vunpack.c.l.b16 %v5291
  %v5356 = vunpack.c.l.b16 %v5292
  %v5357 = vunpack.c.l.b16 %v5293
  %v5358 = vunpack.c.l.b16 %v5294
  %v5359 = vunpack.c.l.b16 %v5295
  %v5360 = vunpack.c.l.b16 %v5296
  %v5361 = vunpack.c.l.b16 %v5297
  %v5362 = vunpack.c.l.b16 %v5298
  %v5363 = vunpack.c.l.b16 %v5299
  %v5364 = vunpack.c.l.b16 %v5300
  %v5365 = vunpack.c.l.b16 %v5301
  %v5366 = vunpack.c.l.b16 %v5302
  %v5367 = vunpack.c.l.b16 %v5303
  %v5368 = vunpack.c.l.b16 %v5304
  %v5369 = vunpack.c.l.b16 %v5305
  %v5370 = vunpack.c.l.b16 %v5306
  %v5371 = vunpack.c.l.b16 %v5307
  %v5372 = vunpack.c.l.b16 %v5308
  %v5373 = vunpack.c.l.b16 %v5309
  %v5374 = vunpack.c.l.b16 %v5310
  %v5375 = vunpack.c.l.b16 %v5311
  %v5376 = vunpack.c.l.b16 %v5312
  %v5377 = vunpack.c.l.b16 %v5313
  %v5378 = vunpack.c.l.b16 %v5314
  %v5379 = vunpack.c.l.b16 %v5315
  %v5380 = vunpack.c.l.b16 %v5316
  %v5381 = vunpack.c.l.b16 %v5317
  %v5382 = vunpack.c.l.b16 %v5318
  %v5383 = vunpack.c.l.b16 %v5319
  %v5384 = vunpack.c.l.b16 %v5320
  %v5385 = vpack.c.b16 %v5354, %v5353
  %v5386 = vpack.c.b16 %v5356, %v5355
  %v5387 = vpack.c.b16 %v5358, %v5357
  %v5388 = vpack.c.b16 %v5360, %v5359
  %v5389 = vpack.c.b16 %v5362, %v5361
  %v5390 = vpack.c.b16 %v5364, %v5363
  %v5391 = vpack.c.b16 %v5366, %v5365
  %v5392 = vpack.c.b16 %v5368, %v5367
  %v5393 = vpack.c.b16 %v5370, %v5369
  %v5394 = vpack.c.b16 %v5372, %v5371
  %v5395 = vpack.c.b16 %v5374, %v5373
  %v5396 = vpack.c.b16 %v5376, %v5375
  %v5397 = vpack.c.b16 %v5378, %v5377
  %v5398 = vpack.c.b16 %v5380, %v5379
  %v5399 = vpack.c.b16 %v5382, %v5381
  %v5400 = vpack.c.b16 %v5384, %v5383
  %5417 = vmatpush.bf16.msra.mxu0 %v5392
  %5418 = vmatpush.bf16.msra.mxu0 %v5391
  %5419 = vmatpush.bf16.msra.mxu0 %v5390
  %5420 = vmatpush.bf16.msra.mxu0 %v5389
  %5421 = vmatpush.bf16.msra.mxu0 %v5388
  %5422 = vmatpush.bf16.msra.mxu0 %v5387
  %5423 = vmatpush.bf16.msra.mxu0 %v5386
  %5424 = vmatpush.bf16.msra.mxu0 %v5385
  %5425 = vmatmul.bf16.gmra.mxu0 %v4983
  %v5426 = vpop.f32.mrf.mxu0
  %v5427 = vadd.f32 0.0, %v5426
  %v5428 = vpop.f32.mrf.mxu0
  %v5429 = vadd.f32 0.0, %v5428
  %5430 = vmatmul.bf16.gmra.mxu0 %v4985
  %v5431 = vpop.f32.mrf.mxu0
  %v5432 = vadd.f32 0.0, %v5431
  %v5433 = vpop.f32.mrf.mxu0
  %v5434 = vadd.f32 0.0, %v5433
  %5435 = vmatmul.bf16.gmra.mxu0 %v4987
  %v5436 = vpop.f32.mrf.mxu0
  %v5437 = vadd.f32 0.0, %v5436
  %v5438 = vpop.f32.mrf.mxu0
  %v5439 = vadd.f32 0.0, %v5438
  %5440 = vmatmul.bf16.gmra.mxu0 %v4989
  %v5441 = vpop.f32.mrf.mxu0
  %v5442 = vadd.f32 0.0, %v5441
  %v5443 = vpop.f32.mrf.mxu0
  %v5444 = vadd.f32 0.0, %v5443
  %5445 = vmatmul.bf16.gmra.mxu0 %v4991
  %v5446 = vpop.f32.mrf.mxu0
  %v5447 = vadd.f32 0.0, %v5446
  %v5448 = vpop.f32.mrf.mxu0
  %v5449 = vadd.f32 0.0, %v5448
  %5450 = vmatmul.bf16.gmra.mxu0 %v4993
  %v5451 = vpop.f32.mrf.mxu0
  %v5452 = vadd.f32 0.0, %v5451
  %v5453 = vpop.f32.mrf.mxu0
  %v5454 = vadd.f32 0.0, %v5453
  %5455 = vmatmul.bf16.gmra.mxu0 %v4995
  %v5456 = vpop.f32.mrf.mxu0
  %v5457 = vadd.f32 0.0, %v5456
  %v5458 = vpop.f32.mrf.mxu0
  %v5459 = vadd.f32 0.0, %v5458
  %5460 = vmatmul.bf16.gmra.mxu0 %v4997
  %v5461 = vpop.f32.mrf.mxu0
  %v5462 = vadd.f32 0.0, %v5461
  %v5463 = vpop.f32.mrf.mxu0
  %v5464 = vadd.f32 0.0, %v5463
  %5465 = vmatmul.bf16.gmra.mxu0 %v4999
  %v5466 = vpop.f32.mrf.mxu0
  %v5467 = vadd.f32 0.0, %v5466
  %v5468 = vpop.f32.mrf.mxu0
  %v5469 = vadd.f32 0.0, %v5468
  %5470 = vmatmul.bf16.gmra.mxu0 %v5001
  %v5471 = vpop.f32.mrf.mxu0
  %v5472 = vadd.f32 0.0, %v5471
  %v5473 = vpop.f32.mrf.mxu0
  %v5474 = vadd.f32 0.0, %v5473
  %5475 = vmatmul.bf16.gmra.mxu0 %v5003
  %v5476 = vpop.f32.mrf.mxu0
  %v5477 = vadd.f32 0.0, %v5476
  %v5478 = vpop.f32.mrf.mxu0
  %v5479 = vadd.f32 0.0, %v5478
  %5480 = vmatmul.bf16.gmra.mxu0 %v5005
  %v5481 = vpop.f32.mrf.mxu0
  %v5482 = vadd.f32 0.0, %v5481
  %v5483 = vpop.f32.mrf.mxu0
  %v5484 = vadd.f32 0.0, %v5483
  %5485 = vdwg.mxu0
  %5486 = vmatpush.bf16.msra.mxu0 %v5400
  %5487 = vmatpush.bf16.msra.mxu0 %v5399
  %5488 = vmatpush.bf16.msra.mxu0 %v5398
  %5489 = vmatpush.bf16.msra.mxu0 %v5397
  %5490 = vmatpush.bf16.msra.mxu0 %v5396
  %5491 = vmatpush.bf16.msra.mxu0 %v5395
  %5492 = vmatpush.bf16.msra.mxu0 %v5394
  %5493 = vmatpush.bf16.msra.mxu0 %v5393
  %5494 = vmatmul.bf16.gmra.mxu0 %v4984
  %v5495 = vpop.f32.mrf.mxu0
  %v5496 = vadd.f32 %v5427, %v5495
  %v5497 = vpop.f32.mrf.mxu0
  %v5498 = vadd.f32 %v5429, %v5497
  %5499 = vmatmul.bf16.gmra.mxu0 %v4986
  %v5500 = vpop.f32.mrf.mxu0
  %v5501 = vadd.f32 %v5432, %v5500
  %v5502 = vpop.f32.mrf.mxu0
  %v5503 = vadd.f32 %v5434, %v5502
  %5504 = vmatmul.bf16.gmra.mxu0 %v4988
  %v5505 = vpop.f32.mrf.mxu0
  %v5506 = vadd.f32 %v5437, %v5505
  %v5507 = vpop.f32.mrf.mxu0
  %v5508 = vadd.f32 %v5439, %v5507
  %5509 = vmatmul.bf16.gmra.mxu0 %v4990
  %v5510 = vpop.f32.mrf.mxu0
  %v5511 = vadd.f32 %v5442, %v5510
  %v5512 = vpop.f32.mrf.mxu0
  %v5513 = vadd.f32 %v5444, %v5512
  %5514 = vmatmul.bf16.gmra.mxu0 %v4992
  %v5515 = vpop.f32.mrf.mxu0
  %v5516 = vadd.f32 %v5447, %v5515
  %v5517 = vpop.f32.mrf.mxu0
  %v5518 = vadd.f32 %v5449, %v5517
  %5519 = vmatmul.bf16.gmra.mxu0 %v4994
  %v5520 = vpop.f32.mrf.mxu0
  %v5521 = vadd.f32 %v5452, %v5520
  %v5522 = vpop.f32.mrf.mxu0
  %v5523 = vadd.f32 %v5454, %v5522
  %5524 = vmatmul.bf16.gmra.mxu0 %v4996
  %v5525 = vpop.f32.mrf.mxu0
  %v5526 = vadd.f32 %v5457, %v5525
  %v5527 = vpop.f32.mrf.mxu0
  %v5528 = vadd.f32 %v5459, %v5527
  %5529 = vmatmul.bf16.gmra.mxu0 %v4998
  %v5530 = vpop.f32.mrf.mxu0
  %v5531 = vadd.f32 %v5462, %v5530
  %v5532 = vpop.f32.mrf.mxu0
  %v5533 = vadd.f32 %v5464, %v5532
  %5534 = vmatmul.bf16.gmra.mxu0 %v5000
  %v5535 = vpop.f32.mrf.mxu0
  %v5536 = vadd.f32 %v5467, %v5535
  %v5537 = vpop.f32.mrf.mxu0
  %v5538 = vadd.f32 %v5469, %v5537
  %5539 = vmatmul.bf16.gmra.mxu0 %v5002
  %v5540 = vpop.f32.mrf.mxu0
  %v5541 = vadd.f32 %v5472, %v5540
  %v5542 = vpop.f32.mrf.mxu0
  %v5543 = vadd.f32 %v5474, %v5542
  %5544 = vmatmul.bf16.gmra.mxu0 %v5004
  %v5545 = vpop.f32.mrf.mxu0
  %v5546 = vadd.f32 %v5477, %v5545
  %v5547 = vpop.f32.mrf.mxu0
  %v5548 = vadd.f32 %v5479, %v5547
  %5549 = vmatmul.bf16.gmra.mxu0 %v5006
  %v5550 = vpop.f32.mrf.mxu0
  %v5551 = vadd.f32 %v5482, %v5550
  %v5552 = vpop.f32.mrf.mxu0
  %v5553 = vadd.f32 %v5484, %v5552
  %5554 = vdwg.mxu0
  %v5579 = vrot.slane %v5496, 1
  %v5580 = vrot.slane %v5498, 1
  %v5581 = vsel %vm740, %v5579, %v5580
  %v5582 = vrot.slane %v5501, 1
  %v5583 = vrot.slane %v5503, 1
  %v5584 = vsel %vm740, %v5582, %v5583
  %v5585 = vrot.slane %v5506, 1
  %v5586 = vrot.slane %v5508, 1
  %v5587 = vsel %vm740, %v5585, %v5586
  %v5588 = vrot.slane %v5511, 1
  %v5589 = vrot.slane %v5513, 1
  %v5590 = vsel %vm740, %v5588, %v5589
  %v5591 = vrot.slane %v5516, 1
  %v5592 = vrot.slane %v5518, 1
  %v5593 = vsel %vm740, %v5591, %v5592
  %v5594 = vrot.slane %v5521, 1
  %v5595 = vrot.slane %v5523, 1
  %v5596 = vsel %vm740, %v5594, %v5595
  %v5597 = vrot.slane %v5526, 1
  %v5598 = vrot.slane %v5528, 1
  %v5599 = vsel %vm740, %v5597, %v5598
  %v5600 = vrot.slane %v5531, 1
  %v5601 = vrot.slane %v5533, 1
  %v5602 = vsel %vm740, %v5600, %v5601
  %v5603 = vrot.slane %v5536, 1
  %v5604 = vrot.slane %v5538, 1
  %v5605 = vsel %vm740, %v5603, %v5604
  %v5606 = vrot.slane %v5541, 1
  %v5607 = vrot.slane %v5543, 1
  %v5608 = vsel %vm740, %v5606, %v5607
  %v5609 = vrot.slane %v5546, 1
  %v5610 = vrot.slane %v5548, 1
  %v5611 = vsel %vm740, %v5609, %v5610
  %v5612 = vrot.slane %v5551, 1
  %v5613 = vrot.slane %v5553, 1
  %v5614 = vsel %vm740, %v5612, %v5613
  %v5639 = vadd.f32 %v5265, %v5581
  %v5640 = vadd.f32 %v5266, %v5580
  %v5641 = vadd.f32 %v5267, %v5584
  %v5642 = vadd.f32 %v5268, %v5583
  %v5643 = vadd.f32 %v5269, %v5587
  %v5644 = vadd.f32 %v5270, %v5586
  %v5645 = vadd.f32 %v5271, %v5590
  %v5646 = vadd.f32 %v5272, %v5589
  %v5647 = vadd.f32 %v5273, %v5593
  %v5648 = vadd.f32 %v5274, %v5592
  %v5649 = vadd.f32 %v5275, %v5596
  %v5650 = vadd.f32 %v5276, %v5595
  %v5651 = vadd.f32 %v5277, %v5599
  %v5652 = vadd.f32 %v5278, %v5598
  %v5653 = vadd.f32 %v5279, %v5602
  %v5654 = vadd.f32 %v5280, %v5601
  %v5655 = vadd.f32 %v5281, %v5605
  %v5656 = vadd.f32 %v5282, %v5604
  %v5657 = vadd.f32 %v5283, %v5608
  %v5658 = vadd.f32 %v5284, %v5607
  %v5659 = vadd.f32 %v5285, %v5611
  %v5660 = vadd.f32 %v5286, %v5610
  %v5661 = vadd.f32 %v5287, %v5614
  %v5662 = vadd.f32 %v5288, %v5613
  %v5663 = vld [vmem:[%s2011] sm:$0xf]
  %v5664 = vld [vmem:[%s2011 + $0x4] sm:$0xf]
  %v5665 = vld [vmem:[%s2011 + $0x8] sm:$0xf]
  %v5666 = vld [vmem:[%s2011 + $0xc] sm:$0xf]
  %v5667 = vld [vmem:[%s2011 + $0x10] sm:$0xf]
  %v5668 = vld [vmem:[%s2011 + $0x14] sm:$0xf]
  %v5669 = vld [vmem:[%s2011 + $0x18] sm:$0xf]
  %v5670 = vld [vmem:[%s2011 + $0x1c] sm:$0xf]
  %v5671 = vld [vmem:[%s2011 + $0x20] sm:$0xf]
  %v5672 = vld [vmem:[%s2011 + $0x24] sm:$0xf]
  %v5673 = vld [vmem:[%s2011 + $0x28] sm:$0xf]
  %v5674 = vld [vmem:[%s2011 + $0x2c] sm:$0xf]
  %v5675 = vld [vmem:[%s2011 + $0x30] sm:$0xf]
  %v5676 = vld [vmem:[%s2011 + $0x34] sm:$0xf]
  %v5677 = vld [vmem:[%s2011 + $0x38] sm:$0xf]
  %v5678 = vld [vmem:[%s2011 + $0x3c] sm:$0xf]
  %v5679 = vld [vmem:[%s2011 + $0x40] sm:$0xf]
  %v5680 = vld [vmem:[%s2011 + $0x44] sm:$0xf]
  %v5681 = vld [vmem:[%s2011 + $0x48] sm:$0xf]
  %v5682 = vld [vmem:[%s2011 + $0x4c] sm:$0xf]
  %v5683 = vld [vmem:[%s2011 + $0x50] sm:$0xf]
  %v5684 = vld [vmem:[%s2011 + $0x54] sm:$0xf]
  %v5685 = vld [vmem:[%s2011 + $0x58] sm:$0xf]
  %v5686 = vld [vmem:[%s2011 + $0x5c] sm:$0xf]
  %v5687 = vld [vmem:[%s2011 + $0x60] sm:$0xf]
  %v5688 = vld [vmem:[%s2011 + $0x64] sm:$0xf]
  %v5689 = vld [vmem:[%s2011 + $0x68] sm:$0xf]
  %v5690 = vld [vmem:[%s2011 + $0x6c] sm:$0xf]
  %v5691 = vld [vmem:[%s2011 + $0x70] sm:$0xf]
  %v5692 = vld [vmem:[%s2011 + $0x74] sm:$0xf]
  %v5693 = vld [vmem:[%s2011 + $0x78] sm:$0xf]
  %v5694 = vld [vmem:[%s2011 + $0x7c] sm:$0xf]
  %v5727 = vunpack.c.l.b16 %v5663
  %v5728 = vunpack.c.l.b16 %v5664
  %v5729 = vunpack.c.l.b16 %v5665
  %v5730 = vunpack.c.l.b16 %v5666
  %v5731 = vunpack.c.l.b16 %v5667
  %v5732 = vunpack.c.l.b16 %v5668
  %v5733 = vunpack.c.l.b16 %v5669
  %v5734 = vunpack.c.l.b16 %v5670
  %v5735 = vunpack.c.l.b16 %v5671
  %v5736 = vunpack.c.l.b16 %v5672
  %v5737 = vunpack.c.l.b16 %v5673
  %v5738 = vunpack.c.l.b16 %v5674
  %v5739 = vunpack.c.l.b16 %v5675
  %v5740 = vunpack.c.l.b16 %v5676
  %v5741 = vunpack.c.l.b16 %v5677
  %v5742 = vunpack.c.l.b16 %v5678
  %v5743 = vunpack.c.l.b16 %v5679
  %v5744 = vunpack.c.l.b16 %v5680
  %v5745 = vunpack.c.l.b16 %v5681
  %v5746 = vunpack.c.l.b16 %v5682
  %v5747 = vunpack.c.l.b16 %v5683
  %v5748 = vunpack.c.l.b16 %v5684
  %v5749 = vunpack.c.l.b16 %v5685
  %v5750 = vunpack.c.l.b16 %v5686
  %v5751 = vunpack.c.l.b16 %v5687
  %v5752 = vunpack.c.l.b16 %v5688
  %v5753 = vunpack.c.l.b16 %v5689
  %v5754 = vunpack.c.l.b16 %v5690
  %v5755 = vunpack.c.l.b16 %v5691
  %v5756 = vunpack.c.l.b16 %v5692
  %v5757 = vunpack.c.l.b16 %v5693
  %v5758 = vunpack.c.l.b16 %v5694
  %v5759 = vpack.c.b16 %v5728, %v5727
  %v5760 = vpack.c.b16 %v5730, %v5729
  %v5761 = vpack.c.b16 %v5732, %v5731
  %v5762 = vpack.c.b16 %v5734, %v5733
  %v5763 = vpack.c.b16 %v5736, %v5735
  %v5764 = vpack.c.b16 %v5738, %v5737
  %v5765 = vpack.c.b16 %v5740, %v5739
  %v5766 = vpack.c.b16 %v5742, %v5741
  %v5767 = vpack.c.b16 %v5744, %v5743
  %v5768 = vpack.c.b16 %v5746, %v5745
  %v5769 = vpack.c.b16 %v5748, %v5747
  %v5770 = vpack.c.b16 %v5750, %v5749
  %v5771 = vpack.c.b16 %v5752, %v5751
  %v5772 = vpack.c.b16 %v5754, %v5753
  %v5773 = vpack.c.b16 %v5756, %v5755
  %v5774 = vpack.c.b16 %v5758, %v5757
  %5791 = vmatpush.bf16.msra.mxu0 %v5766
  %5792 = vmatpush.bf16.msra.mxu0 %v5765
  %5793 = vmatpush.bf16.msra.mxu0 %v5764
  %5794 = vmatpush.bf16.msra.mxu0 %v5763
  %5795 = vmatpush.bf16.msra.mxu0 %v5762
  %5796 = vmatpush.bf16.msra.mxu0 %v5761
  %5797 = vmatpush.bf16.msra.mxu0 %v5760
  %5798 = vmatpush.bf16.msra.mxu0 %v5759
  %5799 = vmatmul.bf16.gmra.mxu0 %v4983
  %v5800 = vpop.f32.mrf.mxu0
  %v5801 = vadd.f32 0.0, %v5800
  %v5802 = vpop.f32.mrf.mxu0
  %v5803 = vadd.f32 0.0, %v5802
  %5804 = vmatmul.bf16.gmra.mxu0 %v4985
  %v5805 = vpop.f32.mrf.mxu0
  %v5806 = vadd.f32 0.0, %v5805
  %v5807 = vpop.f32.mrf.mxu0
  %v5808 = vadd.f32 0.0, %v5807
  %5809 = vmatmul.bf16.gmra.mxu0 %v4987
  %v5810 = vpop.f32.mrf.mxu0
  %v5811 = vadd.f32 0.0, %v5810
  %v5812 = vpop.f32.mrf.mxu0
  %v5813 = vadd.f32 0.0, %v5812
  %5814 = vmatmul.bf16.gmra.mxu0 %v4989
  %v5815 = vpop.f32.mrf.mxu0
  %v5816 = vadd.f32 0.0, %v5815
  %v5817 = vpop.f32.mrf.mxu0
  %v5818 = vadd.f32 0.0, %v5817
  %5819 = vmatmul.bf16.gmra.mxu0 %v4991
  %v5820 = vpop.f32.mrf.mxu0
  %v5821 = vadd.f32 0.0, %v5820
  %v5822 = vpop.f32.mrf.mxu0
  %v5823 = vadd.f32 0.0, %v5822
  %5824 = vmatmul.bf16.gmra.mxu0 %v4993
  %v5825 = vpop.f32.mrf.mxu0
  %v5826 = vadd.f32 0.0, %v5825
  %v5827 = vpop.f32.mrf.mxu0
  %v5828 = vadd.f32 0.0, %v5827
  %5829 = vmatmul.bf16.gmra.mxu0 %v4995
  %v5830 = vpop.f32.mrf.mxu0
  %v5831 = vadd.f32 0.0, %v5830
  %v5832 = vpop.f32.mrf.mxu0
  %v5833 = vadd.f32 0.0, %v5832
  %5834 = vmatmul.bf16.gmra.mxu0 %v4997
  %v5835 = vpop.f32.mrf.mxu0
  %v5836 = vadd.f32 0.0, %v5835
  %v5837 = vpop.f32.mrf.mxu0
  %v5838 = vadd.f32 0.0, %v5837
  %5839 = vmatmul.bf16.gmra.mxu0 %v4999
  %v5840 = vpop.f32.mrf.mxu0
  %v5841 = vadd.f32 0.0, %v5840
  %v5842 = vpop.f32.mrf.mxu0
  %v5843 = vadd.f32 0.0, %v5842
  %5844 = vmatmul.bf16.gmra.mxu0 %v5001
  %v5845 = vpop.f32.mrf.mxu0
  %v5846 = vadd.f32 0.0, %v5845
  %v5847 = vpop.f32.mrf.mxu0
  %v5848 = vadd.f32 0.0, %v5847
  %5849 = vmatmul.bf16.gmra.mxu0 %v5003
  %v5850 = vpop.f32.mrf.mxu0
  %v5851 = vadd.f32 0.0, %v5850
  %v5852 = vpop.f32.mrf.mxu0
  %v5853 = vadd.f32 0.0, %v5852
  %5854 = vmatmul.bf16.gmra.mxu0 %v5005
  %v5855 = vpop.f32.mrf.mxu0
  %v5856 = vadd.f32 0.0, %v5855
  %v5857 = vpop.f32.mrf.mxu0
  %v5858 = vadd.f32 0.0, %v5857
  %5859 = vdwg.mxu0
  %5860 = vmatpush.bf16.msra.mxu0 %v5774
  %5861 = vmatpush.bf16.msra.mxu0 %v5773
  %5862 = vmatpush.bf16.msra.mxu0 %v5772
  %5863 = vmatpush.bf16.msra.mxu0 %v5771
  %5864 = vmatpush.bf16.msra.mxu0 %v5770
  %5865 = vmatpush.bf16.msra.mxu0 %v5769
  %5866 = vmatpush.bf16.msra.mxu0 %v5768
  %5867 = vmatpush.bf16.msra.mxu0 %v5767
  %5868 = vmatmul.bf16.gmra.mxu0 %v4984
  %v5869 = vpop.f32.mrf.mxu0
  %v5870 = vadd.f32 %v5801, %v5869
  %v5871 = vpop.f32.mrf.mxu0
  %v5872 = vadd.f32 %v5803, %v5871
  %5873 = vmatmul.bf16.gmra.mxu0 %v4986
  %v5874 = vpop.f32.mrf.mxu0
  %v5875 = vadd.f32 %v5806, %v5874
  %v5876 = vpop.f32.mrf.mxu0
  %v5877 = vadd.f32 %v5808, %v5876
  %5878 = vmatmul.bf16.gmra.mxu0 %v4988
  %v5879 = vpop.f32.mrf.mxu0
  %v5880 = vadd.f32 %v5811, %v5879
  %v5881 = vpop.f32.mrf.mxu0
  %v5882 = vadd.f32 %v5813, %v5881
  %5883 = vmatmul.bf16.gmra.mxu0 %v4990
  %v5884 = vpop.f32.mrf.mxu0
  %v5885 = vadd.f32 %v5816, %v5884
  %v5886 = vpop.f32.mrf.mxu0
  %v5887 = vadd.f32 %v5818, %v5886
  %5888 = vmatmul.bf16.gmra.mxu0 %v4992
  %v5889 = vpop.f32.mrf.mxu0
  %v5890 = vadd.f32 %v5821, %v5889
  %v5891 = vpop.f32.mrf.mxu0
  %v5892 = vadd.f32 %v5823, %v5891
  %5893 = vmatmul.bf16.gmra.mxu0 %v4994
  %v5894 = vpop.f32.mrf.mxu0
  %v5895 = vadd.f32 %v5826, %v5894
  %v5896 = vpop.f32.mrf.mxu0
  %v5897 = vadd.f32 %v5828, %v5896
  %5898 = vmatmul.bf16.gmra.mxu0 %v4996
  %v5899 = vpop.f32.mrf.mxu0
  %v5900 = vadd.f32 %v5831, %v5899
  %v5901 = vpop.f32.mrf.mxu0
  %v5902 = vadd.f32 %v5833, %v5901
  %5903 = vmatmul.bf16.gmra.mxu0 %v4998
  %v5904 = vpop.f32.mrf.mxu0
  %v5905 = vadd.f32 %v5836, %v5904
  %v5906 = vpop.f32.mrf.mxu0
  %v5907 = vadd.f32 %v5838, %v5906
  %5908 = vmatmul.bf16.gmra.mxu0 %v5000
  %v5909 = vpop.f32.mrf.mxu0
  %v5910 = vadd.f32 %v5841, %v5909
  %v5911 = vpop.f32.mrf.mxu0
  %v5912 = vadd.f32 %v5843, %v5911
  %5913 = vmatmul.bf16.gmra.mxu0 %v5002
  %v5914 = vpop.f32.mrf.mxu0
  %v5915 = vadd.f32 %v5846, %v5914
  %v5916 = vpop.f32.mrf.mxu0
  %v5917 = vadd.f32 %v5848, %v5916
  %5918 = vmatmul.bf16.gmra.mxu0 %v5004
  %v5919 = vpop.f32.mrf.mxu0
  %v5920 = vadd.f32 %v5851, %v5919
  %v5921 = vpop.f32.mrf.mxu0
  %v5922 = vadd.f32 %v5853, %v5921
  %5923 = vmatmul.bf16.gmra.mxu0 %v5006
  %v5924 = vpop.f32.mrf.mxu0
  %v5925 = vadd.f32 %v5856, %v5924
  %v5926 = vpop.f32.mrf.mxu0
  %v5927 = vadd.f32 %v5858, %v5926
  %5928 = vdwg.mxu0
  %v5953 = vrot.slane %v5870, 2
  %v5954 = vrot.slane %v5872, 2
  %v5955 = vsel %vm1116, %v5953, %v5954
  %v5956 = vrot.slane %v5875, 2
  %v5957 = vrot.slane %v5877, 2
  %v5958 = vsel %vm1116, %v5956, %v5957
  %v5959 = vrot.slane %v5880, 2
  %v5960 = vrot.slane %v5882, 2
  %v5961 = vsel %vm1116, %v5959, %v5960
  %v5962 = vrot.slane %v5885, 2
  %v5963 = vrot.slane %v5887, 2
  %v5964 = vsel %vm1116, %v5962, %v5963
  %v5965 = vrot.slane %v5890, 2
  %v5966 = vrot.slane %v5892, 2
  %v5967 = vsel %vm1116, %v5965, %v5966
  %v5968 = vrot.slane %v5895, 2
  %v5969 = vrot.slane %v5897, 2
  %v5970 = vsel %vm1116, %v5968, %v5969
  %v5971 = vrot.slane %v5900, 2
  %v5972 = vrot.slane %v5902, 2
  %v5973 = vsel %vm1116, %v5971, %v5972
  %v5974 = vrot.slane %v5905, 2
  %v5975 = vrot.slane %v5907, 2
  %v5976 = vsel %vm1116, %v5974, %v5975
  %v5977 = vrot.slane %v5910, 2
  %v5978 = vrot.slane %v5912, 2
  %v5979 = vsel %vm1116, %v5977, %v5978
  %v5980 = vrot.slane %v5915, 2
  %v5981 = vrot.slane %v5917, 2
  %v5982 = vsel %vm1116, %v5980, %v5981
  %v5983 = vrot.slane %v5920, 2
  %v5984 = vrot.slane %v5922, 2
  %v5985 = vsel %vm1116, %v5983, %v5984
  %v5986 = vrot.slane %v5925, 2
  %v5987 = vrot.slane %v5927, 2
  %v5988 = vsel %vm1116, %v5986, %v5987
  %v6013 = vadd.f32 %v5639, %v5955
  %v6014 = vadd.f32 %v5640, %v5954
  %v6015 = vadd.f32 %v5641, %v5958
  %v6016 = vadd.f32 %v5642, %v5957
  %v6017 = vadd.f32 %v5643, %v5961
  %v6018 = vadd.f32 %v5644, %v5960
  %v6019 = vadd.f32 %v5645, %v5964
  %v6020 = vadd.f32 %v5646, %v5963
  %v6021 = vadd.f32 %v5647, %v5967
  %v6022 = vadd.f32 %v5648, %v5966
  %v6023 = vadd.f32 %v5649, %v5970
  %v6024 = vadd.f32 %v5650, %v5969
  %v6025 = vadd.f32 %v5651, %v5973
  %v6026 = vadd.f32 %v5652, %v5972
  %v6027 = vadd.f32 %v5653, %v5976
  %v6028 = vadd.f32 %v5654, %v5975
  %v6029 = vadd.f32 %v5655, %v5979
  %v6030 = vadd.f32 %v5656, %v5978
  %v6031 = vadd.f32 %v5657, %v5982
  %v6032 = vadd.f32 %v5658, %v5981
  %v6033 = vadd.f32 %v5659, %v5985
  %v6034 = vadd.f32 %v5660, %v5984
  %v6035 = vadd.f32 %v5661, %v5988
  %v6036 = vadd.f32 %v5662, %v5987
  %v6037 = vld [vmem:[%s3672 + $0x20] sm:$0xff]
  %v6038 = vld [vmem:[%s3672 + $0x28] sm:$0xff]
  %v6039 = vld [vmem:[%s3672 + $0x30] sm:$0xff]
  %v6040 = vld [vmem:[%s3672 + $0x38] sm:$0xff]
  %v6041 = vld [vmem:[%s3672 + $0x40] sm:$0xff]
  %v6042 = vld [vmem:[%s3672 + $0x48] sm:$0xff]
  %v6043 = vld [vmem:[%s3672 + $0x50] sm:$0xff]
  %v6044 = vld [vmem:[%s3672 + $0x58] sm:$0xff]
  %v6045 = vld [vmem:[%s3672 + $0x60] sm:$0xff]
  %v6046 = vld [vmem:[%s3672 + $0x68] sm:$0xff]
  %v6047 = vld [vmem:[%s3672 + $0x70] sm:$0xff]
  %v6048 = vld [vmem:[%s3672 + $0x78] sm:$0xff]
  %v6049 = vld [vmem:[%s3672 + $0x80] sm:$0xff]
  %v6050 = vld [vmem:[%s3672 + $0x88] sm:$0xff]
  %v6051 = vld [vmem:[%s3672 + $0x90] sm:$0xff]
  %v6052 = vld [vmem:[%s3672 + $0x98] sm:$0xff]
  %v6053 = vld [vmem:[%s3672 + $0xa0] sm:$0xff]
  %v6054 = vld [vmem:[%s3672 + $0xa8] sm:$0xff]
  %v6055 = vld [vmem:[%s3672 + $0xb0] sm:$0xff]
  %v6056 = vld [vmem:[%s3672 + $0xb8] sm:$0xff]
  %v6057 = vld [vmem:[%s3672 + $0xc0] sm:$0xff]
  %v6058 = vld [vmem:[%s3672 + $0xc8] sm:$0xff]
  %v6059 = vld [vmem:[%s3672 + $0xd0] sm:$0xff]
  %v6060 = vld [vmem:[%s3672 + $0xd8] sm:$0xff]
  %v6061 = vld [vmem:[%s2410] sm:$0xf]
  %v6062 = vld [vmem:[%s2410 + $0x4] sm:$0xf]
  %v6063 = vld [vmem:[%s2410 + $0x8] sm:$0xf]
  %v6064 = vld [vmem:[%s2410 + $0xc] sm:$0xf]
  %v6065 = vld [vmem:[%s2410 + $0x10] sm:$0xf]
  %v6066 = vld [vmem:[%s2410 + $0x14] sm:$0xf]
  %v6067 = vld [vmem:[%s2410 + $0x18] sm:$0xf]
  %v6068 = vld [vmem:[%s2410 + $0x1c] sm:$0xf]
  %v6069 = vld [vmem:[%s2410 + $0x20] sm:$0xf]
  %v6070 = vld [vmem:[%s2410 + $0x24] sm:$0xf]
  %v6071 = vld [vmem:[%s2410 + $0x28] sm:$0xf]
  %v6072 = vld [vmem:[%s2410 + $0x2c] sm:$0xf]
  %v6073 = vld [vmem:[%s2410 + $0x30] sm:$0xf]
  %v6074 = vld [vmem:[%s2410 + $0x34] sm:$0xf]
  %v6075 = vld [vmem:[%s2410 + $0x38] sm:$0xf]
  %v6076 = vld [vmem:[%s2410 + $0x3c] sm:$0xf]
  %v6077 = vld [vmem:[%s2410 + $0x40] sm:$0xf]
  %v6078 = vld [vmem:[%s2410 + $0x44] sm:$0xf]
  %v6079 = vld [vmem:[%s2410 + $0x48] sm:$0xf]
  %v6080 = vld [vmem:[%s2410 + $0x4c] sm:$0xf]
  %v6081 = vld [vmem:[%s2410 + $0x50] sm:$0xf]
  %v6082 = vld [vmem:[%s2410 + $0x54] sm:$0xf]
  %v6083 = vld [vmem:[%s2410 + $0x58] sm:$0xf]
  %v6084 = vld [vmem:[%s2410 + $0x5c] sm:$0xf]
  %v6085 = vld [vmem:[%s2410 + $0x60] sm:$0xf]
  %v6086 = vld [vmem:[%s2410 + $0x64] sm:$0xf]
  %v6087 = vld [vmem:[%s2410 + $0x68] sm:$0xf]
  %v6088 = vld [vmem:[%s2410 + $0x6c] sm:$0xf]
  %v6089 = vld [vmem:[%s2410 + $0x70] sm:$0xf]
  %v6090 = vld [vmem:[%s2410 + $0x74] sm:$0xf]
  %v6091 = vld [vmem:[%s2410 + $0x78] sm:$0xf]
  %v6092 = vld [vmem:[%s2410 + $0x7c] sm:$0xf]
  %v6117 = vunpack.c.l.b16 %v6037
  %v6118 = vunpack.c.h.b16 %v6037
  %v6119 = vunpack.c.l.b16 %v6038
  %v6120 = vunpack.c.h.b16 %v6038
  %v6121 = vunpack.c.l.b16 %v6039
  %v6122 = vunpack.c.h.b16 %v6039
  %v6123 = vunpack.c.l.b16 %v6040
  %v6124 = vunpack.c.h.b16 %v6040
  %v6125 = vunpack.c.l.b16 %v6041
  %v6126 = vunpack.c.h.b16 %v6041
  %v6127 = vunpack.c.l.b16 %v6042
  %v6128 = vunpack.c.h.b16 %v6042
  %v6129 = vunpack.c.l.b16 %v6043
  %v6130 = vunpack.c.h.b16 %v6043
  %v6131 = vunpack.c.l.b16 %v6044
  %v6132 = vunpack.c.h.b16 %v6044
  %v6133 = vunpack.c.l.b16 %v6045
  %v6134 = vunpack.c.h.b16 %v6045
  %v6135 = vunpack.c.l.b16 %v6046
  %v6136 = vunpack.c.h.b16 %v6046
  %v6137 = vunpack.c.l.b16 %v6047
  %v6138 = vunpack.c.h.b16 %v6047
  %v6139 = vunpack.c.l.b16 %v6048
  %v6140 = vunpack.c.h.b16 %v6048
  %v6141 = vunpack.c.l.b16 %v6049
  %v6142 = vunpack.c.h.b16 %v6049
  %v6143 = vunpack.c.l.b16 %v6050
  %v6144 = vunpack.c.h.b16 %v6050
  %v6145 = vunpack.c.l.b16 %v6051
  %v6146 = vunpack.c.h.b16 %v6051
  %v6147 = vunpack.c.l.b16 %v6052
  %v6148 = vunpack.c.h.b16 %v6052
  %v6149 = vunpack.c.l.b16 %v6053
  %v6150 = vunpack.c.h.b16 %v6053
  %v6151 = vunpack.c.l.b16 %v6054
  %v6152 = vunpack.c.h.b16 %v6054
  %v6153 = vunpack.c.l.b16 %v6055
  %v6154 = vunpack.c.h.b16 %v6055
  %v6155 = vunpack.c.l.b16 %v6056
  %v6156 = vunpack.c.h.b16 %v6056
  %v6157 = vunpack.c.l.b16 %v6057
  %v6158 = vunpack.c.h.b16 %v6057
  %v6159 = vunpack.c.l.b16 %v6058
  %v6160 = vunpack.c.h.b16 %v6058
  %v6161 = vunpack.c.l.b16 %v6059
  %v6162 = vunpack.c.h.b16 %v6059
  %v6163 = vunpack.c.l.b16 %v6060
  %v6164 = vunpack.c.h.b16 %v6060
  %v6165 = vpack.c.b16 %v6119, %v6117
  %v6166 = vpack.c.b16 %v6120, %v6118
  %v6167 = vpack.c.b16 %v6123, %v6121
  %v6168 = vpack.c.b16 %v6124, %v6122
  %v6169 = vpack.c.b16 %v6127, %v6125
  %v6170 = vpack.c.b16 %v6128, %v6126
  %v6171 = vpack.c.b16 %v6131, %v6129
  %v6172 = vpack.c.b16 %v6132, %v6130
  %v6173 = vpack.c.b16 %v6135, %v6133
  %v6174 = vpack.c.b16 %v6136, %v6134
  %v6175 = vpack.c.b16 %v6139, %v6137
  %v6176 = vpack.c.b16 %v6140, %v6138
  %v6177 = vpack.c.b16 %v6143, %v6141
  %v6178 = vpack.c.b16 %v6144, %v6142
  %v6179 = vpack.c.b16 %v6147, %v6145
  %v6180 = vpack.c.b16 %v6148, %v6146
  %v6181 = vpack.c.b16 %v6151, %v6149
  %v6182 = vpack.c.b16 %v6152, %v6150
  %v6183 = vpack.c.b16 %v6155, %v6153
  %v6184 = vpack.c.b16 %v6156, %v6154
  %v6185 = vpack.c.b16 %v6159, %v6157
  %v6186 = vpack.c.b16 %v6160, %v6158
  %v6187 = vpack.c.b16 %v6163, %v6161
  %v6188 = vpack.c.b16 %v6164, %v6162
  %v6245 = vunpack.c.l.b16 %v6061
  %v6246 = vunpack.c.l.b16 %v6062
  %v6247 = vunpack.c.l.b16 %v6063
  %v6248 = vunpack.c.l.b16 %v6064
  %v6249 = vunpack.c.l.b16 %v6065
  %v6250 = vunpack.c.l.b16 %v6066
  %v6251 = vunpack.c.l.b16 %v6067
  %v6252 = vunpack.c.l.b16 %v6068
  %v6253 = vunpack.c.l.b16 %v6069
  %v6254 = vunpack.c.l.b16 %v6070
  %v6255 = vunpack.c.l.b16 %v6071
  %v6256 = vunpack.c.l.b16 %v6072
  %v6257 = vunpack.c.l.b16 %v6073
  %v6258 = vunpack.c.l.b16 %v6074
  %v6259 = vunpack.c.l.b16 %v6075
  %v6260 = vunpack.c.l.b16 %v6076
  %v6261 = vunpack.c.l.b16 %v6077
  %v6262 = vunpack.c.l.b16 %v6078
  %v6263 = vunpack.c.l.b16 %v6079
  %v6264 = vunpack.c.l.b16 %v6080
  %v6265 = vunpack.c.l.b16 %v6081
  %v6266 = vunpack.c.l.b16 %v6082
  %v6267 = vunpack.c.l.b16 %v6083
  %v6268 = vunpack.c.l.b16 %v6084
  %v6269 = vunpack.c.l.b16 %v6085
  %v6270 = vunpack.c.l.b16 %v6086
  %v6271 = vunpack.c.l.b16 %v6087
  %v6272 = vunpack.c.l.b16 %v6088
  %v6273 = vunpack.c.l.b16 %v6089
  %v6274 = vunpack.c.l.b16 %v6090
  %v6275 = vunpack.c.l.b16 %v6091
  %v6276 = vunpack.c.l.b16 %v6092
  %v6277 = vpack.c.b16 %v6246, %v6245
  %v6278 = vpack.c.b16 %v6248, %v6247
  %v6279 = vpack.c.b16 %v6250, %v6249
  %v6280 = vpack.c.b16 %v6252, %v6251
  %v6281 = vpack.c.b16 %v6254, %v6253
  %v6282 = vpack.c.b16 %v6256, %v6255
  %v6283 = vpack.c.b16 %v6258, %v6257
  %v6284 = vpack.c.b16 %v6260, %v6259
  %v6285 = vpack.c.b16 %v6262, %v6261
  %v6286 = vpack.c.b16 %v6264, %v6263
  %v6287 = vpack.c.b16 %v6266, %v6265
  %v6288 = vpack.c.b16 %v6268, %v6267
  %v6289 = vpack.c.b16 %v6270, %v6269
  %v6290 = vpack.c.b16 %v6272, %v6271
  %v6291 = vpack.c.b16 %v6274, %v6273
  %v6292 = vpack.c.b16 %v6276, %v6275
  %6309 = vmatpush.bf16.msra.mxu0 %v6284
  %6310 = vmatpush.bf16.msra.mxu0 %v6283
  %6311 = vmatpush.bf16.msra.mxu0 %v6282
  %6312 = vmatpush.bf16.msra.mxu0 %v6281
  %6313 = vmatpush.bf16.msra.mxu0 %v6280
  %6314 = vmatpush.bf16.msra.mxu0 %v6279
  %6315 = vmatpush.bf16.msra.mxu0 %v6278
  %6316 = vmatpush.bf16.msra.mxu0 %v6277
  %6317 = vmatmul.bf16.gmra.mxu0 %v6165
  %v6318 = vpop.f32.mrf.mxu0
  %v6319 = vadd.f32 0.0, %v6318
  %v6320 = vpop.f32.mrf.mxu0
  %v6321 = vadd.f32 0.0, %v6320
  %6322 = vmatmul.bf16.gmra.mxu0 %v6167
  %v6323 = vpop.f32.mrf.mxu0
  %v6324 = vadd.f32 0.0, %v6323
  %v6325 = vpop.f32.mrf.mxu0
  %v6326 = vadd.f32 0.0, %v6325
  %6327 = vmatmul.bf16.gmra.mxu0 %v6169
  %v6328 = vpop.f32.mrf.mxu0
  %v6329 = vadd.f32 0.0, %v6328
  %v6330 = vpop.f32.mrf.mxu0
  %v6331 = vadd.f32 0.0, %v6330
  %6332 = vmatmul.bf16.gmra.mxu0 %v6171
  %v6333 = vpop.f32.mrf.mxu0
  %v6334 = vadd.f32 0.0, %v6333
  %v6335 = vpop.f32.mrf.mxu0
  %v6336 = vadd.f32 0.0, %v6335
  %6337 = vmatmul.bf16.gmra.mxu0 %v6173
  %v6338 = vpop.f32.mrf.mxu0
  %v6339 = vadd.f32 0.0, %v6338
  %v6340 = vpop.f32.mrf.mxu0
  %v6341 = vadd.f32 0.0, %v6340
  %6342 = vmatmul.bf16.gmra.mxu0 %v6175
  %v6343 = vpop.f32.mrf.mxu0
  %v6344 = vadd.f32 0.0, %v6343
  %v6345 = vpop.f32.mrf.mxu0
  %v6346 = vadd.f32 0.0, %v6345
  %6347 = vmatmul.bf16.gmra.mxu0 %v6177
  %v6348 = vpop.f32.mrf.mxu0
  %v6349 = vadd.f32 0.0, %v6348
  %v6350 = vpop.f32.mrf.mxu0
  %v6351 = vadd.f32 0.0, %v6350
  %6352 = vmatmul.bf16.gmra.mxu0 %v6179
  %v6353 = vpop.f32.mrf.mxu0
  %v6354 = vadd.f32 0.0, %v6353
  %v6355 = vpop.f32.mrf.mxu0
  %v6356 = vadd.f32 0.0, %v6355
  %6357 = vmatmul.bf16.gmra.mxu0 %v6181
  %v6358 = vpop.f32.mrf.mxu0
  %v6359 = vadd.f32 0.0, %v6358
  %v6360 = vpop.f32.mrf.mxu0
  %v6361 = vadd.f32 0.0, %v6360
  %6362 = vmatmul.bf16.gmra.mxu0 %v6183
  %v6363 = vpop.f32.mrf.mxu0
  %v6364 = vadd.f32 0.0, %v6363
  %v6365 = vpop.f32.mrf.mxu0
  %v6366 = vadd.f32 0.0, %v6365
  %6367 = vmatmul.bf16.gmra.mxu0 %v6185
  %v6368 = vpop.f32.mrf.mxu0
  %v6369 = vadd.f32 0.0, %v6368
  %v6370 = vpop.f32.mrf.mxu0
  %v6371 = vadd.f32 0.0, %v6370
  %6372 = vmatmul.bf16.gmra.mxu0 %v6187
  %v6373 = vpop.f32.mrf.mxu0
  %v6374 = vadd.f32 0.0, %v6373
  %v6375 = vpop.f32.mrf.mxu0
  %v6376 = vadd.f32 0.0, %v6375
  %6377 = vdwg.mxu0
  %6378 = vmatpush.bf16.msra.mxu0 %v6292
  %6379 = vmatpush.bf16.msra.mxu0 %v6291
  %6380 = vmatpush.bf16.msra.mxu0 %v6290
  %6381 = vmatpush.bf16.msra.mxu0 %v6289
  %6382 = vmatpush.bf16.msra.mxu0 %v6288
  %6383 = vmatpush.bf16.msra.mxu0 %v6287
  %6384 = vmatpush.bf16.msra.mxu0 %v6286
  %6385 = vmatpush.bf16.msra.mxu0 %v6285
  %6386 = vmatmul.bf16.gmra.mxu0 %v6166
  %v6387 = vpop.f32.mrf.mxu0
  %v6388 = vadd.f32 %v6319, %v6387
  %v6389 = vpop.f32.mrf.mxu0
  %v6390 = vadd.f32 %v6321, %v6389
  %6391 = vmatmul.bf16.gmra.mxu0 %v6168
  %v6392 = vpop.f32.mrf.mxu0
  %v6393 = vadd.f32 %v6324, %v6392
  %v6394 = vpop.f32.mrf.mxu0
  %v6395 = vadd.f32 %v6326, %v6394
  %6396 = vmatmul.bf16.gmra.mxu0 %v6170
  %v6397 = vpop.f32.mrf.mxu0
  %v6398 = vadd.f32 %v6329, %v6397
  %v6399 = vpop.f32.mrf.mxu0
  %v6400 = vadd.f32 %v6331, %v6399
  %6401 = vmatmul.bf16.gmra.mxu0 %v6172
  %v6402 = vpop.f32.mrf.mxu0
  %v6403 = vadd.f32 %v6334, %v6402
  %v6404 = vpop.f32.mrf.mxu0
  %v6405 = vadd.f32 %v6336, %v6404
  %6406 = vmatmul.bf16.gmra.mxu0 %v6174
  %v6407 = vpop.f32.mrf.mxu0
  %v6408 = vadd.f32 %v6339, %v6407
  %v6409 = vpop.f32.mrf.mxu0
  %v6410 = vadd.f32 %v6341, %v6409
  %6411 = vmatmul.bf16.gmra.mxu0 %v6176
  %v6412 = vpop.f32.mrf.mxu0
  %v6413 = vadd.f32 %v6344, %v6412
  %v6414 = vpop.f32.mrf.mxu0
  %v6415 = vadd.f32 %v6346, %v6414
  %6416 = vmatmul.bf16.gmra.mxu0 %v6178
  %v6417 = vpop.f32.mrf.mxu0
  %v6418 = vadd.f32 %v6349, %v6417
  %v6419 = vpop.f32.mrf.mxu0
  %v6420 = vadd.f32 %v6351, %v6419
  %6421 = vmatmul.bf16.gmra.mxu0 %v6180
  %v6422 = vpop.f32.mrf.mxu0
  %v6423 = vadd.f32 %v6354, %v6422
  %v6424 = vpop.f32.mrf.mxu0
  %v6425 = vadd.f32 %v6356, %v6424
  %6426 = vmatmul.bf16.gmra.mxu0 %v6182
  %v6427 = vpop.f32.mrf.mxu0
  %v6428 = vadd.f32 %v6359, %v6427
  %v6429 = vpop.f32.mrf.mxu0
  %v6430 = vadd.f32 %v6361, %v6429
  %6431 = vmatmul.bf16.gmra.mxu0 %v6184
  %v6432 = vpop.f32.mrf.mxu0
  %v6433 = vadd.f32 %v6364, %v6432
  %v6434 = vpop.f32.mrf.mxu0
  %v6435 = vadd.f32 %v6366, %v6434
  %6436 = vmatmul.bf16.gmra.mxu0 %v6186
  %v6437 = vpop.f32.mrf.mxu0
  %v6438 = vadd.f32 %v6369, %v6437
  %v6439 = vpop.f32.mrf.mxu0
  %v6440 = vadd.f32 %v6371, %v6439
  %6441 = vmatmul.bf16.gmra.mxu0 %v6188
  %v6442 = vpop.f32.mrf.mxu0
  %v6443 = vadd.f32 %v6374, %v6442
  %v6444 = vpop.f32.mrf.mxu0
  %v6445 = vadd.f32 %v6376, %v6444
  %6446 = vdwg.mxu0
  %v6447 = vadd.f32 %v6013, %v6388
  %v6448 = vadd.f32 %v6014, %v6390
  %v6449 = vadd.f32 %v6015, %v6393
  %v6450 = vadd.f32 %v6016, %v6395
  %v6451 = vadd.f32 %v6017, %v6398
  %v6452 = vadd.f32 %v6018, %v6400
  %v6453 = vadd.f32 %v6019, %v6403
  %v6454 = vadd.f32 %v6020, %v6405
  %v6455 = vadd.f32 %v6021, %v6408
  %v6456 = vadd.f32 %v6022, %v6410
  %v6457 = vadd.f32 %v6023, %v6413
  %v6458 = vadd.f32 %v6024, %v6415
  %v6459 = vadd.f32 %v6025, %v6418
  %v6460 = vadd.f32 %v6026, %v6420
  %v6461 = vadd.f32 %v6027, %v6423
  %v6462 = vadd.f32 %v6028, %v6425
  %v6463 = vadd.f32 %v6029, %v6428
  %v6464 = vadd.f32 %v6030, %v6430
  %v6465 = vadd.f32 %v6031, %v6433
  %v6466 = vadd.f32 %v6032, %v6435
  %v6467 = vadd.f32 %v6033, %v6438
  %v6468 = vadd.f32 %v6034, %v6440
  %v6469 = vadd.f32 %v6035, %v6443
  %v6470 = vadd.f32 %v6036, %v6445
  %v6471 = vld [vmem:[%s2821] sm:$0xf]
  %v6472 = vld [vmem:[%s2821 + $0x4] sm:$0xf]
  %v6473 = vld [vmem:[%s2821 + $0x8] sm:$0xf]
  %v6474 = vld [vmem:[%s2821 + $0xc] sm:$0xf]
  %v6475 = vld [vmem:[%s2821 + $0x10] sm:$0xf]
  %v6476 = vld [vmem:[%s2821 + $0x14] sm:$0xf]
  %v6477 = vld [vmem:[%s2821 + $0x18] sm:$0xf]
  %v6478 = vld [vmem:[%s2821 + $0x1c] sm:$0xf]
  %v6479 = vld [vmem:[%s2821 + $0x20] sm:$0xf]
  %v6480 = vld [vmem:[%s2821 + $0x24] sm:$0xf]
  %v6481 = vld [vmem:[%s2821 + $0x28] sm:$0xf]
  %v6482 = vld [vmem:[%s2821 + $0x2c] sm:$0xf]
  %v6483 = vld [vmem:[%s2821 + $0x30] sm:$0xf]
  %v6484 = vld [vmem:[%s2821 + $0x34] sm:$0xf]
  %v6485 = vld [vmem:[%s2821 + $0x38] sm:$0xf]
  %v6486 = vld [vmem:[%s2821 + $0x3c] sm:$0xf]
  %v6487 = vld [vmem:[%s2821 + $0x40] sm:$0xf]
  %v6488 = vld [vmem:[%s2821 + $0x44] sm:$0xf]
  %v6489 = vld [vmem:[%s2821 + $0x48] sm:$0xf]
  %v6490 = vld [vmem:[%s2821 + $0x4c] sm:$0xf]
  %v6491 = vld [vmem:[%s2821 + $0x50] sm:$0xf]
  %v6492 = vld [vmem:[%s2821 + $0x54] sm:$0xf]
  %v6493 = vld [vmem:[%s2821 + $0x58] sm:$0xf]
  %v6494 = vld [vmem:[%s2821 + $0x5c] sm:$0xf]
  %v6495 = vld [vmem:[%s2821 + $0x60] sm:$0xf]
  %v6496 = vld [vmem:[%s2821 + $0x64] sm:$0xf]
  %v6497 = vld [vmem:[%s2821 + $0x68] sm:$0xf]
  %v6498 = vld [vmem:[%s2821 + $0x6c] sm:$0xf]
  %v6499 = vld [vmem:[%s2821 + $0x70] sm:$0xf]
  %v6500 = vld [vmem:[%s2821 + $0x74] sm:$0xf]
  %v6501 = vld [vmem:[%s2821 + $0x78] sm:$0xf]
  %v6502 = vld [vmem:[%s2821 + $0x7c] sm:$0xf]
  %v6535 = vunpack.c.l.b16 %v6471
  %v6536 = vunpack.c.l.b16 %v6472
  %v6537 = vunpack.c.l.b16 %v6473
  %v6538 = vunpack.c.l.b16 %v6474
  %v6539 = vunpack.c.l.b16 %v6475
  %v6540 = vunpack.c.l.b16 %v6476
  %v6541 = vunpack.c.l.b16 %v6477
  %v6542 = vunpack.c.l.b16 %v6478
  %v6543 = vunpack.c.l.b16 %v6479
  %v6544 = vunpack.c.l.b16 %v6480
  %v6545 = vunpack.c.l.b16 %v6481
  %v6546 = vunpack.c.l.b16 %v6482
  %v6547 = vunpack.c.l.b16 %v6483
  %v6548 = vunpack.c.l.b16 %v6484
  %v6549 = vunpack.c.l.b16 %v6485
  %v6550 = vunpack.c.l.b16 %v6486
  %v6551 = vunpack.c.l.b16 %v6487
  %v6552 = vunpack.c.l.b16 %v6488
  %v6553 = vunpack.c.l.b16 %v6489
  %v6554 = vunpack.c.l.b16 %v6490
  %v6555 = vunpack.c.l.b16 %v6491
  %v6556 = vunpack.c.l.b16 %v6492
  %v6557 = vunpack.c.l.b16 %v6493
  %v6558 = vunpack.c.l.b16 %v6494
  %v6559 = vunpack.c.l.b16 %v6495
  %v6560 = vunpack.c.l.b16 %v6496
  %v6561 = vunpack.c.l.b16 %v6497
  %v6562 = vunpack.c.l.b16 %v6498
  %v6563 = vunpack.c.l.b16 %v6499
  %v6564 = vunpack.c.l.b16 %v6500
  %v6565 = vunpack.c.l.b16 %v6501
  %v6566 = vunpack.c.l.b16 %v6502
  %v6567 = vpack.c.b16 %v6536, %v6535
  %v6568 = vpack.c.b16 %v6538, %v6537
  %v6569 = vpack.c.b16 %v6540, %v6539
  %v6570 = vpack.c.b16 %v6542, %v6541
  %v6571 = vpack.c.b16 %v6544, %v6543
  %v6572 = vpack.c.b16 %v6546, %v6545
  %v6573 = vpack.c.b16 %v6548, %v6547
  %v6574 = vpack.c.b16 %v6550, %v6549
  %v6575 = vpack.c.b16 %v6552, %v6551
  %v6576 = vpack.c.b16 %v6554, %v6553
  %v6577 = vpack.c.b16 %v6556, %v6555
  %v6578 = vpack.c.b16 %v6558, %v6557
  %v6579 = vpack.c.b16 %v6560, %v6559
  %v6580 = vpack.c.b16 %v6562, %v6561
  %v6581 = vpack.c.b16 %v6564, %v6563
  %v6582 = vpack.c.b16 %v6566, %v6565
  %6599 = vmatpush.bf16.msra.mxu0 %v6574
  %6600 = vmatpush.bf16.msra.mxu0 %v6573
  %6601 = vmatpush.bf16.msra.mxu0 %v6572
  %6602 = vmatpush.bf16.msra.mxu0 %v6571
  %6603 = vmatpush.bf16.msra.mxu0 %v6570
  %6604 = vmatpush.bf16.msra.mxu0 %v6569
  %6605 = vmatpush.bf16.msra.mxu0 %v6568
  %6606 = vmatpush.bf16.msra.mxu0 %v6567
  %6607 = vmatmul.bf16.gmra.mxu0 %v6165
  %v6608 = vpop.f32.mrf.mxu0
  %v6609 = vadd.f32 0.0, %v6608
  %v6610 = vpop.f32.mrf.mxu0
  %v6611 = vadd.f32 0.0, %v6610
  %6612 = vmatmul.bf16.gmra.mxu0 %v6167
  %v6613 = vpop.f32.mrf.mxu0
  %v6614 = vadd.f32 0.0, %v6613
  %v6615 = vpop.f32.mrf.mxu0
  %v6616 = vadd.f32 0.0, %v6615
  %6617 = vmatmul.bf16.gmra.mxu0 %v6169
  %v6618 = vpop.f32.mrf.mxu0
  %v6619 = vadd.f32 0.0, %v6618
  %v6620 = vpop.f32.mrf.mxu0
  %v6621 = vadd.f32 0.0, %v6620
  %6622 = vmatmul.bf16.gmra.mxu0 %v6171
  %v6623 = vpop.f32.mrf.mxu0
  %v6624 = vadd.f32 0.0, %v6623
  %v6625 = vpop.f32.mrf.mxu0
  %v6626 = vadd.f32 0.0, %v6625
  %6627 = vmatmul.bf16.gmra.mxu0 %v6173
  %v6628 = vpop.f32.mrf.mxu0
  %v6629 = vadd.f32 0.0, %v6628
  %v6630 = vpop.f32.mrf.mxu0
  %v6631 = vadd.f32 0.0, %v6630
  %6632 = vmatmul.bf16.gmra.mxu0 %v6175
  %v6633 = vpop.f32.mrf.mxu0
  %v6634 = vadd.f32 0.0, %v6633
  %v6635 = vpop.f32.mrf.mxu0
  %v6636 = vadd.f32 0.0, %v6635
  %6637 = vmatmul.bf16.gmra.mxu0 %v6177
  %v6638 = vpop.f32.mrf.mxu0
  %v6639 = vadd.f32 0.0, %v6638
  %v6640 = vpop.f32.mrf.mxu0
  %v6641 = vadd.f32 0.0, %v6640
  %6642 = vmatmul.bf16.gmra.mxu0 %v6179
  %v6643 = vpop.f32.mrf.mxu0
  %v6644 = vadd.f32 0.0, %v6643
  %v6645 = vpop.f32.mrf.mxu0
  %v6646 = vadd.f32 0.0, %v6645
  %6647 = vmatmul.bf16.gmra.mxu0 %v6181
  %v6648 = vpop.f32.mrf.mxu0
  %v6649 = vadd.f32 0.0, %v6648
  %v6650 = vpop.f32.mrf.mxu0
  %v6651 = vadd.f32 0.0, %v6650
  %6652 = vmatmul.bf16.gmra.mxu0 %v6183
  %v6653 = vpop.f32.mrf.mxu0
  %v6654 = vadd.f32 0.0, %v6653
  %v6655 = vpop.f32.mrf.mxu0
  %v6656 = vadd.f32 0.0, %v6655
  %6657 = vmatmul.bf16.gmra.mxu0 %v6185
  %v6658 = vpop.f32.mrf.mxu0
  %v6659 = vadd.f32 0.0, %v6658
  %v6660 = vpop.f32.mrf.mxu0
  %v6661 = vadd.f32 0.0, %v6660
  %6662 = vmatmul.bf16.gmra.mxu0 %v6187
  %v6663 = vpop.f32.mrf.mxu0
  %v6664 = vadd.f32 0.0, %v6663
  %v6665 = vpop.f32.mrf.mxu0
  %v6666 = vadd.f32 0.0, %v6665
  %6667 = vdwg.mxu0
  %6668 = vmatpush.bf16.msra.mxu0 %v6582
  %6669 = vmatpush.bf16.msra.mxu0 %v6581
  %6670 = vmatpush.bf16.msra.mxu0 %v6580
  %6671 = vmatpush.bf16.msra.mxu0 %v6579
  %6672 = vmatpush.bf16.msra.mxu0 %v6578
  %6673 = vmatpush.bf16.msra.mxu0 %v6577
  %6674 = vmatpush.bf16.msra.mxu0 %v6576
  %6675 = vmatpush.bf16.msra.mxu0 %v6575
  %6676 = vmatmul.bf16.gmra.mxu0 %v6166
  %v6677 = vpop.f32.mrf.mxu0
  %v6678 = vadd.f32 %v6609, %v6677
  %v6679 = vpop.f32.mrf.mxu0
  %v6680 = vadd.f32 %v6611, %v6679
  %6681 = vmatmul.bf16.gmra.mxu0 %v6168
  %v6682 = vpop.f32.mrf.mxu0
  %v6683 = vadd.f32 %v6614, %v6682
  %v6684 = vpop.f32.mrf.mxu0
  %v6685 = vadd.f32 %v6616, %v6684
  %6686 = vmatmul.bf16.gmra.mxu0 %v6170
  %v6687 = vpop.f32.mrf.mxu0
  %v6688 = vadd.f32 %v6619, %v6687
  %v6689 = vpop.f32.mrf.mxu0
  %v6690 = vadd.f32 %v6621, %v6689
  %6691 = vmatmul.bf16.gmra.mxu0 %v6172
  %v6692 = vpop.f32.mrf.mxu0
  %v6693 = vadd.f32 %v6624, %v6692
  %v6694 = vpop.f32.mrf.mxu0
  %v6695 = vadd.f32 %v6626, %v6694
  %6696 = vmatmul.bf16.gmra.mxu0 %v6174
  %v6697 = vpop.f32.mrf.mxu0
  %v6698 = vadd.f32 %v6629, %v6697
  %v6699 = vpop.f32.mrf.mxu0
  %v6700 = vadd.f32 %v6631, %v6699
  %6701 = vmatmul.bf16.gmra.mxu0 %v6176
  %v6702 = vpop.f32.mrf.mxu0
  %v6703 = vadd.f32 %v6634, %v6702
  %v6704 = vpop.f32.mrf.mxu0
  %v6705 = vadd.f32 %v6636, %v6704
  %6706 = vmatmul.bf16.gmra.mxu0 %v6178
  %v6707 = vpop.f32.mrf.mxu0
  %v6708 = vadd.f32 %v6639, %v6707
  %v6709 = vpop.f32.mrf.mxu0
  %v6710 = vadd.f32 %v6641, %v6709
  %6711 = vmatmul.bf16.gmra.mxu0 %v6180
  %v6712 = vpop.f32.mrf.mxu0
  %v6713 = vadd.f32 %v6644, %v6712
  %v6714 = vpop.f32.mrf.mxu0
  %v6715 = vadd.f32 %v6646, %v6714
  %6716 = vmatmul.bf16.gmra.mxu0 %v6182
  %v6717 = vpop.f32.mrf.mxu0
  %v6718 = vadd.f32 %v6649, %v6717
  %v6719 = vpop.f32.mrf.mxu0
  %v6720 = vadd.f32 %v6651, %v6719
  %6721 = vmatmul.bf16.gmra.mxu0 %v6184
  %v6722 = vpop.f32.mrf.mxu0
  %v6723 = vadd.f32 %v6654, %v6722
  %v6724 = vpop.f32.mrf.mxu0
  %v6725 = vadd.f32 %v6656, %v6724
  %6726 = vmatmul.bf16.gmra.mxu0 %v6186
  %v6727 = vpop.f32.mrf.mxu0
  %v6728 = vadd.f32 %v6659, %v6727
  %v6729 = vpop.f32.mrf.mxu0
  %v6730 = vadd.f32 %v6661, %v6729
  %6731 = vmatmul.bf16.gmra.mxu0 %v6188
  %v6732 = vpop.f32.mrf.mxu0
  %v6733 = vadd.f32 %v6664, %v6732
  %v6734 = vpop.f32.mrf.mxu0
  %v6735 = vadd.f32 %v6666, %v6734
  %6736 = vdwg.mxu0
  %v6761 = vrot.slane %v6678, 1
  %v6762 = vrot.slane %v6680, 1
  %v6763 = vsel %vm740, %v6761, %v6762
  %v6764 = vrot.slane %v6683, 1
  %v6765 = vrot.slane %v6685, 1
  %v6766 = vsel %vm740, %v6764, %v6765
  %v6767 = vrot.slane %v6688, 1
  %v6768 = vrot.slane %v6690, 1
  %v6769 = vsel %vm740, %v6767, %v6768
  %v6770 = vrot.slane %v6693, 1
  %v6771 = vrot.slane %v6695, 1
  %v6772 = vsel %vm740, %v6770, %v6771
  %v6773 = vrot.slane %v6698, 1
  %v6774 = vrot.slane %v6700, 1
  %v6775 = vsel %vm740, %v6773, %v6774
  %v6776 = vrot.slane %v6703, 1
  %v6777 = vrot.slane %v6705, 1
  %v6778 = vsel %vm740, %v6776, %v6777
  %v6779 = vrot.slane %v6708, 1
  %v6780 = vrot.slane %v6710, 1
  %v6781 = vsel %vm740, %v6779, %v6780
  %v6782 = vrot.slane %v6713, 1
  %v6783 = vrot.slane %v6715, 1
  %v6784 = vsel %vm740, %v6782, %v6783
  %v6785 = vrot.slane %v6718, 1
  %v6786 = vrot.slane %v6720, 1
  %v6787 = vsel %vm740, %v6785, %v6786
  %v6788 = vrot.slane %v6723, 1
  %v6789 = vrot.slane %v6725, 1
  %v6790 = vsel %vm740, %v6788, %v6789
  %v6791 = vrot.slane %v6728, 1
  %v6792 = vrot.slane %v6730, 1
  %v6793 = vsel %vm740, %v6791, %v6792
  %v6794 = vrot.slane %v6733, 1
  %v6795 = vrot.slane %v6735, 1
  %v6796 = vsel %vm740, %v6794, %v6795
  %v6821 = vadd.f32 %v6447, %v6763
  %v6822 = vadd.f32 %v6448, %v6762
  %v6823 = vadd.f32 %v6449, %v6766
  %v6824 = vadd.f32 %v6450, %v6765
  %v6825 = vadd.f32 %v6451, %v6769
  %v6826 = vadd.f32 %v6452, %v6768
  %v6827 = vadd.f32 %v6453, %v6772
  %v6828 = vadd.f32 %v6454, %v6771
  %v6829 = vadd.f32 %v6455, %v6775
  %v6830 = vadd.f32 %v6456, %v6774
  %v6831 = vadd.f32 %v6457, %v6778
  %v6832 = vadd.f32 %v6458, %v6777
  %v6833 = vadd.f32 %v6459, %v6781
  %v6834 = vadd.f32 %v6460, %v6780
  %v6835 = vadd.f32 %v6461, %v6784
  %v6836 = vadd.f32 %v6462, %v6783
  %v6837 = vadd.f32 %v6463, %v6787
  %v6838 = vadd.f32 %v6464, %v6786
  %v6839 = vadd.f32 %v6465, %v6790
  %v6840 = vadd.f32 %v6466, %v6789
  %v6841 = vadd.f32 %v6467, %v6793
  %v6842 = vadd.f32 %v6468, %v6792
  %v6843 = vadd.f32 %v6469, %v6796
  %v6844 = vadd.f32 %v6470, %v6795
  %v6845 = vld [vmem:[%s3196] sm:$0xf]
  %v6846 = vld [vmem:[%s3196 + $0x4] sm:$0xf]
  %v6847 = vld [vmem:[%s3196 + $0x8] sm:$0xf]
  %v6848 = vld [vmem:[%s3196 + $0xc] sm:$0xf]
  %v6849 = vld [vmem:[%s3196 + $0x10] sm:$0xf]
  %v6850 = vld [vmem:[%s3196 + $0x14] sm:$0xf]
  %v6851 = vld [vmem:[%s3196 + $0x18] sm:$0xf]
  %v6852 = vld [vmem:[%s3196 + $0x1c] sm:$0xf]
  %v6853 = vld [vmem:[%s3196 + $0x20] sm:$0xf]
  %v6854 = vld [vmem:[%s3196 + $0x24] sm:$0xf]
  %v6855 = vld [vmem:[%s3196 + $0x28] sm:$0xf]
  %v6856 = vld [vmem:[%s3196 + $0x2c] sm:$0xf]
  %v6857 = vld [vmem:[%s3196 + $0x30] sm:$0xf]
  %v6858 = vld [vmem:[%s3196 + $0x34] sm:$0xf]
  %v6859 = vld [vmem:[%s3196 + $0x38] sm:$0xf]
  %v6860 = vld [vmem:[%s3196 + $0x3c] sm:$0xf]
  %v6861 = vld [vmem:[%s3196 + $0x40] sm:$0xf]
  %v6862 = vld [vmem:[%s3196 + $0x44] sm:$0xf]
  %v6863 = vld [vmem:[%s3196 + $0x48] sm:$0xf]
  %v6864 = vld [vmem:[%s3196 + $0x4c] sm:$0xf]
  %v6865 = vld [vmem:[%s3196 + $0x50] sm:$0xf]
  %v6866 = vld [vmem:[%s3196 + $0x54] sm:$0xf]
  %v6867 = vld [vmem:[%s3196 + $0x58] sm:$0xf]
  %v6868 = vld [vmem:[%s3196 + $0x5c] sm:$0xf]
  %v6869 = vld [vmem:[%s3196 + $0x60] sm:$0xf]
  %v6870 = vld [vmem:[%s3196 + $0x64] sm:$0xf]
  %v6871 = vld [vmem:[%s3196 + $0x68] sm:$0xf]
  %v6872 = vld [vmem:[%s3196 + $0x6c] sm:$0xf]
  %v6873 = vld [vmem:[%s3196 + $0x70] sm:$0xf]
  %v6874 = vld [vmem:[%s3196 + $0x74] sm:$0xf]
  %v6875 = vld [vmem:[%s3196 + $0x78] sm:$0xf]
  %v6876 = vld [vmem:[%s3196 + $0x7c] sm:$0xf]
  %v6909 = vunpack.c.l.b16 %v6845
  %v6910 = vunpack.c.l.b16 %v6846
  %v6911 = vunpack.c.l.b16 %v6847
  %v6912 = vunpack.c.l.b16 %v6848
  %v6913 = vunpack.c.l.b16 %v6849
  %v6914 = vunpack.c.l.b16 %v6850
  %v6915 = vunpack.c.l.b16 %v6851
  %v6916 = vunpack.c.l.b16 %v6852
  %v6917 = vunpack.c.l.b16 %v6853
  %v6918 = vunpack.c.l.b16 %v6854
  %v6919 = vunpack.c.l.b16 %v6855
  %v6920 = vunpack.c.l.b16 %v6856
  %v6921 = vunpack.c.l.b16 %v6857
  %v6922 = vunpack.c.l.b16 %v6858
  %v6923 = vunpack.c.l.b16 %v6859
  %v6924 = vunpack.c.l.b16 %v6860
  %v6925 = vunpack.c.l.b16 %v6861
  %v6926 = vunpack.c.l.b16 %v6862
  %v6927 = vunpack.c.l.b16 %v6863
  %v6928 = vunpack.c.l.b16 %v6864
  %v6929 = vunpack.c.l.b16 %v6865
  %v6930 = vunpack.c.l.b16 %v6866
  %v6931 = vunpack.c.l.b16 %v6867
  %v6932 = vunpack.c.l.b16 %v6868
  %v6933 = vunpack.c.l.b16 %v6869
  %v6934 = vunpack.c.l.b16 %v6870
  %v6935 = vunpack.c.l.b16 %v6871
  %v6936 = vunpack.c.l.b16 %v6872
  %v6937 = vunpack.c.l.b16 %v6873
  %v6938 = vunpack.c.l.b16 %v6874
  %v6939 = vunpack.c.l.b16 %v6875
  %v6940 = vunpack.c.l.b16 %v6876
  %v6941 = vpack.c.b16 %v6910, %v6909
  %v6942 = vpack.c.b16 %v6912, %v6911
  %v6943 = vpack.c.b16 %v6914, %v6913
  %v6944 = vpack.c.b16 %v6916, %v6915
  %v6945 = vpack.c.b16 %v6918, %v6917
  %v6946 = vpack.c.b16 %v6920, %v6919
  %v6947 = vpack.c.b16 %v6922, %v6921
  %v6948 = vpack.c.b16 %v6924, %v6923
  %v6949 = vpack.c.b16 %v6926, %v6925
  %v6950 = vpack.c.b16 %v6928, %v6927
  %v6951 = vpack.c.b16 %v6930, %v6929
  %v6952 = vpack.c.b16 %v6932, %v6931
  %v6953 = vpack.c.b16 %v6934, %v6933
  %v6954 = vpack.c.b16 %v6936, %v6935
  %v6955 = vpack.c.b16 %v6938, %v6937
  %v6956 = vpack.c.b16 %v6940, %v6939
  %6973 = vmatpush.bf16.msra.mxu0 %v6948
  %6974 = vmatpush.bf16.msra.mxu0 %v6947
  %6975 = vmatpush.bf16.msra.mxu0 %v6946
  %6976 = vmatpush.bf16.msra.mxu0 %v6945
  %6977 = vmatpush.bf16.msra.mxu0 %v6944
  %6978 = vmatpush.bf16.msra.mxu0 %v6943
  %6979 = vmatpush.bf16.msra.mxu0 %v6942
  %6980 = vmatpush.bf16.msra.mxu0 %v6941
  %6981 = vmatmul.bf16.gmra.mxu0 %v6165
  %v6982 = vpop.f32.mrf.mxu0
  %v6983 = vadd.f32 0.0, %v6982
  %v6984 = vpop.f32.mrf.mxu0
  %v6985 = vadd.f32 0.0, %v6984
  %6986 = vmatmul.bf16.gmra.mxu0 %v6167
  %v6987 = vpop.f32.mrf.mxu0
  %v6988 = vadd.f32 0.0, %v6987
  %v6989 = vpop.f32.mrf.mxu0
  %v6990 = vadd.f32 0.0, %v6989
  %6991 = vmatmul.bf16.gmra.mxu0 %v6169
  %v6992 = vpop.f32.mrf.mxu0
  %v6993 = vadd.f32 0.0, %v6992
  %v6994 = vpop.f32.mrf.mxu0
  %v6995 = vadd.f32 0.0, %v6994
  %6996 = vmatmul.bf16.gmra.mxu0 %v6171
  %v6997 = vpop.f32.mrf.mxu0
  %v6998 = vadd.f32 0.0, %v6997
  %v6999 = vpop.f32.mrf.mxu0
  %v7000 = vadd.f32 0.0, %v6999
  %7001 = vmatmul.bf16.gmra.mxu0 %v6173
  %v7002 = vpop.f32.mrf.mxu0
  %v7003 = vadd.f32 0.0, %v7002
  %v7004 = vpop.f32.mrf.mxu0
  %v7005 = vadd.f32 0.0, %v7004
  %7006 = vmatmul.bf16.gmra.mxu0 %v6175
  %v7007 = vpop.f32.mrf.mxu0
  %v7008 = vadd.f32 0.0, %v7007
  %v7009 = vpop.f32.mrf.mxu0
  %v7010 = vadd.f32 0.0, %v7009
  %7011 = vmatmul.bf16.gmra.mxu0 %v6177
  %v7012 = vpop.f32.mrf.mxu0
  %v7013 = vadd.f32 0.0, %v7012
  %v7014 = vpop.f32.mrf.mxu0
  %v7015 = vadd.f32 0.0, %v7014
  %7016 = vmatmul.bf16.gmra.mxu0 %v6179
  %v7017 = vpop.f32.mrf.mxu0
  %v7018 = vadd.f32 0.0, %v7017
  %v7019 = vpop.f32.mrf.mxu0
  %v7020 = vadd.f32 0.0, %v7019
  %7021 = vmatmul.bf16.gmra.mxu0 %v6181
  %v7022 = vpop.f32.mrf.mxu0
  %v7023 = vadd.f32 0.0, %v7022
  %v7024 = vpop.f32.mrf.mxu0
  %v7025 = vadd.f32 0.0, %v7024
  %7026 = vmatmul.bf16.gmra.mxu0 %v6183
  %v7027 = vpop.f32.mrf.mxu0
  %v7028 = vadd.f32 0.0, %v7027
  %v7029 = vpop.f32.mrf.mxu0
  %v7030 = vadd.f32 0.0, %v7029
  %7031 = vmatmul.bf16.gmra.mxu0 %v6185
  %v7032 = vpop.f32.mrf.mxu0
  %v7033 = vadd.f32 0.0, %v7032
  %v7034 = vpop.f32.mrf.mxu0
  %v7035 = vadd.f32 0.0, %v7034
  %7036 = vmatmul.bf16.gmra.mxu0 %v6187
  %v7037 = vpop.f32.mrf.mxu0
  %v7038 = vadd.f32 0.0, %v7037
  %v7039 = vpop.f32.mrf.mxu0
  %v7040 = vadd.f32 0.0, %v7039
  %7041 = vdwg.mxu0
  %7042 = vmatpush.bf16.msra.mxu0 %v6956
  %7043 = vmatpush.bf16.msra.mxu0 %v6955
  %7044 = vmatpush.bf16.msra.mxu0 %v6954
  %7045 = vmatpush.bf16.msra.mxu0 %v6953
  %7046 = vmatpush.bf16.msra.mxu0 %v6952
  %7047 = vmatpush.bf16.msra.mxu0 %v6951
  %7048 = vmatpush.bf16.msra.mxu0 %v6950
  %7049 = vmatpush.bf16.msra.mxu0 %v6949
  %7050 = vmatmul.bf16.gmra.mxu0 %v6166
  %v7051 = vpop.f32.mrf.mxu0
  %v7052 = vadd.f32 %v6983, %v7051
  %v7053 = vpop.f32.mrf.mxu0
  %v7054 = vadd.f32 %v6985, %v7053
  %7055 = vmatmul.bf16.gmra.mxu0 %v6168
  %v7056 = vpop.f32.mrf.mxu0
  %v7057 = vadd.f32 %v6988, %v7056
  %v7058 = vpop.f32.mrf.mxu0
  %v7059 = vadd.f32 %v6990, %v7058
  %7060 = vmatmul.bf16.gmra.mxu0 %v6170
  %v7061 = vpop.f32.mrf.mxu0
  %v7062 = vadd.f32 %v6993, %v7061
  %v7063 = vpop.f32.mrf.mxu0
  %v7064 = vadd.f32 %v6995, %v7063
  %7065 = vmatmul.bf16.gmra.mxu0 %v6172
  %v7066 = vpop.f32.mrf.mxu0
  %v7067 = vadd.f32 %v6998, %v7066
  %v7068 = vpop.f32.mrf.mxu0
  %v7069 = vadd.f32 %v7000, %v7068
  %7070 = vmatmul.bf16.gmra.mxu0 %v6174
  %v7071 = vpop.f32.mrf.mxu0
  %v7072 = vadd.f32 %v7003, %v7071
  %v7073 = vpop.f32.mrf.mxu0
  %v7074 = vadd.f32 %v7005, %v7073
  %7075 = vmatmul.bf16.gmra.mxu0 %v6176
  %v7076 = vpop.f32.mrf.mxu0
  %v7077 = vadd.f32 %v7008, %v7076
  %v7078 = vpop.f32.mrf.mxu0
  %v7079 = vadd.f32 %v7010, %v7078
  %7080 = vmatmul.bf16.gmra.mxu0 %v6178
  %v7081 = vpop.f32.mrf.mxu0
  %v7082 = vadd.f32 %v7013, %v7081
  %v7083 = vpop.f32.mrf.mxu0
  %v7084 = vadd.f32 %v7015, %v7083
  %7085 = vmatmul.bf16.gmra.mxu0 %v6180
  %v7086 = vpop.f32.mrf.mxu0
  %v7087 = vadd.f32 %v7018, %v7086
  %v7088 = vpop.f32.mrf.mxu0
  %v7089 = vadd.f32 %v7020, %v7088
  %7090 = vmatmul.bf16.gmra.mxu0 %v6182
  %v7091 = vpop.f32.mrf.mxu0
  %v7092 = vadd.f32 %v7023, %v7091
  %v7093 = vpop.f32.mrf.mxu0
  %v7094 = vadd.f32 %v7025, %v7093
  %7095 = vmatmul.bf16.gmra.mxu0 %v6184
  %v7096 = vpop.f32.mrf.mxu0
  %v7097 = vadd.f32 %v7028, %v7096
  %v7098 = vpop.f32.mrf.mxu0
  %v7099 = vadd.f32 %v7030, %v7098
  %7100 = vmatmul.bf16.gmra.mxu0 %v6186
  %v7101 = vpop.f32.mrf.mxu0
  %v7102 = vadd.f32 %v7033, %v7101
  %v7103 = vpop.f32.mrf.mxu0
  %v7104 = vadd.f32 %v7035, %v7103
  %7105 = vmatmul.bf16.gmra.mxu0 %v6188
  %v7106 = vpop.f32.mrf.mxu0
  %v7107 = vadd.f32 %v7038, %v7106
  %v7108 = vpop.f32.mrf.mxu0
  %v7109 = vadd.f32 %v7040, %v7108
  %7110 = vdwg.mxu0
  %v7135 = vrot.slane %v7052, 2
  %v7136 = vrot.slane %v7054, 2
  %v7137 = vsel %vm1116, %v7135, %v7136
  %v7138 = vrot.slane %v7057, 2
  %v7139 = vrot.slane %v7059, 2
  %v7140 = vsel %vm1116, %v7138, %v7139
  %v7141 = vrot.slane %v7062, 2
  %v7142 = vrot.slane %v7064, 2
  %v7143 = vsel %vm1116, %v7141, %v7142
  %v7144 = vrot.slane %v7067, 2
  %v7145 = vrot.slane %v7069, 2
  %v7146 = vsel %vm1116, %v7144, %v7145
  %v7147 = vrot.slane %v7072, 2
  %v7148 = vrot.slane %v7074, 2
  %v7149 = vsel %vm1116, %v7147, %v7148
  %v7150 = vrot.slane %v7077, 2
  %v7151 = vrot.slane %v7079, 2
  %v7152 = vsel %vm1116, %v7150, %v7151
  %v7153 = vrot.slane %v7082, 2
  %v7154 = vrot.slane %v7084, 2
  %v7155 = vsel %vm1116, %v7153, %v7154
  %v7156 = vrot.slane %v7087, 2
  %v7157 = vrot.slane %v7089, 2
  %v7158 = vsel %vm1116, %v7156, %v7157
  %v7159 = vrot.slane %v7092, 2
  %v7160 = vrot.slane %v7094, 2
  %v7161 = vsel %vm1116, %v7159, %v7160
  %v7162 = vrot.slane %v7097, 2
  %v7163 = vrot.slane %v7099, 2
  %v7164 = vsel %vm1116, %v7162, %v7163
  %v7165 = vrot.slane %v7102, 2
  %v7166 = vrot.slane %v7104, 2
  %v7167 = vsel %vm1116, %v7165, %v7166
  %v7168 = vrot.slane %v7107, 2
  %v7169 = vrot.slane %v7109, 2
  %v7170 = vsel %vm1116, %v7168, %v7169
  %v7195 = vadd.f32 %v6821, %v7137
  %v7196 = vadd.f32 %v6822, %v7136
  %v7197 = vadd.f32 %v6823, %v7140
  %v7198 = vadd.f32 %v6824, %v7139
  %v7199 = vadd.f32 %v6825, %v7143
  %v7200 = vadd.f32 %v6826, %v7142
  %v7201 = vadd.f32 %v6827, %v7146
  %v7202 = vadd.f32 %v6828, %v7145
  %v7203 = vadd.f32 %v6829, %v7149
  %v7204 = vadd.f32 %v6830, %v7148
  %v7205 = vadd.f32 %v6831, %v7152
  %v7206 = vadd.f32 %v6832, %v7151
  %v7207 = vadd.f32 %v6833, %v7155
  %v7208 = vadd.f32 %v6834, %v7154
  %v7209 = vadd.f32 %v6835, %v7158
  %v7210 = vadd.f32 %v6836, %v7157
  %v7211 = vadd.f32 %v6837, %v7161
  %v7212 = vadd.f32 %v6838, %v7160
  %v7213 = vadd.f32 %v6839, %v7164
  %v7214 = vadd.f32 %v6840, %v7163
  %v7215 = vadd.f32 %v6841, %v7167
  %v7216 = vadd.f32 %v6842, %v7166
  %v7217 = vadd.f32 %v6843, %v7170
  %v7218 = vadd.f32 %v6844, %v7169
  %v7219 = vadd.f32 %v7195, %v3572
  %v7220 = vadd.f32 %v7196, %v3572
  %v7221 = vadd.f32 %v7197, %v3572
  %v7222 = vadd.f32 %v7198, %v3572
  %v7223 = vadd.f32 %v7199, %v3572
  %v7224 = vadd.f32 %v7200, %v3572
  %v7225 = vadd.f32 %v7201, %v3572
  %v7226 = vadd.f32 %v7202, %v3572
  %v7227 = vadd.f32 %v7203, %v3572
  %v7228 = vadd.f32 %v7204, %v3572
  %v7229 = vadd.f32 %v7205, %v3572
  %v7230 = vadd.f32 %v7206, %v3572
  %v7231 = vadd.f32 %v7207, %v3572
  %v7232 = vadd.f32 %v7208, %v3572
  %v7233 = vadd.f32 %v7209, %v3572
  %v7234 = vadd.f32 %v7210, %v3572
  %v7235 = vadd.f32 %v7211, %v3572
  %v7236 = vadd.f32 %v7212, %v3572
  %v7237 = vadd.f32 %v7213, %v3572
  %v7238 = vadd.f32 %v7214, %v3572
  %v7239 = vadd.f32 %v7215, %v3572
  %v7240 = vadd.f32 %v7216, %v3572
  %v7241 = vadd.f32 %v7217, %v3572
  %v7242 = vadd.f32 %v7218, %v3572
  %v7243 = vmax.f32 %v7219, 0.0
  %v7244 = vmax.f32 %v7220, 0.0
  %v7245 = vmax.f32 %v7221, 0.0
  %v7246 = vmax.f32 %v7222, 0.0
  %v7247 = vmax.f32 %v7223, 0.0
  %v7248 = vmax.f32 %v7224, 0.0
  %v7249 = vmax.f32 %v7225, 0.0
  %v7250 = vmax.f32 %v7226, 0.0
  %v7251 = vmax.f32 %v7227, 0.0
  %v7252 = vmax.f32 %v7228, 0.0
  %v7253 = vmax.f32 %v7229, 0.0
  %v7254 = vmax.f32 %v7230, 0.0
  %v7255 = vmax.f32 %v7231, 0.0
  %v7256 = vmax.f32 %v7232, 0.0
  %v7257 = vmax.f32 %v7233, 0.0
  %v7258 = vmax.f32 %v7234, 0.0
  %v7259 = vmax.f32 %v7235, 0.0
  %v7260 = vmax.f32 %v7236, 0.0
  %v7261 = vmax.f32 %v7237, 0.0
  %v7262 = vmax.f32 %v7238, 0.0
  %v7263 = vmax.f32 %v7239, 0.0
  %v7264 = vmax.f32 %v7240, 0.0
  %v7265 = vmax.f32 %v7241, 0.0
  %v7266 = vmax.f32 %v7242, 0.0
  %v7267 = vpack.c.bf16 %v7243, %v7243
  %v7268 = vpack.c.bf16 %v7244, %v7244
  %v7269 = vpack.c.bf16 %v7245, %v7245
  %v7270 = vpack.c.bf16 %v7246, %v7246
  %v7271 = vpack.c.bf16 %v7247, %v7247
  %v7272 = vpack.c.bf16 %v7248, %v7248
  %v7273 = vpack.c.bf16 %v7249, %v7249
  %v7274 = vpack.c.bf16 %v7250, %v7250
  %v7275 = vpack.c.bf16 %v7251, %v7251
  %v7276 = vpack.c.bf16 %v7252, %v7252
  %v7277 = vpack.c.bf16 %v7253, %v7253
  %v7278 = vpack.c.bf16 %v7254, %v7254
  %v7279 = vpack.c.bf16 %v7255, %v7255
  %v7280 = vpack.c.bf16 %v7256, %v7256
  %v7281 = vpack.c.bf16 %v7257, %v7257
  %v7282 = vpack.c.bf16 %v7258, %v7258
  %v7283 = vpack.c.bf16 %v7259, %v7259
  %v7284 = vpack.c.bf16 %v7260, %v7260
  %v7285 = vpack.c.bf16 %v7261, %v7261
  %v7286 = vpack.c.bf16 %v7262, %v7262
  %v7287 = vpack.c.bf16 %v7263, %v7263
  %v7288 = vpack.c.bf16 %v7264, %v7264
  %v7289 = vpack.c.bf16 %v7265, %v7265
  %v7290 = vpack.c.bf16 %v7266, %v7266
  %s7291 = scalar_lea.vmem %s3, 96
  %7292 = vst.msk [vmem:[%s7291] sm:$0xf] %vm3646, %v7267
  %7293 = vst.msk [vmem:[%s7291 + $0x4] sm:$0x3] %vm3648, %v7268
  %7294 = vst.msk [vmem:[%s7291 + $0x8] sm:$0xf] %vm3646, %v7269
  %7295 = vst.msk [vmem:[%s7291 + $0xc] sm:$0x3] %vm3648, %v7270
  %7296 = vst.msk [vmem:[%s7291 + $0x10] sm:$0xf] %vm3646, %v7271
  %7297 = vst.msk [vmem:[%s7291 + $0x14] sm:$0x3] %vm3648, %v7272
  %7298 = vst.msk [vmem:[%s7291 + $0x18] sm:$0xf] %vm3646, %v7273
  %7299 = vst.msk [vmem:[%s7291 + $0x1c] sm:$0x3] %vm3648, %v7274
  %7300 = vst.msk [vmem:[%s7291 + $0x20] sm:$0xf] %vm3646, %v7275
  %7301 = vst.msk [vmem:[%s7291 + $0x24] sm:$0x3] %vm3648, %v7276
  %7302 = vst.msk [vmem:[%s7291 + $0x28] sm:$0xf] %vm3646, %v7277
  %7303 = vst.msk [vmem:[%s7291 + $0x2c] sm:$0x3] %vm3648, %v7278
  %7304 = vst.msk [vmem:[%s7291 + $0x30] sm:$0xf] %vm3646, %v7279
  %7305 = vst.msk [vmem:[%s7291 + $0x34] sm:$0x3] %vm3648, %v7280
  %7306 = vst.msk [vmem:[%s7291 + $0x38] sm:$0xf] %vm3646, %v7281
  %7307 = vst.msk [vmem:[%s7291 + $0x3c] sm:$0x3] %vm3648, %v7282
  %7308 = vst.msk [vmem:[%s7291 + $0x40] sm:$0xf] %vm3646, %v7283
  %7309 = vst.msk [vmem:[%s7291 + $0x44] sm:$0x3] %vm3648, %v7284
  %7310 = vst.msk [vmem:[%s7291 + $0x48] sm:$0xf] %vm3646, %v7285
  %7311 = vst.msk [vmem:[%s7291 + $0x4c] sm:$0x3] %vm3648, %v7286
  %7312 = vst.msk [vmem:[%s7291 + $0x50] sm:$0xf] %vm3646, %v7287
  %7313 = vst.msk [vmem:[%s7291 + $0x54] sm:$0x3] %vm3648, %v7288
  %7314 = vst.msk [vmem:[%s7291 + $0x58] sm:$0xf] %vm3646, %v7289
  %7315 = vst.msk [vmem:[%s7291 + $0x5c] sm:$0x3] %vm3648, %v7290
  // Predicated region
  $region14: #{model_a_forward.4} parent=0 // pred_check
    _
  $region15: #{model_a_forward.4} parent=0 // pred_check_branch
    %7317 = sbr.rel (0) target = $region17
  $region16: #{model_a_forward.4} parent=0 // pred_region
    _
  $region17: #{model_a_forward.4} parent=0 // pred_fallthru
    _
  // Predicated region
  $region18: #{model_a_forward.4} parent=0 // pred_check
    _
  $region19: #{model_a_forward.4} parent=0 // pred_check_branch
    %7319 = sbr.rel (0) target = $region21
  $region20: #{model_a_forward.4} parent=0 // pred_region
    _
  $region21: #{model_a_forward.4} parent=0 // pred_fallthru
    _

// kernel: model_a_forward.5
$region0: #{model_a_forward.5}
  #allocation0 [shape = 'u32[]', space=smem, size = 0x4, offset = 0x4, fixed_abs, tag = 'smem constant byte address 0x4 - core index']
  #allocation1 [shape = 'u32[72,128]{1,0:T(1,128)}', space=vmem, size = 0x9000, scoped, tag = 'internal scratch']
  #allocation2 [shape = 'f32[8,128]{1,0:T(8,128)}', space=vmem, size = 0x1000, scoped, tag = 'scratch operand']
  %s0 = inlined_call_operand.vmem [shape: bf16[8,9216], index: 0, kind: input, shape index: {}]
  %s1 = inlined_call_operand.vmem [shape: bf16[9216,128], index: 1, kind: input, shape index: {}]
  %s2 = inlined_call_operand.vmem [shape: f32[1,128], index: 2, kind: input, shape index: {}]
  %s3 = inlined_call_operand.vmem [shape: bf16[128,128], index: 3, kind: input, shape index: {}]
  %s4 = inlined_call_operand.vmem [shape: f32[1,128], index: 4, kind: input, shape index: {}]
  %s5 = inlined_call_operand.vmem [shape: f32[8,128], index: 5, kind: output, shape index: {}]
  %s6 = sld [smem:[#allocation0]]
  $region38: #{model_a_forward.5} parent=0
    _
  %s8 = ssub.s32 1, %s6
  %s9 = scalar_select 0, %s8, %s6
  // Predicated region
  $region2: #{model_a_forward.5} parent=0 // pred_check
    _
  $region3: #{model_a_forward.5} parent=0 // pred_check_branch
    %11 = sbr.rel (0) target = $region5
  $region4: #{model_a_forward.5} parent=0 // pred_region
    _
  $region5: #{model_a_forward.5} parent=0 // pred_fallthru
    _
  // Predicated region
  $region6: #{model_a_forward.5} parent=0 // pred_check
    _
  $region7: #{model_a_forward.5} parent=0 // pred_check_branch
    %13 = sbr.rel (0) target = $region9
  $region8: #{model_a_forward.5} parent=0 // pred_region
    _
  $region9: #{model_a_forward.5} parent=0 // pred_fallthru
    _
  // Predicated region
  $region10: #{model_a_forward.5} parent=0 // pred_check
    _
  $region11: #{model_a_forward.5} parent=0 // pred_check_branch
    %15 = sbr.rel (0) target = $region13
  $region12: #{model_a_forward.5} parent=0 // pred_region
    _
  $region13: #{model_a_forward.5} parent=0 // pred_fallthru
    _
  // Predicated region
  $region14: #{model_a_forward.5} parent=0 // pred_check
    _
  $region15: #{model_a_forward.5} parent=0 // pred_check_branch
    %17 = sbr.rel (0) target = $region17
  $region16: #{model_a_forward.5} parent=0 // pred_region
    _
  $region17: #{model_a_forward.5} parent=0 // pred_fallthru
    _
  // Predicated region
  $region18: #{model_a_forward.5} parent=0 // pred_check
    _
  $region19: #{model_a_forward.5} parent=0 // pred_check_branch
    %19 = sbr.rel (0) target = $region21
  $region20: #{model_a_forward.5} parent=0 // pred_region
    _
  $region21: #{model_a_forward.5} parent=0 // pred_fallthru
    _
  %p20 = scmp.eq.s32.totalorder 0, 0
  // Predicated region
  $region22: #{model_a_forward.5} parent=0 // pred_check
    %p21 = pneg %p20
  $region23: #{model_a_forward.5} parent=0 // pred_check_branch
    %23 = sbr.rel (%p21) target = $region25
  $region24: #{model_a_forward.5} parent=0 // pred_region
    %24 = vst [vmem:[#allocation2] sm:$0xff] 0.0
  $region25: #{model_a_forward.5} parent=0 // pred_fallthru
    _
  %v25 = vld [vmem:[#allocation2] sm:$0xff]
  %v26 = vld [vmem:[%s0] sm:$0xff]
  %v27 = vld [vmem:[%s0 + $0x8] sm:$0xff]
  %v28 = vld [vmem:[%s0 + $0x10] sm:$0xff]
  %v29 = vld [vmem:[%s0 + $0x18] sm:$0xff]
  %v30 = vld [vmem:[%s0 + $0x20] sm:$0xff]
  %v31 = vld [vmem:[%s0 + $0x28] sm:$0xff]
  %v32 = vld [vmem:[%s0 + $0x30] sm:$0xff]
  %v33 = vld [vmem:[%s0 + $0x38] sm:$0xff]
  %v34 = vld [vmem:[%s0 + $0x40] sm:$0xff]
  %v35 = vld [vmem:[%s0 + $0x48] sm:$0xff]
  %v36 = vld [vmem:[%s0 + $0x50] sm:$0xff]
  %v37 = vld [vmem:[%s0 + $0x58] sm:$0xff]
  %v38 = vld [vmem:[%s0 + $0x60] sm:$0xff]
  %v39 = vld [vmem:[%s0 + $0x68] sm:$0xff]
  %v40 = vld [vmem:[%s0 + $0x70] sm:$0xff]
  %v41 = vld [vmem:[%s0 + $0x78] sm:$0xff]
  %v42 = vld [vmem:[%s0 + $0x80] sm:$0xff]
  %v43 = vld [vmem:[%s0 + $0x88] sm:$0xff]
  %v44 = vld [vmem:[%s0 + $0x90] sm:$0xff]
  %v45 = vld [vmem:[%s0 + $0x98] sm:$0xff]
  %v46 = vld [vmem:[%s0 + $0xa0] sm:$0xff]
  %v47 = vld [vmem:[%s0 + $0xa8] sm:$0xff]
  %v48 = vld [vmem:[%s0 + $0xb0] sm:$0xff]
  %v49 = vld [vmem:[%s0 + $0xb8] sm:$0xff]
  %v50 = vld [vmem:[%s0 + $0xc0] sm:$0xff]
  %v51 = vld [vmem:[%s0 + $0xc8] sm:$0xff]
  %v52 = vld [vmem:[%s0 + $0xd0] sm:$0xff]
  %v53 = vld [vmem:[%s0 + $0xd8] sm:$0xff]
  %v54 = vld [vmem:[%s0 + $0xe0] sm:$0xff]
  %v55 = vld [vmem:[%s0 + $0xe8] sm:$0xff]
  %v56 = vld [vmem:[%s0 + $0xf0] sm:$0xff]
  %v57 = vld [vmem:[%s0 + $0xf8] sm:$0xff]
  %v58 = vld [vmem:[%s0 + $0x100] sm:$0xff]
  %v59 = vld [vmem:[%s0 + $0x108] sm:$0xff]
  %v60 = vld [vmem:[%s0 + $0x110] sm:$0xff]
  %v61 = vld [vmem:[%s0 + $0x118] sm:$0xff]
  %v62 = vld [vmem:[%s1] sm:$0xf]
  %v63 = vld [vmem:[%s1 + $0x4] sm:$0xf]
  %v64 = vld [vmem:[%s1 + $0x8] sm:$0xf]
  %v65 = vld [vmem:[%s1 + $0xc] sm:$0xf]
  %v66 = vld [vmem:[%s1 + $0x10] sm:$0xf]
  %v67 = vld [vmem:[%s1 + $0x14] sm:$0xf]
  %v68 = vld [vmem:[%s1 + $0x18] sm:$0xf]
  %v69 = vld [vmem:[%s1 + $0x1c] sm:$0xf]
  %v70 = vld [vmem:[%s1 + $0x20] sm:$0xf]
  %v71 = vld [vmem:[%s1 + $0x24] sm:$0xf]
  %v72 = vld [vmem:[%s1 + $0x28] sm:$0xf]
  %v73 = vld [vmem:[%s1 + $0x2c] sm:$0xf]
  %v74 = vld [vmem:[%s1 + $0x30] sm:$0xf]
  %v75 = vld [vmem:[%s1 + $0x34] sm:$0xf]
  %v76 = vld [vmem:[%s1 + $0x38] sm:$0xf]
  %v77 = vld [vmem:[%s1 + $0x3c] sm:$0xf]
  %v78 = vld [vmem:[%s1 + $0x40] sm:$0xf]
  %v79 = vld [vmem:[%s1 + $0x44] sm:$0xf]
  %v80 = vld [vmem:[%s1 + $0x48] sm:$0xf]
  %v81 = vld [vmem:[%s1 + $0x4c] sm:$0xf]
  %v82 = vld [vmem:[%s1 + $0x50] sm:$0xf]
  %v83 = vld [vmem:[%s1 + $0x54] sm:$0xf]
  %v84 = vld [vmem:[%s1 + $0x58] sm:$0xf]
  %v85 = vld [vmem:[%s1 + $0x5c] sm:$0xf]
  %v86 = vld [vmem:[%s1 + $0x60] sm:$0xf]
  %v87 = vld [vmem:[%s1 + $0x64] sm:$0xf]
  %v88 = vld [vmem:[%s1 + $0x68] sm:$0xf]
  %v89 = vld [vmem:[%s1 + $0x6c] sm:$0xf]
  %v90 = vld [vmem:[%s1 + $0x70] sm:$0xf]
  %v91 = vld [vmem:[%s1 + $0x74] sm:$0xf]
  %v92 = vld [vmem:[%s1 + $0x78] sm:$0xf]
  %v93 = vld [vmem:[%s1 + $0x7c] sm:$0xf]
  %v94 = vld [vmem:[%s1 + $0x80] sm:$0xf]
  %v95 = vld [vmem:[%s1 + $0x84] sm:$0xf]
  %v96 = vld [vmem:[%s1 + $0x88] sm:$0xf]
  %v97 = vld [vmem:[%s1 + $0x8c] sm:$0xf]
  %v98 = vld [vmem:[%s1 + $0x90] sm:$0xf]
  %v99 = vld [vmem:[%s1 + $0x94] sm:$0xf]
  %v100 = vld [vmem:[%s1 + $0x98] sm:$0xf]
  %v101 = vld [vmem:[%s1 + $0x9c] sm:$0xf]
  %v102 = vld [vmem:[%s1 + $0xa0] sm:$0xf]
  %v103 = vld [vmem:[%s1 + $0xa4] sm:$0xf]
  %v104 = vld [vmem:[%s1 + $0xa8] sm:$0xf]
  %v105 = vld [vmem:[%s1 + $0xac] sm:$0xf]
  %v106 = vld [vmem:[%s1 + $0xb0] sm:$0xf]
  %v107 = vld [vmem:[%s1 + $0xb4] sm:$0xf]
  %v108 = vld [vmem:[%s1 + $0xb8] sm:$0xf]
  %v109 = vld [vmem:[%s1 + $0xbc] sm:$0xf]
  %v110 = vld [vmem:[%s1 + $0xc0] sm:$0xf]
  %v111 = vld [vmem:[%s1 + $0xc4] sm:$0xf]
  %v112 = vld [vmem:[%s1 + $0xc8] sm:$0xf]
  %v113 = vld [vmem:[%s1 + $0xcc] sm:$0xf]
  %v114 = vld [vmem:[%s1 + $0xd0] sm:$0xf]
  %v115 = vld [vmem:[%s1 + $0xd4] sm:$0xf]
  %v116 = vld [vmem:[%s1 + $0xd8] sm:$0xf]
  %v117 = vld [vmem:[%s1 + $0xdc] sm:$0xf]
  %v118 = vld [vmem:[%s1 + $0xe0] sm:$0xf]
  %v119 = vld [vmem:[%s1 + $0xe4] sm:$0xf]
  %v120 = vld [vmem:[%s1 + $0xe8] sm:$0xf]
  %v121 = vld [vmem:[%s1 + $0xec] sm:$0xf]
  %v122 = vld [vmem:[%s1 + $0xf0] sm:$0xf]
  %v123 = vld [vmem:[%s1 + $0xf4] sm:$0xf]
  %v124 = vld [vmem:[%s1 + $0xf8] sm:$0xf]
  %v125 = vld [vmem:[%s1 + $0xfc] sm:$0xf]
  %v126 = vld [vmem:[%s1 + $0x100] sm:$0xf]
  %v127 = vld [vmem:[%s1 + $0x104] sm:$0xf]
  %v128 = vld [vmem:[%s1 + $0x108] sm:$0xf]
  %v129 = vld [vmem:[%s1 + $0x10c] sm:$0xf]
  %v130 = vld [vmem:[%s1 + $0x110] sm:$0xf]
  %v131 = vld [vmem:[%s1 + $0x114] sm:$0xf]
  %v132 = vld [vmem:[%s1 + $0x118] sm:$0xf]
  %v133 = vld [vmem:[%s1 + $0x11c] sm:$0xf]
  %v134 = vld [vmem:[%s1 + $0x120] sm:$0xf]
  %v135 = vld [vmem:[%s1 + $0x124] sm:$0xf]
  %v136 = vld [vmem:[%s1 + $0x128] sm:$0xf]
  %v137 = vld [vmem:[%s1 + $0x12c] sm:$0xf]
  %v138 = vld [vmem:[%s1 + $0x130] sm:$0xf]
  %v139 = vld [vmem:[%s1 + $0x134] sm:$0xf]
  %v140 = vld [vmem:[%s1 + $0x138] sm:$0xf]
  %v141 = vld [vmem:[%s1 + $0x13c] sm:$0xf]
  %v142 = vld [vmem:[%s1 + $0x140] sm:$0xf]
  %v143 = vld [vmem:[%s1 + $0x144] sm:$0xf]
  %v144 = vld [vmem:[%s1 + $0x148] sm:$0xf]
  %v145 = vld [vmem:[%s1 + $0x14c] sm:$0xf]
  %v146 = vld [vmem:[%s1 + $0x150] sm:$0xf]
  %v147 = vld [vmem:[%s1 + $0x154] sm:$0xf]
  %v148 = vld [vmem:[%s1 + $0x158] sm:$0xf]
  %v149 = vld [vmem:[%s1 + $0x15c] sm:$0xf]
  %v150 = vld [vmem:[%s1 + $0x160] sm:$0xf]
  %v151 = vld [vmem:[%s1 + $0x164] sm:$0xf]
  %v152 = vld [vmem:[%s1 + $0x168] sm:$0xf]
  %v153 = vld [vmem:[%s1 + $0x16c] sm:$0xf]
  %v154 = vld [vmem:[%s1 + $0x170] sm:$0xf]
  %v155 = vld [vmem:[%s1 + $0x174] sm:$0xf]
  %v156 = vld [vmem:[%s1 + $0x178] sm:$0xf]
  %v157 = vld [vmem:[%s1 + $0x17c] sm:$0xf]
  %v158 = vld [vmem:[%s1 + $0x180] sm:$0xf]
  %v159 = vld [vmem:[%s1 + $0x184] sm:$0xf]
  %v160 = vld [vmem:[%s1 + $0x188] sm:$0xf]
  %v161 = vld [vmem:[%s1 + $0x18c] sm:$0xf]
  %v162 = vld [vmem:[%s1 + $0x190] sm:$0xf]
  %v163 = vld [vmem:[%s1 + $0x194] sm:$0xf]
  %v164 = vld [vmem:[%s1 + $0x198] sm:$0xf]
  %v165 = vld [vmem:[%s1 + $0x19c] sm:$0xf]
  %v166 = vld [vmem:[%s1 + $0x1a0] sm:$0xf]
  %v167 = vld [vmem:[%s1 + $0x1a4] sm:$0xf]
  %v168 = vld [vmem:[%s1 + $0x1a8] sm:$0xf]
  %v169 = vld [vmem:[%s1 + $0x1ac] sm:$0xf]
  %v170 = vld [vmem:[%s1 + $0x1b0] sm:$0xf]
  %v171 = vld [vmem:[%s1 + $0x1b4] sm:$0xf]
  %v172 = vld [vmem:[%s1 + $0x1b8] sm:$0xf]
  %v173 = vld [vmem:[%s1 + $0x1bc] sm:$0xf]
  %v174 = vld [vmem:[%s1 + $0x1c0] sm:$0xf]
  %v175 = vld [vmem:[%s1 + $0x1c4] sm:$0xf]
  %v176 = vld [vmem:[%s1 + $0x1c8] sm:$0xf]
  %v177 = vld [vmem:[%s1 + $0x1cc] sm:$0xf]
  %v178 = vld [vmem:[%s1 + $0x1d0] sm:$0xf]
  %v179 = vld [vmem:[%s1 + $0x1d4] sm:$0xf]
  %v180 = vld [vmem:[%s1 + $0x1d8] sm:$0xf]
  %v181 = vld [vmem:[%s1 + $0x1dc] sm:$0xf]
  %v182 = vld [vmem:[%s1 + $0x1e0] sm:$0xf]
  %v183 = vld [vmem:[%s1 + $0x1e4] sm:$0xf]
  %v184 = vld [vmem:[%s1 + $0x1e8] sm:$0xf]
  %v185 = vld [vmem:[%s1 + $0x1ec] sm:$0xf]
  %v186 = vld [vmem:[%s1 + $0x1f0] sm:$0xf]
  %v187 = vld [vmem:[%s1 + $0x1f4] sm:$0xf]
  %v188 = vld [vmem:[%s1 + $0x1f8] sm:$0xf]
  %v189 = vld [vmem:[%s1 + $0x1fc] sm:$0xf]
  %v190 = vld [vmem:[%s1 + $0x200] sm:$0xf]
  %v191 = vld [vmem:[%s1 + $0x204] sm:$0xf]
  %v192 = vld [vmem:[%s1 + $0x208] sm:$0xf]
  %v193 = vld [vmem:[%s1 + $0x20c] sm:$0xf]
  %v194 = vld [vmem:[%s1 + $0x210] sm:$0xf]
  %v195 = vld [vmem:[%s1 + $0x214] sm:$0xf]
  %v196 = vld [vmem:[%s1 + $0x218] sm:$0xf]
  %v197 = vld [vmem:[%s1 + $0x21c] sm:$0xf]
  %v198 = vld [vmem:[%s1 + $0x220] sm:$0xf]
  %v199 = vld [vmem:[%s1 + $0x224] sm:$0xf]
  %v200 = vld [vmem:[%s1 + $0x228] sm:$0xf]
  %v201 = vld [vmem:[%s1 + $0x22c] sm:$0xf]
  %v202 = vld [vmem:[%s1 + $0x230] sm:$0xf]
  %v203 = vld [vmem:[%s1 + $0x234] sm:$0xf]
  %v204 = vld [vmem:[%s1 + $0x238] sm:$0xf]
  %v205 = vld [vmem:[%s1 + $0x23c] sm:$0xf]
  %v206 = vld [vmem:[%s1 + $0x240] sm:$0xf]
  %v207 = vld [vmem:[%s1 + $0x244] sm:$0xf]
  %v208 = vld [vmem:[%s1 + $0x248] sm:$0xf]
  %v209 = vld [vmem:[%s1 + $0x24c] sm:$0xf]
  %v210 = vld [vmem:[%s1 + $0x250] sm:$0xf]
  %v211 = vld [vmem:[%s1 + $0x254] sm:$0xf]
  %v212 = vld [vmem:[%s1 + $0x258] sm:$0xf]
  %v213 = vld [vmem:[%s1 + $0x25c] sm:$0xf]
  %v214 = vld [vmem:[%s1 + $0x260] sm:$0xf]
  %v215 = vld [vmem:[%s1 + $0x264] sm:$0xf]
  %v216 = vld [vmem:[%s1 + $0x268] sm:$0xf]
  %v217 = vld [vmem:[%s1 + $0x26c] sm:$0xf]
  %v218 = vld [vmem:[%s1 + $0x270] sm:$0xf]
  %v219 = vld [vmem:[%s1 + $0x274] sm:$0xf]
  %v220 = vld [vmem:[%s1 + $0x278] sm:$0xf]
  %v221 = vld [vmem:[%s1 + $0x27c] sm:$0xf]
  %v222 = vld [vmem:[%s1 + $0x280] sm:$0xf]
  %v223 = vld [vmem:[%s1 + $0x284] sm:$0xf]
  %v224 = vld [vmem:[%s1 + $0x288] sm:$0xf]
  %v225 = vld [vmem:[%s1 + $0x28c] sm:$0xf]
  %v226 = vld [vmem:[%s1 + $0x290] sm:$0xf]
  %v227 = vld [vmem:[%s1 + $0x294] sm:$0xf]
  %v228 = vld [vmem:[%s1 + $0x298] sm:$0xf]
  %v229 = vld [vmem:[%s1 + $0x29c] sm:$0xf]
  %v230 = vld [vmem:[%s1 + $0x2a0] sm:$0xf]
  %v231 = vld [vmem:[%s1 + $0x2a4] sm:$0xf]
  %v232 = vld [vmem:[%s1 + $0x2a8] sm:$0xf]
  %v233 = vld [vmem:[%s1 + $0x2ac] sm:$0xf]
  %v234 = vld [vmem:[%s1 + $0x2b0] sm:$0xf]
  %v235 = vld [vmem:[%s1 + $0x2b4] sm:$0xf]
  %v236 = vld [vmem:[%s1 + $0x2b8] sm:$0xf]
  %v237 = vld [vmem:[%s1 + $0x2bc] sm:$0xf]
  %v238 = vld [vmem:[%s1 + $0x2c0] sm:$0xf]
  %v239 = vld [vmem:[%s1 + $0x2c4] sm:$0xf]
  %v240 = vld [vmem:[%s1 + $0x2c8] sm:$0xf]
  %v241 = vld [vmem:[%s1 + $0x2cc] sm:$0xf]
  %v242 = vld [vmem:[%s1 + $0x2d0] sm:$0xf]
  %v243 = vld [vmem:[%s1 + $0x2d4] sm:$0xf]
  %v244 = vld [vmem:[%s1 + $0x2d8] sm:$0xf]
  %v245 = vld [vmem:[%s1 + $0x2dc] sm:$0xf]
  %v246 = vld [vmem:[%s1 + $0x2e0] sm:$0xf]
  %v247 = vld [vmem:[%s1 + $0x2e4] sm:$0xf]
  %v248 = vld [vmem:[%s1 + $0x2e8] sm:$0xf]
  %v249 = vld [vmem:[%s1 + $0x2ec] sm:$0xf]
  %v250 = vld [vmem:[%s1 + $0x2f0] sm:$0xf]
  %v251 = vld [vmem:[%s1 + $0x2f4] sm:$0xf]
  %v252 = vld [vmem:[%s1 + $0x2f8] sm:$0xf]
  %v253 = vld [vmem:[%s1 + $0x2fc] sm:$0xf]
  %v254 = vld [vmem:[%s1 + $0x300] sm:$0xf]
  %v255 = vld [vmem:[%s1 + $0x304] sm:$0xf]
  %v256 = vld [vmem:[%s1 + $0x308] sm:$0xf]
  %v257 = vld [vmem:[%s1 + $0x30c] sm:$0xf]
  %v258 = vld [vmem:[%s1 + $0x310] sm:$0xf]
  %v259 = vld [vmem:[%s1 + $0x314] sm:$0xf]
  %v260 = vld [vmem:[%s1 + $0x318] sm:$0xf]
  %v261 = vld [vmem:[%s1 + $0x31c] sm:$0xf]
  %v262 = vld [vmem:[%s1 + $0x320] sm:$0xf]
  %v263 = vld [vmem:[%s1 + $0x324] sm:$0xf]
  %v264 = vld [vmem:[%s1 + $0x328] sm:$0xf]
  %v265 = vld [vmem:[%s1 + $0x32c] sm:$0xf]
  %v266 = vld [vmem:[%s1 + $0x330] sm:$0xf]
  %v267 = vld [vmem:[%s1 + $0x334] sm:$0xf]
  %v268 = vld [vmem:[%s1 + $0x338] sm:$0xf]
  %v269 = vld [vmem:[%s1 + $0x33c] sm:$0xf]
  %v270 = vld [vmem:[%s1 + $0x340] sm:$0xf]
  %v271 = vld [vmem:[%s1 + $0x344] sm:$0xf]
  %v272 = vld [vmem:[%s1 + $0x348] sm:$0xf]
  %v273 = vld [vmem:[%s1 + $0x34c] sm:$0xf]
  %v274 = vld [vmem:[%s1 + $0x350] sm:$0xf]
  %v275 = vld [vmem:[%s1 + $0x354] sm:$0xf]
  %v276 = vld [vmem:[%s1 + $0x358] sm:$0xf]
  %v277 = vld [vmem:[%s1 + $0x35c] sm:$0xf]
  %v278 = vld [vmem:[%s1 + $0x360] sm:$0xf]
  %v279 = vld [vmem:[%s1 + $0x364] sm:$0xf]
  %v280 = vld [vmem:[%s1 + $0x368] sm:$0xf]
  %v281 = vld [vmem:[%s1 + $0x36c] sm:$0xf]
  %v282 = vld [vmem:[%s1 + $0x370] sm:$0xf]
  %v283 = vld [vmem:[%s1 + $0x374] sm:$0xf]
  %v284 = vld [vmem:[%s1 + $0x378] sm:$0xf]
  %v285 = vld [vmem:[%s1 + $0x37c] sm:$0xf]
  %v286 = vld [vmem:[%s1 + $0x380] sm:$0xf]
  %v287 = vld [vmem:[%s1 + $0x384] sm:$0xf]
  %v288 = vld [vmem:[%s1 + $0x388] sm:$0xf]
  %v289 = vld [vmem:[%s1 + $0x38c] sm:$0xf]
  %v290 = vld [vmem:[%s1 + $0x390] sm:$0xf]
  %v291 = vld [vmem:[%s1 + $0x394] sm:$0xf]
  %v292 = vld [vmem:[%s1 + $0x398] sm:$0xf]
  %v293 = vld [vmem:[%s1 + $0x39c] sm:$0xf]
  %v294 = vld [vmem:[%s1 + $0x3a0] sm:$0xf]
  %v295 = vld [vmem:[%s1 + $0x3a4] sm:$0xf]
  %v296 = vld [vmem:[%s1 + $0x3a8] sm:$0xf]
  %v297 = vld [vmem:[%s1 + $0x3ac] sm:$0xf]
  %v298 = vld [vmem:[%s1 + $0x3b0] sm:$0xf]
  %v299 = vld [vmem:[%s1 + $0x3b4] sm:$0xf]
  %v300 = vld [vmem:[%s1 + $0x3b8] sm:$0xf]
  %v301 = vld [vmem:[%s1 + $0x3bc] sm:$0xf]
  %v302 = vld [vmem:[%s1 + $0x3c0] sm:$0xf]
  %v303 = vld [vmem:[%s1 + $0x3c4] sm:$0xf]
  %v304 = vld [vmem:[%s1 + $0x3c8] sm:$0xf]
  %v305 = vld [vmem:[%s1 + $0x3cc] sm:$0xf]
  %v306 = vld [vmem:[%s1 + $0x3d0] sm:$0xf]
  %v307 = vld [vmem:[%s1 + $0x3d4] sm:$0xf]
  %v308 = vld [vmem:[%s1 + $0x3d8] sm:$0xf]
  %v309 = vld [vmem:[%s1 + $0x3dc] sm:$0xf]
  %v310 = vld [vmem:[%s1 + $0x3e0] sm:$0xf]
  %v311 = vld [vmem:[%s1 + $0x3e4] sm:$0xf]
  %v312 = vld [vmem:[%s1 + $0x3e8] sm:$0xf]
  %v313 = vld [vmem:[%s1 + $0x3ec] sm:$0xf]
  %v314 = vld [vmem:[%s1 + $0x3f0] sm:$0xf]
  %v315 = vld [vmem:[%s1 + $0x3f4] sm:$0xf]
  %v316 = vld [vmem:[%s1 + $0x3f8] sm:$0xf]
  %v317 = vld [vmem:[%s1 + $0x3fc] sm:$0xf]
  %v318 = vld [vmem:[%s1 + $0x400] sm:$0xf]
  %v319 = vld [vmem:[%s1 + $0x404] sm:$0xf]
  %v320 = vld [vmem:[%s1 + $0x408] sm:$0xf]
  %v321 = vld [vmem:[%s1 + $0x40c] sm:$0xf]
  %v322 = vld [vmem:[%s1 + $0x410] sm:$0xf]
  %v323 = vld [vmem:[%s1 + $0x414] sm:$0xf]
  %v324 = vld [vmem:[%s1 + $0x418] sm:$0xf]
  %v325 = vld [vmem:[%s1 + $0x41c] sm:$0xf]
  %v326 = vld [vmem:[%s1 + $0x420] sm:$0xf]
  %v327 = vld [vmem:[%s1 + $0x424] sm:$0xf]
  %v328 = vld [vmem:[%s1 + $0x428] sm:$0xf]
  %v329 = vld [vmem:[%s1 + $0x42c] sm:$0xf]
  %v330 = vld [vmem:[%s1 + $0x430] sm:$0xf]
  %v331 = vld [vmem:[%s1 + $0x434] sm:$0xf]
  %v332 = vld [vmem:[%s1 + $0x438] sm:$0xf]
  %v333 = vld [vmem:[%s1 + $0x43c] sm:$0xf]
  %v334 = vld [vmem:[%s1 + $0x440] sm:$0xf]
  %v335 = vld [vmem:[%s1 + $0x444] sm:$0xf]
  %v336 = vld [vmem:[%s1 + $0x448] sm:$0xf]
  %v337 = vld [vmem:[%s1 + $0x44c] sm:$0xf]
  %v338 = vld [vmem:[%s1 + $0x450] sm:$0xf]
  %v339 = vld [vmem:[%s1 + $0x454] sm:$0xf]
  %v340 = vld [vmem:[%s1 + $0x458] sm:$0xf]
  %v341 = vld [vmem:[%s1 + $0x45c] sm:$0xf]
  %v342 = vld [vmem:[%s1 + $0x460] sm:$0xf]
  %v343 = vld [vmem:[%s1 + $0x464] sm:$0xf]
  %v344 = vld [vmem:[%s1 + $0x468] sm:$0xf]
  %v345 = vld [vmem:[%s1 + $0x46c] sm:$0xf]
  %v346 = vld [vmem:[%s1 + $0x470] sm:$0xf]
  %v347 = vld [vmem:[%s1 + $0x474] sm:$0xf]
  %v348 = vld [vmem:[%s1 + $0x478] sm:$0xf]
  %v349 = vld [vmem:[%s1 + $0x47c] sm:$0xf]
  %v350 = vld [vmem:[%s1 + $0x480] sm:$0xf]
  %v351 = vld [vmem:[%s1 + $0x484] sm:$0xf]
  %v352 = vld [vmem:[%s1 + $0x488] sm:$0xf]
  %v353 = vld [vmem:[%s1 + $0x48c] sm:$0xf]
  %v354 = vld [vmem:[%s1 + $0x490] sm:$0xf]
  %v355 = vld [vmem:[%s1 + $0x494] sm:$0xf]
  %v356 = vld [vmem:[%s1 + $0x498] sm:$0xf]
  %v357 = vld [vmem:[%s1 + $0x49c] sm:$0xf]
  %v358 = vld [vmem:[%s1 + $0x4a0] sm:$0xf]
  %v359 = vld [vmem:[%s1 + $0x4a4] sm:$0xf]
  %v360 = vld [vmem:[%s1 + $0x4a8] sm:$0xf]
  %v361 = vld [vmem:[%s1 + $0x4ac] sm:$0xf]
  %v362 = vld [vmem:[%s1 + $0x4b0] sm:$0xf]
  %v363 = vld [vmem:[%s1 + $0x4b4] sm:$0xf]
  %v364 = vld [vmem:[%s1 + $0x4b8] sm:$0xf]
  %v365 = vld [vmem:[%s1 + $0x4bc] sm:$0xf]
  %v366 = vld [vmem:[%s1 + $0x4c0] sm:$0xf]
  %v367 = vld [vmem:[%s1 + $0x4c4] sm:$0xf]
  %v368 = vld [vmem:[%s1 + $0x4c8] sm:$0xf]
  %v369 = vld [vmem:[%s1 + $0x4cc] sm:$0xf]
  %v370 = vld [vmem:[%s1 + $0x4d0] sm:$0xf]
  %v371 = vld [vmem:[%s1 + $0x4d4] sm:$0xf]
  %v372 = vld [vmem:[%s1 + $0x4d8] sm:$0xf]
  %v373 = vld [vmem:[%s1 + $0x4dc] sm:$0xf]
  %v374 = vld [vmem:[%s1 + $0x4e0] sm:$0xf]
  %v375 = vld [vmem:[%s1 + $0x4e4] sm:$0xf]
  %v376 = vld [vmem:[%s1 + $0x4e8] sm:$0xf]
  %v377 = vld [vmem:[%s1 + $0x4ec] sm:$0xf]
  %v378 = vld [vmem:[%s1 + $0x4f0] sm:$0xf]
  %v379 = vld [vmem:[%s1 + $0x4f4] sm:$0xf]
  %v380 = vld [vmem:[%s1 + $0x4f8] sm:$0xf]
  %v381 = vld [vmem:[%s1 + $0x4fc] sm:$0xf]
  %v382 = vld [vmem:[%s1 + $0x500] sm:$0xf]
  %v383 = vld [vmem:[%s1 + $0x504] sm:$0xf]
  %v384 = vld [vmem:[%s1 + $0x508] sm:$0xf]
  %v385 = vld [vmem:[%s1 + $0x50c] sm:$0xf]
  %v386 = vld [vmem:[%s1 + $0x510] sm:$0xf]
  %v387 = vld [vmem:[%s1 + $0x514] sm:$0xf]
  %v388 = vld [vmem:[%s1 + $0x518] sm:$0xf]
  %v389 = vld [vmem:[%s1 + $0x51c] sm:$0xf]
  %v390 = vld [vmem:[%s1 + $0x520] sm:$0xf]
  %v391 = vld [vmem:[%s1 + $0x524] sm:$0xf]
  %v392 = vld [vmem:[%s1 + $0x528] sm:$0xf]
  %v393 = vld [vmem:[%s1 + $0x52c] sm:$0xf]
  %v394 = vld [vmem:[%s1 + $0x530] sm:$0xf]
  %v395 = vld [vmem:[%s1 + $0x534] sm:$0xf]
  %v396 = vld [vmem:[%s1 + $0x538] sm:$0xf]
  %v397 = vld [vmem:[%s1 + $0x53c] sm:$0xf]
  %v398 = vld [vmem:[%s1 + $0x540] sm:$0xf]
  %v399 = vld [vmem:[%s1 + $0x544] sm:$0xf]
  %v400 = vld [vmem:[%s1 + $0x548] sm:$0xf]
  %v401 = vld [vmem:[%s1 + $0x54c] sm:$0xf]
  %v402 = vld [vmem:[%s1 + $0x550] sm:$0xf]
  %v403 = vld [vmem:[%s1 + $0x554] sm:$0xf]
  %v404 = vld [vmem:[%s1 + $0x558] sm:$0xf]
  %v405 = vld [vmem:[%s1 + $0x55c] sm:$0xf]
  %v406 = vld [vmem:[%s1 + $0x560] sm:$0xf]
  %v407 = vld [vmem:[%s1 + $0x564] sm:$0xf]
  %v408 = vld [vmem:[%s1 + $0x568] sm:$0xf]
  %v409 = vld [vmem:[%s1 + $0x56c] sm:$0xf]
  %v410 = vld [vmem:[%s1 + $0x570] sm:$0xf]
  %v411 = vld [vmem:[%s1 + $0x574] sm:$0xf]
  %v412 = vld [vmem:[%s1 + $0x578] sm:$0xf]
  %v413 = vld [vmem:[%s1 + $0x57c] sm:$0xf]
  %v414 = vld [vmem:[%s1 + $0x580] sm:$0xf]
  %v415 = vld [vmem:[%s1 + $0x584] sm:$0xf]
  %v416 = vld [vmem:[%s1 + $0x588] sm:$0xf]
  %v417 = vld [vmem:[%s1 + $0x58c] sm:$0xf]
  %v418 = vld [vmem:[%s1 + $0x590] sm:$0xf]
  %v419 = vld [vmem:[%s1 + $0x594] sm:$0xf]
  %v420 = vld [vmem:[%s1 + $0x598] sm:$0xf]
  %v421 = vld [vmem:[%s1 + $0x59c] sm:$0xf]
  %v422 = vld [vmem:[%s1 + $0x5a0] sm:$0xf]
  %v423 = vld [vmem:[%s1 + $0x5a4] sm:$0xf]
  %v424 = vld [vmem:[%s1 + $0x5a8] sm:$0xf]
  %v425 = vld [vmem:[%s1 + $0x5ac] sm:$0xf]
  %v426 = vld [vmem:[%s1 + $0x5b0] sm:$0xf]
  %v427 = vld [vmem:[%s1 + $0x5b4] sm:$0xf]
  %v428 = vld [vmem:[%s1 + $0x5b8] sm:$0xf]
  %v429 = vld [vmem:[%s1 + $0x5bc] sm:$0xf]
  %v430 = vld [vmem:[%s1 + $0x5c0] sm:$0xf]
  %v431 = vld [vmem:[%s1 + $0x5c4] sm:$0xf]
  %v432 = vld [vmem:[%s1 + $0x5c8] sm:$0xf]
  %v433 = vld [vmem:[%s1 + $0x5cc] sm:$0xf]
  %v434 = vld [vmem:[%s1 + $0x5d0] sm:$0xf]
  %v435 = vld [vmem:[%s1 + $0x5d4] sm:$0xf]
  %v436 = vld [vmem:[%s1 + $0x5d8] sm:$0xf]
  %v437 = vld [vmem:[%s1 + $0x5dc] sm:$0xf]
  %v438 = vld [vmem:[%s1 + $0x5e0] sm:$0xf]
  %v439 = vld [vmem:[%s1 + $0x5e4] sm:$0xf]
  %v440 = vld [vmem:[%s1 + $0x5e8] sm:$0xf]
  %v441 = vld [vmem:[%s1 + $0x5ec] sm:$0xf]
  %v442 = vld [vmem:[%s1 + $0x5f0] sm:$0xf]
  %v443 = vld [vmem:[%s1 + $0x5f4] sm:$0xf]
  %v444 = vld [vmem:[%s1 + $0x5f8] sm:$0xf]
  %v445 = vld [vmem:[%s1 + $0x5fc] sm:$0xf]
  %v446 = vld [vmem:[%s1 + $0x600] sm:$0xf]
  %v447 = vld [vmem:[%s1 + $0x604] sm:$0xf]
  %v448 = vld [vmem:[%s1 + $0x608] sm:$0xf]
  %v449 = vld [vmem:[%s1 + $0x60c] sm:$0xf]
  %v450 = vld [vmem:[%s1 + $0x610] sm:$0xf]
  %v451 = vld [vmem:[%s1 + $0x614] sm:$0xf]
  %v452 = vld [vmem:[%s1 + $0x618] sm:$0xf]
  %v453 = vld [vmem:[%s1 + $0x61c] sm:$0xf]
  %v454 = vld [vmem:[%s1 + $0x620] sm:$0xf]
  %v455 = vld [vmem:[%s1 + $0x624] sm:$0xf]
  %v456 = vld [vmem:[%s1 + $0x628] sm:$0xf]
  %v457 = vld [vmem:[%s1 + $0x62c] sm:$0xf]
  %v458 = vld [vmem:[%s1 + $0x630] sm:$0xf]
  %v459 = vld [vmem:[%s1 + $0x634] sm:$0xf]
  %v460 = vld [vmem:[%s1 + $0x638] sm:$0xf]
  %v461 = vld [vmem:[%s1 + $0x63c] sm:$0xf]
  %v462 = vld [vmem:[%s1 + $0x640] sm:$0xf]
  %v463 = vld [vmem:[%s1 + $0x644] sm:$0xf]
  %v464 = vld [vmem:[%s1 + $0x648] sm:$0xf]
  %v465 = vld [vmem:[%s1 + $0x64c] sm:$0xf]
  %v466 = vld [vmem:[%s1 + $0x650] sm:$0xf]
  %v467 = vld [vmem:[%s1 + $0x654] sm:$0xf]
  %v468 = vld [vmem:[%s1 + $0x658] sm:$0xf]
  %v469 = vld [vmem:[%s1 + $0x65c] sm:$0xf]
  %v470 = vld [vmem:[%s1 + $0x660] sm:$0xf]
  %v471 = vld [vmem:[%s1 + $0x664] sm:$0xf]
  %v472 = vld [vmem:[%s1 + $0x668] sm:$0xf]
  %v473 = vld [vmem:[%s1 + $0x66c] sm:$0xf]
  %v474 = vld [vmem:[%s1 + $0x670] sm:$0xf]
  %v475 = vld [vmem:[%s1 + $0x674] sm:$0xf]
  %v476 = vld [vmem:[%s1 + $0x678] sm:$0xf]
  %v477 = vld [vmem:[%s1 + $0x67c] sm:$0xf]
  %v478 = vld [vmem:[%s1 + $0x680] sm:$0xf]
  %v479 = vld [vmem:[%s1 + $0x684] sm:$0xf]
  %v480 = vld [vmem:[%s1 + $0x688] sm:$0xf]
  %v481 = vld [vmem:[%s1 + $0x68c] sm:$0xf]
  %v482 = vld [vmem:[%s1 + $0x690] sm:$0xf]
  %v483 = vld [vmem:[%s1 + $0x694] sm:$0xf]
  %v484 = vld [vmem:[%s1 + $0x698] sm:$0xf]
  %v485 = vld [vmem:[%s1 + $0x69c] sm:$0xf]
  %v486 = vld [vmem:[%s1 + $0x6a0] sm:$0xf]
  %v487 = vld [vmem:[%s1 + $0x6a4] sm:$0xf]
  %v488 = vld [vmem:[%s1 + $0x6a8] sm:$0xf]
  %v489 = vld [vmem:[%s1 + $0x6ac] sm:$0xf]
  %v490 = vld [vmem:[%s1 + $0x6b0] sm:$0xf]
  %v491 = vld [vmem:[%s1 + $0x6b4] sm:$0xf]
  %v492 = vld [vmem:[%s1 + $0x6b8] sm:$0xf]
  %v493 = vld [vmem:[%s1 + $0x6bc] sm:$0xf]
  %v494 = vld [vmem:[%s1 + $0x6c0] sm:$0xf]
  %v495 = vld [vmem:[%s1 + $0x6c4] sm:$0xf]
  %v496 = vld [vmem:[%s1 + $0x6c8] sm:$0xf]
  %v497 = vld [vmem:[%s1 + $0x6cc] sm:$0xf]
  %v498 = vld [vmem:[%s1 + $0x6d0] sm:$0xf]
  %v499 = vld [vmem:[%s1 + $0x6d4] sm:$0xf]
  %v500 = vld [vmem:[%s1 + $0x6d8] sm:$0xf]
  %v501 = vld [vmem:[%s1 + $0x6dc] sm:$0xf]
  %v502 = vld [vmem:[%s1 + $0x6e0] sm:$0xf]
  %v503 = vld [vmem:[%s1 + $0x6e4] sm:$0xf]
  %v504 = vld [vmem:[%s1 + $0x6e8] sm:$0xf]
  %v505 = vld [vmem:[%s1 + $0x6ec] sm:$0xf]
  %v506 = vld [vmem:[%s1 + $0x6f0] sm:$0xf]
  %v507 = vld [vmem:[%s1 + $0x6f4] sm:$0xf]
  %v508 = vld [vmem:[%s1 + $0x6f8] sm:$0xf]
  %v509 = vld [vmem:[%s1 + $0x6fc] sm:$0xf]
  %v510 = vld [vmem:[%s1 + $0x700] sm:$0xf]
  %v511 = vld [vmem:[%s1 + $0x704] sm:$0xf]
  %v512 = vld [vmem:[%s1 + $0x708] sm:$0xf]
  %v513 = vld [vmem:[%s1 + $0x70c] sm:$0xf]
  %v514 = vld [vmem:[%s1 + $0x710] sm:$0xf]
  %v515 = vld [vmem:[%s1 + $0x714] sm:$0xf]
  %v516 = vld [vmem:[%s1 + $0x718] sm:$0xf]
  %v517 = vld [vmem:[%s1 + $0x71c] sm:$0xf]
  %v518 = vld [vmem:[%s1 + $0x720] sm:$0xf]
  %v519 = vld [vmem:[%s1 + $0x724] sm:$0xf]
  %v520 = vld [vmem:[%s1 + $0x728] sm:$0xf]
  %v521 = vld [vmem:[%s1 + $0x72c] sm:$0xf]
  %v522 = vld [vmem:[%s1 + $0x730] sm:$0xf]
  %v523 = vld [vmem:[%s1 + $0x734] sm:$0xf]
  %v524 = vld [vmem:[%s1 + $0x738] sm:$0xf]
  %v525 = vld [vmem:[%s1 + $0x73c] sm:$0xf]
  %v526 = vld [vmem:[%s1 + $0x740] sm:$0xf]
  %v527 = vld [vmem:[%s1 + $0x744] sm:$0xf]
  %v528 = vld [vmem:[%s1 + $0x748] sm:$0xf]
  %v529 = vld [vmem:[%s1 + $0x74c] sm:$0xf]
  %v530 = vld [vmem:[%s1 + $0x750] sm:$0xf]
  %v531 = vld [vmem:[%s1 + $0x754] sm:$0xf]
  %v532 = vld [vmem:[%s1 + $0x758] sm:$0xf]
  %v533 = vld [vmem:[%s1 + $0x75c] sm:$0xf]
  %v534 = vld [vmem:[%s1 + $0x760] sm:$0xf]
  %v535 = vld [vmem:[%s1 + $0x764] sm:$0xf]
  %v536 = vld [vmem:[%s1 + $0x768] sm:$0xf]
  %v537 = vld [vmem:[%s1 + $0x76c] sm:$0xf]
  %v538 = vld [vmem:[%s1 + $0x770] sm:$0xf]
  %v539 = vld [vmem:[%s1 + $0x774] sm:$0xf]
  %v540 = vld [vmem:[%s1 + $0x778] sm:$0xf]
  %v541 = vld [vmem:[%s1 + $0x77c] sm:$0xf]
  %v542 = vld [vmem:[%s1 + $0x780] sm:$0xf]
  %v543 = vld [vmem:[%s1 + $0x784] sm:$0xf]
  %v544 = vld [vmem:[%s1 + $0x788] sm:$0xf]
  %v545 = vld [vmem:[%s1 + $0x78c] sm:$0xf]
  %v546 = vld [vmem:[%s1 + $0x790] sm:$0xf]
  %v547 = vld [vmem:[%s1 + $0x794] sm:$0xf]
  %v548 = vld [vmem:[%s1 + $0x798] sm:$0xf]
  %v549 = vld [vmem:[%s1 + $0x79c] sm:$0xf]
  %v550 = vld [vmem:[%s1 + $0x7a0] sm:$0xf]
  %v551 = vld [vmem:[%s1 + $0x7a4] sm:$0xf]
  %v552 = vld [vmem:[%s1 + $0x7a8] sm:$0xf]
  %v553 = vld [vmem:[%s1 + $0x7ac] sm:$0xf]
  %v554 = vld [vmem:[%s1 + $0x7b0] sm:$0xf]
  %v555 = vld [vmem:[%s1 + $0x7b4] sm:$0xf]
  %v556 = vld [vmem:[%s1 + $0x7b8] sm:$0xf]
  %v557 = vld [vmem:[%s1 + $0x7bc] sm:$0xf]
  %v558 = vld [vmem:[%s1 + $0x7c0] sm:$0xf]
  %v559 = vld [vmem:[%s1 + $0x7c4] sm:$0xf]
  %v560 = vld [vmem:[%s1 + $0x7c8] sm:$0xf]
  %v561 = vld [vmem:[%s1 + $0x7cc] sm:$0xf]
  %v562 = vld [vmem:[%s1 + $0x7d0] sm:$0xf]
  %v563 = vld [vmem:[%s1 + $0x7d4] sm:$0xf]
  %v564 = vld [vmem:[%s1 + $0x7d8] sm:$0xf]
  %v565 = vld [vmem:[%s1 + $0x7dc] sm:$0xf]
  %v566 = vld [vmem:[%s1 + $0x7e0] sm:$0xf]
  %v567 = vld [vmem:[%s1 + $0x7e4] sm:$0xf]
  %v568 = vld [vmem:[%s1 + $0x7e8] sm:$0xf]
  %v569 = vld [vmem:[%s1 + $0x7ec] sm:$0xf]
  %v570 = vld [vmem:[%s1 + $0x7f0] sm:$0xf]
  %v571 = vld [vmem:[%s1 + $0x7f4] sm:$0xf]
  %v572 = vld [vmem:[%s1 + $0x7f8] sm:$0xf]
  %v573 = vld [vmem:[%s1 + $0x7fc] sm:$0xf]
  %v574 = vld [vmem:[%s1 + $0x800] sm:$0xf]
  %v575 = vld [vmem:[%s1 + $0x804] sm:$0xf]
  %v576 = vld [vmem:[%s1 + $0x808] sm:$0xf]
  %v577 = vld [vmem:[%s1 + $0x80c] sm:$0xf]
  %v578 = vld [vmem:[%s1 + $0x810] sm:$0xf]
  %v579 = vld [vmem:[%s1 + $0x814] sm:$0xf]
  %v580 = vld [vmem:[%s1 + $0x818] sm:$0xf]
  %v581 = vld [vmem:[%s1 + $0x81c] sm:$0xf]
  %v582 = vld [vmem:[%s1 + $0x820] sm:$0xf]
  %v583 = vld [vmem:[%s1 + $0x824] sm:$0xf]
  %v584 = vld [vmem:[%s1 + $0x828] sm:$0xf]
  %v585 = vld [vmem:[%s1 + $0x82c] sm:$0xf]
  %v586 = vld [vmem:[%s1 + $0x830] sm:$0xf]
  %v587 = vld [vmem:[%s1 + $0x834] sm:$0xf]
  %v588 = vld [vmem:[%s1 + $0x838] sm:$0xf]
  %v589 = vld [vmem:[%s1 + $0x83c] sm:$0xf]
  %v590 = vld [vmem:[%s1 + $0x840] sm:$0xf]
  %v591 = vld [vmem:[%s1 + $0x844] sm:$0xf]
  %v592 = vld [vmem:[%s1 + $0x848] sm:$0xf]
  %v593 = vld [vmem:[%s1 + $0x84c] sm:$0xf]
  %v594 = vld [vmem:[%s1 + $0x850] sm:$0xf]
  %v595 = vld [vmem:[%s1 + $0x854] sm:$0xf]
  %v596 = vld [vmem:[%s1 + $0x858] sm:$0xf]
  %v597 = vld [vmem:[%s1 + $0x85c] sm:$0xf]
  %v598 = vld [vmem:[%s1 + $0x860] sm:$0xf]
  %v599 = vld [vmem:[%s1 + $0x864] sm:$0xf]
  %v600 = vld [vmem:[%s1 + $0x868] sm:$0xf]
  %v601 = vld [vmem:[%s1 + $0x86c] sm:$0xf]
  %v602 = vld [vmem:[%s1 + $0x870] sm:$0xf]
  %v603 = vld [vmem:[%s1 + $0x874] sm:$0xf]
  %v604 = vld [vmem:[%s1 + $0x878] sm:$0xf]
  %v605 = vld [vmem:[%s1 + $0x87c] sm:$0xf]
  %v606 = vld [vmem:[%s1 + $0x880] sm:$0xf]
  %v607 = vld [vmem:[%s1 + $0x884] sm:$0xf]
  %v608 = vld [vmem:[%s1 + $0x888] sm:$0xf]
  %v609 = vld [vmem:[%s1 + $0x88c] sm:$0xf]
  %v610 = vld [vmem:[%s1 + $0x890] sm:$0xf]
  %v611 = vld [vmem:[%s1 + $0x894] sm:$0xf]
  %v612 = vld [vmem:[%s1 + $0x898] sm:$0xf]
  %v613 = vld [vmem:[%s1 + $0x89c] sm:$0xf]
  %v614 = vld [vmem:[%s1 + $0x8a0] sm:$0xf]
  %v615 = vld [vmem:[%s1 + $0x8a4] sm:$0xf]
  %v616 = vld [vmem:[%s1 + $0x8a8] sm:$0xf]
  %v617 = vld [vmem:[%s1 + $0x8ac] sm:$0xf]
  %v618 = vld [vmem:[%s1 + $0x8b0] sm:$0xf]
  %v619 = vld [vmem:[%s1 + $0x8b4] sm:$0xf]
  %v620 = vld [vmem:[%s1 + $0x8b8] sm:$0xf]
  %v621 = vld [vmem:[%s1 + $0x8bc] sm:$0xf]
  %v622 = vld [vmem:[%s1 + $0x8c0] sm:$0xf]
  %v623 = vld [vmem:[%s1 + $0x8c4] sm:$0xf]
  %v624 = vld [vmem:[%s1 + $0x8c8] sm:$0xf]
  %v625 = vld [vmem:[%s1 + $0x8cc] sm:$0xf]
  %v626 = vld [vmem:[%s1 + $0x8d0] sm:$0xf]
  %v627 = vld [vmem:[%s1 + $0x8d4] sm:$0xf]
  %v628 = vld [vmem:[%s1 + $0x8d8] sm:$0xf]
  %v629 = vld [vmem:[%s1 + $0x8dc] sm:$0xf]
  %v630 = vld [vmem:[%s1 + $0x8e0] sm:$0xf]
  %v631 = vld [vmem:[%s1 + $0x8e4] sm:$0xf]
  %v632 = vld [vmem:[%s1 + $0x8e8] sm:$0xf]
  %v633 = vld [vmem:[%s1 + $0x8ec] sm:$0xf]
  %v634 = vld [vmem:[%s1 + $0x8f0] sm:$0xf]
  %v635 = vld [vmem:[%s1 + $0x8f4] sm:$0xf]
  %v636 = vld [vmem:[%s1 + $0x8f8] sm:$0xf]
  %v637 = vld [vmem:[%s1 + $0x8fc] sm:$0xf]
  %v638 = vld [vmem:[%s1 + $0x900] sm:$0xf]
  %v639 = vld [vmem:[%s1 + $0x904] sm:$0xf]
  %v640 = vld [vmem:[%s1 + $0x908] sm:$0xf]
  %v641 = vld [vmem:[%s1 + $0x90c] sm:$0xf]
  %v642 = vld [vmem:[%s1 + $0x910] sm:$0xf]
  %v643 = vld [vmem:[%s1 + $0x914] sm:$0xf]
  %v644 = vld [vmem:[%s1 + $0x918] sm:$0xf]
  %v645 = vld [vmem:[%s1 + $0x91c] sm:$0xf]
  %v646 = vld [vmem:[%s1 + $0x920] sm:$0xf]
  %v647 = vld [vmem:[%s1 + $0x924] sm:$0xf]
  %v648 = vld [vmem:[%s1 + $0x928] sm:$0xf]
  %v649 = vld [vmem:[%s1 + $0x92c] sm:$0xf]
  %v650 = vld [vmem:[%s1 + $0x930] sm:$0xf]
  %v651 = vld [vmem:[%s1 + $0x934] sm:$0xf]
  %v652 = vld [vmem:[%s1 + $0x938] sm:$0xf]
  %v653 = vld [vmem:[%s1 + $0x93c] sm:$0xf]
  %v654 = vld [vmem:[%s1 + $0x940] sm:$0xf]
  %v655 = vld [vmem:[%s1 + $0x944] sm:$0xf]
  %v656 = vld [vmem:[%s1 + $0x948] sm:$0xf]
  %v657 = vld [vmem:[%s1 + $0x94c] sm:$0xf]
  %v658 = vld [vmem:[%s1 + $0x950] sm:$0xf]
  %v659 = vld [vmem:[%s1 + $0x954] sm:$0xf]
  %v660 = vld [vmem:[%s1 + $0x958] sm:$0xf]
  %v661 = vld [vmem:[%s1 + $0x95c] sm:$0xf]
  %v662 = vld [vmem:[%s1 + $0x960] sm:$0xf]
  %v663 = vld [vmem:[%s1 + $0x964] sm:$0xf]
  %v664 = vld [vmem:[%s1 + $0x968] sm:$0xf]
  %v665 = vld [vmem:[%s1 + $0x96c] sm:$0xf]
  %v666 = vld [vmem:[%s1 + $0x970] sm:$0xf]
  %v667 = vld [vmem:[%s1 + $0x974] sm:$0xf]
  %v668 = vld [vmem:[%s1 + $0x978] sm:$0xf]
  %v669 = vld [vmem:[%s1 + $0x97c] sm:$0xf]
  %v670 = vld [vmem:[%s1 + $0x980] sm:$0xf]
  %v671 = vld [vmem:[%s1 + $0x984] sm:$0xf]
  %v672 = vld [vmem:[%s1 + $0x988] sm:$0xf]
  %v673 = vld [vmem:[%s1 + $0x98c] sm:$0xf]
  %v674 = vld [vmem:[%s1 + $0x990] sm:$0xf]
  %v675 = vld [vmem:[%s1 + $0x994] sm:$0xf]
  %v676 = vld [vmem:[%s1 + $0x998] sm:$0xf]
  %v677 = vld [vmem:[%s1 + $0x99c] sm:$0xf]
  %v678 = vld [vmem:[%s1 + $0x9a0] sm:$0xf]
  %v679 = vld [vmem:[%s1 + $0x9a4] sm:$0xf]
  %v680 = vld [vmem:[%s1 + $0x9a8] sm:$0xf]
  %v681 = vld [vmem:[%s1 + $0x9ac] sm:$0xf]
  %v682 = vld [vmem:[%s1 + $0x9b0] sm:$0xf]
  %v683 = vld [vmem:[%s1 + $0x9b4] sm:$0xf]
  %v684 = vld [vmem:[%s1 + $0x9b8] sm:$0xf]
  %v685 = vld [vmem:[%s1 + $0x9bc] sm:$0xf]
  %v686 = vld [vmem:[%s1 + $0x9c0] sm:$0xf]
  %v687 = vld [vmem:[%s1 + $0x9c4] sm:$0xf]
  %v688 = vld [vmem:[%s1 + $0x9c8] sm:$0xf]
  %v689 = vld [vmem:[%s1 + $0x9cc] sm:$0xf]
  %v690 = vld [vmem:[%s1 + $0x9d0] sm:$0xf]
  %v691 = vld [vmem:[%s1 + $0x9d4] sm:$0xf]
  %v692 = vld [vmem:[%s1 + $0x9d8] sm:$0xf]
  %v693 = vld [vmem:[%s1 + $0x9dc] sm:$0xf]
  %v694 = vld [vmem:[%s1 + $0x9e0] sm:$0xf]
  %v695 = vld [vmem:[%s1 + $0x9e4] sm:$0xf]
  %v696 = vld [vmem:[%s1 + $0x9e8] sm:$0xf]
  %v697 = vld [vmem:[%s1 + $0x9ec] sm:$0xf]
  %v698 = vld [vmem:[%s1 + $0x9f0] sm:$0xf]
  %v699 = vld [vmem:[%s1 + $0x9f4] sm:$0xf]
  %v700 = vld [vmem:[%s1 + $0x9f8] sm:$0xf]
  %v701 = vld [vmem:[%s1 + $0x9fc] sm:$0xf]
  %v702 = vld [vmem:[%s1 + $0xa00] sm:$0xf]
  %v703 = vld [vmem:[%s1 + $0xa04] sm:$0xf]
  %v704 = vld [vmem:[%s1 + $0xa08] sm:$0xf]
  %v705 = vld [vmem:[%s1 + $0xa0c] sm:$0xf]
  %v706 = vld [vmem:[%s1 + $0xa10] sm:$0xf]
  %v707 = vld [vmem:[%s1 + $0xa14] sm:$0xf]
  %v708 = vld [vmem:[%s1 + $0xa18] sm:$0xf]
  %v709 = vld [vmem:[%s1 + $0xa1c] sm:$0xf]
  %v710 = vld [vmem:[%s1 + $0xa20] sm:$0xf]
  %v711 = vld [vmem:[%s1 + $0xa24] sm:$0xf]
  %v712 = vld [vmem:[%s1 + $0xa28] sm:$0xf]
  %v713 = vld [vmem:[%s1 + $0xa2c] sm:$0xf]
  %v714 = vld [vmem:[%s1 + $0xa30] sm:$0xf]
  %v715 = vld [vmem:[%s1 + $0xa34] sm:$0xf]
  %v716 = vld [vmem:[%s1 + $0xa38] sm:$0xf]
  %v717 = vld [vmem:[%s1 + $0xa3c] sm:$0xf]
  %v718 = vld [vmem:[%s1 + $0xa40] sm:$0xf]
  %v719 = vld [vmem:[%s1 + $0xa44] sm:$0xf]
  %v720 = vld [vmem:[%s1 + $0xa48] sm:$0xf]
  %v721 = vld [vmem:[%s1 + $0xa4c] sm:$0xf]
  %v722 = vld [vmem:[%s1 + $0xa50] sm:$0xf]
  %v723 = vld [vmem:[%s1 + $0xa54] sm:$0xf]
  %v724 = vld [vmem:[%s1 + $0xa58] sm:$0xf]
  %v725 = vld [vmem:[%s1 + $0xa5c] sm:$0xf]
  %v726 = vld [vmem:[%s1 + $0xa60] sm:$0xf]
  %v727 = vld [vmem:[%s1 + $0xa64] sm:$0xf]
  %v728 = vld [vmem:[%s1 + $0xa68] sm:$0xf]
  %v729 = vld [vmem:[%s1 + $0xa6c] sm:$0xf]
  %v730 = vld [vmem:[%s1 + $0xa70] sm:$0xf]
  %v731 = vld [vmem:[%s1 + $0xa74] sm:$0xf]
  %v732 = vld [vmem:[%s1 + $0xa78] sm:$0xf]
  %v733 = vld [vmem:[%s1 + $0xa7c] sm:$0xf]
  %v734 = vld [vmem:[%s1 + $0xa80] sm:$0xf]
  %v735 = vld [vmem:[%s1 + $0xa84] sm:$0xf]
  %v736 = vld [vmem:[%s1 + $0xa88] sm:$0xf]
  %v737 = vld [vmem:[%s1 + $0xa8c] sm:$0xf]
  %v738 = vld [vmem:[%s1 + $0xa90] sm:$0xf]
  %v739 = vld [vmem:[%s1 + $0xa94] sm:$0xf]
  %v740 = vld [vmem:[%s1 + $0xa98] sm:$0xf]
  %v741 = vld [vmem:[%s1 + $0xa9c] sm:$0xf]
  %v742 = vld [vmem:[%s1 + $0xaa0] sm:$0xf]
  %v743 = vld [vmem:[%s1 + $0xaa4] sm:$0xf]
  %v744 = vld [vmem:[%s1 + $0xaa8] sm:$0xf]
  %v745 = vld [vmem:[%s1 + $0xaac] sm:$0xf]
  %v746 = vld [vmem:[%s1 + $0xab0] sm:$0xf]
  %v747 = vld [vmem:[%s1 + $0xab4] sm:$0xf]
  %v748 = vld [vmem:[%s1 + $0xab8] sm:$0xf]
  %v749 = vld [vmem:[%s1 + $0xabc] sm:$0xf]
  %v750 = vld [vmem:[%s1 + $0xac0] sm:$0xf]
  %v751 = vld [vmem:[%s1 + $0xac4] sm:$0xf]
  %v752 = vld [vmem:[%s1 + $0xac8] sm:$0xf]
  %v753 = vld [vmem:[%s1 + $0xacc] sm:$0xf]
  %v754 = vld [vmem:[%s1 + $0xad0] sm:$0xf]
  %v755 = vld [vmem:[%s1 + $0xad4] sm:$0xf]
  %v756 = vld [vmem:[%s1 + $0xad8] sm:$0xf]
  %v757 = vld [vmem:[%s1 + $0xadc] sm:$0xf]
  %v758 = vld [vmem:[%s1 + $0xae0] sm:$0xf]
  %v759 = vld [vmem:[%s1 + $0xae4] sm:$0xf]
  %v760 = vld [vmem:[%s1 + $0xae8] sm:$0xf]
  %v761 = vld [vmem:[%s1 + $0xaec] sm:$0xf]
  %v762 = vld [vmem:[%s1 + $0xaf0] sm:$0xf]
  %v763 = vld [vmem:[%s1 + $0xaf4] sm:$0xf]
  %v764 = vld [vmem:[%s1 + $0xaf8] sm:$0xf]
  %v765 = vld [vmem:[%s1 + $0xafc] sm:$0xf]
  %v766 = vld [vmem:[%s1 + $0xb00] sm:$0xf]
  %v767 = vld [vmem:[%s1 + $0xb04] sm:$0xf]
  %v768 = vld [vmem:[%s1 + $0xb08] sm:$0xf]
  %v769 = vld [vmem:[%s1 + $0xb0c] sm:$0xf]
  %v770 = vld [vmem:[%s1 + $0xb10] sm:$0xf]
  %v771 = vld [vmem:[%s1 + $0xb14] sm:$0xf]
  %v772 = vld [vmem:[%s1 + $0xb18] sm:$0xf]
  %v773 = vld [vmem:[%s1 + $0xb1c] sm:$0xf]
  %v774 = vld [vmem:[%s1 + $0xb20] sm:$0xf]
  %v775 = vld [vmem:[%s1 + $0xb24] sm:$0xf]
  %v776 = vld [vmem:[%s1 + $0xb28] sm:$0xf]
  %v777 = vld [vmem:[%s1 + $0xb2c] sm:$0xf]
  %v778 = vld [vmem:[%s1 + $0xb30] sm:$0xf]
  %v779 = vld [vmem:[%s1 + $0xb34] sm:$0xf]
  %v780 = vld [vmem:[%s1 + $0xb38] sm:$0xf]
  %v781 = vld [vmem:[%s1 + $0xb3c] sm:$0xf]
  %v782 = vld [vmem:[%s1 + $0xb40] sm:$0xf]
  %v783 = vld [vmem:[%s1 + $0xb44] sm:$0xf]
  %v784 = vld [vmem:[%s1 + $0xb48] sm:$0xf]
  %v785 = vld [vmem:[%s1 + $0xb4c] sm:$0xf]
  %v786 = vld [vmem:[%s1 + $0xb50] sm:$0xf]
  %v787 = vld [vmem:[%s1 + $0xb54] sm:$0xf]
  %v788 = vld [vmem:[%s1 + $0xb58] sm:$0xf]
  %v789 = vld [vmem:[%s1 + $0xb5c] sm:$0xf]
  %v790 = vld [vmem:[%s1 + $0xb60] sm:$0xf]
  %v791 = vld [vmem:[%s1 + $0xb64] sm:$0xf]
  %v792 = vld [vmem:[%s1 + $0xb68] sm:$0xf]
  %v793 = vld [vmem:[%s1 + $0xb6c] sm:$0xf]
  %v794 = vld [vmem:[%s1 + $0xb70] sm:$0xf]
  %v795 = vld [vmem:[%s1 + $0xb74] sm:$0xf]
  %v796 = vld [vmem:[%s1 + $0xb78] sm:$0xf]
  %v797 = vld [vmem:[%s1 + $0xb7c] sm:$0xf]
  %v798 = vld [vmem:[%s1 + $0xb80] sm:$0xf]
  %v799 = vld [vmem:[%s1 + $0xb84] sm:$0xf]
  %v800 = vld [vmem:[%s1 + $0xb88] sm:$0xf]
  %v801 = vld [vmem:[%s1 + $0xb8c] sm:$0xf]
  %v802 = vld [vmem:[%s1 + $0xb90] sm:$0xf]
  %v803 = vld [vmem:[%s1 + $0xb94] sm:$0xf]
  %v804 = vld [vmem:[%s1 + $0xb98] sm:$0xf]
  %v805 = vld [vmem:[%s1 + $0xb9c] sm:$0xf]
  %v806 = vld [vmem:[%s1 + $0xba0] sm:$0xf]
  %v807 = vld [vmem:[%s1 + $0xba4] sm:$0xf]
  %v808 = vld [vmem:[%s1 + $0xba8] sm:$0xf]
  %v809 = vld [vmem:[%s1 + $0xbac] sm:$0xf]
  %v810 = vld [vmem:[%s1 + $0xbb0] sm:$0xf]
  %v811 = vld [vmem:[%s1 + $0xbb4] sm:$0xf]
  %v812 = vld [vmem:[%s1 + $0xbb8] sm:$0xf]
  %v813 = vld [vmem:[%s1 + $0xbbc] sm:$0xf]
  %v814 = vld [vmem:[%s1 + $0xbc0] sm:$0xf]
  %v815 = vld [vmem:[%s1 + $0xbc4] sm:$0xf]
  %v816 = vld [vmem:[%s1 + $0xbc8] sm:$0xf]
  %v817 = vld [vmem:[%s1 + $0xbcc] sm:$0xf]
  %v818 = vld [vmem:[%s1 + $0xbd0] sm:$0xf]
  %v819 = vld [vmem:[%s1 + $0xbd4] sm:$0xf]
  %v820 = vld [vmem:[%s1 + $0xbd8] sm:$0xf]
  %v821 = vld [vmem:[%s1 + $0xbdc] sm:$0xf]
  %v822 = vld [vmem:[%s1 + $0xbe0] sm:$0xf]
  %v823 = vld [vmem:[%s1 + $0xbe4] sm:$0xf]
  %v824 = vld [vmem:[%s1 + $0xbe8] sm:$0xf]
  %v825 = vld [vmem:[%s1 + $0xbec] sm:$0xf]
  %v826 = vld [vmem:[%s1 + $0xbf0] sm:$0xf]
  %v827 = vld [vmem:[%s1 + $0xbf4] sm:$0xf]
  %v828 = vld [vmem:[%s1 + $0xbf8] sm:$0xf]
  %v829 = vld [vmem:[%s1 + $0xbfc] sm:$0xf]
  %v830 = vld [vmem:[%s1 + $0xc00] sm:$0xf]
  %v831 = vld [vmem:[%s1 + $0xc04] sm:$0xf]
  %v832 = vld [vmem:[%s1 + $0xc08] sm:$0xf]
  %v833 = vld [vmem:[%s1 + $0xc0c] sm:$0xf]
  %v834 = vld [vmem:[%s1 + $0xc10] sm:$0xf]
  %v835 = vld [vmem:[%s1 + $0xc14] sm:$0xf]
  %v836 = vld [vmem:[%s1 + $0xc18] sm:$0xf]
  %v837 = vld [vmem:[%s1 + $0xc1c] sm:$0xf]
  %v838 = vld [vmem:[%s1 + $0xc20] sm:$0xf]
  %v839 = vld [vmem:[%s1 + $0xc24] sm:$0xf]
  %v840 = vld [vmem:[%s1 + $0xc28] sm:$0xf]
  %v841 = vld [vmem:[%s1 + $0xc2c] sm:$0xf]
  %v842 = vld [vmem:[%s1 + $0xc30] sm:$0xf]
  %v843 = vld [vmem:[%s1 + $0xc34] sm:$0xf]
  %v844 = vld [vmem:[%s1 + $0xc38] sm:$0xf]
  %v845 = vld [vmem:[%s1 + $0xc3c] sm:$0xf]
  %v846 = vld [vmem:[%s1 + $0xc40] sm:$0xf]
  %v847 = vld [vmem:[%s1 + $0xc44] sm:$0xf]
  %v848 = vld [vmem:[%s1 + $0xc48] sm:$0xf]
  %v849 = vld [vmem:[%s1 + $0xc4c] sm:$0xf]
  %v850 = vld [vmem:[%s1 + $0xc50] sm:$0xf]
  %v851 = vld [vmem:[%s1 + $0xc54] sm:$0xf]
  %v852 = vld [vmem:[%s1 + $0xc58] sm:$0xf]
  %v853 = vld [vmem:[%s1 + $0xc5c] sm:$0xf]
  %v854 = vld [vmem:[%s1 + $0xc60] sm:$0xf]
  %v855 = vld [vmem:[%s1 + $0xc64] sm:$0xf]
  %v856 = vld [vmem:[%s1 + $0xc68] sm:$0xf]
  %v857 = vld [vmem:[%s1 + $0xc6c] sm:$0xf]
  %v858 = vld [vmem:[%s1 + $0xc70] sm:$0xf]
  %v859 = vld [vmem:[%s1 + $0xc74] sm:$0xf]
  %v860 = vld [vmem:[%s1 + $0xc78] sm:$0xf]
  %v861 = vld [vmem:[%s1 + $0xc7c] sm:$0xf]
  %v862 = vld [vmem:[%s1 + $0xc80] sm:$0xf]
  %v863 = vld [vmem:[%s1 + $0xc84] sm:$0xf]
  %v864 = vld [vmem:[%s1 + $0xc88] sm:$0xf]
  %v865 = vld [vmem:[%s1 + $0xc8c] sm:$0xf]
  %v866 = vld [vmem:[%s1 + $0xc90] sm:$0xf]
  %v867 = vld [vmem:[%s1 + $0xc94] sm:$0xf]
  %v868 = vld [vmem:[%s1 + $0xc98] sm:$0xf]
  %v869 = vld [vmem:[%s1 + $0xc9c] sm:$0xf]
  %v870 = vld [vmem:[%s1 + $0xca0] sm:$0xf]
  %v871 = vld [vmem:[%s1 + $0xca4] sm:$0xf]
  %v872 = vld [vmem:[%s1 + $0xca8] sm:$0xf]
  %v873 = vld [vmem:[%s1 + $0xcac] sm:$0xf]
  %v874 = vld [vmem:[%s1 + $0xcb0] sm:$0xf]
  %v875 = vld [vmem:[%s1 + $0xcb4] sm:$0xf]
  %v876 = vld [vmem:[%s1 + $0xcb8] sm:$0xf]
  %v877 = vld [vmem:[%s1 + $0xcbc] sm:$0xf]
  %v878 = vld [vmem:[%s1 + $0xcc0] sm:$0xf]
  %v879 = vld [vmem:[%s1 + $0xcc4] sm:$0xf]
  %v880 = vld [vmem:[%s1 + $0xcc8] sm:$0xf]
  %v881 = vld [vmem:[%s1 + $0xccc] sm:$0xf]
  %v882 = vld [vmem:[%s1 + $0xcd0] sm:$0xf]
  %v883 = vld [vmem:[%s1 + $0xcd4] sm:$0xf]
  %v884 = vld [vmem:[%s1 + $0xcd8] sm:$0xf]
  %v885 = vld [vmem:[%s1 + $0xcdc] sm:$0xf]
  %v886 = vld [vmem:[%s1 + $0xce0] sm:$0xf]
  %v887 = vld [vmem:[%s1 + $0xce4] sm:$0xf]
  %v888 = vld [vmem:[%s1 + $0xce8] sm:$0xf]
  %v889 = vld [vmem:[%s1 + $0xcec] sm:$0xf]
  %v890 = vld [vmem:[%s1 + $0xcf0] sm:$0xf]
  %v891 = vld [vmem:[%s1 + $0xcf4] sm:$0xf]
  %v892 = vld [vmem:[%s1 + $0xcf8] sm:$0xf]
  %v893 = vld [vmem:[%s1 + $0xcfc] sm:$0xf]
  %v894 = vld [vmem:[%s1 + $0xd00] sm:$0xf]
  %v895 = vld [vmem:[%s1 + $0xd04] sm:$0xf]
  %v896 = vld [vmem:[%s1 + $0xd08] sm:$0xf]
  %v897 = vld [vmem:[%s1 + $0xd0c] sm:$0xf]
  %v898 = vld [vmem:[%s1 + $0xd10] sm:$0xf]
  %v899 = vld [vmem:[%s1 + $0xd14] sm:$0xf]
  %v900 = vld [vmem:[%s1 + $0xd18] sm:$0xf]
  %v901 = vld [vmem:[%s1 + $0xd1c] sm:$0xf]
  %v902 = vld [vmem:[%s1 + $0xd20] sm:$0xf]
  %v903 = vld [vmem:[%s1 + $0xd24] sm:$0xf]
  %v904 = vld [vmem:[%s1 + $0xd28] sm:$0xf]
  %v905 = vld [vmem:[%s1 + $0xd2c] sm:$0xf]
  %v906 = vld [vmem:[%s1 + $0xd30] sm:$0xf]
  %v907 = vld [vmem:[%s1 + $0xd34] sm:$0xf]
  %v908 = vld [vmem:[%s1 + $0xd38] sm:$0xf]
  %v909 = vld [vmem:[%s1 + $0xd3c] sm:$0xf]
  %v910 = vld [vmem:[%s1 + $0xd40] sm:$0xf]
  %v911 = vld [vmem:[%s1 + $0xd44] sm:$0xf]
  %v912 = vld [vmem:[%s1 + $0xd48] sm:$0xf]
  %v913 = vld [vmem:[%s1 + $0xd4c] sm:$0xf]
  %v914 = vld [vmem:[%s1 + $0xd50] sm:$0xf]
  %v915 = vld [vmem:[%s1 + $0xd54] sm:$0xf]
  %v916 = vld [vmem:[%s1 + $0xd58] sm:$0xf]
  %v917 = vld [vmem:[%s1 + $0xd5c] sm:$0xf]
  %v918 = vld [vmem:[%s1 + $0xd60] sm:$0xf]
  %v919 = vld [vmem:[%s1 + $0xd64] sm:$0xf]
  %v920 = vld [vmem:[%s1 + $0xd68] sm:$0xf]
  %v921 = vld [vmem:[%s1 + $0xd6c] sm:$0xf]
  %v922 = vld [vmem:[%s1 + $0xd70] sm:$0xf]
  %v923 = vld [vmem:[%s1 + $0xd74] sm:$0xf]
  %v924 = vld [vmem:[%s1 + $0xd78] sm:$0xf]
  %v925 = vld [vmem:[%s1 + $0xd7c] sm:$0xf]
  %v926 = vld [vmem:[%s1 + $0xd80] sm:$0xf]
  %v927 = vld [vmem:[%s1 + $0xd84] sm:$0xf]
  %v928 = vld [vmem:[%s1 + $0xd88] sm:$0xf]
  %v929 = vld [vmem:[%s1 + $0xd8c] sm:$0xf]
  %v930 = vld [vmem:[%s1 + $0xd90] sm:$0xf]
  %v931 = vld [vmem:[%s1 + $0xd94] sm:$0xf]
  %v932 = vld [vmem:[%s1 + $0xd98] sm:$0xf]
  %v933 = vld [vmem:[%s1 + $0xd9c] sm:$0xf]
  %v934 = vld [vmem:[%s1 + $0xda0] sm:$0xf]
  %v935 = vld [vmem:[%s1 + $0xda4] sm:$0xf]
  %v936 = vld [vmem:[%s1 + $0xda8] sm:$0xf]
  %v937 = vld [vmem:[%s1 + $0xdac] sm:$0xf]
  %v938 = vld [vmem:[%s1 + $0xdb0] sm:$0xf]
  %v939 = vld [vmem:[%s1 + $0xdb4] sm:$0xf]
  %v940 = vld [vmem:[%s1 + $0xdb8] sm:$0xf]
  %v941 = vld [vmem:[%s1 + $0xdbc] sm:$0xf]
  %v942 = vld [vmem:[%s1 + $0xdc0] sm:$0xf]
  %v943 = vld [vmem:[%s1 + $0xdc4] sm:$0xf]
  %v944 = vld [vmem:[%s1 + $0xdc8] sm:$0xf]
  %v945 = vld [vmem:[%s1 + $0xdcc] sm:$0xf]
  %v946 = vld [vmem:[%s1 + $0xdd0] sm:$0xf]
  %v947 = vld [vmem:[%s1 + $0xdd4] sm:$0xf]
  %v948 = vld [vmem:[%s1 + $0xdd8] sm:$0xf]
  %v949 = vld [vmem:[%s1 + $0xddc] sm:$0xf]
  %v950 = vld [vmem:[%s1 + $0xde0] sm:$0xf]
  %v951 = vld [vmem:[%s1 + $0xde4] sm:$0xf]
  %v952 = vld [vmem:[%s1 + $0xde8] sm:$0xf]
  %v953 = vld [vmem:[%s1 + $0xdec] sm:$0xf]
  %v954 = vld [vmem:[%s1 + $0xdf0] sm:$0xf]
  %v955 = vld [vmem:[%s1 + $0xdf4] sm:$0xf]
  %v956 = vld [vmem:[%s1 + $0xdf8] sm:$0xf]
  %v957 = vld [vmem:[%s1 + $0xdfc] sm:$0xf]
  %v958 = vld [vmem:[%s1 + $0xe00] sm:$0xf]
  %v959 = vld [vmem:[%s1 + $0xe04] sm:$0xf]
  %v960 = vld [vmem:[%s1 + $0xe08] sm:$0xf]
  %v961 = vld [vmem:[%s1 + $0xe0c] sm:$0xf]
  %v962 = vld [vmem:[%s1 + $0xe10] sm:$0xf]
  %v963 = vld [vmem:[%s1 + $0xe14] sm:$0xf]
  %v964 = vld [vmem:[%s1 + $0xe18] sm:$0xf]
  %v965 = vld [vmem:[%s1 + $0xe1c] sm:$0xf]
  %v966 = vld [vmem:[%s1 + $0xe20] sm:$0xf]
  %v967 = vld [vmem:[%s1 + $0xe24] sm:$0xf]
  %v968 = vld [vmem:[%s1 + $0xe28] sm:$0xf]
  %v969 = vld [vmem:[%s1 + $0xe2c] sm:$0xf]
  %v970 = vld [vmem:[%s1 + $0xe30] sm:$0xf]
  %v971 = vld [vmem:[%s1 + $0xe34] sm:$0xf]
  %v972 = vld [vmem:[%s1 + $0xe38] sm:$0xf]
  %v973 = vld [vmem:[%s1 + $0xe3c] sm:$0xf]
  %v974 = vld [vmem:[%s1 + $0xe40] sm:$0xf]
  %v975 = vld [vmem:[%s1 + $0xe44] sm:$0xf]
  %v976 = vld [vmem:[%s1 + $0xe48] sm:$0xf]
  %v977 = vld [vmem:[%s1 + $0xe4c] sm:$0xf]
  %v978 = vld [vmem:[%s1 + $0xe50] sm:$0xf]
  %v979 = vld [vmem:[%s1 + $0xe54] sm:$0xf]
  %v980 = vld [vmem:[%s1 + $0xe58] sm:$0xf]
  %v981 = vld [vmem:[%s1 + $0xe5c] sm:$0xf]
  %v982 = vld [vmem:[%s1 + $0xe60] sm:$0xf]
  %v983 = vld [vmem:[%s1 + $0xe64] sm:$0xf]
  %v984 = vld [vmem:[%s1 + $0xe68] sm:$0xf]
  %v985 = vld [vmem:[%s1 + $0xe6c] sm:$0xf]
  %v986 = vld [vmem:[%s1 + $0xe70] sm:$0xf]
  %v987 = vld [vmem:[%s1 + $0xe74] sm:$0xf]
  %v988 = vld [vmem:[%s1 + $0xe78] sm:$0xf]
  %v989 = vld [vmem:[%s1 + $0xe7c] sm:$0xf]
  %v990 = vld [vmem:[%s1 + $0xe80] sm:$0xf]
  %v991 = vld [vmem:[%s1 + $0xe84] sm:$0xf]
  %v992 = vld [vmem:[%s1 + $0xe88] sm:$0xf]
  %v993 = vld [vmem:[%s1 + $0xe8c] sm:$0xf]
  %v994 = vld [vmem:[%s1 + $0xe90] sm:$0xf]
  %v995 = vld [vmem:[%s1 + $0xe94] sm:$0xf]
  %v996 = vld [vmem:[%s1 + $0xe98] sm:$0xf]
  %v997 = vld [vmem:[%s1 + $0xe9c] sm:$0xf]
  %v998 = vld [vmem:[%s1 + $0xea0] sm:$0xf]
  %v999 = vld [vmem:[%s1 + $0xea4] sm:$0xf]
  %v1000 = vld [vmem:[%s1 + $0xea8] sm:$0xf]
  %v1001 = vld [vmem:[%s1 + $0xeac] sm:$0xf]
  %v1002 = vld [vmem:[%s1 + $0xeb0] sm:$0xf]
  %v1003 = vld [vmem:[%s1 + $0xeb4] sm:$0xf]
  %v1004 = vld [vmem:[%s1 + $0xeb8] sm:$0xf]
  %v1005 = vld [vmem:[%s1 + $0xebc] sm:$0xf]
  %v1006 = vld [vmem:[%s1 + $0xec0] sm:$0xf]
  %v1007 = vld [vmem:[%s1 + $0xec4] sm:$0xf]
  %v1008 = vld [vmem:[%s1 + $0xec8] sm:$0xf]
  %v1009 = vld [vmem:[%s1 + $0xecc] sm:$0xf]
  %v1010 = vld [vmem:[%s1 + $0xed0] sm:$0xf]
  %v1011 = vld [vmem:[%s1 + $0xed4] sm:$0xf]
  %v1012 = vld [vmem:[%s1 + $0xed8] sm:$0xf]
  %v1013 = vld [vmem:[%s1 + $0xedc] sm:$0xf]
  %v1014 = vld [vmem:[%s1 + $0xee0] sm:$0xf]
  %v1015 = vld [vmem:[%s1 + $0xee4] sm:$0xf]
  %v1016 = vld [vmem:[%s1 + $0xee8] sm:$0xf]
  %v1017 = vld [vmem:[%s1 + $0xeec] sm:$0xf]
  %v1018 = vld [vmem:[%s1 + $0xef0] sm:$0xf]
  %v1019 = vld [vmem:[%s1 + $0xef4] sm:$0xf]
  %v1020 = vld [vmem:[%s1 + $0xef8] sm:$0xf]
  %v1021 = vld [vmem:[%s1 + $0xefc] sm:$0xf]
  %v1022 = vld [vmem:[%s1 + $0xf00] sm:$0xf]
  %v1023 = vld [vmem:[%s1 + $0xf04] sm:$0xf]
  %v1024 = vld [vmem:[%s1 + $0xf08] sm:$0xf]
  %v1025 = vld [vmem:[%s1 + $0xf0c] sm:$0xf]
  %v1026 = vld [vmem:[%s1 + $0xf10] sm:$0xf]
  %v1027 = vld [vmem:[%s1 + $0xf14] sm:$0xf]
  %v1028 = vld [vmem:[%s1 + $0xf18] sm:$0xf]
  %v1029 = vld [vmem:[%s1 + $0xf1c] sm:$0xf]
  %v1030 = vld [vmem:[%s1 + $0xf20] sm:$0xf]
  %v1031 = vld [vmem:[%s1 + $0xf24] sm:$0xf]
  %v1032 = vld [vmem:[%s1 + $0xf28] sm:$0xf]
  %v1033 = vld [vmem:[%s1 + $0xf2c] sm:$0xf]
  %v1034 = vld [vmem:[%s1 + $0xf30] sm:$0xf]
  %v1035 = vld [vmem:[%s1 + $0xf34] sm:$0xf]
  %v1036 = vld [vmem:[%s1 + $0xf38] sm:$0xf]
  %v1037 = vld [vmem:[%s1 + $0xf3c] sm:$0xf]
  %v1038 = vld [vmem:[%s1 + $0xf40] sm:$0xf]
  %v1039 = vld [vmem:[%s1 + $0xf44] sm:$0xf]
  %v1040 = vld [vmem:[%s1 + $0xf48] sm:$0xf]
  %v1041 = vld [vmem:[%s1 + $0xf4c] sm:$0xf]
  %v1042 = vld [vmem:[%s1 + $0xf50] sm:$0xf]
  %v1043 = vld [vmem:[%s1 + $0xf54] sm:$0xf]
  %v1044 = vld [vmem:[%s1 + $0xf58] sm:$0xf]
  %v1045 = vld [vmem:[%s1 + $0xf5c] sm:$0xf]
  %v1046 = vld [vmem:[%s1 + $0xf60] sm:$0xf]
  %v1047 = vld [vmem:[%s1 + $0xf64] sm:$0xf]
  %v1048 = vld [vmem:[%s1 + $0xf68] sm:$0xf]
  %v1049 = vld [vmem:[%s1 + $0xf6c] sm:$0xf]
  %v1050 = vld [vmem:[%s1 + $0xf70] sm:$0xf]
  %v1051 = vld [vmem:[%s1 + $0xf74] sm:$0xf]
  %v1052 = vld [vmem:[%s1 + $0xf78] sm:$0xf]
  %v1053 = vld [vmem:[%s1 + $0xf7c] sm:$0xf]
  %v1054 = vld [vmem:[%s1 + $0xf80] sm:$0xf]
  %v1055 = vld [vmem:[%s1 + $0xf84] sm:$0xf]
  %v1056 = vld [vmem:[%s1 + $0xf88] sm:$0xf]
  %v1057 = vld [vmem:[%s1 + $0xf8c] sm:$0xf]
  %v1058 = vld [vmem:[%s1 + $0xf90] sm:$0xf]
  %v1059 = vld [vmem:[%s1 + $0xf94] sm:$0xf]
  %v1060 = vld [vmem:[%s1 + $0xf98] sm:$0xf]
  %v1061 = vld [vmem:[%s1 + $0xf9c] sm:$0xf]
  %v1062 = vld [vmem:[%s1 + $0xfa0] sm:$0xf]
  %v1063 = vld [vmem:[%s1 + $0xfa4] sm:$0xf]
  %v1064 = vld [vmem:[%s1 + $0xfa8] sm:$0xf]
  %v1065 = vld [vmem:[%s1 + $0xfac] sm:$0xf]
  %v1066 = vld [vmem:[%s1 + $0xfb0] sm:$0xf]
  %v1067 = vld [vmem:[%s1 + $0xfb4] sm:$0xf]
  %v1068 = vld [vmem:[%s1 + $0xfb8] sm:$0xf]
  %v1069 = vld [vmem:[%s1 + $0xfbc] sm:$0xf]
  %v1070 = vld [vmem:[%s1 + $0xfc0] sm:$0xf]
  %v1071 = vld [vmem:[%s1 + $0xfc4] sm:$0xf]
  %v1072 = vld [vmem:[%s1 + $0xfc8] sm:$0xf]
  %v1073 = vld [vmem:[%s1 + $0xfcc] sm:$0xf]
  %v1074 = vld [vmem:[%s1 + $0xfd0] sm:$0xf]
  %v1075 = vld [vmem:[%s1 + $0xfd4] sm:$0xf]
  %v1076 = vld [vmem:[%s1 + $0xfd8] sm:$0xf]
  %v1077 = vld [vmem:[%s1 + $0xfdc] sm:$0xf]
  %v1078 = vld [vmem:[%s1 + $0xfe0] sm:$0xf]
  %v1079 = vld [vmem:[%s1 + $0xfe4] sm:$0xf]
  %v1080 = vld [vmem:[%s1 + $0xfe8] sm:$0xf]
  %v1081 = vld [vmem:[%s1 + $0xfec] sm:$0xf]
  %v1082 = vld [vmem:[%s1 + $0xff0] sm:$0xf]
  %v1083 = vld [vmem:[%s1 + $0xff4] sm:$0xf]
  %v1084 = vld [vmem:[%s1 + $0xff8] sm:$0xf]
  %v1085 = vld [vmem:[%s1 + $0xffc] sm:$0xf]
  %v1086 = vld [vmem:[%s1 + $0x1000] sm:$0xf]
  %v1087 = vld [vmem:[%s1 + $0x1004] sm:$0xf]
  %v1088 = vld [vmem:[%s1 + $0x1008] sm:$0xf]
  %v1089 = vld [vmem:[%s1 + $0x100c] sm:$0xf]
  %v1090 = vld [vmem:[%s1 + $0x1010] sm:$0xf]
  %v1091 = vld [vmem:[%s1 + $0x1014] sm:$0xf]
  %v1092 = vld [vmem:[%s1 + $0x1018] sm:$0xf]
  %v1093 = vld [vmem:[%s1 + $0x101c] sm:$0xf]
  %v1094 = vld [vmem:[%s1 + $0x1020] sm:$0xf]
  %v1095 = vld [vmem:[%s1 + $0x1024] sm:$0xf]
  %v1096 = vld [vmem:[%s1 + $0x1028] sm:$0xf]
  %v1097 = vld [vmem:[%s1 + $0x102c] sm:$0xf]
  %v1098 = vld [vmem:[%s1 + $0x1030] sm:$0xf]
  %v1099 = vld [vmem:[%s1 + $0x1034] sm:$0xf]
  %v1100 = vld [vmem:[%s1 + $0x1038] sm:$0xf]
  %v1101 = vld [vmem:[%s1 + $0x103c] sm:$0xf]
  %v1102 = vld [vmem:[%s1 + $0x1040] sm:$0xf]
  %v1103 = vld [vmem:[%s1 + $0x1044] sm:$0xf]
  %v1104 = vld [vmem:[%s1 + $0x1048] sm:$0xf]
  %v1105 = vld [vmem:[%s1 + $0x104c] sm:$0xf]
  %v1106 = vld [vmem:[%s1 + $0x1050] sm:$0xf]
  %v1107 = vld [vmem:[%s1 + $0x1054] sm:$0xf]
  %v1108 = vld [vmem:[%s1 + $0x1058] sm:$0xf]
  %v1109 = vld [vmem:[%s1 + $0x105c] sm:$0xf]
  %v1110 = vld [vmem:[%s1 + $0x1060] sm:$0xf]
  %v1111 = vld [vmem:[%s1 + $0x1064] sm:$0xf]
  %v1112 = vld [vmem:[%s1 + $0x1068] sm:$0xf]
  %v1113 = vld [vmem:[%s1 + $0x106c] sm:$0xf]
  %v1114 = vld [vmem:[%s1 + $0x1070] sm:$0xf]
  %v1115 = vld [vmem:[%s1 + $0x1074] sm:$0xf]
  %v1116 = vld [vmem:[%s1 + $0x1078] sm:$0xf]
  %v1117 = vld [vmem:[%s1 + $0x107c] sm:$0xf]
  %v1118 = vld [vmem:[%s1 + $0x1080] sm:$0xf]
  %v1119 = vld [vmem:[%s1 + $0x1084] sm:$0xf]
  %v1120 = vld [vmem:[%s1 + $0x1088] sm:$0xf]
  %v1121 = vld [vmem:[%s1 + $0x108c] sm:$0xf]
  %v1122 = vld [vmem:[%s1 + $0x1090] sm:$0xf]
  %v1123 = vld [vmem:[%s1 + $0x1094] sm:$0xf]
  %v1124 = vld [vmem:[%s1 + $0x1098] sm:$0xf]
  %v1125 = vld [vmem:[%s1 + $0x109c] sm:$0xf]
  %v1126 = vld [vmem:[%s1 + $0x10a0] sm:$0xf]
  %v1127 = vld [vmem:[%s1 + $0x10a4] sm:$0xf]
  %v1128 = vld [vmem:[%s1 + $0x10a8] sm:$0xf]
  %v1129 = vld [vmem:[%s1 + $0x10ac] sm:$0xf]
  %v1130 = vld [vmem:[%s1 + $0x10b0] sm:$0xf]
  %v1131 = vld [vmem:[%s1 + $0x10b4] sm:$0xf]
  %v1132 = vld [vmem:[%s1 + $0x10b8] sm:$0xf]
  %v1133 = vld [vmem:[%s1 + $0x10bc] sm:$0xf]
  %v1134 = vld [vmem:[%s1 + $0x10c0] sm:$0xf]
  %v1135 = vld [vmem:[%s1 + $0x10c4] sm:$0xf]
  %v1136 = vld [vmem:[%s1 + $0x10c8] sm:$0xf]
  %v1137 = vld [vmem:[%s1 + $0x10cc] sm:$0xf]
  %v1138 = vld [vmem:[%s1 + $0x10d0] sm:$0xf]
  %v1139 = vld [vmem:[%s1 + $0x10d4] sm:$0xf]
  %v1140 = vld [vmem:[%s1 + $0x10d8] sm:$0xf]
  %v1141 = vld [vmem:[%s1 + $0x10dc] sm:$0xf]
  %v1142 = vld [vmem:[%s1 + $0x10e0] sm:$0xf]
  %v1143 = vld [vmem:[%s1 + $0x10e4] sm:$0xf]
  %v1144 = vld [vmem:[%s1 + $0x10e8] sm:$0xf]
  %v1145 = vld [vmem:[%s1 + $0x10ec] sm:$0xf]
  %v1146 = vld [vmem:[%s1 + $0x10f0] sm:$0xf]
  %v1147 = vld [vmem:[%s1 + $0x10f4] sm:$0xf]
  %v1148 = vld [vmem:[%s1 + $0x10f8] sm:$0xf]
  %v1149 = vld [vmem:[%s1 + $0x10fc] sm:$0xf]
  %v1150 = vld [vmem:[%s1 + $0x1100] sm:$0xf]
  %v1151 = vld [vmem:[%s1 + $0x1104] sm:$0xf]
  %v1152 = vld [vmem:[%s1 + $0x1108] sm:$0xf]
  %v1153 = vld [vmem:[%s1 + $0x110c] sm:$0xf]
  %v1154 = vld [vmem:[%s1 + $0x1110] sm:$0xf]
  %v1155 = vld [vmem:[%s1 + $0x1114] sm:$0xf]
  %v1156 = vld [vmem:[%s1 + $0x1118] sm:$0xf]
  %v1157 = vld [vmem:[%s1 + $0x111c] sm:$0xf]
  %v1158 = vld [vmem:[%s1 + $0x1120] sm:$0xf]
  %v1159 = vld [vmem:[%s1 + $0x1124] sm:$0xf]
  %v1160 = vld [vmem:[%s1 + $0x1128] sm:$0xf]
  %v1161 = vld [vmem:[%s1 + $0x112c] sm:$0xf]
  %v1162 = vld [vmem:[%s1 + $0x1130] sm:$0xf]
  %v1163 = vld [vmem:[%s1 + $0x1134] sm:$0xf]
  %v1164 = vld [vmem:[%s1 + $0x1138] sm:$0xf]
  %v1165 = vld [vmem:[%s1 + $0x113c] sm:$0xf]
  %v1166 = vld [vmem:[%s1 + $0x1140] sm:$0xf]
  %v1167 = vld [vmem:[%s1 + $0x1144] sm:$0xf]
  %v1168 = vld [vmem:[%s1 + $0x1148] sm:$0xf]
  %v1169 = vld [vmem:[%s1 + $0x114c] sm:$0xf]
  %v1170 = vld [vmem:[%s1 + $0x1150] sm:$0xf]
  %v1171 = vld [vmem:[%s1 + $0x1154] sm:$0xf]
  %v1172 = vld [vmem:[%s1 + $0x1158] sm:$0xf]
  %v1173 = vld [vmem:[%s1 + $0x115c] sm:$0xf]
  %v1174 = vld [vmem:[%s1 + $0x1160] sm:$0xf]
  %v1175 = vld [vmem:[%s1 + $0x1164] sm:$0xf]
  %v1176 = vld [vmem:[%s1 + $0x1168] sm:$0xf]
  %v1177 = vld [vmem:[%s1 + $0x116c] sm:$0xf]
  %v1178 = vld [vmem:[%s1 + $0x1170] sm:$0xf]
  %v1179 = vld [vmem:[%s1 + $0x1174] sm:$0xf]
  %v1180 = vld [vmem:[%s1 + $0x1178] sm:$0xf]
  %v1181 = vld [vmem:[%s1 + $0x117c] sm:$0xf]
  %v1182 = vld [vmem:[%s1 + $0x1180] sm:$0xf]
  %v1183 = vld [vmem:[%s1 + $0x1184] sm:$0xf]
  %v1184 = vld [vmem:[%s1 + $0x1188] sm:$0xf]
  %v1185 = vld [vmem:[%s1 + $0x118c] sm:$0xf]
  %v1186 = vld [vmem:[%s1 + $0x1190] sm:$0xf]
  %v1187 = vld [vmem:[%s1 + $0x1194] sm:$0xf]
  %v1188 = vld [vmem:[%s1 + $0x1198] sm:$0xf]
  %v1189 = vld [vmem:[%s1 + $0x119c] sm:$0xf]
  %v1190 = vld [vmem:[%s1 + $0x11a0] sm:$0xf]
  %v1191 = vld [vmem:[%s1 + $0x11a4] sm:$0xf]
  %v1192 = vld [vmem:[%s1 + $0x11a8] sm:$0xf]
  %v1193 = vld [vmem:[%s1 + $0x11ac] sm:$0xf]
  %v1194 = vld [vmem:[%s1 + $0x11b0] sm:$0xf]
  %v1195 = vld [vmem:[%s1 + $0x11b4] sm:$0xf]
  %v1196 = vld [vmem:[%s1 + $0x11b8] sm:$0xf]
  %v1197 = vld [vmem:[%s1 + $0x11bc] sm:$0xf]
  %v1198 = vld [vmem:[%s1 + $0x11c0] sm:$0xf]
  %v1199 = vld [vmem:[%s1 + $0x11c4] sm:$0xf]
  %v1200 = vld [vmem:[%s1 + $0x11c8] sm:$0xf]
  %v1201 = vld [vmem:[%s1 + $0x11cc] sm:$0xf]
  %v1202 = vld [vmem:[%s1 + $0x11d0] sm:$0xf]
  %v1203 = vld [vmem:[%s1 + $0x11d4] sm:$0xf]
  %v1204 = vld [vmem:[%s1 + $0x11d8] sm:$0xf]
  %v1205 = vld [vmem:[%s1 + $0x11dc] sm:$0xf]
  %v1206 = vld [vmem:[%s1 + $0x11e0] sm:$0xf]
  %v1207 = vld [vmem:[%s1 + $0x11e4] sm:$0xf]
  %v1208 = vld [vmem:[%s1 + $0x11e8] sm:$0xf]
  %v1209 = vld [vmem:[%s1 + $0x11ec] sm:$0xf]
  %v1210 = vld [vmem:[%s1 + $0x11f0] sm:$0xf]
  %v1211 = vld [vmem:[%s1 + $0x11f4] sm:$0xf]
  %v1212 = vld [vmem:[%s1 + $0x11f8] sm:$0xf]
  %v1213 = vld [vmem:[%s1 + $0x11fc] sm:$0xf]
  %v1250 = vunpack.c.l.b16 %v26
  %v1251 = vunpack.c.h.b16 %v26
  %v1252 = vunpack.c.l.b16 %v27
  %v1253 = vunpack.c.h.b16 %v27
  %v1254 = vunpack.c.l.b16 %v28
  %v1255 = vunpack.c.h.b16 %v28
  %v1256 = vunpack.c.l.b16 %v29
  %v1257 = vunpack.c.h.b16 %v29
  %v1258 = vunpack.c.l.b16 %v30
  %v1259 = vunpack.c.h.b16 %v30
  %v1260 = vunpack.c.l.b16 %v31
  %v1261 = vunpack.c.h.b16 %v31
  %v1262 = vunpack.c.l.b16 %v32
  %v1263 = vunpack.c.h.b16 %v32
  %v1264 = vunpack.c.l.b16 %v33
  %v1265 = vunpack.c.h.b16 %v33
  %v1266 = vunpack.c.l.b16 %v34
  %v1267 = vunpack.c.h.b16 %v34
  %v1268 = vunpack.c.l.b16 %v35
  %v1269 = vunpack.c.h.b16 %v35
  %v1270 = vunpack.c.l.b16 %v36
  %v1271 = vunpack.c.h.b16 %v36
  %v1272 = vunpack.c.l.b16 %v37
  %v1273 = vunpack.c.h.b16 %v37
  %v1274 = vunpack.c.l.b16 %v38
  %v1275 = vunpack.c.h.b16 %v38
  %v1276 = vunpack.c.l.b16 %v39
  %v1277 = vunpack.c.h.b16 %v39
  %v1278 = vunpack.c.l.b16 %v40
  %v1279 = vunpack.c.h.b16 %v40
  %v1280 = vunpack.c.l.b16 %v41
  %v1281 = vunpack.c.h.b16 %v41
  %v1282 = vunpack.c.l.b16 %v42
  %v1283 = vunpack.c.h.b16 %v42
  %v1284 = vunpack.c.l.b16 %v43
  %v1285 = vunpack.c.h.b16 %v43
  %v1286 = vunpack.c.l.b16 %v44
  %v1287 = vunpack.c.h.b16 %v44
  %v1288 = vunpack.c.l.b16 %v45
  %v1289 = vunpack.c.h.b16 %v45
  %v1290 = vunpack.c.l.b16 %v46
  %v1291 = vunpack.c.h.b16 %v46
  %v1292 = vunpack.c.l.b16 %v47
  %v1293 = vunpack.c.h.b16 %v47
  %v1294 = vunpack.c.l.b16 %v48
  %v1295 = vunpack.c.h.b16 %v48
  %v1296 = vunpack.c.l.b16 %v49
  %v1297 = vunpack.c.h.b16 %v49
  %v1298 = vunpack.c.l.b16 %v50
  %v1299 = vunpack.c.h.b16 %v50
  %v1300 = vunpack.c.l.b16 %v51
  %v1301 = vunpack.c.h.b16 %v51
  %v1302 = vunpack.c.l.b16 %v52
  %v1303 = vunpack.c.h.b16 %v52
  %v1304 = vunpack.c.l.b16 %v53
  %v1305 = vunpack.c.h.b16 %v53
  %v1306 = vunpack.c.l.b16 %v54
  %v1307 = vunpack.c.h.b16 %v54
  %v1308 = vunpack.c.l.b16 %v55
  %v1309 = vunpack.c.h.b16 %v55
  %v1310 = vunpack.c.l.b16 %v56
  %v1311 = vunpack.c.h.b16 %v56
  %v1312 = vunpack.c.l.b16 %v57
  %v1313 = vunpack.c.h.b16 %v57
  %v1314 = vunpack.c.l.b16 %v58
  %v1315 = vunpack.c.h.b16 %v58
  %v1316 = vunpack.c.l.b16 %v59
  %v1317 = vunpack.c.h.b16 %v59
  %v1318 = vunpack.c.l.b16 %v60
  %v1319 = vunpack.c.h.b16 %v60
  %v1320 = vunpack.c.l.b16 %v61
  %v1321 = vunpack.c.h.b16 %v61
  %v1322 = vpack.c.b16 %v1250, %v1250
  %v1323 = vpack.c.b16 %v1251, %v1251
  %v1324 = vpack.c.b16 %v1252, %v1252
  %v1325 = vpack.c.b16 %v1253, %v1253
  %v1326 = vpack.c.b16 %v1254, %v1254
  %v1327 = vpack.c.b16 %v1255, %v1255
  %v1328 = vpack.c.b16 %v1256, %v1256
  %v1329 = vpack.c.b16 %v1257, %v1257
  %v1330 = vpack.c.b16 %v1258, %v1258
  %v1331 = vpack.c.b16 %v1259, %v1259
  %v1332 = vpack.c.b16 %v1260, %v1260
  %v1333 = vpack.c.b16 %v1261, %v1261
  %v1334 = vpack.c.b16 %v1262, %v1262
  %v1335 = vpack.c.b16 %v1263, %v1263
  %v1336 = vpack.c.b16 %v1264, %v1264
  %v1337 = vpack.c.b16 %v1265, %v1265
  %v1338 = vpack.c.b16 %v1266, %v1266
  %v1339 = vpack.c.b16 %v1267, %v1267
  %v1340 = vpack.c.b16 %v1268, %v1268
  %v1341 = vpack.c.b16 %v1269, %v1269
  %v1342 = vpack.c.b16 %v1270, %v1270
  %v1343 = vpack.c.b16 %v1271, %v1271
  %v1344 = vpack.c.b16 %v1272, %v1272
  %v1345 = vpack.c.b16 %v1273, %v1273
  %v1346 = vpack.c.b16 %v1274, %v1274
  %v1347 = vpack.c.b16 %v1275, %v1275
  %v1348 = vpack.c.b16 %v1276, %v1276
  %v1349 = vpack.c.b16 %v1277, %v1277
  %v1350 = vpack.c.b16 %v1278, %v1278
  %v1351 = vpack.c.b16 %v1279, %v1279
  %v1352 = vpack.c.b16 %v1280, %v1280
  %v1353 = vpack.c.b16 %v1281, %v1281
  %v1354 = vpack.c.b16 %v1282, %v1282
  %v1355 = vpack.c.b16 %v1283, %v1283
  %v1356 = vpack.c.b16 %v1284, %v1284
  %v1357 = vpack.c.b16 %v1285, %v1285
  %v1358 = vpack.c.b16 %v1286, %v1286
  %v1359 = vpack.c.b16 %v1287, %v1287
  %v1360 = vpack.c.b16 %v1288, %v1288
  %v1361 = vpack.c.b16 %v1289, %v1289
  %v1362 = vpack.c.b16 %v1290, %v1290
  %v1363 = vpack.c.b16 %v1291, %v1291
  %v1364 = vpack.c.b16 %v1292, %v1292
  %v1365 = vpack.c.b16 %v1293, %v1293
  %v1366 = vpack.c.b16 %v1294, %v1294
  %v1367 = vpack.c.b16 %v1295, %v1295
  %v1368 = vpack.c.b16 %v1296, %v1296
  %v1369 = vpack.c.b16 %v1297, %v1297
  %v1370 = vpack.c.b16 %v1298, %v1298
  %v1371 = vpack.c.b16 %v1299, %v1299
  %v1372 = vpack.c.b16 %v1300, %v1300
  %v1373 = vpack.c.b16 %v1301, %v1301
  %v1374 = vpack.c.b16 %v1302, %v1302
  %v1375 = vpack.c.b16 %v1303, %v1303
  %v1376 = vpack.c.b16 %v1304, %v1304
  %v1377 = vpack.c.b16 %v1305, %v1305
  %v1378 = vpack.c.b16 %v1306, %v1306
  %v1379 = vpack.c.b16 %v1307, %v1307
  %v1380 = vpack.c.b16 %v1308, %v1308
  %v1381 = vpack.c.b16 %v1309, %v1309
  %v1382 = vpack.c.b16 %v1310, %v1310
  %v1383 = vpack.c.b16 %v1311, %v1311
  %v1384 = vpack.c.b16 %v1312, %v1312
  %v1385 = vpack.c.b16 %v1313, %v1313
  %v1386 = vpack.c.b16 %v1314, %v1314
  %v1387 = vpack.c.b16 %v1315, %v1315
  %v1388 = vpack.c.b16 %v1316, %v1316
  %v1389 = vpack.c.b16 %v1317, %v1317
  %v1390 = vpack.c.b16 %v1318, %v1318
  %v1391 = vpack.c.b16 %v1319, %v1319
  %v1392 = vpack.c.b16 %v1320, %v1320
  %v1393 = vpack.c.b16 %v1321, %v1321
  %v2618 = vunpack.c.l.b16 %v62
  %v2619 = vunpack.c.l.b16 %v63
  %v2620 = vunpack.c.l.b16 %v64
  %v2621 = vunpack.c.l.b16 %v65
  %v2622 = vunpack.c.l.b16 %v66
  %v2623 = vunpack.c.l.b16 %v67
  %v2624 = vunpack.c.l.b16 %v68
  %v2625 = vunpack.c.l.b16 %v69
  %v2626 = vunpack.c.l.b16 %v70
  %v2627 = vunpack.c.l.b16 %v71
  %v2628 = vunpack.c.l.b16 %v72
  %v2629 = vunpack.c.l.b16 %v73
  %v2630 = vunpack.c.l.b16 %v74
  %v2631 = vunpack.c.l.b16 %v75
  %v2632 = vunpack.c.l.b16 %v76
  %v2633 = vunpack.c.l.b16 %v77
  %v2634 = vunpack.c.l.b16 %v78
  %v2635 = vunpack.c.l.b16 %v79
  %v2636 = vunpack.c.l.b16 %v80
  %v2637 = vunpack.c.l.b16 %v81
  %v2638 = vunpack.c.l.b16 %v82
  %v2639 = vunpack.c.l.b16 %v83
  %v2640 = vunpack.c.l.b16 %v84
  %v2641 = vunpack.c.l.b16 %v85
  %v2642 = vunpack.c.l.b16 %v86
  %v2643 = vunpack.c.l.b16 %v87
  %v2644 = vunpack.c.l.b16 %v88
  %v2645 = vunpack.c.l.b16 %v89
  %v2646 = vunpack.c.l.b16 %v90
  %v2647 = vunpack.c.l.b16 %v91
  %v2648 = vunpack.c.l.b16 %v92
  %v2649 = vunpack.c.l.b16 %v93
  %v2650 = vunpack.c.l.b16 %v94
  %v2651 = vunpack.c.l.b16 %v95
  %v2652 = vunpack.c.l.b16 %v96
  %v2653 = vunpack.c.l.b16 %v97
  %v2654 = vunpack.c.l.b16 %v98
  %v2655 = vunpack.c.l.b16 %v99
  %v2656 = vunpack.c.l.b16 %v100
  %v2657 = vunpack.c.l.b16 %v101
  %v2658 = vunpack.c.l.b16 %v102
  %v2659 = vunpack.c.l.b16 %v103
  %v2660 = vunpack.c.l.b16 %v104
  %v2661 = vunpack.c.l.b16 %v105
  %v2662 = vunpack.c.l.b16 %v106
  %v2663 = vunpack.c.l.b16 %v107
  %v2664 = vunpack.c.l.b16 %v108
  %v2665 = vunpack.c.l.b16 %v109
  %v2666 = vunpack.c.l.b16 %v110
  %v2667 = vunpack.c.l.b16 %v111
  %v2668 = vunpack.c.l.b16 %v112
  %v2669 = vunpack.c.l.b16 %v113
  %v2670 = vunpack.c.l.b16 %v114
  %v2671 = vunpack.c.l.b16 %v115
  %v2672 = vunpack.c.l.b16 %v116
  %v2673 = vunpack.c.l.b16 %v117
  %v2674 = vunpack.c.l.b16 %v118
  %v2675 = vunpack.c.l.b16 %v119
  %v2676 = vunpack.c.l.b16 %v120
  %v2677 = vunpack.c.l.b16 %v121
  %v2678 = vunpack.c.l.b16 %v122
  %v2679 = vunpack.c.l.b16 %v123
  %v2680 = vunpack.c.l.b16 %v124
  %v2681 = vunpack.c.l.b16 %v125
  %v2682 = vunpack.c.l.b16 %v126
  %v2683 = vunpack.c.l.b16 %v127
  %v2684 = vunpack.c.l.b16 %v128
  %v2685 = vunpack.c.l.b16 %v129
  %v2686 = vunpack.c.l.b16 %v130
  %v2687 = vunpack.c.l.b16 %v131
  %v2688 = vunpack.c.l.b16 %v132
  %v2689 = vunpack.c.l.b16 %v133
  %v2690 = vunpack.c.l.b16 %v134
  %v2691 = vunpack.c.l.b16 %v135
  %v2692 = vunpack.c.l.b16 %v136
  %v2693 = vunpack.c.l.b16 %v137
  %v2694 = vunpack.c.l.b16 %v138
  %v2695 = vunpack.c.l.b16 %v139
  %v2696 = vunpack.c.l.b16 %v140
  %v2697 = vunpack.c.l.b16 %v141
  %v2698 = vunpack.c.l.b16 %v142
  %v2699 = vunpack.c.l.b16 %v143
  %v2700 = vunpack.c.l.b16 %v144
  %v2701 = vunpack.c.l.b16 %v145
  %v2702 = vunpack.c.l.b16 %v146
  %v2703 = vunpack.c.l.b16 %v147
  %v2704 = vunpack.c.l.b16 %v148
  %v2705 = vunpack.c.l.b16 %v149
  %v2706 = vunpack.c.l.b16 %v150
  %v2707 = vunpack.c.l.b16 %v151
  %v2708 = vunpack.c.l.b16 %v152
  %v2709 = vunpack.c.l.b16 %v153
  %v2710 = vunpack.c.l.b16 %v154
  %v2711 = vunpack.c.l.b16 %v155
  %v2712 = vunpack.c.l.b16 %v156
  %v2713 = vunpack.c.l.b16 %v157
  %v2714 = vunpack.c.l.b16 %v158
  %v2715 = vunpack.c.l.b16 %v159
  %v2716 = vunpack.c.l.b16 %v160
  %v2717 = vunpack.c.l.b16 %v161
  %v2718 = vunpack.c.l.b16 %v162
  %v2719 = vunpack.c.l.b16 %v163
  %v2720 = vunpack.c.l.b16 %v164
  %v2721 = vunpack.c.l.b16 %v165
  %v2722 = vunpack.c.l.b16 %v166
  %v2723 = vunpack.c.l.b16 %v167
  %v2724 = vunpack.c.l.b16 %v168
  %v2725 = vunpack.c.l.b16 %v169
  %v2726 = vunpack.c.l.b16 %v170
  %v2727 = vunpack.c.l.b16 %v171
  %v2728 = vunpack.c.l.b16 %v172
  %v2729 = vunpack.c.l.b16 %v173
  %v2730 = vunpack.c.l.b16 %v174
  %v2731 = vunpack.c.l.b16 %v175
  %v2732 = vunpack.c.l.b16 %v176
  %v2733 = vunpack.c.l.b16 %v177
  %v2734 = vunpack.c.l.b16 %v178
  %v2735 = vunpack.c.l.b16 %v179
  %v2736 = vunpack.c.l.b16 %v180
  %v2737 = vunpack.c.l.b16 %v181
  %v2738 = vunpack.c.l.b16 %v182
  %v2739 = vunpack.c.l.b16 %v183
  %v2740 = vunpack.c.l.b16 %v184
  %v2741 = vunpack.c.l.b16 %v185
  %v2742 = vunpack.c.l.b16 %v186
  %v2743 = vunpack.c.l.b16 %v187
  %v2744 = vunpack.c.l.b16 %v188
  %v2745 = vunpack.c.l.b16 %v189
  %v2746 = vunpack.c.l.b16 %v190
  %v2747 = vunpack.c.l.b16 %v191
  %v2748 = vunpack.c.l.b16 %v192
  %v2749 = vunpack.c.l.b16 %v193
  %v2750 = vunpack.c.l.b16 %v194
  %v2751 = vunpack.c.l.b16 %v195
  %v2752 = vunpack.c.l.b16 %v196
  %v2753 = vunpack.c.l.b16 %v197
  %v2754 = vunpack.c.l.b16 %v198
  %v2755 = vunpack.c.l.b16 %v199
  %v2756 = vunpack.c.l.b16 %v200
  %v2757 = vunpack.c.l.b16 %v201
  %v2758 = vunpack.c.l.b16 %v202
  %v2759 = vunpack.c.l.b16 %v203
  %v2760 = vunpack.c.l.b16 %v204
  %v2761 = vunpack.c.l.b16 %v205
  %v2762 = vunpack.c.l.b16 %v206
  %v2763 = vunpack.c.l.b16 %v207
  %v2764 = vunpack.c.l.b16 %v208
  %v2765 = vunpack.c.l.b16 %v209
  %v2766 = vunpack.c.l.b16 %v210
  %v2767 = vunpack.c.l.b16 %v211
  %v2768 = vunpack.c.l.b16 %v212
  %v2769 = vunpack.c.l.b16 %v213
  %v2770 = vunpack.c.l.b16 %v214
  %v2771 = vunpack.c.l.b16 %v215
  %v2772 = vunpack.c.l.b16 %v216
  %v2773 = vunpack.c.l.b16 %v217
  %v2774 = vunpack.c.l.b16 %v218
  %v2775 = vunpack.c.l.b16 %v219
  %v2776 = vunpack.c.l.b16 %v220
  %v2777 = vunpack.c.l.b16 %v221
  %v2778 = vunpack.c.l.b16 %v222
  %v2779 = vunpack.c.l.b16 %v223
  %v2780 = vunpack.c.l.b16 %v224
  %v2781 = vunpack.c.l.b16 %v225
  %v2782 = vunpack.c.l.b16 %v226
  %v2783 = vunpack.c.l.b16 %v227
  %v2784 = vunpack.c.l.b16 %v228
  %v2785 = vunpack.c.l.b16 %v229
  %v2786 = vunpack.c.l.b16 %v230
  %v2787 = vunpack.c.l.b16 %v231
  %v2788 = vunpack.c.l.b16 %v232
  %v2789 = vunpack.c.l.b16 %v233
  %v2790 = vunpack.c.l.b16 %v234
  %v2791 = vunpack.c.l.b16 %v235
  %v2792 = vunpack.c.l.b16 %v236
  %v2793 = vunpack.c.l.b16 %v237
  %v2794 = vunpack.c.l.b16 %v238
  %v2795 = vunpack.c.l.b16 %v239
  %v2796 = vunpack.c.l.b16 %v240
  %v2797 = vunpack.c.l.b16 %v241
  %v2798 = vunpack.c.l.b16 %v242
  %v2799 = vunpack.c.l.b16 %v243
  %v2800 = vunpack.c.l.b16 %v244
  %v2801 = vunpack.c.l.b16 %v245
  %v2802 = vunpack.c.l.b16 %v246
  %v2803 = vunpack.c.l.b16 %v247
  %v2804 = vunpack.c.l.b16 %v248
  %v2805 = vunpack.c.l.b16 %v249
  %v2806 = vunpack.c.l.b16 %v250
  %v2807 = vunpack.c.l.b16 %v251
  %v2808 = vunpack.c.l.b16 %v252
  %v2809 = vunpack.c.l.b16 %v253
  %v2810 = vunpack.c.l.b16 %v254
  %v2811 = vunpack.c.l.b16 %v255
  %v2812 = vunpack.c.l.b16 %v256
  %v2813 = vunpack.c.l.b16 %v257
  %v2814 = vunpack.c.l.b16 %v258
  %v2815 = vunpack.c.l.b16 %v259
  %v2816 = vunpack.c.l.b16 %v260
  %v2817 = vunpack.c.l.b16 %v261
  %v2818 = vunpack.c.l.b16 %v262
  %v2819 = vunpack.c.l.b16 %v263
  %v2820 = vunpack.c.l.b16 %v264
  %v2821 = vunpack.c.l.b16 %v265
  %v2822 = vunpack.c.l.b16 %v266
  %v2823 = vunpack.c.l.b16 %v267
  %v2824 = vunpack.c.l.b16 %v268
  %v2825 = vunpack.c.l.b16 %v269
  %v2826 = vunpack.c.l.b16 %v270
  %v2827 = vunpack.c.l.b16 %v271
  %v2828 = vunpack.c.l.b16 %v272
  %v2829 = vunpack.c.l.b16 %v273
  %v2830 = vunpack.c.l.b16 %v274
  %v2831 = vunpack.c.l.b16 %v275
  %v2832 = vunpack.c.l.b16 %v276
  %v2833 = vunpack.c.l.b16 %v277
  %v2834 = vunpack.c.l.b16 %v278
  %v2835 = vunpack.c.l.b16 %v279
  %v2836 = vunpack.c.l.b16 %v280
  %v2837 = vunpack.c.l.b16 %v281
  %v2838 = vunpack.c.l.b16 %v282
  %v2839 = vunpack.c.l.b16 %v283
  %v2840 = vunpack.c.l.b16 %v284
  %v2841 = vunpack.c.l.b16 %v285
  %v2842 = vunpack.c.l.b16 %v286
  %v2843 = vunpack.c.l.b16 %v287
  %v2844 = vunpack.c.l.b16 %v288
  %v2845 = vunpack.c.l.b16 %v289
  %v2846 = vunpack.c.l.b16 %v290
  %v2847 = vunpack.c.l.b16 %v291
  %v2848 = vunpack.c.l.b16 %v292
  %v2849 = vunpack.c.l.b16 %v293
  %v2850 = vunpack.c.l.b16 %v294
  %v2851 = vunpack.c.l.b16 %v295
  %v2852 = vunpack.c.l.b16 %v296
  %v2853 = vunpack.c.l.b16 %v297
  %v2854 = vunpack.c.l.b16 %v298
  %v2855 = vunpack.c.l.b16 %v299
  %v2856 = vunpack.c.l.b16 %v300
  %v2857 = vunpack.c.l.b16 %v301
  %v2858 = vunpack.c.l.b16 %v302
  %v2859 = vunpack.c.l.b16 %v303
  %v2860 = vunpack.c.l.b16 %v304
  %v2861 = vunpack.c.l.b16 %v305
  %v2862 = vunpack.c.l.b16 %v306
  %v2863 = vunpack.c.l.b16 %v307
  %v2864 = vunpack.c.l.b16 %v308
  %v2865 = vunpack.c.l.b16 %v309
  %v2866 = vunpack.c.l.b16 %v310
  %v2867 = vunpack.c.l.b16 %v311
  %v2868 = vunpack.c.l.b16 %v312
  %v2869 = vunpack.c.l.b16 %v313
  %v2870 = vunpack.c.l.b16 %v314
  %v2871 = vunpack.c.l.b16 %v315
  %v2872 = vunpack.c.l.b16 %v316
  %v2873 = vunpack.c.l.b16 %v317
  %v2874 = vunpack.c.l.b16 %v318
  %v2875 = vunpack.c.l.b16 %v319
  %v2876 = vunpack.c.l.b16 %v320
  %v2877 = vunpack.c.l.b16 %v321
  %v2878 = vunpack.c.l.b16 %v322
  %v2879 = vunpack.c.l.b16 %v323
  %v2880 = vunpack.c.l.b16 %v324
  %v2881 = vunpack.c.l.b16 %v325
  %v2882 = vunpack.c.l.b16 %v326
  %v2883 = vunpack.c.l.b16 %v327
  %v2884 = vunpack.c.l.b16 %v328
  %v2885 = vunpack.c.l.b16 %v329
  %v2886 = vunpack.c.l.b16 %v330
  %v2887 = vunpack.c.l.b16 %v331
  %v2888 = vunpack.c.l.b16 %v332
  %v2889 = vunpack.c.l.b16 %v333
  %v2890 = vunpack.c.l.b16 %v334
  %v2891 = vunpack.c.l.b16 %v335
  %v2892 = vunpack.c.l.b16 %v336
  %v2893 = vunpack.c.l.b16 %v337
  %v2894 = vunpack.c.l.b16 %v338
  %v2895 = vunpack.c.l.b16 %v339
  %v2896 = vunpack.c.l.b16 %v340
  %v2897 = vunpack.c.l.b16 %v341
  %v2898 = vunpack.c.l.b16 %v342
  %v2899 = vunpack.c.l.b16 %v343
  %v2900 = vunpack.c.l.b16 %v344
  %v2901 = vunpack.c.l.b16 %v345
  %v2902 = vunpack.c.l.b16 %v346
  %v2903 = vunpack.c.l.b16 %v347
  %v2904 = vunpack.c.l.b16 %v348
  %v2905 = vunpack.c.l.b16 %v349
  %v2906 = vunpack.c.l.b16 %v350
  %v2907 = vunpack.c.l.b16 %v351
  %v2908 = vunpack.c.l.b16 %v352
  %v2909 = vunpack.c.l.b16 %v353
  %v2910 = vunpack.c.l.b16 %v354
  %v2911 = vunpack.c.l.b16 %v355
  %v2912 = vunpack.c.l.b16 %v356
  %v2913 = vunpack.c.l.b16 %v357
  %v2914 = vunpack.c.l.b16 %v358
  %v2915 = vunpack.c.l.b16 %v359
  %v2916 = vunpack.c.l.b16 %v360
  %v2917 = vunpack.c.l.b16 %v361
  %v2918 = vunpack.c.l.b16 %v362
  %v2919 = vunpack.c.l.b16 %v363
  %v2920 = vunpack.c.l.b16 %v364
  %v2921 = vunpack.c.l.b16 %v365
  %v2922 = vunpack.c.l.b16 %v366
  %v2923 = vunpack.c.l.b16 %v367
  %v2924 = vunpack.c.l.b16 %v368
  %v2925 = vunpack.c.l.b16 %v369
  %v2926 = vunpack.c.l.b16 %v370
  %v2927 = vunpack.c.l.b16 %v371
  %v2928 = vunpack.c.l.b16 %v372
  %v2929 = vunpack.c.l.b16 %v373
  %v2930 = vunpack.c.l.b16 %v374
  %v2931 = vunpack.c.l.b16 %v375
  %v2932 = vunpack.c.l.b16 %v376
  %v2933 = vunpack.c.l.b16 %v377
  %v2934 = vunpack.c.l.b16 %v378
  %v2935 = vunpack.c.l.b16 %v379
  %v2936 = vunpack.c.l.b16 %v380
  %v2937 = vunpack.c.l.b16 %v381
  %v2938 = vunpack.c.l.b16 %v382
  %v2939 = vunpack.c.l.b16 %v383
  %v2940 = vunpack.c.l.b16 %v384
  %v2941 = vunpack.c.l.b16 %v385
  %v2942 = vunpack.c.l.b16 %v386
  %v2943 = vunpack.c.l.b16 %v387
  %v2944 = vunpack.c.l.b16 %v388
  %v2945 = vunpack.c.l.b16 %v389
  %v2946 = vunpack.c.l.b16 %v390
  %v2947 = vunpack.c.l.b16 %v391
  %v2948 = vunpack.c.l.b16 %v392
  %v2949 = vunpack.c.l.b16 %v393
  %v2950 = vunpack.c.l.b16 %v394
  %v2951 = vunpack.c.l.b16 %v395
  %v2952 = vunpack.c.l.b16 %v396
  %v2953 = vunpack.c.l.b16 %v397
  %v2954 = vunpack.c.l.b16 %v398
  %v2955 = vunpack.c.l.b16 %v399
  %v2956 = vunpack.c.l.b16 %v400
  %v2957 = vunpack.c.l.b16 %v401
  %v2958 = vunpack.c.l.b16 %v402
  %v2959 = vunpack.c.l.b16 %v403
  %v2960 = vunpack.c.l.b16 %v404
  %v2961 = vunpack.c.l.b16 %v405
  %v2962 = vunpack.c.l.b16 %v406
  %v2963 = vunpack.c.l.b16 %v407
  %v2964 = vunpack.c.l.b16 %v408
  %v2965 = vunpack.c.l.b16 %v409
  %v2966 = vunpack.c.l.b16 %v410
  %v2967 = vunpack.c.l.b16 %v411
  %v2968 = vunpack.c.l.b16 %v412
  %v2969 = vunpack.c.l.b16 %v413
  %v2970 = vunpack.c.l.b16 %v414
  %v2971 = vunpack.c.l.b16 %v415
  %v2972 = vunpack.c.l.b16 %v416
  %v2973 = vunpack.c.l.b16 %v417
  %v2974 = vunpack.c.l.b16 %v418
  %v2975 = vunpack.c.l.b16 %v419
  %v2976 = vunpack.c.l.b16 %v420
  %v2977 = vunpack.c.l.b16 %v421
  %v2978 = vunpack.c.l.b16 %v422
  %v2979 = vunpack.c.l.b16 %v423
  %v2980 = vunpack.c.l.b16 %v424
  %v2981 = vunpack.c.l.b16 %v425
  %v2982 = vunpack.c.l.b16 %v426
  %v2983 = vunpack.c.l.b16 %v427
  %v2984 = vunpack.c.l.b16 %v428
  %v2985 = vunpack.c.l.b16 %v429
  %v2986 = vunpack.c.l.b16 %v430
  %v2987 = vunpack.c.l.b16 %v431
  %v2988 = vunpack.c.l.b16 %v432
  %v2989 = vunpack.c.l.b16 %v433
  %v2990 = vunpack.c.l.b16 %v434
  %v2991 = vunpack.c.l.b16 %v435
  %v2992 = vunpack.c.l.b16 %v436
  %v2993 = vunpack.c.l.b16 %v437
  %v2994 = vunpack.c.l.b16 %v438
  %v2995 = vunpack.c.l.b16 %v439
  %v2996 = vunpack.c.l.b16 %v440
  %v2997 = vunpack.c.l.b16 %v441
  %v2998 = vunpack.c.l.b16 %v442
  %v2999 = vunpack.c.l.b16 %v443
  %v3000 = vunpack.c.l.b16 %v444
  %v3001 = vunpack.c.l.b16 %v445
  %v3002 = vunpack.c.l.b16 %v446
  %v3003 = vunpack.c.l.b16 %v447
  %v3004 = vunpack.c.l.b16 %v448
  %v3005 = vunpack.c.l.b16 %v449
  %v3006 = vunpack.c.l.b16 %v450
  %v3007 = vunpack.c.l.b16 %v451
  %v3008 = vunpack.c.l.b16 %v452
  %v3009 = vunpack.c.l.b16 %v453
  %v3010 = vunpack.c.l.b16 %v454
  %v3011 = vunpack.c.l.b16 %v455
  %v3012 = vunpack.c.l.b16 %v456
  %v3013 = vunpack.c.l.b16 %v457
  %v3014 = vunpack.c.l.b16 %v458
  %v3015 = vunpack.c.l.b16 %v459
  %v3016 = vunpack.c.l.b16 %v460
  %v3017 = vunpack.c.l.b16 %v461
  %v3018 = vunpack.c.l.b16 %v462
  %v3019 = vunpack.c.l.b16 %v463
  %v3020 = vunpack.c.l.b16 %v464
  %v3021 = vunpack.c.l.b16 %v465
  %v3022 = vunpack.c.l.b16 %v466
  %v3023 = vunpack.c.l.b16 %v467
  %v3024 = vunpack.c.l.b16 %v468
  %v3025 = vunpack.c.l.b16 %v469
  %v3026 = vunpack.c.l.b16 %v470
  %v3027 = vunpack.c.l.b16 %v471
  %v3028 = vunpack.c.l.b16 %v472
  %v3029 = vunpack.c.l.b16 %v473
  %v3030 = vunpack.c.l.b16 %v474
  %v3031 = vunpack.c.l.b16 %v475
  %v3032 = vunpack.c.l.b16 %v476
  %v3033 = vunpack.c.l.b16 %v477
  %v3034 = vunpack.c.l.b16 %v478
  %v3035 = vunpack.c.l.b16 %v479
  %v3036 = vunpack.c.l.b16 %v480
  %v3037 = vunpack.c.l.b16 %v481
  %v3038 = vunpack.c.l.b16 %v482
  %v3039 = vunpack.c.l.b16 %v483
  %v3040 = vunpack.c.l.b16 %v484
  %v3041 = vunpack.c.l.b16 %v485
  %v3042 = vunpack.c.l.b16 %v486
  %v3043 = vunpack.c.l.b16 %v487
  %v3044 = vunpack.c.l.b16 %v488
  %v3045 = vunpack.c.l.b16 %v489
  %v3046 = vunpack.c.l.b16 %v490
  %v3047 = vunpack.c.l.b16 %v491
  %v3048 = vunpack.c.l.b16 %v492
  %v3049 = vunpack.c.l.b16 %v493
  %v3050 = vunpack.c.l.b16 %v494
  %v3051 = vunpack.c.l.b16 %v495
  %v3052 = vunpack.c.l.b16 %v496
  %v3053 = vunpack.c.l.b16 %v497
  %v3054 = vunpack.c.l.b16 %v498
  %v3055 = vunpack.c.l.b16 %v499
  %v3056 = vunpack.c.l.b16 %v500
  %v3057 = vunpack.c.l.b16 %v501
  %v3058 = vunpack.c.l.b16 %v502
  %v3059 = vunpack.c.l.b16 %v503
  %v3060 = vunpack.c.l.b16 %v504
  %v3061 = vunpack.c.l.b16 %v505
  %v3062 = vunpack.c.l.b16 %v506
  %v3063 = vunpack.c.l.b16 %v507
  %v3064 = vunpack.c.l.b16 %v508
  %v3065 = vunpack.c.l.b16 %v509
  %v3066 = vunpack.c.l.b16 %v510
  %v3067 = vunpack.c.l.b16 %v511
  %v3068 = vunpack.c.l.b16 %v512
  %v3069 = vunpack.c.l.b16 %v513
  %v3070 = vunpack.c.l.b16 %v514
  %v3071 = vunpack.c.l.b16 %v515
  %v3072 = vunpack.c.l.b16 %v516
  %v3073 = vunpack.c.l.b16 %v517
  %v3074 = vunpack.c.l.b16 %v518
  %v3075 = vunpack.c.l.b16 %v519
  %v3076 = vunpack.c.l.b16 %v520
  %v3077 = vunpack.c.l.b16 %v521
  %v3078 = vunpack.c.l.b16 %v522
  %v3079 = vunpack.c.l.b16 %v523
  %v3080 = vunpack.c.l.b16 %v524
  %v3081 = vunpack.c.l.b16 %v525
  %v3082 = vunpack.c.l.b16 %v526
  %v3083 = vunpack.c.l.b16 %v527
  %v3084 = vunpack.c.l.b16 %v528
  %v3085 = vunpack.c.l.b16 %v529
  %v3086 = vunpack.c.l.b16 %v530
  %v3087 = vunpack.c.l.b16 %v531
  %v3088 = vunpack.c.l.b16 %v532
  %v3089 = vunpack.c.l.b16 %v533
  %v3090 = vunpack.c.l.b16 %v534
  %v3091 = vunpack.c.l.b16 %v535
  %v3092 = vunpack.c.l.b16 %v536
  %v3093 = vunpack.c.l.b16 %v537
  %v3094 = vunpack.c.l.b16 %v538
  %v3095 = vunpack.c.l.b16 %v539
  %v3096 = vunpack.c.l.b16 %v540
  %v3097 = vunpack.c.l.b16 %v541
  %v3098 = vunpack.c.l.b16 %v542
  %v3099 = vunpack.c.l.b16 %v543
  %v3100 = vunpack.c.l.b16 %v544
  %v3101 = vunpack.c.l.b16 %v545
  %v3102 = vunpack.c.l.b16 %v546
  %v3103 = vunpack.c.l.b16 %v547
  %v3104 = vunpack.c.l.b16 %v548
  %v3105 = vunpack.c.l.b16 %v549
  %v3106 = vunpack.c.l.b16 %v550
  %v3107 = vunpack.c.l.b16 %v551
  %v3108 = vunpack.c.l.b16 %v552
  %v3109 = vunpack.c.l.b16 %v553
  %v3110 = vunpack.c.l.b16 %v554
  %v3111 = vunpack.c.l.b16 %v555
  %v3112 = vunpack.c.l.b16 %v556
  %v3113 = vunpack.c.l.b16 %v557
  %v3114 = vunpack.c.l.b16 %v558
  %v3115 = vunpack.c.l.b16 %v559
  %v3116 = vunpack.c.l.b16 %v560
  %v3117 = vunpack.c.l.b16 %v561
  %v3118 = vunpack.c.l.b16 %v562
  %v3119 = vunpack.c.l.b16 %v563
  %v3120 = vunpack.c.l.b16 %v564
  %v3121 = vunpack.c.l.b16 %v565
  %v3122 = vunpack.c.l.b16 %v566
  %v3123 = vunpack.c.l.b16 %v567
  %v3124 = vunpack.c.l.b16 %v568
  %v3125 = vunpack.c.l.b16 %v569
  %v3126 = vunpack.c.l.b16 %v570
  %v3127 = vunpack.c.l.b16 %v571
  %v3128 = vunpack.c.l.b16 %v572
  %v3129 = vunpack.c.l.b16 %v573
  %v3130 = vunpack.c.l.b16 %v574
  %v3131 = vunpack.c.l.b16 %v575
  %v3132 = vunpack.c.l.b16 %v576
  %v3133 = vunpack.c.l.b16 %v577
  %v3134 = vunpack.c.l.b16 %v578
  %v3135 = vunpack.c.l.b16 %v579
  %v3136 = vunpack.c.l.b16 %v580
  %v3137 = vunpack.c.l.b16 %v581
  %v3138 = vunpack.c.l.b16 %v582
  %v3139 = vunpack.c.l.b16 %v583
  %v3140 = vunpack.c.l.b16 %v584
  %v3141 = vunpack.c.l.b16 %v585
  %v3142 = vunpack.c.l.b16 %v586
  %v3143 = vunpack.c.l.b16 %v587
  %v3144 = vunpack.c.l.b16 %v588
  %v3145 = vunpack.c.l.b16 %v589
  %v3146 = vunpack.c.l.b16 %v590
  %v3147 = vunpack.c.l.b16 %v591
  %v3148 = vunpack.c.l.b16 %v592
  %v3149 = vunpack.c.l.b16 %v593
  %v3150 = vunpack.c.l.b16 %v594
  %v3151 = vunpack.c.l.b16 %v595
  %v3152 = vunpack.c.l.b16 %v596
  %v3153 = vunpack.c.l.b16 %v597
  %v3154 = vunpack.c.l.b16 %v598
  %v3155 = vunpack.c.l.b16 %v599
  %v3156 = vunpack.c.l.b16 %v600
  %v3157 = vunpack.c.l.b16 %v601
  %v3158 = vunpack.c.l.b16 %v602
  %v3159 = vunpack.c.l.b16 %v603
  %v3160 = vunpack.c.l.b16 %v604
  %v3161 = vunpack.c.l.b16 %v605
  %v3162 = vunpack.c.l.b16 %v606
  %v3163 = vunpack.c.l.b16 %v607
  %v3164 = vunpack.c.l.b16 %v608
  %v3165 = vunpack.c.l.b16 %v609
  %v3166 = vunpack.c.l.b16 %v610
  %v3167 = vunpack.c.l.b16 %v611
  %v3168 = vunpack.c.l.b16 %v612
  %v3169 = vunpack.c.l.b16 %v613
  %v3170 = vunpack.c.l.b16 %v614
  %v3171 = vunpack.c.l.b16 %v615
  %v3172 = vunpack.c.l.b16 %v616
  %v3173 = vunpack.c.l.b16 %v617
  %v3174 = vunpack.c.l.b16 %v618
  %v3175 = vunpack.c.l.b16 %v619
  %v3176 = vunpack.c.l.b16 %v620
  %v3177 = vunpack.c.l.b16 %v621
  %v3178 = vunpack.c.l.b16 %v622
  %v3179 = vunpack.c.l.b16 %v623
  %v3180 = vunpack.c.l.b16 %v624
  %v3181 = vunpack.c.l.b16 %v625
  %v3182 = vunpack.c.l.b16 %v626
  %v3183 = vunpack.c.l.b16 %v627
  %v3184 = vunpack.c.l.b16 %v628
  %v3185 = vunpack.c.l.b16 %v629
  %v3186 = vunpack.c.l.b16 %v630
  %v3187 = vunpack.c.l.b16 %v631
  %v3188 = vunpack.c.l.b16 %v632
  %v3189 = vunpack.c.l.b16 %v633
  %v3190 = vunpack.c.l.b16 %v634
  %v3191 = vunpack.c.l.b16 %v635
  %v3192 = vunpack.c.l.b16 %v636
  %v3193 = vunpack.c.l.b16 %v637
  %v3194 = vunpack.c.l.b16 %v638
  %v3195 = vunpack.c.l.b16 %v639
  %v3196 = vunpack.c.l.b16 %v640
  %v3197 = vunpack.c.l.b16 %v641
  %v3198 = vunpack.c.l.b16 %v642
  %v3199 = vunpack.c.l.b16 %v643
  %v3200 = vunpack.c.l.b16 %v644
  %v3201 = vunpack.c.l.b16 %v645
  %v3202 = vunpack.c.l.b16 %v646
  %v3203 = vunpack.c.l.b16 %v647
  %v3204 = vunpack.c.l.b16 %v648
  %v3205 = vunpack.c.l.b16 %v649
  %v3206 = vunpack.c.l.b16 %v650
  %v3207 = vunpack.c.l.b16 %v651
  %v3208 = vunpack.c.l.b16 %v652
  %v3209 = vunpack.c.l.b16 %v653
  %v3210 = vunpack.c.l.b16 %v654
  %v3211 = vunpack.c.l.b16 %v655
  %v3212 = vunpack.c.l.b16 %v656
  %v3213 = vunpack.c.l.b16 %v657
  %v3214 = vunpack.c.l.b16 %v658
  %v3215 = vunpack.c.l.b16 %v659
  %v3216 = vunpack.c.l.b16 %v660
  %v3217 = vunpack.c.l.b16 %v661
  %v3218 = vunpack.c.l.b16 %v662
  %v3219 = vunpack.c.l.b16 %v663
  %v3220 = vunpack.c.l.b16 %v664
  %v3221 = vunpack.c.l.b16 %v665
  %v3222 = vunpack.c.l.b16 %v666
  %v3223 = vunpack.c.l.b16 %v667
  %v3224 = vunpack.c.l.b16 %v668
  %v3225 = vunpack.c.l.b16 %v669
  %v3226 = vunpack.c.l.b16 %v670
  %v3227 = vunpack.c.l.b16 %v671
  %v3228 = vunpack.c.l.b16 %v672
  %v3229 = vunpack.c.l.b16 %v673
  %v3230 = vunpack.c.l.b16 %v674
  %v3231 = vunpack.c.l.b16 %v675
  %v3232 = vunpack.c.l.b16 %v676
  %v3233 = vunpack.c.l.b16 %v677
  %v3234 = vunpack.c.l.b16 %v678
  %v3235 = vunpack.c.l.b16 %v679
  %v3236 = vunpack.c.l.b16 %v680
  %v3237 = vunpack.c.l.b16 %v681
  %v3238 = vunpack.c.l.b16 %v682
  %v3239 = vunpack.c.l.b16 %v683
  %v3240 = vunpack.c.l.b16 %v684
  %v3241 = vunpack.c.l.b16 %v685
  %v3242 = vunpack.c.l.b16 %v686
  %v3243 = vunpack.c.l.b16 %v687
  %v3244 = vunpack.c.l.b16 %v688
  %v3245 = vunpack.c.l.b16 %v689
  %v3246 = vunpack.c.l.b16 %v690
  %v3247 = vunpack.c.l.b16 %v691
  %v3248 = vunpack.c.l.b16 %v692
  %v3249 = vunpack.c.l.b16 %v693
  %v3250 = vunpack.c.l.b16 %v694
  %v3251 = vunpack.c.l.b16 %v695
  %v3252 = vunpack.c.l.b16 %v696
  %v3253 = vunpack.c.l.b16 %v697
  %v3254 = vunpack.c.l.b16 %v698
  %v3255 = vunpack.c.l.b16 %v699
  %v3256 = vunpack.c.l.b16 %v700
  %v3257 = vunpack.c.l.b16 %v701
  %v3258 = vunpack.c.l.b16 %v702
  %v3259 = vunpack.c.l.b16 %v703
  %v3260 = vunpack.c.l.b16 %v704
  %v3261 = vunpack.c.l.b16 %v705
  %v3262 = vunpack.c.l.b16 %v706
  %v3263 = vunpack.c.l.b16 %v707
  %v3264 = vunpack.c.l.b16 %v708
  %v3265 = vunpack.c.l.b16 %v709
  %v3266 = vunpack.c.l.b16 %v710
  %v3267 = vunpack.c.l.b16 %v711
  %v3268 = vunpack.c.l.b16 %v712
  %v3269 = vunpack.c.l.b16 %v713
  %v3270 = vunpack.c.l.b16 %v714
  %v3271 = vunpack.c.l.b16 %v715
  %v3272 = vunpack.c.l.b16 %v716
  %v3273 = vunpack.c.l.b16 %v717
  %v3274 = vunpack.c.l.b16 %v718
  %v3275 = vunpack.c.l.b16 %v719
  %v3276 = vunpack.c.l.b16 %v720
  %v3277 = vunpack.c.l.b16 %v721
  %v3278 = vunpack.c.l.b16 %v722
  %v3279 = vunpack.c.l.b16 %v723
  %v3280 = vunpack.c.l.b16 %v724
  %v3281 = vunpack.c.l.b16 %v725
  %v3282 = vunpack.c.l.b16 %v726
  %v3283 = vunpack.c.l.b16 %v727
  %v3284 = vunpack.c.l.b16 %v728
  %v3285 = vunpack.c.l.b16 %v729
  %v3286 = vunpack.c.l.b16 %v730
  %v3287 = vunpack.c.l.b16 %v731
  %v3288 = vunpack.c.l.b16 %v732
  %v3289 = vunpack.c.l.b16 %v733
  %v3290 = vunpack.c.l.b16 %v734
  %v3291 = vunpack.c.l.b16 %v735
  %v3292 = vunpack.c.l.b16 %v736
  %v3293 = vunpack.c.l.b16 %v737
  %v3294 = vunpack.c.l.b16 %v738
  %v3295 = vunpack.c.l.b16 %v739
  %v3296 = vunpack.c.l.b16 %v740
  %v3297 = vunpack.c.l.b16 %v741
  %v3298 = vunpack.c.l.b16 %v742
  %v3299 = vunpack.c.l.b16 %v743
  %v3300 = vunpack.c.l.b16 %v744
  %v3301 = vunpack.c.l.b16 %v745
  %v3302 = vunpack.c.l.b16 %v746
  %v3303 = vunpack.c.l.b16 %v747
  %v3304 = vunpack.c.l.b16 %v748
  %v3305 = vunpack.c.l.b16 %v749
  %v3306 = vunpack.c.l.b16 %v750
  %v3307 = vunpack.c.l.b16 %v751
  %v3308 = vunpack.c.l.b16 %v752
  %v3309 = vunpack.c.l.b16 %v753
  %v3310 = vunpack.c.l.b16 %v754
  %v3311 = vunpack.c.l.b16 %v755
  %v3312 = vunpack.c.l.b16 %v756
  %v3313 = vunpack.c.l.b16 %v757
  %v3314 = vunpack.c.l.b16 %v758
  %v3315 = vunpack.c.l.b16 %v759
  %v3316 = vunpack.c.l.b16 %v760
  %v3317 = vunpack.c.l.b16 %v761
  %v3318 = vunpack.c.l.b16 %v762
  %v3319 = vunpack.c.l.b16 %v763
  %v3320 = vunpack.c.l.b16 %v764
  %v3321 = vunpack.c.l.b16 %v765
  %v3322 = vunpack.c.l.b16 %v766
  %v3323 = vunpack.c.l.b16 %v767
  %v3324 = vunpack.c.l.b16 %v768
  %v3325 = vunpack.c.l.b16 %v769
  %v3326 = vunpack.c.l.b16 %v770
  %v3327 = vunpack.c.l.b16 %v771
  %v3328 = vunpack.c.l.b16 %v772
  %v3329 = vunpack.c.l.b16 %v773
  %v3330 = vunpack.c.l.b16 %v774
  %v3331 = vunpack.c.l.b16 %v775
  %v3332 = vunpack.c.l.b16 %v776
  %v3333 = vunpack.c.l.b16 %v777
  %v3334 = vunpack.c.l.b16 %v778
  %v3335 = vunpack.c.l.b16 %v779
  %v3336 = vunpack.c.l.b16 %v780
  %v3337 = vunpack.c.l.b16 %v781
  %v3338 = vunpack.c.l.b16 %v782
  %v3339 = vunpack.c.l.b16 %v783
  %v3340 = vunpack.c.l.b16 %v784
  %v3341 = vunpack.c.l.b16 %v785
  %v3342 = vunpack.c.l.b16 %v786
  %v3343 = vunpack.c.l.b16 %v787
  %v3344 = vunpack.c.l.b16 %v788
  %v3345 = vunpack.c.l.b16 %v789
  %v3346 = vunpack.c.l.b16 %v790
  %v3347 = vunpack.c.l.b16 %v791
  %v3348 = vunpack.c.l.b16 %v792
  %v3349 = vunpack.c.l.b16 %v793
  %v3350 = vunpack.c.l.b16 %v794
  %v3351 = vunpack.c.l.b16 %v795
  %v3352 = vunpack.c.l.b16 %v796
  %v3353 = vunpack.c.l.b16 %v797
  %v3354 = vunpack.c.l.b16 %v798
  %v3355 = vunpack.c.l.b16 %v799
  %v3356 = vunpack.c.l.b16 %v800
  %v3357 = vunpack.c.l.b16 %v801
  %v3358 = vunpack.c.l.b16 %v802
  %v3359 = vunpack.c.l.b16 %v803
  %v3360 = vunpack.c.l.b16 %v804
  %v3361 = vunpack.c.l.b16 %v805
  %v3362 = vunpack.c.l.b16 %v806
  %v3363 = vunpack.c.l.b16 %v807
  %v3364 = vunpack.c.l.b16 %v808
  %v3365 = vunpack.c.l.b16 %v809
  %v3366 = vunpack.c.l.b16 %v810
  %v3367 = vunpack.c.l.b16 %v811
  %v3368 = vunpack.c.l.b16 %v812
  %v3369 = vunpack.c.l.b16 %v813
  %v3370 = vunpack.c.l.b16 %v814
  %v3371 = vunpack.c.l.b16 %v815
  %v3372 = vunpack.c.l.b16 %v816
  %v3373 = vunpack.c.l.b16 %v817
  %v3374 = vunpack.c.l.b16 %v818
  %v3375 = vunpack.c.l.b16 %v819
  %v3376 = vunpack.c.l.b16 %v820
  %v3377 = vunpack.c.l.b16 %v821
  %v3378 = vunpack.c.l.b16 %v822
  %v3379 = vunpack.c.l.b16 %v823
  %v3380 = vunpack.c.l.b16 %v824
  %v3381 = vunpack.c.l.b16 %v825
  %v3382 = vunpack.c.l.b16 %v826
  %v3383 = vunpack.c.l.b16 %v827
  %v3384 = vunpack.c.l.b16 %v828
  %v3385 = vunpack.c.l.b16 %v829
  %v3386 = vunpack.c.l.b16 %v830
  %v3387 = vunpack.c.l.b16 %v831
  %v3388 = vunpack.c.l.b16 %v832
  %v3389 = vunpack.c.l.b16 %v833
  %v3390 = vunpack.c.l.b16 %v834
  %v3391 = vunpack.c.l.b16 %v835
  %v3392 = vunpack.c.l.b16 %v836
  %v3393 = vunpack.c.l.b16 %v837
  %v3394 = vunpack.c.l.b16 %v838
  %v3395 = vunpack.c.l.b16 %v839
  %v3396 = vunpack.c.l.b16 %v840
  %v3397 = vunpack.c.l.b16 %v841
  %v3398 = vunpack.c.l.b16 %v842
  %v3399 = vunpack.c.l.b16 %v843
  %v3400 = vunpack.c.l.b16 %v844
  %v3401 = vunpack.c.l.b16 %v845
  %v3402 = vunpack.c.l.b16 %v846
  %v3403 = vunpack.c.l.b16 %v847
  %v3404 = vunpack.c.l.b16 %v848
  %v3405 = vunpack.c.l.b16 %v849
  %v3406 = vunpack.c.l.b16 %v850
  %v3407 = vunpack.c.l.b16 %v851
  %v3408 = vunpack.c.l.b16 %v852
  %v3409 = vunpack.c.l.b16 %v853
  %v3410 = vunpack.c.l.b16 %v854
  %v3411 = vunpack.c.l.b16 %v855
  %v3412 = vunpack.c.l.b16 %v856
  %v3413 = vunpack.c.l.b16 %v857
  %v3414 = vunpack.c.l.b16 %v858
  %v3415 = vunpack.c.l.b16 %v859
  %v3416 = vunpack.c.l.b16 %v860
  %v3417 = vunpack.c.l.b16 %v861
  %v3418 = vunpack.c.l.b16 %v862
  %v3419 = vunpack.c.l.b16 %v863
  %v3420 = vunpack.c.l.b16 %v864
  %v3421 = vunpack.c.l.b16 %v865
  %v3422 = vunpack.c.l.b16 %v866
  %v3423 = vunpack.c.l.b16 %v867
  %v3424 = vunpack.c.l.b16 %v868
  %v3425 = vunpack.c.l.b16 %v869
  %v3426 = vunpack.c.l.b16 %v870
  %v3427 = vunpack.c.l.b16 %v871
  %v3428 = vunpack.c.l.b16 %v872
  %v3429 = vunpack.c.l.b16 %v873
  %v3430 = vunpack.c.l.b16 %v874
  %v3431 = vunpack.c.l.b16 %v875
  %v3432 = vunpack.c.l.b16 %v876
  %v3433 = vunpack.c.l.b16 %v877
  %v3434 = vunpack.c.l.b16 %v878
  %v3435 = vunpack.c.l.b16 %v879
  %v3436 = vunpack.c.l.b16 %v880
  %v3437 = vunpack.c.l.b16 %v881
  %v3438 = vunpack.c.l.b16 %v882
  %v3439 = vunpack.c.l.b16 %v883
  %v3440 = vunpack.c.l.b16 %v884
  %v3441 = vunpack.c.l.b16 %v885
  %v3442 = vunpack.c.l.b16 %v886
  %v3443 = vunpack.c.l.b16 %v887
  %v3444 = vunpack.c.l.b16 %v888
  %v3445 = vunpack.c.l.b16 %v889
  %v3446 = vunpack.c.l.b16 %v890
  %v3447 = vunpack.c.l.b16 %v891
  %v3448 = vunpack.c.l.b16 %v892
  %v3449 = vunpack.c.l.b16 %v893
  %v3450 = vunpack.c.l.b16 %v894
  %v3451 = vunpack.c.l.b16 %v895
  %v3452 = vunpack.c.l.b16 %v896
  %v3453 = vunpack.c.l.b16 %v897
  %v3454 = vunpack.c.l.b16 %v898
  %v3455 = vunpack.c.l.b16 %v899
  %v3456 = vunpack.c.l.b16 %v900
  %v3457 = vunpack.c.l.b16 %v901
  %v3458 = vunpack.c.l.b16 %v902
  %v3459 = vunpack.c.l.b16 %v903
  %v3460 = vunpack.c.l.b16 %v904
  %v3461 = vunpack.c.l.b16 %v905
  %v3462 = vunpack.c.l.b16 %v906
  %v3463 = vunpack.c.l.b16 %v907
  %v3464 = vunpack.c.l.b16 %v908
  %v3465 = vunpack.c.l.b16 %v909
  %v3466 = vunpack.c.l.b16 %v910
  %v3467 = vunpack.c.l.b16 %v911
  %v3468 = vunpack.c.l.b16 %v912
  %v3469 = vunpack.c.l.b16 %v913
  %v3470 = vunpack.c.l.b16 %v914
  %v3471 = vunpack.c.l.b16 %v915
  %v3472 = vunpack.c.l.b16 %v916
  %v3473 = vunpack.c.l.b16 %v917
  %v3474 = vunpack.c.l.b16 %v918
  %v3475 = vunpack.c.l.b16 %v919
  %v3476 = vunpack.c.l.b16 %v920
  %v3477 = vunpack.c.l.b16 %v921
  %v3478 = vunpack.c.l.b16 %v922
  %v3479 = vunpack.c.l.b16 %v923
  %v3480 = vunpack.c.l.b16 %v924
  %v3481 = vunpack.c.l.b16 %v925
  %v3482 = vunpack.c.l.b16 %v926
  %v3483 = vunpack.c.l.b16 %v927
  %v3484 = vunpack.c.l.b16 %v928
  %v3485 = vunpack.c.l.b16 %v929
  %v3486 = vunpack.c.l.b16 %v930
  %v3487 = vunpack.c.l.b16 %v931
  %v3488 = vunpack.c.l.b16 %v932
  %v3489 = vunpack.c.l.b16 %v933
  %v3490 = vunpack.c.l.b16 %v934
  %v3491 = vunpack.c.l.b16 %v935
  %v3492 = vunpack.c.l.b16 %v936
  %v3493 = vunpack.c.l.b16 %v937
  %v3494 = vunpack.c.l.b16 %v938
  %v3495 = vunpack.c.l.b16 %v939
  %v3496 = vunpack.c.l.b16 %v940
  %v3497 = vunpack.c.l.b16 %v941
  %v3498 = vunpack.c.l.b16 %v942
  %v3499 = vunpack.c.l.b16 %v943
  %v3500 = vunpack.c.l.b16 %v944
  %v3501 = vunpack.c.l.b16 %v945
  %v3502 = vunpack.c.l.b16 %v946
  %v3503 = vunpack.c.l.b16 %v947
  %v3504 = vunpack.c.l.b16 %v948
  %v3505 = vunpack.c.l.b16 %v949
  %v3506 = vunpack.c.l.b16 %v950
  %v3507 = vunpack.c.l.b16 %v951
  %v3508 = vunpack.c.l.b16 %v952
  %v3509 = vunpack.c.l.b16 %v953
  %v3510 = vunpack.c.l.b16 %v954
  %v3511 = vunpack.c.l.b16 %v955
  %v3512 = vunpack.c.l.b16 %v956
  %v3513 = vunpack.c.l.b16 %v957
  %v3514 = vunpack.c.l.b16 %v958
  %v3515 = vunpack.c.l.b16 %v959
  %v3516 = vunpack.c.l.b16 %v960
  %v3517 = vunpack.c.l.b16 %v961
  %v3518 = vunpack.c.l.b16 %v962
  %v3519 = vunpack.c.l.b16 %v963
  %v3520 = vunpack.c.l.b16 %v964
  %v3521 = vunpack.c.l.b16 %v965
  %v3522 = vunpack.c.l.b16 %v966
  %v3523 = vunpack.c.l.b16 %v967
  %v3524 = vunpack.c.l.b16 %v968
  %v3525 = vunpack.c.l.b16 %v969
  %v3526 = vunpack.c.l.b16 %v970
  %v3527 = vunpack.c.l.b16 %v971
  %v3528 = vunpack.c.l.b16 %v972
  %v3529 = vunpack.c.l.b16 %v973
  %v3530 = vunpack.c.l.b16 %v974
  %v3531 = vunpack.c.l.b16 %v975
  %v3532 = vunpack.c.l.b16 %v976
  %v3533 = vunpack.c.l.b16 %v977
  %v3534 = vunpack.c.l.b16 %v978
  %v3535 = vunpack.c.l.b16 %v979
  %v3536 = vunpack.c.l.b16 %v980
  %v3537 = vunpack.c.l.b16 %v981
  %v3538 = vunpack.c.l.b16 %v982
  %v3539 = vunpack.c.l.b16 %v983
  %v3540 = vunpack.c.l.b16 %v984
  %v3541 = vunpack.c.l.b16 %v985
  %v3542 = vunpack.c.l.b16 %v986
  %v3543 = vunpack.c.l.b16 %v987
  %v3544 = vunpack.c.l.b16 %v988
  %v3545 = vunpack.c.l.b16 %v989
  %v3546 = vunpack.c.l.b16 %v990
  %v3547 = vunpack.c.l.b16 %v991
  %v3548 = vunpack.c.l.b16 %v992
  %v3549 = vunpack.c.l.b16 %v993
  %v3550 = vunpack.c.l.b16 %v994
  %v3551 = vunpack.c.l.b16 %v995
  %v3552 = vunpack.c.l.b16 %v996
  %v3553 = vunpack.c.l.b16 %v997
  %v3554 = vunpack.c.l.b16 %v998
  %v3555 = vunpack.c.l.b16 %v999
  %v3556 = vunpack.c.l.b16 %v1000
  %v3557 = vunpack.c.l.b16 %v1001
  %v3558 = vunpack.c.l.b16 %v1002
  %v3559 = vunpack.c.l.b16 %v1003
  %v3560 = vunpack.c.l.b16 %v1004
  %v3561 = vunpack.c.l.b16 %v1005
  %v3562 = vunpack.c.l.b16 %v1006
  %v3563 = vunpack.c.l.b16 %v1007
  %v3564 = vunpack.c.l.b16 %v1008
  %v3565 = vunpack.c.l.b16 %v1009
  %v3566 = vunpack.c.l.b16 %v1010
  %v3567 = vunpack.c.l.b16 %v1011
  %v3568 = vunpack.c.l.b16 %v1012
  %v3569 = vunpack.c.l.b16 %v1013
  %v3570 = vunpack.c.l.b16 %v1014
  %v3571 = vunpack.c.l.b16 %v1015
  %v3572 = vunpack.c.l.b16 %v1016
  %v3573 = vunpack.c.l.b16 %v1017
  %v3574 = vunpack.c.l.b16 %v1018
  %v3575 = vunpack.c.l.b16 %v1019
  %v3576 = vunpack.c.l.b16 %v1020
  %v3577 = vunpack.c.l.b16 %v1021
  %v3578 = vunpack.c.l.b16 %v1022
  %v3579 = vunpack.c.l.b16 %v1023
  %v3580 = vunpack.c.l.b16 %v1024
  %v3581 = vunpack.c.l.b16 %v1025
  %v3582 = vunpack.c.l.b16 %v1026
  %v3583 = vunpack.c.l.b16 %v1027
  %v3584 = vunpack.c.l.b16 %v1028
  %v3585 = vunpack.c.l.b16 %v1029
  %v3586 = vunpack.c.l.b16 %v1030
  %v3587 = vunpack.c.l.b16 %v1031
  %v3588 = vunpack.c.l.b16 %v1032
  %v3589 = vunpack.c.l.b16 %v1033
  %v3590 = vunpack.c.l.b16 %v1034
  %v3591 = vunpack.c.l.b16 %v1035
  %v3592 = vunpack.c.l.b16 %v1036
  %v3593 = vunpack.c.l.b16 %v1037
  %v3594 = vunpack.c.l.b16 %v1038
  %v3595 = vunpack.c.l.b16 %v1039
  %v3596 = vunpack.c.l.b16 %v1040
  %v3597 = vunpack.c.l.b16 %v1041
  %v3598 = vunpack.c.l.b16 %v1042
  %v3599 = vunpack.c.l.b16 %v1043
  %v3600 = vunpack.c.l.b16 %v1044
  %v3601 = vunpack.c.l.b16 %v1045
  %v3602 = vunpack.c.l.b16 %v1046
  %v3603 = vunpack.c.l.b16 %v1047
  %v3604 = vunpack.c.l.b16 %v1048
  %v3605 = vunpack.c.l.b16 %v1049
  %v3606 = vunpack.c.l.b16 %v1050
  %v3607 = vunpack.c.l.b16 %v1051
  %v3608 = vunpack.c.l.b16 %v1052
  %v3609 = vunpack.c.l.b16 %v1053
  %v3610 = vunpack.c.l.b16 %v1054
  %v3611 = vunpack.c.l.b16 %v1055
  %v3612 = vunpack.c.l.b16 %v1056
  %v3613 = vunpack.c.l.b16 %v1057
  %v3614 = vunpack.c.l.b16 %v1058
  %v3615 = vunpack.c.l.b16 %v1059
  %v3616 = vunpack.c.l.b16 %v1060
  %v3617 = vunpack.c.l.b16 %v1061
  %v3618 = vunpack.c.l.b16 %v1062
  %v3619 = vunpack.c.l.b16 %v1063
  %v3620 = vunpack.c.l.b16 %v1064
  %v3621 = vunpack.c.l.b16 %v1065
  %v3622 = vunpack.c.l.b16 %v1066
  %v3623 = vunpack.c.l.b16 %v1067
  %v3624 = vunpack.c.l.b16 %v1068
  %v3625 = vunpack.c.l.b16 %v1069
  %v3626 = vunpack.c.l.b16 %v1070
  %v3627 = vunpack.c.l.b16 %v1071
  %v3628 = vunpack.c.l.b16 %v1072
  %v3629 = vunpack.c.l.b16 %v1073
  %v3630 = vunpack.c.l.b16 %v1074
  %v3631 = vunpack.c.l.b16 %v1075
  %v3632 = vunpack.c.l.b16 %v1076
  %v3633 = vunpack.c.l.b16 %v1077
  %v3634 = vunpack.c.l.b16 %v1078
  %v3635 = vunpack.c.l.b16 %v1079
  %v3636 = vunpack.c.l.b16 %v1080
  %v3637 = vunpack.c.l.b16 %v1081
  %v3638 = vunpack.c.l.b16 %v1082
  %v3639 = vunpack.c.l.b16 %v1083
  %v3640 = vunpack.c.l.b16 %v1084
  %v3641 = vunpack.c.l.b16 %v1085
  %v3642 = vunpack.c.l.b16 %v1086
  %v3643 = vunpack.c.l.b16 %v1087
  %v3644 = vunpack.c.l.b16 %v1088
  %v3645 = vunpack.c.l.b16 %v1089
  %v3646 = vunpack.c.l.b16 %v1090
  %v3647 = vunpack.c.l.b16 %v1091
  %v3648 = vunpack.c.l.b16 %v1092
  %v3649 = vunpack.c.l.b16 %v1093
  %v3650 = vunpack.c.l.b16 %v1094
  %v3651 = vunpack.c.l.b16 %v1095
  %v3652 = vunpack.c.l.b16 %v1096
  %v3653 = vunpack.c.l.b16 %v1097
  %v3654 = vunpack.c.l.b16 %v1098
  %v3655 = vunpack.c.l.b16 %v1099
  %v3656 = vunpack.c.l.b16 %v1100
  %v3657 = vunpack.c.l.b16 %v1101
  %v3658 = vunpack.c.l.b16 %v1102
  %v3659 = vunpack.c.l.b16 %v1103
  %v3660 = vunpack.c.l.b16 %v1104
  %v3661 = vunpack.c.l.b16 %v1105
  %v3662 = vunpack.c.l.b16 %v1106
  %v3663 = vunpack.c.l.b16 %v1107
  %v3664 = vunpack.c.l.b16 %v1108
  %v3665 = vunpack.c.l.b16 %v1109
  %v3666 = vunpack.c.l.b16 %v1110
  %v3667 = vunpack.c.l.b16 %v1111
  %v3668 = vunpack.c.l.b16 %v1112
  %v3669 = vunpack.c.l.b16 %v1113
  %v3670 = vunpack.c.l.b16 %v1114
  %v3671 = vunpack.c.l.b16 %v1115
  %v3672 = vunpack.c.l.b16 %v1116
  %v3673 = vunpack.c.l.b16 %v1117
  %v3674 = vunpack.c.l.b16 %v1118
  %v3675 = vunpack.c.l.b16 %v1119
  %v3676 = vunpack.c.l.b16 %v1120
  %v3677 = vunpack.c.l.b16 %v1121
  %v3678 = vunpack.c.l.b16 %v1122
  %v3679 = vunpack.c.l.b16 %v1123
  %v3680 = vunpack.c.l.b16 %v1124
  %v3681 = vunpack.c.l.b16 %v1125
  %v3682 = vunpack.c.l.b16 %v1126
  %v3683 = vunpack.c.l.b16 %v1127
  %v3684 = vunpack.c.l.b16 %v1128
  %v3685 = vunpack.c.l.b16 %v1129
  %v3686 = vunpack.c.l.b16 %v1130
  %v3687 = vunpack.c.l.b16 %v1131
  %v3688 = vunpack.c.l.b16 %v1132
  %v3689 = vunpack.c.l.b16 %v1133
  %v3690 = vunpack.c.l.b16 %v1134
  %v3691 = vunpack.c.l.b16 %v1135
  %v3692 = vunpack.c.l.b16 %v1136
  %v3693 = vunpack.c.l.b16 %v1137
  %v3694 = vunpack.c.l.b16 %v1138
  %v3695 = vunpack.c.l.b16 %v1139
  %v3696 = vunpack.c.l.b16 %v1140
  %v3697 = vunpack.c.l.b16 %v1141
  %v3698 = vunpack.c.l.b16 %v1142
  %v3699 = vunpack.c.l.b16 %v1143
  %v3700 = vunpack.c.l.b16 %v1144
  %v3701 = vunpack.c.l.b16 %v1145
  %v3702 = vunpack.c.l.b16 %v1146
  %v3703 = vunpack.c.l.b16 %v1147
  %v3704 = vunpack.c.l.b16 %v1148
  %v3705 = vunpack.c.l.b16 %v1149
  %v3706 = vunpack.c.l.b16 %v1150
  %v3707 = vunpack.c.l.b16 %v1151
  %v3708 = vunpack.c.l.b16 %v1152
  %v3709 = vunpack.c.l.b16 %v1153
  %v3710 = vunpack.c.l.b16 %v1154
  %v3711 = vunpack.c.l.b16 %v1155
  %v3712 = vunpack.c.l.b16 %v1156
  %v3713 = vunpack.c.l.b16 %v1157
  %v3714 = vunpack.c.l.b16 %v1158
  %v3715 = vunpack.c.l.b16 %v1159
  %v3716 = vunpack.c.l.b16 %v1160
  %v3717 = vunpack.c.l.b16 %v1161
  %v3718 = vunpack.c.l.b16 %v1162
  %v3719 = vunpack.c.l.b16 %v1163
  %v3720 = vunpack.c.l.b16 %v1164
  %v3721 = vunpack.c.l.b16 %v1165
  %v3722 = vunpack.c.l.b16 %v1166
  %v3723 = vunpack.c.l.b16 %v1167
  %v3724 = vunpack.c.l.b16 %v1168
  %v3725 = vunpack.c.l.b16 %v1169
  %v3726 = vunpack.c.l.b16 %v1170
  %v3727 = vunpack.c.l.b16 %v1171
  %v3728 = vunpack.c.l.b16 %v1172
  %v3729 = vunpack.c.l.b16 %v1173
  %v3730 = vunpack.c.l.b16 %v1174
  %v3731 = vunpack.c.l.b16 %v1175
  %v3732 = vunpack.c.l.b16 %v1176
  %v3733 = vunpack.c.l.b16 %v1177
  %v3734 = vunpack.c.l.b16 %v1178
  %v3735 = vunpack.c.l.b16 %v1179
  %v3736 = vunpack.c.l.b16 %v1180
  %v3737 = vunpack.c.l.b16 %v1181
  %v3738 = vunpack.c.l.b16 %v1182
  %v3739 = vunpack.c.l.b16 %v1183
  %v3740 = vunpack.c.l.b16 %v1184
  %v3741 = vunpack.c.l.b16 %v1185
  %v3742 = vunpack.c.l.b16 %v1186
  %v3743 = vunpack.c.l.b16 %v1187
  %v3744 = vunpack.c.l.b16 %v1188
  %v3745 = vunpack.c.l.b16 %v1189
  %v3746 = vunpack.c.l.b16 %v1190
  %v3747 = vunpack.c.l.b16 %v1191
  %v3748 = vunpack.c.l.b16 %v1192
  %v3749 = vunpack.c.l.b16 %v1193
  %v3750 = vunpack.c.l.b16 %v1194
  %v3751 = vunpack.c.l.b16 %v1195
  %v3752 = vunpack.c.l.b16 %v1196
  %v3753 = vunpack.c.l.b16 %v1197
  %v3754 = vunpack.c.l.b16 %v1198
  %v3755 = vunpack.c.l.b16 %v1199
  %v3756 = vunpack.c.l.b16 %v1200
  %v3757 = vunpack.c.l.b16 %v1201
  %v3758 = vunpack.c.l.b16 %v1202
  %v3759 = vunpack.c.l.b16 %v1203
  %v3760 = vunpack.c.l.b16 %v1204
  %v3761 = vunpack.c.l.b16 %v1205
  %v3762 = vunpack.c.l.b16 %v1206
  %v3763 = vunpack.c.l.b16 %v1207
  %v3764 = vunpack.c.l.b16 %v1208
  %v3765 = vunpack.c.l.b16 %v1209
  %v3766 = vunpack.c.l.b16 %v1210
  %v3767 = vunpack.c.l.b16 %v1211
  %v3768 = vunpack.c.l.b16 %v1212
  %v3769 = vunpack.c.l.b16 %v1213
  %v3770 = vpack.c.b16 %v2619, %v2618
  %v3771 = vpack.c.b16 %v2621, %v2620
  %v3772 = vpack.c.b16 %v2623, %v2622
  %v3773 = vpack.c.b16 %v2625, %v2624
  %v3774 = vpack.c.b16 %v2627, %v2626
  %v3775 = vpack.c.b16 %v2629, %v2628
  %v3776 = vpack.c.b16 %v2631, %v2630
  %v3777 = vpack.c.b16 %v2633, %v2632
  %v3778 = vpack.c.b16 %v2635, %v2634
  %v3779 = vpack.c.b16 %v2637, %v2636
  %v3780 = vpack.c.b16 %v2639, %v2638
  %v3781 = vpack.c.b16 %v2641, %v2640
  %v3782 = vpack.c.b16 %v2643, %v2642
  %v3783 = vpack.c.b16 %v2645, %v2644
  %v3784 = vpack.c.b16 %v2647, %v2646
  %v3785 = vpack.c.b16 %v2649, %v2648
  %v3786 = vpack.c.b16 %v2651, %v2650
  %v3787 = vpack.c.b16 %v2653, %v2652
  %v3788 = vpack.c.b16 %v2655, %v2654
  %v3789 = vpack.c.b16 %v2657, %v2656
  %v3790 = vpack.c.b16 %v2659, %v2658
  %v3791 = vpack.c.b16 %v2661, %v2660
  %v3792 = vpack.c.b16 %v2663, %v2662
  %v3793 = vpack.c.b16 %v2665, %v2664
  %v3794 = vpack.c.b16 %v2667, %v2666
  %v3795 = vpack.c.b16 %v2669, %v2668
  %v3796 = vpack.c.b16 %v2671, %v2670
  %v3797 = vpack.c.b16 %v2673, %v2672
  %v3798 = vpack.c.b16 %v2675, %v2674
  %v3799 = vpack.c.b16 %v2677, %v2676
  %v3800 = vpack.c.b16 %v2679, %v2678
  %v3801 = vpack.c.b16 %v2681, %v2680
  %v3802 = vpack.c.b16 %v2683, %v2682
  %v3803 = vpack.c.b16 %v2685, %v2684
  %v3804 = vpack.c.b16 %v2687, %v2686
  %v3805 = vpack.c.b16 %v2689, %v2688
  %v3806 = vpack.c.b16 %v2691, %v2690
  %v3807 = vpack.c.b16 %v2693, %v2692
  %v3808 = vpack.c.b16 %v2695, %v2694
  %v3809 = vpack.c.b16 %v2697, %v2696
  %v3810 = vpack.c.b16 %v2699, %v2698
  %v3811 = vpack.c.b16 %v2701, %v2700
  %v3812 = vpack.c.b16 %v2703, %v2702
  %v3813 = vpack.c.b16 %v2705, %v2704
  %v3814 = vpack.c.b16 %v2707, %v2706
  %v3815 = vpack.c.b16 %v2709, %v2708
  %v3816 = vpack.c.b16 %v2711, %v2710
  %v3817 = vpack.c.b16 %v2713, %v2712
  %v3818 = vpack.c.b16 %v2715, %v2714
  %v3819 = vpack.c.b16 %v2717, %v2716
  %v3820 = vpack.c.b16 %v2719, %v2718
  %v3821 = vpack.c.b16 %v2721, %v2720
  %v3822 = vpack.c.b16 %v2723, %v2722
  %v3823 = vpack.c.b16 %v2725, %v2724
  %v3824 = vpack.c.b16 %v2727, %v2726
  %v3825 = vpack.c.b16 %v2729, %v2728
  %v3826 = vpack.c.b16 %v2731, %v2730
  %v3827 = vpack.c.b16 %v2733, %v2732
  %v3828 = vpack.c.b16 %v2735, %v2734
  %v3829 = vpack.c.b16 %v2737, %v2736
  %v3830 = vpack.c.b16 %v2739, %v2738
  %v3831 = vpack.c.b16 %v2741, %v2740
  %v3832 = vpack.c.b16 %v2743, %v2742
  %v3833 = vpack.c.b16 %v2745, %v2744
  %v3834 = vpack.c.b16 %v2747, %v2746
  %v3835 = vpack.c.b16 %v2749, %v2748
  %v3836 = vpack.c.b16 %v2751, %v2750
  %v3837 = vpack.c.b16 %v2753, %v2752
  %v3838 = vpack.c.b16 %v2755, %v2754
  %v3839 = vpack.c.b16 %v2757, %v2756
  %v3840 = vpack.c.b16 %v2759, %v2758
  %v3841 = vpack.c.b16 %v2761, %v2760
  %v3842 = vpack.c.b16 %v2763, %v2762
  %v3843 = vpack.c.b16 %v2765, %v2764
  %v3844 = vpack.c.b16 %v2767, %v2766
  %v3845 = vpack.c.b16 %v2769, %v2768
  %v3846 = vpack.c.b16 %v2771, %v2770
  %v3847 = vpack.c.b16 %v2773, %v2772
  %v3848 = vpack.c.b16 %v2775, %v2774
  %v3849 = vpack.c.b16 %v2777, %v2776
  %v3850 = vpack.c.b16 %v2779, %v2778
  %v3851 = vpack.c.b16 %v2781, %v2780
  %v3852 = vpack.c.b16 %v2783, %v2782
  %v3853 = vpack.c.b16 %v2785, %v2784
  %v3854 = vpack.c.b16 %v2787, %v2786
  %v3855 = vpack.c.b16 %v2789, %v2788
  %v3856 = vpack.c.b16 %v2791, %v2790
  %v3857 = vpack.c.b16 %v2793, %v2792
  %v3858 = vpack.c.b16 %v2795, %v2794
  %v3859 = vpack.c.b16 %v2797, %v2796
  %v3860 = vpack.c.b16 %v2799, %v2798
  %v3861 = vpack.c.b16 %v2801, %v2800
  %v3862 = vpack.c.b16 %v2803, %v2802
  %v3863 = vpack.c.b16 %v2805, %v2804
  %v3864 = vpack.c.b16 %v2807, %v2806
  %v3865 = vpack.c.b16 %v2809, %v2808
  %v3866 = vpack.c.b16 %v2811, %v2810
  %v3867 = vpack.c.b16 %v2813, %v2812
  %v3868 = vpack.c.b16 %v2815, %v2814
  %v3869 = vpack.c.b16 %v2817, %v2816
  %v3870 = vpack.c.b16 %v2819, %v2818
  %v3871 = vpack.c.b16 %v2821, %v2820
  %v3872 = vpack.c.b16 %v2823, %v2822
  %v3873 = vpack.c.b16 %v2825, %v2824
  %v3874 = vpack.c.b16 %v2827, %v2826
  %v3875 = vpack.c.b16 %v2829, %v2828
  %v3876 = vpack.c.b16 %v2831, %v2830
  %v3877 = vpack.c.b16 %v2833, %v2832
  %v3878 = vpack.c.b16 %v2835, %v2834
  %v3879 = vpack.c.b16 %v2837, %v2836
  %v3880 = vpack.c.b16 %v2839, %v2838
  %v3881 = vpack.c.b16 %v2841, %v2840
  %v3882 = vpack.c.b16 %v2843, %v2842
  %v3883 = vpack.c.b16 %v2845, %v2844
  %v3884 = vpack.c.b16 %v2847, %v2846
  %v3885 = vpack.c.b16 %v2849, %v2848
  %v3886 = vpack.c.b16 %v2851, %v2850
  %v3887 = vpack.c.b16 %v2853, %v2852
  %v3888 = vpack.c.b16 %v2855, %v2854
  %v3889 = vpack.c.b16 %v2857, %v2856
  %v3890 = vpack.c.b16 %v2859, %v2858
  %v3891 = vpack.c.b16 %v2861, %v2860
  %v3892 = vpack.c.b16 %v2863, %v2862
  %v3893 = vpack.c.b16 %v2865, %v2864
  %v3894 = vpack.c.b16 %v2867, %v2866
  %v3895 = vpack.c.b16 %v2869, %v2868
  %v3896 = vpack.c.b16 %v2871, %v2870
  %v3897 = vpack.c.b16 %v2873, %v2872
  %v3898 = vpack.c.b16 %v2875, %v2874
  %v3899 = vpack.c.b16 %v2877, %v2876
  %v3900 = vpack.c.b16 %v2879, %v2878
  %v3901 = vpack.c.b16 %v2881, %v2880
  %v3902 = vpack.c.b16 %v2883, %v2882
  %v3903 = vpack.c.b16 %v2885, %v2884
  %v3904 = vpack.c.b16 %v2887, %v2886
  %v3905 = vpack.c.b16 %v2889, %v2888
  %v3906 = vpack.c.b16 %v2891, %v2890
  %v3907 = vpack.c.b16 %v2893, %v2892
  %v3908 = vpack.c.b16 %v2895, %v2894
  %v3909 = vpack.c.b16 %v2897, %v2896
  %v3910 = vpack.c.b16 %v2899, %v2898
  %v3911 = vpack.c.b16 %v2901, %v2900
  %v3912 = vpack.c.b16 %v2903, %v2902
  %v3913 = vpack.c.b16 %v2905, %v2904
  %v3914 = vpack.c.b16 %v2907, %v2906
  %v3915 = vpack.c.b16 %v2909, %v2908
  %v3916 = vpack.c.b16 %v2911, %v2910
  %v3917 = vpack.c.b16 %v2913, %v2912
  %v3918 = vpack.c.b16 %v2915, %v2914
  %v3919 = vpack.c.b16 %v2917, %v2916
  %v3920 = vpack.c.b16 %v2919, %v2918
  %v3921 = vpack.c.b16 %v2921, %v2920
  %v3922 = vpack.c.b16 %v2923, %v2922
  %v3923 = vpack.c.b16 %v2925, %v2924
  %v3924 = vpack.c.b16 %v2927, %v2926
  %v3925 = vpack.c.b16 %v2929, %v2928
  %v3926 = vpack.c.b16 %v2931, %v2930
  %v3927 = vpack.c.b16 %v2933, %v2932
  %v3928 = vpack.c.b16 %v2935, %v2934
  %v3929 = vpack.c.b16 %v2937, %v2936
  %v3930 = vpack.c.b16 %v2939, %v2938
  %v3931 = vpack.c.b16 %v2941, %v2940
  %v3932 = vpack.c.b16 %v2943, %v2942
  %v3933 = vpack.c.b16 %v2945, %v2944
  %v3934 = vpack.c.b16 %v2947, %v2946
  %v3935 = vpack.c.b16 %v2949, %v2948
  %v3936 = vpack.c.b16 %v2951, %v2950
  %v3937 = vpack.c.b16 %v2953, %v2952
  %v3938 = vpack.c.b16 %v2955, %v2954
  %v3939 = vpack.c.b16 %v2957, %v2956
  %v3940 = vpack.c.b16 %v2959, %v2958
  %v3941 = vpack.c.b16 %v2961, %v2960
  %v3942 = vpack.c.b16 %v2963, %v2962
  %v3943 = vpack.c.b16 %v2965, %v2964
  %v3944 = vpack.c.b16 %v2967, %v2966
  %v3945 = vpack.c.b16 %v2969, %v2968
  %v3946 = vpack.c.b16 %v2971, %v2970
  %v3947 = vpack.c.b16 %v2973, %v2972
  %v3948 = vpack.c.b16 %v2975, %v2974
  %v3949 = vpack.c.b16 %v2977, %v2976
  %v3950 = vpack.c.b16 %v2979, %v2978
  %v3951 = vpack.c.b16 %v2981, %v2980
  %v3952 = vpack.c.b16 %v2983, %v2982
  %v3953 = vpack.c.b16 %v2985, %v2984
  %v3954 = vpack.c.b16 %v2987, %v2986
  %v3955 = vpack.c.b16 %v2989, %v2988
  %v3956 = vpack.c.b16 %v2991, %v2990
  %v3957 = vpack.c.b16 %v2993, %v2992
  %v3958 = vpack.c.b16 %v2995, %v2994
  %v3959 = vpack.c.b16 %v2997, %v2996
  %v3960 = vpack.c.b16 %v2999, %v2998
  %v3961 = vpack.c.b16 %v3001, %v3000
  %v3962 = vpack.c.b16 %v3003, %v3002
  %v3963 = vpack.c.b16 %v3005, %v3004
  %v3964 = vpack.c.b16 %v3007, %v3006
  %v3965 = vpack.c.b16 %v3009, %v3008
  %v3966 = vpack.c.b16 %v3011, %v3010
  %v3967 = vpack.c.b16 %v3013, %v3012
  %v3968 = vpack.c.b16 %v3015, %v3014
  %v3969 = vpack.c.b16 %v3017, %v3016
  %v3970 = vpack.c.b16 %v3019, %v3018
  %v3971 = vpack.c.b16 %v3021, %v3020
  %v3972 = vpack.c.b16 %v3023, %v3022
  %v3973 = vpack.c.b16 %v3025, %v3024
  %v3974 = vpack.c.b16 %v3027, %v3026
  %v3975 = vpack.c.b16 %v3029, %v3028
  %v3976 = vpack.c.b16 %v3031, %v3030
  %v3977 = vpack.c.b16 %v3033, %v3032
  %v3978 = vpack.c.b16 %v3035, %v3034
  %v3979 = vpack.c.b16 %v3037, %v3036
  %v3980 = vpack.c.b16 %v3039, %v3038
  %v3981 = vpack.c.b16 %v3041, %v3040
  %v3982 = vpack.c.b16 %v3043, %v3042
  %v3983 = vpack.c.b16 %v3045, %v3044
  %v3984 = vpack.c.b16 %v3047, %v3046
  %v3985 = vpack.c.b16 %v3049, %v3048
  %v3986 = vpack.c.b16 %v3051, %v3050
  %v3987 = vpack.c.b16 %v3053, %v3052
  %v3988 = vpack.c.b16 %v3055, %v3054
  %v3989 = vpack.c.b16 %v3057, %v3056
  %v3990 = vpack.c.b16 %v3059, %v3058
  %v3991 = vpack.c.b16 %v3061, %v3060
  %v3992 = vpack.c.b16 %v3063, %v3062
  %v3993 = vpack.c.b16 %v3065, %v3064
  %v3994 = vpack.c.b16 %v3067, %v3066
  %v3995 = vpack.c.b16 %v3069, %v3068
  %v3996 = vpack.c.b16 %v3071, %v3070
  %v3997 = vpack.c.b16 %v3073, %v3072
  %v3998 = vpack.c.b16 %v3075, %v3074
  %v3999 = vpack.c.b16 %v3077, %v3076
  %v4000 = vpack.c.b16 %v3079, %v3078
  %v4001 = vpack.c.b16 %v3081, %v3080
  %v4002 = vpack.c.b16 %v3083, %v3082
  %v4003 = vpack.c.b16 %v3085, %v3084
  %v4004 = vpack.c.b16 %v3087, %v3086
  %v4005 = vpack.c.b16 %v3089, %v3088
  %v4006 = vpack.c.b16 %v3091, %v3090
  %v4007 = vpack.c.b16 %v3093, %v3092
  %v4008 = vpack.c.b16 %v3095, %v3094
  %v4009 = vpack.c.b16 %v3097, %v3096
  %v4010 = vpack.c.b16 %v3099, %v3098
  %v4011 = vpack.c.b16 %v3101, %v3100
  %v4012 = vpack.c.b16 %v3103, %v3102
  %v4013 = vpack.c.b16 %v3105, %v3104
  %v4014 = vpack.c.b16 %v3107, %v3106
  %v4015 = vpack.c.b16 %v3109, %v3108
  %v4016 = vpack.c.b16 %v3111, %v3110
  %v4017 = vpack.c.b16 %v3113, %v3112
  %v4018 = vpack.c.b16 %v3115, %v3114
  %v4019 = vpack.c.b16 %v3117, %v3116
  %v4020 = vpack.c.b16 %v3119, %v3118
  %v4021 = vpack.c.b16 %v3121, %v3120
  %v4022 = vpack.c.b16 %v3123, %v3122
  %v4023 = vpack.c.b16 %v3125, %v3124
  %v4024 = vpack.c.b16 %v3127, %v3126
  %v4025 = vpack.c.b16 %v3129, %v3128
  %v4026 = vpack.c.b16 %v3131, %v3130
  %v4027 = vpack.c.b16 %v3133, %v3132
  %v4028 = vpack.c.b16 %v3135, %v3134
  %v4029 = vpack.c.b16 %v3137, %v3136
  %v4030 = vpack.c.b16 %v3139, %v3138
  %v4031 = vpack.c.b16 %v3141, %v3140
  %v4032 = vpack.c.b16 %v3143, %v3142
  %v4033 = vpack.c.b16 %v3145, %v3144
  %v4034 = vpack.c.b16 %v3147, %v3146
  %v4035 = vpack.c.b16 %v3149, %v3148
  %v4036 = vpack.c.b16 %v3151, %v3150
  %v4037 = vpack.c.b16 %v3153, %v3152
  %v4038 = vpack.c.b16 %v3155, %v3154
  %v4039 = vpack.c.b16 %v3157, %v3156
  %v4040 = vpack.c.b16 %v3159, %v3158
  %v4041 = vpack.c.b16 %v3161, %v3160
  %v4042 = vpack.c.b16 %v3163, %v3162
  %v4043 = vpack.c.b16 %v3165, %v3164
  %v4044 = vpack.c.b16 %v3167, %v3166
  %v4045 = vpack.c.b16 %v3169, %v3168
  %v4046 = vpack.c.b16 %v3171, %v3170
  %v4047 = vpack.c.b16 %v3173, %v3172
  %v4048 = vpack.c.b16 %v3175, %v3174
  %v4049 = vpack.c.b16 %v3177, %v3176
  %v4050 = vpack.c.b16 %v3179, %v3178
  %v4051 = vpack.c.b16 %v3181, %v3180
  %v4052 = vpack.c.b16 %v3183, %v3182
  %v4053 = vpack.c.b16 %v3185, %v3184
  %v4054 = vpack.c.b16 %v3187, %v3186
  %v4055 = vpack.c.b16 %v3189, %v3188
  %v4056 = vpack.c.b16 %v3191, %v3190
  %v4057 = vpack.c.b16 %v3193, %v3192
  %v4058 = vpack.c.b16 %v3195, %v3194
  %v4059 = vpack.c.b16 %v3197, %v3196
  %v4060 = vpack.c.b16 %v3199, %v3198
  %v4061 = vpack.c.b16 %v3201, %v3200
  %v4062 = vpack.c.b16 %v3203, %v3202
  %v4063 = vpack.c.b16 %v3205, %v3204
  %v4064 = vpack.c.b16 %v3207, %v3206
  %v4065 = vpack.c.b16 %v3209, %v3208
  %v4066 = vpack.c.b16 %v3211, %v3210
  %v4067 = vpack.c.b16 %v3213, %v3212
  %v4068 = vpack.c.b16 %v3215, %v3214
  %v4069 = vpack.c.b16 %v3217, %v3216
  %v4070 = vpack.c.b16 %v3219, %v3218
  %v4071 = vpack.c.b16 %v3221, %v3220
  %v4072 = vpack.c.b16 %v3223, %v3222
  %v4073 = vpack.c.b16 %v3225, %v3224
  %v4074 = vpack.c.b16 %v3227, %v3226
  %v4075 = vpack.c.b16 %v3229, %v3228
  %v4076 = vpack.c.b16 %v3231, %v3230
  %v4077 = vpack.c.b16 %v3233, %v3232
  %v4078 = vpack.c.b16 %v3235, %v3234
  %v4079 = vpack.c.b16 %v3237, %v3236
  %v4080 = vpack.c.b16 %v3239, %v3238
  %v4081 = vpack.c.b16 %v3241, %v3240
  %v4082 = vpack.c.b16 %v3243, %v3242
  %v4083 = vpack.c.b16 %v3245, %v3244
  %v4084 = vpack.c.b16 %v3247, %v3246
  %v4085 = vpack.c.b16 %v3249, %v3248
  %v4086 = vpack.c.b16 %v3251, %v3250
  %v4087 = vpack.c.b16 %v3253, %v3252
  %v4088 = vpack.c.b16 %v3255, %v3254
  %v4089 = vpack.c.b16 %v3257, %v3256
  %v4090 = vpack.c.b16 %v3259, %v3258
  %v4091 = vpack.c.b16 %v3261, %v3260
  %v4092 = vpack.c.b16 %v3263, %v3262
  %v4093 = vpack.c.b16 %v3265, %v3264
  %v4094 = vpack.c.b16 %v3267, %v3266
  %v4095 = vpack.c.b16 %v3269, %v3268
  %v4096 = vpack.c.b16 %v3271, %v3270
  %v4097 = vpack.c.b16 %v3273, %v3272
  %v4098 = vpack.c.b16 %v3275, %v3274
  %v4099 = vpack.c.b16 %v3277, %v3276
  %v4100 = vpack.c.b16 %v3279, %v3278
  %v4101 = vpack.c.b16 %v3281, %v3280
  %v4102 = vpack.c.b16 %v3283, %v3282
  %v4103 = vpack.c.b16 %v3285, %v3284
  %v4104 = vpack.c.b16 %v3287, %v3286
  %v4105 = vpack.c.b16 %v3289, %v3288
  %v4106 = vpack.c.b16 %v3291, %v3290
  %v4107 = vpack.c.b16 %v3293, %v3292
  %v4108 = vpack.c.b16 %v3295, %v3294
  %v4109 = vpack.c.b16 %v3297, %v3296
  %v4110 = vpack.c.b16 %v3299, %v3298
  %v4111 = vpack.c.b16 %v3301, %v3300
  %v4112 = vpack.c.b16 %v3303, %v3302
  %v4113 = vpack.c.b16 %v3305, %v3304
  %v4114 = vpack.c.b16 %v3307, %v3306
  %v4115 = vpack.c.b16 %v3309, %v3308
  %v4116 = vpack.c.b16 %v3311, %v3310
  %v4117 = vpack.c.b16 %v3313, %v3312
  %v4118 = vpack.c.b16 %v3315, %v3314
  %v4119 = vpack.c.b16 %v3317, %v3316
  %v4120 = vpack.c.b16 %v3319, %v3318
  %v4121 = vpack.c.b16 %v3321, %v3320
  %v4122 = vpack.c.b16 %v3323, %v3322
  %v4123 = vpack.c.b16 %v3325, %v3324
  %v4124 = vpack.c.b16 %v3327, %v3326
  %v4125 = vpack.c.b16 %v3329, %v3328
  %v4126 = vpack.c.b16 %v3331, %v3330
  %v4127 = vpack.c.b16 %v3333, %v3332
  %v4128 = vpack.c.b16 %v3335, %v3334
  %v4129 = vpack.c.b16 %v3337, %v3336
  %v4130 = vpack.c.b16 %v3339, %v3338
  %v4131 = vpack.c.b16 %v3341, %v3340
  %v4132 = vpack.c.b16 %v3343, %v3342
  %v4133 = vpack.c.b16 %v3345, %v3344
  %v4134 = vpack.c.b16 %v3347, %v3346
  %v4135 = vpack.c.b16 %v3349, %v3348
  %v4136 = vpack.c.b16 %v3351, %v3350
  %v4137 = vpack.c.b16 %v3353, %v3352
  %v4138 = vpack.c.b16 %v3355, %v3354
  %v4139 = vpack.c.b16 %v3357, %v3356
  %v4140 = vpack.c.b16 %v3359, %v3358
  %v4141 = vpack.c.b16 %v3361, %v3360
  %v4142 = vpack.c.b16 %v3363, %v3362
  %v4143 = vpack.c.b16 %v3365, %v3364
  %v4144 = vpack.c.b16 %v3367, %v3366
  %v4145 = vpack.c.b16 %v3369, %v3368
  %v4146 = vpack.c.b16 %v3371, %v3370
  %v4147 = vpack.c.b16 %v3373, %v3372
  %v4148 = vpack.c.b16 %v3375, %v3374
  %v4149 = vpack.c.b16 %v3377, %v3376
  %v4150 = vpack.c.b16 %v3379, %v3378
  %v4151 = vpack.c.b16 %v3381, %v3380
  %v4152 = vpack.c.b16 %v3383, %v3382
  %v4153 = vpack.c.b16 %v3385, %v3384
  %v4154 = vpack.c.b16 %v3387, %v3386
  %v4155 = vpack.c.b16 %v3389, %v3388
  %v4156 = vpack.c.b16 %v3391, %v3390
  %v4157 = vpack.c.b16 %v3393, %v3392
  %v4158 = vpack.c.b16 %v3395, %v3394
  %v4159 = vpack.c.b16 %v3397, %v3396
  %v4160 = vpack.c.b16 %v3399, %v3398
  %v4161 = vpack.c.b16 %v3401, %v3400
  %v4162 = vpack.c.b16 %v3403, %v3402
  %v4163 = vpack.c.b16 %v3405, %v3404
  %v4164 = vpack.c.b16 %v3407, %v3406
  %v4165 = vpack.c.b16 %v3409, %v3408
  %v4166 = vpack.c.b16 %v3411, %v3410
  %v4167 = vpack.c.b16 %v3413, %v3412
  %v4168 = vpack.c.b16 %v3415, %v3414
  %v4169 = vpack.c.b16 %v3417, %v3416
  %v4170 = vpack.c.b16 %v3419, %v3418
  %v4171 = vpack.c.b16 %v3421, %v3420
  %v4172 = vpack.c.b16 %v3423, %v3422
  %v4173 = vpack.c.b16 %v3425, %v3424
  %v4174 = vpack.c.b16 %v3427, %v3426
  %v4175 = vpack.c.b16 %v3429, %v3428
  %v4176 = vpack.c.b16 %v3431, %v3430
  %v4177 = vpack.c.b16 %v3433, %v3432
  %v4178 = vpack.c.b16 %v3435, %v3434
  %v4179 = vpack.c.b16 %v3437, %v3436
  %v4180 = vpack.c.b16 %v3439, %v3438
  %v4181 = vpack.c.b16 %v3441, %v3440
  %v4182 = vpack.c.b16 %v3443, %v3442
  %v4183 = vpack.c.b16 %v3445, %v3444
  %v4184 = vpack.c.b16 %v3447, %v3446
  %v4185 = vpack.c.b16 %v3449, %v3448
  %v4186 = vpack.c.b16 %v3451, %v3450
  %v4187 = vpack.c.b16 %v3453, %v3452
  %v4188 = vpack.c.b16 %v3455, %v3454
  %v4189 = vpack.c.b16 %v3457, %v3456
  %v4190 = vpack.c.b16 %v3459, %v3458
  %v4191 = vpack.c.b16 %v3461, %v3460
  %v4192 = vpack.c.b16 %v3463, %v3462
  %v4193 = vpack.c.b16 %v3465, %v3464
  %v4194 = vpack.c.b16 %v3467, %v3466
  %v4195 = vpack.c.b16 %v3469, %v3468
  %v4196 = vpack.c.b16 %v3471, %v3470
  %v4197 = vpack.c.b16 %v3473, %v3472
  %v4198 = vpack.c.b16 %v3475, %v3474
  %v4199 = vpack.c.b16 %v3477, %v3476
  %v4200 = vpack.c.b16 %v3479, %v3478
  %v4201 = vpack.c.b16 %v3481, %v3480
  %v4202 = vpack.c.b16 %v3483, %v3482
  %v4203 = vpack.c.b16 %v3485, %v3484
  %v4204 = vpack.c.b16 %v3487, %v3486
  %v4205 = vpack.c.b16 %v3489, %v3488
  %v4206 = vpack.c.b16 %v3491, %v3490
  %v4207 = vpack.c.b16 %v3493, %v3492
  %v4208 = vpack.c.b16 %v3495, %v3494
  %v4209 = vpack.c.b16 %v3497, %v3496
  %v4210 = vpack.c.b16 %v3499, %v3498
  %v4211 = vpack.c.b16 %v3501, %v3500
  %v4212 = vpack.c.b16 %v3503, %v3502
  %v4213 = vpack.c.b16 %v3505, %v3504
  %v4214 = vpack.c.b16 %v3507, %v3506
  %v4215 = vpack.c.b16 %v3509, %v3508
  %v4216 = vpack.c.b16 %v3511, %v3510
  %v4217 = vpack.c.b16 %v3513, %v3512
  %v4218 = vpack.c.b16 %v3515, %v3514
  %v4219 = vpack.c.b16 %v3517, %v3516
  %v4220 = vpack.c.b16 %v3519, %v3518
  %v4221 = vpack.c.b16 %v3521, %v3520
  %v4222 = vpack.c.b16 %v3523, %v3522
  %v4223 = vpack.c.b16 %v3525, %v3524
  %v4224 = vpack.c.b16 %v3527, %v3526
  %v4225 = vpack.c.b16 %v3529, %v3528
  %v4226 = vpack.c.b16 %v3531, %v3530
  %v4227 = vpack.c.b16 %v3533, %v3532
  %v4228 = vpack.c.b16 %v3535, %v3534
  %v4229 = vpack.c.b16 %v3537, %v3536
  %v4230 = vpack.c.b16 %v3539, %v3538
  %v4231 = vpack.c.b16 %v3541, %v3540
  %v4232 = vpack.c.b16 %v3543, %v3542
  %v4233 = vpack.c.b16 %v3545, %v3544
  %v4234 = vpack.c.b16 %v3547, %v3546
  %v4235 = vpack.c.b16 %v3549, %v3548
  %v4236 = vpack.c.b16 %v3551, %v3550
  %v4237 = vpack.c.b16 %v3553, %v3552
  %v4238 = vpack.c.b16 %v3555, %v3554
  %v4239 = vpack.c.b16 %v3557, %v3556
  %v4240 = vpack.c.b16 %v3559, %v3558
  %v4241 = vpack.c.b16 %v3561, %v3560
  %v4242 = vpack.c.b16 %v3563, %v3562
  %v4243 = vpack.c.b16 %v3565, %v3564
  %v4244 = vpack.c.b16 %v3567, %v3566
  %v4245 = vpack.c.b16 %v3569, %v3568
  %v4246 = vpack.c.b16 %v3571, %v3570
  %v4247 = vpack.c.b16 %v3573, %v3572
  %v4248 = vpack.c.b16 %v3575, %v3574
  %v4249 = vpack.c.b16 %v3577, %v3576
  %v4250 = vpack.c.b16 %v3579, %v3578
  %v4251 = vpack.c.b16 %v3581, %v3580
  %v4252 = vpack.c.b16 %v3583, %v3582
  %v4253 = vpack.c.b16 %v3585, %v3584
  %v4254 = vpack.c.b16 %v3587, %v3586
  %v4255 = vpack.c.b16 %v3589, %v3588
  %v4256 = vpack.c.b16 %v3591, %v3590
  %v4257 = vpack.c.b16 %v3593, %v3592
  %v4258 = vpack.c.b16 %v3595, %v3594
  %v4259 = vpack.c.b16 %v3597, %v3596
  %v4260 = vpack.c.b16 %v3599, %v3598
  %v4261 = vpack.c.b16 %v3601, %v3600
  %v4262 = vpack.c.b16 %v3603, %v3602
  %v4263 = vpack.c.b16 %v3605, %v3604
  %v4264 = vpack.c.b16 %v3607, %v3606
  %v4265 = vpack.c.b16 %v3609, %v3608
  %v4266 = vpack.c.b16 %v3611, %v3610
  %v4267 = vpack.c.b16 %v3613, %v3612
  %v4268 = vpack.c.b16 %v3615, %v3614
  %v4269 = vpack.c.b16 %v3617, %v3616
  %v4270 = vpack.c.b16 %v3619, %v3618
  %v4271 = vpack.c.b16 %v3621, %v3620
  %v4272 = vpack.c.b16 %v3623, %v3622
  %v4273 = vpack.c.b16 %v3625, %v3624
  %v4274 = vpack.c.b16 %v3627, %v3626
  %v4275 = vpack.c.b16 %v3629, %v3628
  %v4276 = vpack.c.b16 %v3631, %v3630
  %v4277 = vpack.c.b16 %v3633, %v3632
  %v4278 = vpack.c.b16 %v3635, %v3634
  %v4279 = vpack.c.b16 %v3637, %v3636
  %v4280 = vpack.c.b16 %v3639, %v3638
  %v4281 = vpack.c.b16 %v3641, %v3640
  %v4282 = vpack.c.b16 %v3643, %v3642
  %v4283 = vpack.c.b16 %v3645, %v3644
  %v4284 = vpack.c.b16 %v3647, %v3646
  %v4285 = vpack.c.b16 %v3649, %v3648
  %v4286 = vpack.c.b16 %v3651, %v3650
  %v4287 = vpack.c.b16 %v3653, %v3652
  %v4288 = vpack.c.b16 %v3655, %v3654
  %v4289 = vpack.c.b16 %v3657, %v3656
  %v4290 = vpack.c.b16 %v3659, %v3658
  %v4291 = vpack.c.b16 %v3661, %v3660
  %v4292 = vpack.c.b16 %v3663, %v3662
  %v4293 = vpack.c.b16 %v3665, %v3664
  %v4294 = vpack.c.b16 %v3667, %v3666
  %v4295 = vpack.c.b16 %v3669, %v3668
  %v4296 = vpack.c.b16 %v3671, %v3670
  %v4297 = vpack.c.b16 %v3673, %v3672
  %v4298 = vpack.c.b16 %v3675, %v3674
  %v4299 = vpack.c.b16 %v3677, %v3676
  %v4300 = vpack.c.b16 %v3679, %v3678
  %v4301 = vpack.c.b16 %v3681, %v3680
  %v4302 = vpack.c.b16 %v3683, %v3682
  %v4303 = vpack.c.b16 %v3685, %v3684
  %v4304 = vpack.c.b16 %v3687, %v3686
  %v4305 = vpack.c.b16 %v3689, %v3688
  %v4306 = vpack.c.b16 %v3691, %v3690
  %v4307 = vpack.c.b16 %v3693, %v3692
  %v4308 = vpack.c.b16 %v3695, %v3694
  %v4309 = vpack.c.b16 %v3697, %v3696
  %v4310 = vpack.c.b16 %v3699, %v3698
  %v4311 = vpack.c.b16 %v3701, %v3700
  %v4312 = vpack.c.b16 %v3703, %v3702
  %v4313 = vpack.c.b16 %v3705, %v3704
  %v4314 = vpack.c.b16 %v3707, %v3706
  %v4315 = vpack.c.b16 %v3709, %v3708
  %v4316 = vpack.c.b16 %v3711, %v3710
  %v4317 = vpack.c.b16 %v3713, %v3712
  %v4318 = vpack.c.b16 %v3715, %v3714
  %v4319 = vpack.c.b16 %v3717, %v3716
  %v4320 = vpack.c.b16 %v3719, %v3718
  %v4321 = vpack.c.b16 %v3721, %v3720
  %v4322 = vpack.c.b16 %v3723, %v3722
  %v4323 = vpack.c.b16 %v3725, %v3724
  %v4324 = vpack.c.b16 %v3727, %v3726
  %v4325 = vpack.c.b16 %v3729, %v3728
  %v4326 = vpack.c.b16 %v3731, %v3730
  %v4327 = vpack.c.b16 %v3733, %v3732
  %v4328 = vpack.c.b16 %v3735, %v3734
  %v4329 = vpack.c.b16 %v3737, %v3736
  %v4330 = vpack.c.b16 %v3739, %v3738
  %v4331 = vpack.c.b16 %v3741, %v3740
  %v4332 = vpack.c.b16 %v3743, %v3742
  %v4333 = vpack.c.b16 %v3745, %v3744
  %v4334 = vpack.c.b16 %v3747, %v3746
  %v4335 = vpack.c.b16 %v3749, %v3748
  %v4336 = vpack.c.b16 %v3751, %v3750
  %v4337 = vpack.c.b16 %v3753, %v3752
  %v4338 = vpack.c.b16 %v3755, %v3754
  %v4339 = vpack.c.b16 %v3757, %v3756
  %v4340 = vpack.c.b16 %v3759, %v3758
  %v4341 = vpack.c.b16 %v3761, %v3760
  %v4342 = vpack.c.b16 %v3763, %v3762
  %v4343 = vpack.c.b16 %v3765, %v3764
  %v4344 = vpack.c.b16 %v3767, %v3766
  %v4345 = vpack.c.b16 %v3769, %v3768
  %4922 = vmatpush.bf16.msra.mxu0 %v3777
  %4923 = vmatpush.bf16.msra.mxu0 %v3776
  %4924 = vmatpush.bf16.msra.mxu0 %v3775
  %4925 = vmatpush.bf16.msra.mxu0 %v3774
  %4926 = vmatpush.bf16.msra.mxu0 %v3773
  %4927 = vmatpush.bf16.msra.mxu0 %v3772
  %4928 = vmatpush.bf16.msra.mxu0 %v3771
  %4929 = vmatpush.bf16.msra.mxu0 %v3770
  %4930 = vmatmul.bf16.gmra.mxu0 %v1322
  %v4931 = vpop.f32.mrf.mxu0
  %v4932 = vadd.f32 0.0, %v4931
  %v4933 = vpop.f32.mrf.mxu0
  %4934 = vdwg.mxu0
  %4935 = vmatpush.bf16.msra.mxu0 %v3785
  %4936 = vmatpush.bf16.msra.mxu0 %v3784
  %4937 = vmatpush.bf16.msra.mxu0 %v3783
  %4938 = vmatpush.bf16.msra.mxu0 %v3782
  %4939 = vmatpush.bf16.msra.mxu0 %v3781
  %4940 = vmatpush.bf16.msra.mxu0 %v3780
  %4941 = vmatpush.bf16.msra.mxu0 %v3779
  %4942 = vmatpush.bf16.msra.mxu0 %v3778
  %4943 = vmatmul.bf16.gmra.mxu0 %v1323
  %v4944 = vpop.f32.mrf.mxu0
  %v4945 = vadd.f32 %v4932, %v4944
  %v4946 = vpop.f32.mrf.mxu0
  %4947 = vdwg.mxu0
  %4948 = vmatpush.bf16.msra.mxu0 %v3793
  %4949 = vmatpush.bf16.msra.mxu0 %v3792
  %4950 = vmatpush.bf16.msra.mxu0 %v3791
  %4951 = vmatpush.bf16.msra.mxu0 %v3790
  %4952 = vmatpush.bf16.msra.mxu0 %v3789
  %4953 = vmatpush.bf16.msra.mxu0 %v3788
  %4954 = vmatpush.bf16.msra.mxu0 %v3787
  %4955 = vmatpush.bf16.msra.mxu0 %v3786
  %4956 = vmatmul.bf16.gmra.mxu0 %v1324
  %v4957 = vpop.f32.mrf.mxu0
  %v4958 = vadd.f32 %v4945, %v4957
  %v4959 = vpop.f32.mrf.mxu0
  %4960 = vdwg.mxu0
  %4961 = vmatpush.bf16.msra.mxu0 %v3801
  %4962 = vmatpush.bf16.msra.mxu0 %v3800
  %4963 = vmatpush.bf16.msra.mxu0 %v3799
  %4964 = vmatpush.bf16.msra.mxu0 %v3798
  %4965 = vmatpush.bf16.msra.mxu0 %v3797
  %4966 = vmatpush.bf16.msra.mxu0 %v3796
  %4967 = vmatpush.bf16.msra.mxu0 %v3795
  %4968 = vmatpush.bf16.msra.mxu0 %v3794
  %4969 = vmatmul.bf16.gmra.mxu0 %v1325
  %v4970 = vpop.f32.mrf.mxu0
  %v4971 = vadd.f32 %v4958, %v4970
  %v4972 = vpop.f32.mrf.mxu0
  %4973 = vdwg.mxu0
  %4974 = vmatpush.bf16.msra.mxu0 %v3809
  %4975 = vmatpush.bf16.msra.mxu0 %v3808
  %4976 = vmatpush.bf16.msra.mxu0 %v3807
  %4977 = vmatpush.bf16.msra.mxu0 %v3806
  %4978 = vmatpush.bf16.msra.mxu0 %v3805
  %4979 = vmatpush.bf16.msra.mxu0 %v3804
  %4980 = vmatpush.bf16.msra.mxu0 %v3803
  %4981 = vmatpush.bf16.msra.mxu0 %v3802
  %4982 = vmatmul.bf16.gmra.mxu0 %v1326
  %v4983 = vpop.f32.mrf.mxu0
  %v4984 = vadd.f32 %v4971, %v4983
  %v4985 = vpop.f32.mrf.mxu0
  %4986 = vdwg.mxu0
  %4987 = vmatpush.bf16.msra.mxu0 %v3817
  %4988 = vmatpush.bf16.msra.mxu0 %v3816
  %4989 = vmatpush.bf16.msra.mxu0 %v3815
  %4990 = vmatpush.bf16.msra.mxu0 %v3814
  %4991 = vmatpush.bf16.msra.mxu0 %v3813
  %4992 = vmatpush.bf16.msra.mxu0 %v3812
  %4993 = vmatpush.bf16.msra.mxu0 %v3811
  %4994 = vmatpush.bf16.msra.mxu0 %v3810
  %4995 = vmatmul.bf16.gmra.mxu0 %v1327
  %v4996 = vpop.f32.mrf.mxu0
  %v4997 = vadd.f32 %v4984, %v4996
  %v4998 = vpop.f32.mrf.mxu0
  %4999 = vdwg.mxu0
  %5000 = vmatpush.bf16.msra.mxu0 %v3825
  %5001 = vmatpush.bf16.msra.mxu0 %v3824
  %5002 = vmatpush.bf16.msra.mxu0 %v3823
  %5003 = vmatpush.bf16.msra.mxu0 %v3822
  %5004 = vmatpush.bf16.msra.mxu0 %v3821
  %5005 = vmatpush.bf16.msra.mxu0 %v3820
  %5006 = vmatpush.bf16.msra.mxu0 %v3819
  %5007 = vmatpush.bf16.msra.mxu0 %v3818
  %5008 = vmatmul.bf16.gmra.mxu0 %v1328
  %v5009 = vpop.f32.mrf.mxu0
  %v5010 = vadd.f32 %v4997, %v5009
  %v5011 = vpop.f32.mrf.mxu0
  %5012 = vdwg.mxu0
  %5013 = vmatpush.bf16.msra.mxu0 %v3833
  %5014 = vmatpush.bf16.msra.mxu0 %v3832
  %5015 = vmatpush.bf16.msra.mxu0 %v3831
  %5016 = vmatpush.bf16.msra.mxu0 %v3830
  %5017 = vmatpush.bf16.msra.mxu0 %v3829
  %5018 = vmatpush.bf16.msra.mxu0 %v3828
  %5019 = vmatpush.bf16.msra.mxu0 %v3827
  %5020 = vmatpush.bf16.msra.mxu0 %v3826
  %5021 = vmatmul.bf16.gmra.mxu0 %v1329
  %v5022 = vpop.f32.mrf.mxu0
  %v5023 = vadd.f32 %v5010, %v5022
  %v5024 = vpop.f32.mrf.mxu0
  %5025 = vdwg.mxu0
  %5026 = vmatpush.bf16.msra.mxu0 %v3841
  %5027 = vmatpush.bf16.msra.mxu0 %v3840
  %5028 = vmatpush.bf16.msra.mxu0 %v3839
  %5029 = vmatpush.bf16.msra.mxu0 %v3838
  %5030 = vmatpush.bf16.msra.mxu0 %v3837
  %5031 = vmatpush.bf16.msra.mxu0 %v3836
  %5032 = vmatpush.bf16.msra.mxu0 %v3835
  %5033 = vmatpush.bf16.msra.mxu0 %v3834
  %5034 = vmatmul.bf16.gmra.mxu0 %v1330
  %v5035 = vpop.f32.mrf.mxu0
  %v5036 = vadd.f32 %v5023, %v5035
  %v5037 = vpop.f32.mrf.mxu0
  %5038 = vdwg.mxu0
  %5039 = vmatpush.bf16.msra.mxu0 %v3849
  %5040 = vmatpush.bf16.msra.mxu0 %v3848
  %5041 = vmatpush.bf16.msra.mxu0 %v3847
  %5042 = vmatpush.bf16.msra.mxu0 %v3846
  %5043 = vmatpush.bf16.msra.mxu0 %v3845
  %5044 = vmatpush.bf16.msra.mxu0 %v3844
  %5045 = vmatpush.bf16.msra.mxu0 %v3843
  %5046 = vmatpush.bf16.msra.mxu0 %v3842
  %5047 = vmatmul.bf16.gmra.mxu0 %v1331
  %v5048 = vpop.f32.mrf.mxu0
  %v5049 = vadd.f32 %v5036, %v5048
  %v5050 = vpop.f32.mrf.mxu0
  %5051 = vdwg.mxu0
  %5052 = vmatpush.bf16.msra.mxu0 %v3857
  %5053 = vmatpush.bf16.msra.mxu0 %v3856
  %5054 = vmatpush.bf16.msra.mxu0 %v3855
  %5055 = vmatpush.bf16.msra.mxu0 %v3854
  %5056 = vmatpush.bf16.msra.mxu0 %v3853
  %5057 = vmatpush.bf16.msra.mxu0 %v3852
  %5058 = vmatpush.bf16.msra.mxu0 %v3851
  %5059 = vmatpush.bf16.msra.mxu0 %v3850
  %5060 = vmatmul.bf16.gmra.mxu0 %v1332
  %v5061 = vpop.f32.mrf.mxu0
  %v5062 = vadd.f32 %v5049, %v5061
  %v5063 = vpop.f32.mrf.mxu0
  %5064 = vdwg.mxu0
  %5065 = vmatpush.bf16.msra.mxu0 %v3865
  %5066 = vmatpush.bf16.msra.mxu0 %v3864
  %5067 = vmatpush.bf16.msra.mxu0 %v3863
  %5068 = vmatpush.bf16.msra.mxu0 %v3862
  %5069 = vmatpush.bf16.msra.mxu0 %v3861
  %5070 = vmatpush.bf16.msra.mxu0 %v3860
  %5071 = vmatpush.bf16.msra.mxu0 %v3859
  %5072 = vmatpush.bf16.msra.mxu0 %v3858
  %5073 = vmatmul.bf16.gmra.mxu0 %v1333
  %v5074 = vpop.f32.mrf.mxu0
  %v5075 = vadd.f32 %v5062, %v5074
  %v5076 = vpop.f32.mrf.mxu0
  %5077 = vdwg.mxu0
  %5078 = vmatpush.bf16.msra.mxu0 %v3873
  %5079 = vmatpush.bf16.msra.mxu0 %v3872
  %5080 = vmatpush.bf16.msra.mxu0 %v3871
  %5081 = vmatpush.bf16.msra.mxu0 %v3870
  %5082 = vmatpush.bf16.msra.mxu0 %v3869
  %5083 = vmatpush.bf16.msra.mxu0 %v3868
  %5084 = vmatpush.bf16.msra.mxu0 %v3867
  %5085 = vmatpush.bf16.msra.mxu0 %v3866
  %5086 = vmatmul.bf16.gmra.mxu0 %v1334
  %v5087 = vpop.f32.mrf.mxu0
  %v5088 = vadd.f32 %v5075, %v5087
  %v5089 = vpop.f32.mrf.mxu0
  %5090 = vdwg.mxu0
  %5091 = vmatpush.bf16.msra.mxu0 %v3881
  %5092 = vmatpush.bf16.msra.mxu0 %v3880
  %5093 = vmatpush.bf16.msra.mxu0 %v3879
  %5094 = vmatpush.bf16.msra.mxu0 %v3878
  %5095 = vmatpush.bf16.msra.mxu0 %v3877
  %5096 = vmatpush.bf16.msra.mxu0 %v3876
  %5097 = vmatpush.bf16.msra.mxu0 %v3875
  %5098 = vmatpush.bf16.msra.mxu0 %v3874
  %5099 = vmatmul.bf16.gmra.mxu0 %v1335
  %v5100 = vpop.f32.mrf.mxu0
  %v5101 = vadd.f32 %v5088, %v5100
  %v5102 = vpop.f32.mrf.mxu0
  %5103 = vdwg.mxu0
  %5104 = vmatpush.bf16.msra.mxu0 %v3889
  %5105 = vmatpush.bf16.msra.mxu0 %v3888
  %5106 = vmatpush.bf16.msra.mxu0 %v3887
  %5107 = vmatpush.bf16.msra.mxu0 %v3886
  %5108 = vmatpush.bf16.msra.mxu0 %v3885
  %5109 = vmatpush.bf16.msra.mxu0 %v3884
  %5110 = vmatpush.bf16.msra.mxu0 %v3883
  %5111 = vmatpush.bf16.msra.mxu0 %v3882
  %5112 = vmatmul.bf16.gmra.mxu0 %v1336
  %v5113 = vpop.f32.mrf.mxu0
  %v5114 = vadd.f32 %v5101, %v5113
  %v5115 = vpop.f32.mrf.mxu0
  %5116 = vdwg.mxu0
  %5117 = vmatpush.bf16.msra.mxu0 %v3897
  %5118 = vmatpush.bf16.msra.mxu0 %v3896
  %5119 = vmatpush.bf16.msra.mxu0 %v3895
  %5120 = vmatpush.bf16.msra.mxu0 %v3894
  %5121 = vmatpush.bf16.msra.mxu0 %v3893
  %5122 = vmatpush.bf16.msra.mxu0 %v3892
  %5123 = vmatpush.bf16.msra.mxu0 %v3891
  %5124 = vmatpush.bf16.msra.mxu0 %v3890
  %5125 = vmatmul.bf16.gmra.mxu0 %v1337
  %v5126 = vpop.f32.mrf.mxu0
  %v5127 = vadd.f32 %v5114, %v5126
  %v5128 = vpop.f32.mrf.mxu0
  %5129 = vdwg.mxu0
  %5130 = vmatpush.bf16.msra.mxu0 %v3905
  %5131 = vmatpush.bf16.msra.mxu0 %v3904
  %5132 = vmatpush.bf16.msra.mxu0 %v3903
  %5133 = vmatpush.bf16.msra.mxu0 %v3902
  %5134 = vmatpush.bf16.msra.mxu0 %v3901
  %5135 = vmatpush.bf16.msra.mxu0 %v3900
  %5136 = vmatpush.bf16.msra.mxu0 %v3899
  %5137 = vmatpush.bf16.msra.mxu0 %v3898
  %5138 = vmatmul.bf16.gmra.mxu0 %v1338
  %v5139 = vpop.f32.mrf.mxu0
  %v5140 = vadd.f32 %v5127, %v5139
  %v5141 = vpop.f32.mrf.mxu0
  %5142 = vdwg.mxu0
  %5143 = vmatpush.bf16.msra.mxu0 %v3913
  %5144 = vmatpush.bf16.msra.mxu0 %v3912
  %5145 = vmatpush.bf16.msra.mxu0 %v3911
  %5146 = vmatpush.bf16.msra.mxu0 %v3910
  %5147 = vmatpush.bf16.msra.mxu0 %v3909
  %5148 = vmatpush.bf16.msra.mxu0 %v3908
  %5149 = vmatpush.bf16.msra.mxu0 %v3907
  %5150 = vmatpush.bf16.msra.mxu0 %v3906
  %5151 = vmatmul.bf16.gmra.mxu0 %v1339
  %v5152 = vpop.f32.mrf.mxu0
  %v5153 = vadd.f32 %v5140, %v5152
  %v5154 = vpop.f32.mrf.mxu0
  %5155 = vdwg.mxu0
  %5156 = vmatpush.bf16.msra.mxu0 %v3921
  %5157 = vmatpush.bf16.msra.mxu0 %v3920
  %5158 = vmatpush.bf16.msra.mxu0 %v3919
  %5159 = vmatpush.bf16.msra.mxu0 %v3918
  %5160 = vmatpush.bf16.msra.mxu0 %v3917
  %5161 = vmatpush.bf16.msra.mxu0 %v3916
  %5162 = vmatpush.bf16.msra.mxu0 %v3915
  %5163 = vmatpush.bf16.msra.mxu0 %v3914
  %5164 = vmatmul.bf16.gmra.mxu0 %v1340
  %v5165 = vpop.f32.mrf.mxu0
  %v5166 = vadd.f32 %v5153, %v5165
  %v5167 = vpop.f32.mrf.mxu0
  %5168 = vdwg.mxu0
  %5169 = vmatpush.bf16.msra.mxu0 %v3929
  %5170 = vmatpush.bf16.msra.mxu0 %v3928
  %5171 = vmatpush.bf16.msra.mxu0 %v3927
  %5172 = vmatpush.bf16.msra.mxu0 %v3926
  %5173 = vmatpush.bf16.msra.mxu0 %v3925
  %5174 = vmatpush.bf16.msra.mxu0 %v3924
  %5175 = vmatpush.bf16.msra.mxu0 %v3923
  %5176 = vmatpush.bf16.msra.mxu0 %v3922
  %5177 = vmatmul.bf16.gmra.mxu0 %v1341
  %v5178 = vpop.f32.mrf.mxu0
  %v5179 = vadd.f32 %v5166, %v5178
  %v5180 = vpop.f32.mrf.mxu0
  %5181 = vdwg.mxu0
  %5182 = vmatpush.bf16.msra.mxu0 %v3937
  %5183 = vmatpush.bf16.msra.mxu0 %v3936
  %5184 = vmatpush.bf16.msra.mxu0 %v3935
  %5185 = vmatpush.bf16.msra.mxu0 %v3934
  %5186 = vmatpush.bf16.msra.mxu0 %v3933
  %5187 = vmatpush.bf16.msra.mxu0 %v3932
  %5188 = vmatpush.bf16.msra.mxu0 %v3931
  %5189 = vmatpush.bf16.msra.mxu0 %v3930
  %5190 = vmatmul.bf16.gmra.mxu0 %v1342
  %v5191 = vpop.f32.mrf.mxu0
  %v5192 = vadd.f32 %v5179, %v5191
  %v5193 = vpop.f32.mrf.mxu0
  %5194 = vdwg.mxu0
  %5195 = vmatpush.bf16.msra.mxu0 %v3945
  %5196 = vmatpush.bf16.msra.mxu0 %v3944
  %5197 = vmatpush.bf16.msra.mxu0 %v3943
  %5198 = vmatpush.bf16.msra.mxu0 %v3942
  %5199 = vmatpush.bf16.msra.mxu0 %v3941
  %5200 = vmatpush.bf16.msra.mxu0 %v3940
  %5201 = vmatpush.bf16.msra.mxu0 %v3939
  %5202 = vmatpush.bf16.msra.mxu0 %v3938
  %5203 = vmatmul.bf16.gmra.mxu0 %v1343
  %v5204 = vpop.f32.mrf.mxu0
  %v5205 = vadd.f32 %v5192, %v5204
  %v5206 = vpop.f32.mrf.mxu0
  %5207 = vdwg.mxu0
  %5208 = vmatpush.bf16.msra.mxu0 %v3953
  %5209 = vmatpush.bf16.msra.mxu0 %v3952
  %5210 = vmatpush.bf16.msra.mxu0 %v3951
  %5211 = vmatpush.bf16.msra.mxu0 %v3950
  %5212 = vmatpush.bf16.msra.mxu0 %v3949
  %5213 = vmatpush.bf16.msra.mxu0 %v3948
  %5214 = vmatpush.bf16.msra.mxu0 %v3947
  %5215 = vmatpush.bf16.msra.mxu0 %v3946
  %5216 = vmatmul.bf16.gmra.mxu0 %v1344
  %v5217 = vpop.f32.mrf.mxu0
  %v5218 = vadd.f32 %v5205, %v5217
  %v5219 = vpop.f32.mrf.mxu0
  %5220 = vdwg.mxu0
  %5221 = vmatpush.bf16.msra.mxu0 %v3961
  %5222 = vmatpush.bf16.msra.mxu0 %v3960
  %5223 = vmatpush.bf16.msra.mxu0 %v3959
  %5224 = vmatpush.bf16.msra.mxu0 %v3958
  %5225 = vmatpush.bf16.msra.mxu0 %v3957
  %5226 = vmatpush.bf16.msra.mxu0 %v3956
  %5227 = vmatpush.bf16.msra.mxu0 %v3955
  %5228 = vmatpush.bf16.msra.mxu0 %v3954
  %5229 = vmatmul.bf16.gmra.mxu0 %v1345
  %v5230 = vpop.f32.mrf.mxu0
  %v5231 = vadd.f32 %v5218, %v5230
  %v5232 = vpop.f32.mrf.mxu0
  %5233 = vdwg.mxu0
  %5234 = vmatpush.bf16.msra.mxu0 %v3969
  %5235 = vmatpush.bf16.msra.mxu0 %v3968
  %5236 = vmatpush.bf16.msra.mxu0 %v3967
  %5237 = vmatpush.bf16.msra.mxu0 %v3966
  %5238 = vmatpush.bf16.msra.mxu0 %v3965
  %5239 = vmatpush.bf16.msra.mxu0 %v3964
  %5240 = vmatpush.bf16.msra.mxu0 %v3963
  %5241 = vmatpush.bf16.msra.mxu0 %v3962
  %5242 = vmatmul.bf16.gmra.mxu0 %v1346
  %v5243 = vpop.f32.mrf.mxu0
  %v5244 = vadd.f32 %v5231, %v5243
  %v5245 = vpop.f32.mrf.mxu0
  %5246 = vdwg.mxu0
  %5247 = vmatpush.bf16.msra.mxu0 %v3977
  %5248 = vmatpush.bf16.msra.mxu0 %v3976
  %5249 = vmatpush.bf16.msra.mxu0 %v3975
  %5250 = vmatpush.bf16.msra.mxu0 %v3974
  %5251 = vmatpush.bf16.msra.mxu0 %v3973
  %5252 = vmatpush.bf16.msra.mxu0 %v3972
  %5253 = vmatpush.bf16.msra.mxu0 %v3971
  %5254 = vmatpush.bf16.msra.mxu0 %v3970
  %5255 = vmatmul.bf16.gmra.mxu0 %v1347
  %v5256 = vpop.f32.mrf.mxu0
  %v5257 = vadd.f32 %v5244, %v5256
  %v5258 = vpop.f32.mrf.mxu0
  %5259 = vdwg.mxu0
  %5260 = vmatpush.bf16.msra.mxu0 %v3985
  %5261 = vmatpush.bf16.msra.mxu0 %v3984
  %5262 = vmatpush.bf16.msra.mxu0 %v3983
  %5263 = vmatpush.bf16.msra.mxu0 %v3982
  %5264 = vmatpush.bf16.msra.mxu0 %v3981
  %5265 = vmatpush.bf16.msra.mxu0 %v3980
  %5266 = vmatpush.bf16.msra.mxu0 %v3979
  %5267 = vmatpush.bf16.msra.mxu0 %v3978
  %5268 = vmatmul.bf16.gmra.mxu0 %v1348
  %v5269 = vpop.f32.mrf.mxu0
  %v5270 = vadd.f32 %v5257, %v5269
  %v5271 = vpop.f32.mrf.mxu0
  %5272 = vdwg.mxu0
  %5273 = vmatpush.bf16.msra.mxu0 %v3993
  %5274 = vmatpush.bf16.msra.mxu0 %v3992
  %5275 = vmatpush.bf16.msra.mxu0 %v3991
  %5276 = vmatpush.bf16.msra.mxu0 %v3990
  %5277 = vmatpush.bf16.msra.mxu0 %v3989
  %5278 = vmatpush.bf16.msra.mxu0 %v3988
  %5279 = vmatpush.bf16.msra.mxu0 %v3987
  %5280 = vmatpush.bf16.msra.mxu0 %v3986
  %5281 = vmatmul.bf16.gmra.mxu0 %v1349
  %v5282 = vpop.f32.mrf.mxu0
  %v5283 = vadd.f32 %v5270, %v5282
  %v5284 = vpop.f32.mrf.mxu0
  %5285 = vdwg.mxu0
  %5286 = vmatpush.bf16.msra.mxu0 %v4001
  %5287 = vmatpush.bf16.msra.mxu0 %v4000
  %5288 = vmatpush.bf16.msra.mxu0 %v3999
  %5289 = vmatpush.bf16.msra.mxu0 %v3998
  %5290 = vmatpush.bf16.msra.mxu0 %v3997
  %5291 = vmatpush.bf16.msra.mxu0 %v3996
  %5292 = vmatpush.bf16.msra.mxu0 %v3995
  %5293 = vmatpush.bf16.msra.mxu0 %v3994
  %5294 = vmatmul.bf16.gmra.mxu0 %v1350
  %v5295 = vpop.f32.mrf.mxu0
  %v5296 = vadd.f32 %v5283, %v5295
  %v5297 = vpop.f32.mrf.mxu0
  %5298 = vdwg.mxu0
  %5299 = vmatpush.bf16.msra.mxu0 %v4009
  %5300 = vmatpush.bf16.msra.mxu0 %v4008
  %5301 = vmatpush.bf16.msra.mxu0 %v4007
  %5302 = vmatpush.bf16.msra.mxu0 %v4006
  %5303 = vmatpush.bf16.msra.mxu0 %v4005
  %5304 = vmatpush.bf16.msra.mxu0 %v4004
  %5305 = vmatpush.bf16.msra.mxu0 %v4003
  %5306 = vmatpush.bf16.msra.mxu0 %v4002
  %5307 = vmatmul.bf16.gmra.mxu0 %v1351
  %v5308 = vpop.f32.mrf.mxu0
  %v5309 = vadd.f32 %v5296, %v5308
  %v5310 = vpop.f32.mrf.mxu0
  %5311 = vdwg.mxu0
  %5312 = vmatpush.bf16.msra.mxu0 %v4017
  %5313 = vmatpush.bf16.msra.mxu0 %v4016
  %5314 = vmatpush.bf16.msra.mxu0 %v4015
  %5315 = vmatpush.bf16.msra.mxu0 %v4014
  %5316 = vmatpush.bf16.msra.mxu0 %v4013
  %5317 = vmatpush.bf16.msra.mxu0 %v4012
  %5318 = vmatpush.bf16.msra.mxu0 %v4011
  %5319 = vmatpush.bf16.msra.mxu0 %v4010
  %5320 = vmatmul.bf16.gmra.mxu0 %v1352
  %v5321 = vpop.f32.mrf.mxu0
  %v5322 = vadd.f32 %v5309, %v5321
  %v5323 = vpop.f32.mrf.mxu0
  %5324 = vdwg.mxu0
  %5325 = vmatpush.bf16.msra.mxu0 %v4025
  %5326 = vmatpush.bf16.msra.mxu0 %v4024
  %5327 = vmatpush.bf16.msra.mxu0 %v4023
  %5328 = vmatpush.bf16.msra.mxu0 %v4022
  %5329 = vmatpush.bf16.msra.mxu0 %v4021
  %5330 = vmatpush.bf16.msra.mxu0 %v4020
  %5331 = vmatpush.bf16.msra.mxu0 %v4019
  %5332 = vmatpush.bf16.msra.mxu0 %v4018
  %5333 = vmatmul.bf16.gmra.mxu0 %v1353
  %v5334 = vpop.f32.mrf.mxu0
  %v5335 = vadd.f32 %v5322, %v5334
  %v5336 = vpop.f32.mrf.mxu0
  %5337 = vdwg.mxu0
  %5338 = vmatpush.bf16.msra.mxu0 %v4033
  %5339 = vmatpush.bf16.msra.mxu0 %v4032
  %5340 = vmatpush.bf16.msra.mxu0 %v4031
  %5341 = vmatpush.bf16.msra.mxu0 %v4030
  %5342 = vmatpush.bf16.msra.mxu0 %v4029
  %5343 = vmatpush.bf16.msra.mxu0 %v4028
  %5344 = vmatpush.bf16.msra.mxu0 %v4027
  %5345 = vmatpush.bf16.msra.mxu0 %v4026
  %5346 = vmatmul.bf16.gmra.mxu0 %v1354
  %v5347 = vpop.f32.mrf.mxu0
  %v5348 = vadd.f32 %v5335, %v5347
  %v5349 = vpop.f32.mrf.mxu0
  %5350 = vdwg.mxu0
  %5351 = vmatpush.bf16.msra.mxu0 %v4041
  %5352 = vmatpush.bf16.msra.mxu0 %v4040
  %5353 = vmatpush.bf16.msra.mxu0 %v4039
  %5354 = vmatpush.bf16.msra.mxu0 %v4038
  %5355 = vmatpush.bf16.msra.mxu0 %v4037
  %5356 = vmatpush.bf16.msra.mxu0 %v4036
  %5357 = vmatpush.bf16.msra.mxu0 %v4035
  %5358 = vmatpush.bf16.msra.mxu0 %v4034
  %5359 = vmatmul.bf16.gmra.mxu0 %v1355
  %v5360 = vpop.f32.mrf.mxu0
  %v5361 = vadd.f32 %v5348, %v5360
  %v5362 = vpop.f32.mrf.mxu0
  %5363 = vdwg.mxu0
  %5364 = vmatpush.bf16.msra.mxu0 %v4049
  %5365 = vmatpush.bf16.msra.mxu0 %v4048
  %5366 = vmatpush.bf16.msra.mxu0 %v4047
  %5367 = vmatpush.bf16.msra.mxu0 %v4046
  %5368 = vmatpush.bf16.msra.mxu0 %v4045
  %5369 = vmatpush.bf16.msra.mxu0 %v4044
  %5370 = vmatpush.bf16.msra.mxu0 %v4043
  %5371 = vmatpush.bf16.msra.mxu0 %v4042
  %5372 = vmatmul.bf16.gmra.mxu0 %v1356
  %v5373 = vpop.f32.mrf.mxu0
  %v5374 = vadd.f32 %v5361, %v5373
  %v5375 = vpop.f32.mrf.mxu0
  %5376 = vdwg.mxu0
  %5377 = vmatpush.bf16.msra.mxu0 %v4057
  %5378 = vmatpush.bf16.msra.mxu0 %v4056
  %5379 = vmatpush.bf16.msra.mxu0 %v4055
  %5380 = vmatpush.bf16.msra.mxu0 %v4054
  %5381 = vmatpush.bf16.msra.mxu0 %v4053
  %5382 = vmatpush.bf16.msra.mxu0 %v4052
  %5383 = vmatpush.bf16.msra.mxu0 %v4051
  %5384 = vmatpush.bf16.msra.mxu0 %v4050
  %5385 = vmatmul.bf16.gmra.mxu0 %v1357
  %v5386 = vpop.f32.mrf.mxu0
  %v5387 = vadd.f32 %v5374, %v5386
  %v5388 = vpop.f32.mrf.mxu0
  %5389 = vdwg.mxu0
  %5390 = vmatpush.bf16.msra.mxu0 %v4065
  %5391 = vmatpush.bf16.msra.mxu0 %v4064
  %5392 = vmatpush.bf16.msra.mxu0 %v4063
  %5393 = vmatpush.bf16.msra.mxu0 %v4062
  %5394 = vmatpush.bf16.msra.mxu0 %v4061
  %5395 = vmatpush.bf16.msra.mxu0 %v4060
  %5396 = vmatpush.bf16.msra.mxu0 %v4059
  %5397 = vmatpush.bf16.msra.mxu0 %v4058
  %5398 = vmatmul.bf16.gmra.mxu0 %v1358
  %v5399 = vpop.f32.mrf.mxu0
  %v5400 = vadd.f32 %v5387, %v5399
  %v5401 = vpop.f32.mrf.mxu0
  %5402 = vdwg.mxu0
  %5403 = vmatpush.bf16.msra.mxu0 %v4073
  %5404 = vmatpush.bf16.msra.mxu0 %v4072
  %5405 = vmatpush.bf16.msra.mxu0 %v4071
  %5406 = vmatpush.bf16.msra.mxu0 %v4070
  %5407 = vmatpush.bf16.msra.mxu0 %v4069
  %5408 = vmatpush.bf16.msra.mxu0 %v4068
  %5409 = vmatpush.bf16.msra.mxu0 %v4067
  %5410 = vmatpush.bf16.msra.mxu0 %v4066
  %5411 = vmatmul.bf16.gmra.mxu0 %v1359
  %v5412 = vpop.f32.mrf.mxu0
  %v5413 = vadd.f32 %v5400, %v5412
  %v5414 = vpop.f32.mrf.mxu0
  %5415 = vdwg.mxu0
  %5416 = vmatpush.bf16.msra.mxu0 %v4081
  %5417 = vmatpush.bf16.msra.mxu0 %v4080
  %5418 = vmatpush.bf16.msra.mxu0 %v4079
  %5419 = vmatpush.bf16.msra.mxu0 %v4078
  %5420 = vmatpush.bf16.msra.mxu0 %v4077
  %5421 = vmatpush.bf16.msra.mxu0 %v4076
  %5422 = vmatpush.bf16.msra.mxu0 %v4075
  %5423 = vmatpush.bf16.msra.mxu0 %v4074
  %5424 = vmatmul.bf16.gmra.mxu0 %v1360
  %v5425 = vpop.f32.mrf.mxu0
  %v5426 = vadd.f32 %v5413, %v5425
  %v5427 = vpop.f32.mrf.mxu0
  %5428 = vdwg.mxu0
  %5429 = vmatpush.bf16.msra.mxu0 %v4089
  %5430 = vmatpush.bf16.msra.mxu0 %v4088
  %5431 = vmatpush.bf16.msra.mxu0 %v4087
  %5432 = vmatpush.bf16.msra.mxu0 %v4086
  %5433 = vmatpush.bf16.msra.mxu0 %v4085
  %5434 = vmatpush.bf16.msra.mxu0 %v4084
  %5435 = vmatpush.bf16.msra.mxu0 %v4083
  %5436 = vmatpush.bf16.msra.mxu0 %v4082
  %5437 = vmatmul.bf16.gmra.mxu0 %v1361
  %v5438 = vpop.f32.mrf.mxu0
  %v5439 = vadd.f32 %v5426, %v5438
  %v5440 = vpop.f32.mrf.mxu0
  %5441 = vdwg.mxu0
  %5442 = vmatpush.bf16.msra.mxu0 %v4097
  %5443 = vmatpush.bf16.msra.mxu0 %v4096
  %5444 = vmatpush.bf16.msra.mxu0 %v4095
  %5445 = vmatpush.bf16.msra.mxu0 %v4094
  %5446 = vmatpush.bf16.msra.mxu0 %v4093
  %5447 = vmatpush.bf16.msra.mxu0 %v4092
  %5448 = vmatpush.bf16.msra.mxu0 %v4091
  %5449 = vmatpush.bf16.msra.mxu0 %v4090
  %5450 = vmatmul.bf16.gmra.mxu0 %v1362
  %v5451 = vpop.f32.mrf.mxu0
  %v5452 = vadd.f32 %v5439, %v5451
  %v5453 = vpop.f32.mrf.mxu0
  %5454 = vdwg.mxu0
  %5455 = vmatpush.bf16.msra.mxu0 %v4105
  %5456 = vmatpush.bf16.msra.mxu0 %v4104
  %5457 = vmatpush.bf16.msra.mxu0 %v4103
  %5458 = vmatpush.bf16.msra.mxu0 %v4102
  %5459 = vmatpush.bf16.msra.mxu0 %v4101
  %5460 = vmatpush.bf16.msra.mxu0 %v4100
  %5461 = vmatpush.bf16.msra.mxu0 %v4099
  %5462 = vmatpush.bf16.msra.mxu0 %v4098
  %5463 = vmatmul.bf16.gmra.mxu0 %v1363
  %v5464 = vpop.f32.mrf.mxu0
  %v5465 = vadd.f32 %v5452, %v5464
  %v5466 = vpop.f32.mrf.mxu0
  %5467 = vdwg.mxu0
  %5468 = vmatpush.bf16.msra.mxu0 %v4113
  %5469 = vmatpush.bf16.msra.mxu0 %v4112
  %5470 = vmatpush.bf16.msra.mxu0 %v4111
  %5471 = vmatpush.bf16.msra.mxu0 %v4110
  %5472 = vmatpush.bf16.msra.mxu0 %v4109
  %5473 = vmatpush.bf16.msra.mxu0 %v4108
  %5474 = vmatpush.bf16.msra.mxu0 %v4107
  %5475 = vmatpush.bf16.msra.mxu0 %v4106
  %5476 = vmatmul.bf16.gmra.mxu0 %v1364
  %v5477 = vpop.f32.mrf.mxu0
  %v5478 = vadd.f32 %v5465, %v5477
  %v5479 = vpop.f32.mrf.mxu0
  %5480 = vdwg.mxu0
  %5481 = vmatpush.bf16.msra.mxu0 %v4121
  %5482 = vmatpush.bf16.msra.mxu0 %v4120
  %5483 = vmatpush.bf16.msra.mxu0 %v4119
  %5484 = vmatpush.bf16.msra.mxu0 %v4118
  %5485 = vmatpush.bf16.msra.mxu0 %v4117
  %5486 = vmatpush.bf16.msra.mxu0 %v4116
  %5487 = vmatpush.bf16.msra.mxu0 %v4115
  %5488 = vmatpush.bf16.msra.mxu0 %v4114
  %5489 = vmatmul.bf16.gmra.mxu0 %v1365
  %v5490 = vpop.f32.mrf.mxu0
  %v5491 = vadd.f32 %v5478, %v5490
  %v5492 = vpop.f32.mrf.mxu0
  %5493 = vdwg.mxu0
  %5494 = vmatpush.bf16.msra.mxu0 %v4129
  %5495 = vmatpush.bf16.msra.mxu0 %v4128
  %5496 = vmatpush.bf16.msra.mxu0 %v4127
  %5497 = vmatpush.bf16.msra.mxu0 %v4126
  %5498 = vmatpush.bf16.msra.mxu0 %v4125
  %5499 = vmatpush.bf16.msra.mxu0 %v4124
  %5500 = vmatpush.bf16.msra.mxu0 %v4123
  %5501 = vmatpush.bf16.msra.mxu0 %v4122
  %5502 = vmatmul.bf16.gmra.mxu0 %v1366
  %v5503 = vpop.f32.mrf.mxu0
  %v5504 = vadd.f32 %v5491, %v5503
  %v5505 = vpop.f32.mrf.mxu0
  %5506 = vdwg.mxu0
  %5507 = vmatpush.bf16.msra.mxu0 %v4137
  %5508 = vmatpush.bf16.msra.mxu0 %v4136
  %5509 = vmatpush.bf16.msra.mxu0 %v4135
  %5510 = vmatpush.bf16.msra.mxu0 %v4134
  %5511 = vmatpush.bf16.msra.mxu0 %v4133
  %5512 = vmatpush.bf16.msra.mxu0 %v4132
  %5513 = vmatpush.bf16.msra.mxu0 %v4131
  %5514 = vmatpush.bf16.msra.mxu0 %v4130
  %5515 = vmatmul.bf16.gmra.mxu0 %v1367
  %v5516 = vpop.f32.mrf.mxu0
  %v5517 = vadd.f32 %v5504, %v5516
  %v5518 = vpop.f32.mrf.mxu0
  %5519 = vdwg.mxu0
  %5520 = vmatpush.bf16.msra.mxu0 %v4145
  %5521 = vmatpush.bf16.msra.mxu0 %v4144
  %5522 = vmatpush.bf16.msra.mxu0 %v4143
  %5523 = vmatpush.bf16.msra.mxu0 %v4142
  %5524 = vmatpush.bf16.msra.mxu0 %v4141
  %5525 = vmatpush.bf16.msra.mxu0 %v4140
  %5526 = vmatpush.bf16.msra.mxu0 %v4139
  %5527 = vmatpush.bf16.msra.mxu0 %v4138
  %5528 = vmatmul.bf16.gmra.mxu0 %v1368
  %v5529 = vpop.f32.mrf.mxu0
  %v5530 = vadd.f32 %v5517, %v5529
  %v5531 = vpop.f32.mrf.mxu0
  %5532 = vdwg.mxu0
  %5533 = vmatpush.bf16.msra.mxu0 %v4153
  %5534 = vmatpush.bf16.msra.mxu0 %v4152
  %5535 = vmatpush.bf16.msra.mxu0 %v4151
  %5536 = vmatpush.bf16.msra.mxu0 %v4150
  %5537 = vmatpush.bf16.msra.mxu0 %v4149
  %5538 = vmatpush.bf16.msra.mxu0 %v4148
  %5539 = vmatpush.bf16.msra.mxu0 %v4147
  %5540 = vmatpush.bf16.msra.mxu0 %v4146
  %5541 = vmatmul.bf16.gmra.mxu0 %v1369
  %v5542 = vpop.f32.mrf.mxu0
  %v5543 = vadd.f32 %v5530, %v5542
  %v5544 = vpop.f32.mrf.mxu0
  %5545 = vdwg.mxu0
  %5546 = vmatpush.bf16.msra.mxu0 %v4161
  %5547 = vmatpush.bf16.msra.mxu0 %v4160
  %5548 = vmatpush.bf16.msra.mxu0 %v4159
  %5549 = vmatpush.bf16.msra.mxu0 %v4158
  %5550 = vmatpush.bf16.msra.mxu0 %v4157
  %5551 = vmatpush.bf16.msra.mxu0 %v4156
  %5552 = vmatpush.bf16.msra.mxu0 %v4155
  %5553 = vmatpush.bf16.msra.mxu0 %v4154
  %5554 = vmatmul.bf16.gmra.mxu0 %v1370
  %v5555 = vpop.f32.mrf.mxu0
  %v5556 = vadd.f32 %v5543, %v5555
  %v5557 = vpop.f32.mrf.mxu0
  %5558 = vdwg.mxu0
  %5559 = vmatpush.bf16.msra.mxu0 %v4169
  %5560 = vmatpush.bf16.msra.mxu0 %v4168
  %5561 = vmatpush.bf16.msra.mxu0 %v4167
  %5562 = vmatpush.bf16.msra.mxu0 %v4166
  %5563 = vmatpush.bf16.msra.mxu0 %v4165
  %5564 = vmatpush.bf16.msra.mxu0 %v4164
  %5565 = vmatpush.bf16.msra.mxu0 %v4163
  %5566 = vmatpush.bf16.msra.mxu0 %v4162
  %5567 = vmatmul.bf16.gmra.mxu0 %v1371
  %v5568 = vpop.f32.mrf.mxu0
  %v5569 = vadd.f32 %v5556, %v5568
  %v5570 = vpop.f32.mrf.mxu0
  %5571 = vdwg.mxu0
  %5572 = vmatpush.bf16.msra.mxu0 %v4177
  %5573 = vmatpush.bf16.msra.mxu0 %v4176
  %5574 = vmatpush.bf16.msra.mxu0 %v4175
  %5575 = vmatpush.bf16.msra.mxu0 %v4174
  %5576 = vmatpush.bf16.msra.mxu0 %v4173
  %5577 = vmatpush.bf16.msra.mxu0 %v4172
  %5578 = vmatpush.bf16.msra.mxu0 %v4171
  %5579 = vmatpush.bf16.msra.mxu0 %v4170
  %5580 = vmatmul.bf16.gmra.mxu0 %v1372
  %v5581 = vpop.f32.mrf.mxu0
  %v5582 = vadd.f32 %v5569, %v5581
  %v5583 = vpop.f32.mrf.mxu0
  %5584 = vdwg.mxu0
  %5585 = vmatpush.bf16.msra.mxu0 %v4185
  %5586 = vmatpush.bf16.msra.mxu0 %v4184
  %5587 = vmatpush.bf16.msra.mxu0 %v4183
  %5588 = vmatpush.bf16.msra.mxu0 %v4182
  %5589 = vmatpush.bf16.msra.mxu0 %v4181
  %5590 = vmatpush.bf16.msra.mxu0 %v4180
  %5591 = vmatpush.bf16.msra.mxu0 %v4179
  %5592 = vmatpush.bf16.msra.mxu0 %v4178
  %5593 = vmatmul.bf16.gmra.mxu0 %v1373
  %v5594 = vpop.f32.mrf.mxu0
  %v5595 = vadd.f32 %v5582, %v5594
  %v5596 = vpop.f32.mrf.mxu0
  %5597 = vdwg.mxu0
  %5598 = vmatpush.bf16.msra.mxu0 %v4193
  %5599 = vmatpush.bf16.msra.mxu0 %v4192
  %5600 = vmatpush.bf16.msra.mxu0 %v4191
  %5601 = vmatpush.bf16.msra.mxu0 %v4190
  %5602 = vmatpush.bf16.msra.mxu0 %v4189
  %5603 = vmatpush.bf16.msra.mxu0 %v4188
  %5604 = vmatpush.bf16.msra.mxu0 %v4187
  %5605 = vmatpush.bf16.msra.mxu0 %v4186
  %5606 = vmatmul.bf16.gmra.mxu0 %v1374
  %v5607 = vpop.f32.mrf.mxu0
  %v5608 = vadd.f32 %v5595, %v5607
  %v5609 = vpop.f32.mrf.mxu0
  %5610 = vdwg.mxu0
  %5611 = vmatpush.bf16.msra.mxu0 %v4201
  %5612 = vmatpush.bf16.msra.mxu0 %v4200
  %5613 = vmatpush.bf16.msra.mxu0 %v4199
  %5614 = vmatpush.bf16.msra.mxu0 %v4198
  %5615 = vmatpush.bf16.msra.mxu0 %v4197
  %5616 = vmatpush.bf16.msra.mxu0 %v4196
  %5617 = vmatpush.bf16.msra.mxu0 %v4195
  %5618 = vmatpush.bf16.msra.mxu0 %v4194
  %5619 = vmatmul.bf16.gmra.mxu0 %v1375
  %v5620 = vpop.f32.mrf.mxu0
  %v5621 = vadd.f32 %v5608, %v5620
  %v5622 = vpop.f32.mrf.mxu0
  %5623 = vdwg.mxu0
  %5624 = vmatpush.bf16.msra.mxu0 %v4209
  %5625 = vmatpush.bf16.msra.mxu0 %v4208
  %5626 = vmatpush.bf16.msra.mxu0 %v4207
  %5627 = vmatpush.bf16.msra.mxu0 %v4206
  %5628 = vmatpush.bf16.msra.mxu0 %v4205
  %5629 = vmatpush.bf16.msra.mxu0 %v4204
  %5630 = vmatpush.bf16.msra.mxu0 %v4203
  %5631 = vmatpush.bf16.msra.mxu0 %v4202
  %5632 = vmatmul.bf16.gmra.mxu0 %v1376
  %v5633 = vpop.f32.mrf.mxu0
  %v5634 = vadd.f32 %v5621, %v5633
  %v5635 = vpop.f32.mrf.mxu0
  %5636 = vdwg.mxu0
  %5637 = vmatpush.bf16.msra.mxu0 %v4217
  %5638 = vmatpush.bf16.msra.mxu0 %v4216
  %5639 = vmatpush.bf16.msra.mxu0 %v4215
  %5640 = vmatpush.bf16.msra.mxu0 %v4214
  %5641 = vmatpush.bf16.msra.mxu0 %v4213
  %5642 = vmatpush.bf16.msra.mxu0 %v4212
  %5643 = vmatpush.bf16.msra.mxu0 %v4211
  %5644 = vmatpush.bf16.msra.mxu0 %v4210
  %5645 = vmatmul.bf16.gmra.mxu0 %v1377
  %v5646 = vpop.f32.mrf.mxu0
  %v5647 = vadd.f32 %v5634, %v5646
  %v5648 = vpop.f32.mrf.mxu0
  %5649 = vdwg.mxu0
  %5650 = vmatpush.bf16.msra.mxu0 %v4225
  %5651 = vmatpush.bf16.msra.mxu0 %v4224
  %5652 = vmatpush.bf16.msra.mxu0 %v4223
  %5653 = vmatpush.bf16.msra.mxu0 %v4222
  %5654 = vmatpush.bf16.msra.mxu0 %v4221
  %5655 = vmatpush.bf16.msra.mxu0 %v4220
  %5656 = vmatpush.bf16.msra.mxu0 %v4219
  %5657 = vmatpush.bf16.msra.mxu0 %v4218
  %5658 = vmatmul.bf16.gmra.mxu0 %v1378
  %v5659 = vpop.f32.mrf.mxu0
  %v5660 = vadd.f32 %v5647, %v5659
  %v5661 = vpop.f32.mrf.mxu0
  %5662 = vdwg.mxu0
  %5663 = vmatpush.bf16.msra.mxu0 %v4233
  %5664 = vmatpush.bf16.msra.mxu0 %v4232
  %5665 = vmatpush.bf16.msra.mxu0 %v4231
  %5666 = vmatpush.bf16.msra.mxu0 %v4230
  %5667 = vmatpush.bf16.msra.mxu0 %v4229
  %5668 = vmatpush.bf16.msra.mxu0 %v4228
  %5669 = vmatpush.bf16.msra.mxu0 %v4227
  %5670 = vmatpush.bf16.msra.mxu0 %v4226
  %5671 = vmatmul.bf16.gmra.mxu0 %v1379
  %v5672 = vpop.f32.mrf.mxu0
  %v5673 = vadd.f32 %v5660, %v5672
  %v5674 = vpop.f32.mrf.mxu0
  %5675 = vdwg.mxu0
  %5676 = vmatpush.bf16.msra.mxu0 %v4241
  %5677 = vmatpush.bf16.msra.mxu0 %v4240
  %5678 = vmatpush.bf16.msra.mxu0 %v4239
  %5679 = vmatpush.bf16.msra.mxu0 %v4238
  %5680 = vmatpush.bf16.msra.mxu0 %v4237
  %5681 = vmatpush.bf16.msra.mxu0 %v4236
  %5682 = vmatpush.bf16.msra.mxu0 %v4235
  %5683 = vmatpush.bf16.msra.mxu0 %v4234
  %5684 = vmatmul.bf16.gmra.mxu0 %v1380
  %v5685 = vpop.f32.mrf.mxu0
  %v5686 = vadd.f32 %v5673, %v5685
  %v5687 = vpop.f32.mrf.mxu0
  %5688 = vdwg.mxu0
  %5689 = vmatpush.bf16.msra.mxu0 %v4249
  %5690 = vmatpush.bf16.msra.mxu0 %v4248
  %5691 = vmatpush.bf16.msra.mxu0 %v4247
  %5692 = vmatpush.bf16.msra.mxu0 %v4246
  %5693 = vmatpush.bf16.msra.mxu0 %v4245
  %5694 = vmatpush.bf16.msra.mxu0 %v4244
  %5695 = vmatpush.bf16.msra.mxu0 %v4243
  %5696 = vmatpush.bf16.msra.mxu0 %v4242
  %5697 = vmatmul.bf16.gmra.mxu0 %v1381
  %v5698 = vpop.f32.mrf.mxu0
  %v5699 = vadd.f32 %v5686, %v5698
  %v5700 = vpop.f32.mrf.mxu0
  %5701 = vdwg.mxu0
  %5702 = vmatpush.bf16.msra.mxu0 %v4257
  %5703 = vmatpush.bf16.msra.mxu0 %v4256
  %5704 = vmatpush.bf16.msra.mxu0 %v4255
  %5705 = vmatpush.bf16.msra.mxu0 %v4254
  %5706 = vmatpush.bf16.msra.mxu0 %v4253
  %5707 = vmatpush.bf16.msra.mxu0 %v4252
  %5708 = vmatpush.bf16.msra.mxu0 %v4251
  %5709 = vmatpush.bf16.msra.mxu0 %v4250
  %5710 = vmatmul.bf16.gmra.mxu0 %v1382
  %v5711 = vpop.f32.mrf.mxu0
  %v5712 = vadd.f32 %v5699, %v5711
  %v5713 = vpop.f32.mrf.mxu0
  %5714 = vdwg.mxu0
  %5715 = vmatpush.bf16.msra.mxu0 %v4265
  %5716 = vmatpush.bf16.msra.mxu0 %v4264
  %5717 = vmatpush.bf16.msra.mxu0 %v4263
  %5718 = vmatpush.bf16.msra.mxu0 %v4262
  %5719 = vmatpush.bf16.msra.mxu0 %v4261
  %5720 = vmatpush.bf16.msra.mxu0 %v4260
  %5721 = vmatpush.bf16.msra.mxu0 %v4259
  %5722 = vmatpush.bf16.msra.mxu0 %v4258
  %5723 = vmatmul.bf16.gmra.mxu0 %v1383
  %v5724 = vpop.f32.mrf.mxu0
  %v5725 = vadd.f32 %v5712, %v5724
  %v5726 = vpop.f32.mrf.mxu0
  %5727 = vdwg.mxu0
  %5728 = vmatpush.bf16.msra.mxu0 %v4273
  %5729 = vmatpush.bf16.msra.mxu0 %v4272
  %5730 = vmatpush.bf16.msra.mxu0 %v4271
  %5731 = vmatpush.bf16.msra.mxu0 %v4270
  %5732 = vmatpush.bf16.msra.mxu0 %v4269
  %5733 = vmatpush.bf16.msra.mxu0 %v4268
  %5734 = vmatpush.bf16.msra.mxu0 %v4267
  %5735 = vmatpush.bf16.msra.mxu0 %v4266
  %5736 = vmatmul.bf16.gmra.mxu0 %v1384
  %v5737 = vpop.f32.mrf.mxu0
  %v5738 = vadd.f32 %v5725, %v5737
  %v5739 = vpop.f32.mrf.mxu0
  %5740 = vdwg.mxu0
  %5741 = vmatpush.bf16.msra.mxu0 %v4281
  %5742 = vmatpush.bf16.msra.mxu0 %v4280
  %5743 = vmatpush.bf16.msra.mxu0 %v4279
  %5744 = vmatpush.bf16.msra.mxu0 %v4278
  %5745 = vmatpush.bf16.msra.mxu0 %v4277
  %5746 = vmatpush.bf16.msra.mxu0 %v4276
  %5747 = vmatpush.bf16.msra.mxu0 %v4275
  %5748 = vmatpush.bf16.msra.mxu0 %v4274
  %5749 = vmatmul.bf16.gmra.mxu0 %v1385
  %v5750 = vpop.f32.mrf.mxu0
  %v5751 = vadd.f32 %v5738, %v5750
  %v5752 = vpop.f32.mrf.mxu0
  %5753 = vdwg.mxu0
  %5754 = vmatpush.bf16.msra.mxu0 %v4289
  %5755 = vmatpush.bf16.msra.mxu0 %v4288
  %5756 = vmatpush.bf16.msra.mxu0 %v4287
  %5757 = vmatpush.bf16.msra.mxu0 %v4286
  %5758 = vmatpush.bf16.msra.mxu0 %v4285
  %5759 = vmatpush.bf16.msra.mxu0 %v4284
  %5760 = vmatpush.bf16.msra.mxu0 %v4283
  %5761 = vmatpush.bf16.msra.mxu0 %v4282
  %5762 = vmatmul.bf16.gmra.mxu0 %v1386
  %v5763 = vpop.f32.mrf.mxu0
  %v5764 = vadd.f32 %v5751, %v5763
  %v5765 = vpop.f32.mrf.mxu0
  %5766 = vdwg.mxu0
  %5767 = vmatpush.bf16.msra.mxu0 %v4297
  %5768 = vmatpush.bf16.msra.mxu0 %v4296
  %5769 = vmatpush.bf16.msra.mxu0 %v4295
  %5770 = vmatpush.bf16.msra.mxu0 %v4294
  %5771 = vmatpush.bf16.msra.mxu0 %v4293
  %5772 = vmatpush.bf16.msra.mxu0 %v4292
  %5773 = vmatpush.bf16.msra.mxu0 %v4291
  %5774 = vmatpush.bf16.msra.mxu0 %v4290
  %5775 = vmatmul.bf16.gmra.mxu0 %v1387
  %v5776 = vpop.f32.mrf.mxu0
  %v5777 = vadd.f32 %v5764, %v5776
  %v5778 = vpop.f32.mrf.mxu0
  %5779 = vdwg.mxu0
  %5780 = vmatpush.bf16.msra.mxu0 %v4305
  %5781 = vmatpush.bf16.msra.mxu0 %v4304
  %5782 = vmatpush.bf16.msra.mxu0 %v4303
  %5783 = vmatpush.bf16.msra.mxu0 %v4302
  %5784 = vmatpush.bf16.msra.mxu0 %v4301
  %5785 = vmatpush.bf16.msra.mxu0 %v4300
  %5786 = vmatpush.bf16.msra.mxu0 %v4299
  %5787 = vmatpush.bf16.msra.mxu0 %v4298
  %5788 = vmatmul.bf16.gmra.mxu0 %v1388
  %v5789 = vpop.f32.mrf.mxu0
  %v5790 = vadd.f32 %v5777, %v5789
  %v5791 = vpop.f32.mrf.mxu0
  %5792 = vdwg.mxu0
  %5793 = vmatpush.bf16.msra.mxu0 %v4313
  %5794 = vmatpush.bf16.msra.mxu0 %v4312
  %5795 = vmatpush.bf16.msra.mxu0 %v4311
  %5796 = vmatpush.bf16.msra.mxu0 %v4310
  %5797 = vmatpush.bf16.msra.mxu0 %v4309
  %5798 = vmatpush.bf16.msra.mxu0 %v4308
  %5799 = vmatpush.bf16.msra.mxu0 %v4307
  %5800 = vmatpush.bf16.msra.mxu0 %v4306
  %5801 = vmatmul.bf16.gmra.mxu0 %v1389
  %v5802 = vpop.f32.mrf.mxu0
  %v5803 = vadd.f32 %v5790, %v5802
  %v5804 = vpop.f32.mrf.mxu0
  %5805 = vdwg.mxu0
  %5806 = vmatpush.bf16.msra.mxu0 %v4321
  %5807 = vmatpush.bf16.msra.mxu0 %v4320
  %5808 = vmatpush.bf16.msra.mxu0 %v4319
  %5809 = vmatpush.bf16.msra.mxu0 %v4318
  %5810 = vmatpush.bf16.msra.mxu0 %v4317
  %5811 = vmatpush.bf16.msra.mxu0 %v4316
  %5812 = vmatpush.bf16.msra.mxu0 %v4315
  %5813 = vmatpush.bf16.msra.mxu0 %v4314
  %5814 = vmatmul.bf16.gmra.mxu0 %v1390
  %v5815 = vpop.f32.mrf.mxu0
  %v5816 = vadd.f32 %v5803, %v5815
  %v5817 = vpop.f32.mrf.mxu0
  %5818 = vdwg.mxu0
  %5819 = vmatpush.bf16.msra.mxu0 %v4329
  %5820 = vmatpush.bf16.msra.mxu0 %v4328
  %5821 = vmatpush.bf16.msra.mxu0 %v4327
  %5822 = vmatpush.bf16.msra.mxu0 %v4326
  %5823 = vmatpush.bf16.msra.mxu0 %v4325
  %5824 = vmatpush.bf16.msra.mxu0 %v4324
  %5825 = vmatpush.bf16.msra.mxu0 %v4323
  %5826 = vmatpush.bf16.msra.mxu0 %v4322
  %5827 = vmatmul.bf16.gmra.mxu0 %v1391
  %v5828 = vpop.f32.mrf.mxu0
  %v5829 = vadd.f32 %v5816, %v5828
  %v5830 = vpop.f32.mrf.mxu0
  %5831 = vdwg.mxu0
  %5832 = vmatpush.bf16.msra.mxu0 %v4337
  %5833 = vmatpush.bf16.msra.mxu0 %v4336
  %5834 = vmatpush.bf16.msra.mxu0 %v4335
  %5835 = vmatpush.bf16.msra.mxu0 %v4334
  %5836 = vmatpush.bf16.msra.mxu0 %v4333
  %5837 = vmatpush.bf16.msra.mxu0 %v4332
  %5838 = vmatpush.bf16.msra.mxu0 %v4331
  %5839 = vmatpush.bf16.msra.mxu0 %v4330
  %5840 = vmatmul.bf16.gmra.mxu0 %v1392
  %v5841 = vpop.f32.mrf.mxu0
  %v5842 = vadd.f32 %v5829, %v5841
  %v5843 = vpop.f32.mrf.mxu0
  %5844 = vdwg.mxu0
  %5845 = vmatpush.bf16.msra.mxu0 %v4345
  %5846 = vmatpush.bf16.msra.mxu0 %v4344
  %5847 = vmatpush.bf16.msra.mxu0 %v4343
  %5848 = vmatpush.bf16.msra.mxu0 %v4342
  %5849 = vmatpush.bf16.msra.mxu0 %v4341
  %5850 = vmatpush.bf16.msra.mxu0 %v4340
  %5851 = vmatpush.bf16.msra.mxu0 %v4339
  %5852 = vmatpush.bf16.msra.mxu0 %v4338
  %5853 = vmatmul.bf16.gmra.mxu0 %v1393
  %v5854 = vpop.f32.mrf.mxu0
  %v5855 = vadd.f32 %v5842, %v5854
  %v5856 = vpop.f32.mrf.mxu0
  %5857 = vdwg.mxu0
  %v5858 = vadd.f32 %v25, %v5855
  %5859 = vst [vmem:[#allocation2] sm:$0xff] %v5858
  // Predicated region
  $region26: #{model_a_forward.5} parent=0 // pred_check
    %p5860 = pneg %p20
  $region27: #{model_a_forward.5} parent=0 // pred_check_branch
    %5862 = sbr.rel (%p5860) target = $region29
  $region28: #{model_a_forward.5} parent=0 // pred_region
    %v5863 = vld [vmem:[#allocation2] sm:$0xff]
    %v5864 = vld [vmem:[%s2] sm:$0x1]
    %v5866 = vperm.slane %v5864, 0
    %v5868 = vadd.f32 %v5863, %v5866
    %v5869 = vmax.f32 %v5868, 0.0
    %v5870 = vpack.c.bf16 %v5869, %v5869
    %v5871 = vld [vmem:[%s3] sm:$0xf]
    %v5872 = vld [vmem:[%s3 + $0x4] sm:$0xf]
    %v5873 = vld [vmem:[%s3 + $0x8] sm:$0xf]
    %v5874 = vld [vmem:[%s3 + $0xc] sm:$0xf]
    %v5875 = vld [vmem:[%s3 + $0x10] sm:$0xf]
    %v5876 = vld [vmem:[%s3 + $0x14] sm:$0xf]
    %v5877 = vld [vmem:[%s3 + $0x18] sm:$0xf]
    %v5878 = vld [vmem:[%s3 + $0x1c] sm:$0xf]
    %v5879 = vld [vmem:[%s3 + $0x20] sm:$0xf]
    %v5880 = vld [vmem:[%s3 + $0x24] sm:$0xf]
    %v5881 = vld [vmem:[%s3 + $0x28] sm:$0xf]
    %v5882 = vld [vmem:[%s3 + $0x2c] sm:$0xf]
    %v5883 = vld [vmem:[%s3 + $0x30] sm:$0xf]
    %v5884 = vld [vmem:[%s3 + $0x34] sm:$0xf]
    %v5885 = vld [vmem:[%s3 + $0x38] sm:$0xf]
    %v5886 = vld [vmem:[%s3 + $0x3c] sm:$0xf]
    %v5887 = vld [vmem:[%s4] sm:$0x1]
    %v5889 = vperm.slane %v5887, 0
    %v5907 = vunpack.c.l.b16 %v5871
    %v5908 = vunpack.c.l.b16 %v5872
    %v5909 = vunpack.c.l.b16 %v5873
    %v5910 = vunpack.c.l.b16 %v5874
    %v5911 = vunpack.c.l.b16 %v5875
    %v5912 = vunpack.c.l.b16 %v5876
    %v5913 = vunpack.c.l.b16 %v5877
    %v5914 = vunpack.c.l.b16 %v5878
    %v5915 = vunpack.c.l.b16 %v5879
    %v5916 = vunpack.c.l.b16 %v5880
    %v5917 = vunpack.c.l.b16 %v5881
    %v5918 = vunpack.c.l.b16 %v5882
    %v5919 = vunpack.c.l.b16 %v5883
    %v5920 = vunpack.c.l.b16 %v5884
    %v5921 = vunpack.c.l.b16 %v5885
    %v5922 = vunpack.c.l.b16 %v5886
    %v5923 = vpack.c.b16 %v5908, %v5907
    %v5924 = vpack.c.b16 %v5910, %v5909
    %v5925 = vpack.c.b16 %v5912, %v5911
    %v5926 = vpack.c.b16 %v5914, %v5913
    %v5927 = vpack.c.b16 %v5916, %v5915
    %v5928 = vpack.c.b16 %v5918, %v5917
    %v5929 = vpack.c.b16 %v5920, %v5919
    %v5930 = vpack.c.b16 %v5922, %v5921
    %5939 = vmatpush.bf16.msra.mxu0 %v5930
    %5940 = vmatpush.bf16.msra.mxu0 %v5929
    %5941 = vmatpush.bf16.msra.mxu0 %v5928
    %5942 = vmatpush.bf16.msra.mxu0 %v5927
    %5943 = vmatpush.bf16.msra.mxu0 %v5926
    %5944 = vmatpush.bf16.msra.mxu0 %v5925
    %5945 = vmatpush.bf16.msra.mxu0 %v5924
    %5946 = vmatpush.bf16.msra.mxu0 %v5923
    %5947 = vmatmul.bf16.gmra.mxu0 %v5870
    %v5948 = vpop.f32.mrf.mxu0
    %v5949 = vadd.f32 %v5889, %v5948
    %v5950 = vpop.f32.mrf.mxu0
    %5951 = vdwg.mxu0
    %v5952 = vlaneseq
    %v5953 = vand.u32 %v5952, 127
    %vm5954 = vcmp.lt.s32.totalorder %v5953, 10
    %v5955 = vsel %vm5954, %v5949, -1e+30
    %5956 = vmax.xlane.f32.xlu0 %v5955
    %v5957 = vpop.xlane.xlu0 %5956
    %v5958 = vsub.f32 %v5955, %v5957
    %v5959 = vmul.f32 %v5958, 1.442695
    %v5960 = vpow.pop %v5959
    %5961 = vadd.xlane.f32.xlu0 %v5960
    %v5962 = vpop.xlane.xlu0 %5961
    %v5963 = vlog2.pop %v5962
    %v5964 = vmul.f32 %v5963, 0.6931472
    %v5965 = vsub.f32 %v5958, %v5964
    %5966 = vst [vmem:[%s5] sm:$0xff] %v5965
  $region29: #{model_a_forward.5} parent=0 // pred_fallthru
    _
  // Predicated region
  $region30: #{model_a_forward.5} parent=0 // pred_check
    _
  $region31: #{model_a_forward.5} parent=0 // pred_check_branch
    %5968 = sbr.rel (0) target = $region33
  $region32: #{model_a_forward.5} parent=0 // pred_region
    _
  $region33: #{model_a_forward.5} parent=0 // pred_fallthru
    _
  // Predicated region
  $region34: #{model_a_forward.5} parent=0 // pred_check
    _
  $region35: #{model_a_forward.5} parent=0 // pred_check_branch
    %5970 = sbr.rel (0) target = $region37
  $region36: #{model_a_forward.5} parent=0 // pred_region
    _
  $region37: #{model_a_forward.5} parent=0 // pred_fallthru
    _

</llo_original>
